<compile_context>
chip_gen: v6e
topology: v6e:2x2x1
jax: 0.10.0
libtpu: 0.0.40
codegen_flags: <defaults>
</compile_context>

<pallas_src>
import jax
import jax.numpy as jnp
import numpy as np
from jax.experimental import pallas as pl
from jax.experimental.pallas import tpu as pltpu

# ---- static model constants --------------------------------------------------
SEQ_LEN  = 101
C_IN     = 4
C1_OUT   = 16
K1       = 24
PAD1     = 23
PAD_VAL  = 0.25
PADDED_L = SEQ_LEN + 2 * PAD1              # 147
CONV_LEN = PADDED_L - K1 + 1               # 124
POOL_K   = 21
POOL_PAD = 1
POOL_OUT = (CONV_LEN + 2 * POOL_PAD - POOL_K) // POOL_K + 1   # 6 (== conv_2 in_channels)
assert POOL_OUT == 6

# ---- kernel layout constants --------------------------------------------------
TILE_B   = 128                 # samples per grid step == lane width everywhere
K_REAL   = PADDED_L * C_IN     # 588 real contraction taps (flattened padded input, k = pos*4+c)
BIAS_COL = K_REAL              # 588: constant-1.0 input lane <-> conv_1 bias column
K_TOT    = 640                 # contraction padded to a multiple of 128
M_REAL   = CONV_LEN * C1_OUT   # 1984 matmul rows, row index = l*16 + o (L-major, channel-minor)
M_ROWS   = 2048                # rows padded (rows >= 1984 are zero and never pooled)
ROW_TRICK = K_REAL + C_IN      # 592: row length for the banded-matrix flatten trick


def _pool_windows():
    # MaxPool1d pads with -inf, so each output is the max over the *real*
    # elements intersecting the window.
    wins = []
    for j in range(POOL_OUT):
        s = j * POOL_K - POOL_PAD
        e = min(s + POOL_K, CONV_LEN)
        s = max(s, 0)
        wins.append((s, e - s))
    return tuple(wins)


POOL_WINDOWS = _pool_windows()   # ((0,20),(20,21),(41,21),(62,21),(83,21),(104,20))


# ---- Pallas kernel (one grid step per TILE_B samples) -------------------------
def cdnn_kernel(xT_ref, w_ref, w3_ref, sp_ref, out_ref):
    # xT_ref : (K_TOT, TILE_B) bf16   compact padded input, transposed: row k, lane = sample.
    #                                 rows 0..587 = xpad[b, c, pos] (k = pos*4+c), row 588 = 1.0.
    # w_ref  : (M_ROWS, K_TOT) bf16   banded conv_1 matrix; row l*16+o holds w1[o,:, :] at
    #                                 column offset 4*l, col 588 = b1[o]; rows >= 1984 are 0.
    # w3_ref : (C1_OUT, TILE_B) f32   dense (Linear) weight, pre-broadcast along lanes.
    # sp_ref : (8,) f32 in SMEM       [dense bias b3, w2_0..w2_5, 0]
    # out_ref: (1, 1, TILE_B) f32     lane-dense sigmoid outputs for this tile.

    # Conv1d(4->16, k=24) + bias as a single MXU matmul (bf16 in, f32 accumulate).
    # Result layout: h[l*16 + o, b]  -> conv length on sublanes, batch on lanes.
    h = jnp.dot(w_ref[...], xT_ref[...], preferred_element_type=jnp.float32)  # (M_ROWS, TILE_B)

    # ReLU + MaxPool1d(21, pad=1) fused with Conv1d(6->1, k=1, bias=False):
    #   r[o, b] = sum_j w2[j] * max_{l in window_j} relu(h[l*16+o, b]).
    # Windows are clipped to real elements (equivalent to -inf pool padding), and
    # relu(max(.)) == max(relu(.)) since ReLU is monotone.  Each window is an
    # 8-aligned sublane slab; the max runs over the leading axis (pure VPU maxima).
    r = jnp.zeros((C1_OUT, TILE_B), jnp.float32)
    for j, (s, ln) in enumerate(POOL_WINDOWS):
        slab = h[C1_OUT * s:C1_OUT * (s + ln), :].reshape(ln, C1_OUT, TILE_B)
        m = jnp.maximum(jnp.max(slab, axis=0), 0.0)          # (C1_OUT, TILE_B)
        r = r + sp_ref[1 + j] * m
    r = jnp.maximum(r, 0.0)                                  # ReLU after conv_2

    # TODO(synk): nn.Dropout is identity in eval mode; training-mode dropout not implemented.
    # Linear(16 -> 1) + Sigmoid, lane-dense over the batch.
    logit = jnp.sum(r * w3_ref[...], axis=0, keepdims=True) + sp_ref[0]   # (1, TILE_B)
    out_ref[0] = jax.nn.sigmoid(logit)


# ---- parameter packing (O(1) in batch; can be hoisted/cached by the caller) ---
def cdnn_prepare(w1, b1, w2, w3, b3):
    """Pack module params into kernel operands: banded conv matrix + small params."""
    # w1_flat[o, k*4 + c] = w1[o, c, k]
    w1f = jnp.transpose(w1.astype(jnp.float32), (0, 2, 1)).reshape(C1_OUT, K1 * C_IN)

    # Banded (Toeplitz) matrix via the pad + flatten-truncate trick (no scatter):
    #   band[o, l, pos*4+c] = w1[o, c, pos-l] for 0 <= pos-l < 24, else 0.
    c = jnp.broadcast_to(w1f[:, None, :], (C1_OUT, CONV_LEN, K1 * C_IN))
    c = jnp.pad(c, ((0, 0), (0, 0), (0, ROW_TRICK - K1 * C_IN)))          # (16, 124, 592)
    band = c.reshape(C1_OUT, CONV_LEN * ROW_TRICK)[:, :CONV_LEN * K_REAL]
    band = band.reshape(C1_OUT, CONV_LEN, K_REAL)
    band = jnp.swapaxes(band, 0, 1).reshape(M_REAL, K_REAL)               # row = l*16 + o

    wb = jnp.zeros((M_ROWS, K_TOT), jnp.float32)
    wb = wb.at[:M_REAL, :K_REAL].set(band)
    wb = wb.at[:M_REAL, BIAS_COL].set(jnp.tile(b1.astype(jnp.float32), CONV_LEN))
    wbt = wb.astype(jnp.bfloat16)                                         # (2048, 640) bf16

    w3b = jnp.tile(w3.reshape(C1_OUT, 1).astype(jnp.float32), (1, TILE_B))  # (16, TILE_B)

    sparams = jnp.zeros((8,), jnp.float32)
    sparams = sparams.at[0].set(b3.reshape(()).astype(jnp.float32))
    sparams = sparams.at[1:1 + POOL_OUT].set(w2.reshape(POOL_OUT).astype(jnp.float32))
    return wbt, w3b, sparams


# ---- forward ------------------------------------------------------------------
def cdnn_apply(x, wbt, w3b, sparams):
    """x: (N, 4, 101) NCL like PyTorch. Returns (N, 1) sigmoid outputs."""
    N = x.shape[0]
    n_tiles = pl.cdiv(N, TILE_B)
    n_pad = n_tiles * TILE_B

    # ConstantPad1d(23, 0.25), channels-last flatten (k = pos*4+c), bias lane, transpose.
    # All of this touches only the compact ~2.4 KB/sample representation.
    xp = jnp.pad(x.astype(jnp.float32), ((0, 0), (0, 0), (PAD1, PAD1)),
                 constant_values=PAD_VAL)                                  # (N, 4, 147)
    xf = jnp.transpose(xp, (0, 2, 1)).reshape(N, K_REAL)                   # (N, 588)
    xf = jnp.concatenate([xf, jnp.ones((N, 1), jnp.float32)], axis=1)      # bias lane -> (N, 589)
    xf = jnp.pad(xf, ((0, n_pad - N), (0, K_TOT - (K_REAL + 1))))          # (n_pad, 640)
    xT = jnp.transpose(xf).astype(jnp.bfloat16)                            # (640, n_pad)

    out = pl.pallas_call(
        cdnn_kernel,
        out_shape=jax.ShapeDtypeStruct((n_tiles, 1, TILE_B), jnp.float32),
        grid=(n_tiles,),
        in_specs=[
            pl.BlockSpec((K_TOT, TILE_B), lambda n: (0, n)),      # per-tile batch slab
            pl.BlockSpec((M_ROWS, K_TOT), lambda n: (0, 0)),      # constant block: loaded once
            pl.BlockSpec((C1_OUT, TILE_B), lambda n: (0, 0)),     # constant block
            pl.BlockSpec(memory_space=pltpu.MemorySpace.SMEM),
        ],
        out_specs=pl.BlockSpec((1, 1, TILE_B), lambda n: (n, 0, 0)),
        compiler_params=pltpu.CompilerParams(
            dimension_semantics=("parallel",),
            vmem_limit_bytes=32 * 1024 * 1024),
    )(xT, wbt, w3b, sparams)

    # Lane-dense (n_tiles, 1, TILE_B) -> (N, 1); drop padded samples.
    return out.reshape(n_pad, 1)[:N]


@jax.jit
def cdnn_forward(x, w1, b1, w2, w3, b3):
    return cdnn_apply(x, *cdnn_prepare(w1, b1, w2, w3, b3))


# ---- pure-JAX reference for correctness check --------------------------------
def cdnn_reference(x, w1, b1, w2, w3, b3):
    xp = jnp.pad(x, ((0, 0), (0, 0), (PAD1, PAD1)), constant_values=PAD_VAL)
    h = jax.lax.conv_general_dilated(
        xp, w1, window_strides=(1,), padding="VALID",
        dimension_numbers=("NCH", "OIH", "NCH"))              # (N, 16, 124)
    h = jax.nn.relu(h + b1[None, :, None])
    hp = jnp.pad(h, ((0, 0), (0, 0), (POOL_PAD, POOL_PAD)),
                 constant_values=-jnp.inf)                    # (N, 16, 126)
    p = hp.reshape(h.shape[0], C1_OUT, POOL_OUT, POOL_K).max(axis=-1)   # (N, 16, 6)
    r = jax.nn.relu(jnp.einsum("ncj,j->nc", p, w2))           # (N, 16)
    return jax.nn.sigmoid(r @ w3.reshape(1, C1_OUT).T + b3.reshape(1, 1))


if __name__ == "__main__":
    key = jax.random.PRNGKey(0)
    ks = jax.random.split(key, 7)

    bnd1 = 1.0 / np.sqrt(C_IN * K1)
    w1 = jax.random.uniform(ks[0], (C1_OUT, C_IN, K1), jnp.float32, -bnd1, bnd1)
    b1 = jax.random.uniform(ks[1], (C1_OUT,), jnp.float32, -bnd1, bnd1)
    bnd2 = 1.0 / np.sqrt(POOL_OUT)
    w2 = jax.random.uniform(ks[2], (POOL_OUT,), jnp.float32, -bnd2, bnd2)  # conv_2 (1,6,1) flat
    bnd3 = 1.0 / np.sqrt(C1_OUT)
    w3 = jax.random.uniform(ks[3], (1, C1_OUT), jnp.float32, -bnd3, bnd3)
    b3 = jax.random.uniform(ks[4], (1,), jnp.float32, -bnd3, bnd3)

    # Small batch (single tile).
    x = jax.random.normal(ks[5], (2, C_IN, SEQ_LEN), jnp.float32)       # (N=2, 4, 101)
    out = jax.block_until_ready(cdnn_forward(x, w1, b1, w2, w3, b3))
    ref = jax.block_until_ready(cdnn_reference(x, w1, b1, w2, w3, b3))
    assert out.shape == (2, 1), out.shape
    # bf16 matmul operands (f32 accumulate) -> loosened tolerance vs. the f32 reference.
    np.testing.assert_allclose(np.asarray(out), np.asarray(ref), rtol=2e-2, atol=2e-2)

    # Multi-tile + ragged batch (exercises grid iteration and batch padding).
    x2 = jax.random.normal(ks[6], (259, C_IN, SEQ_LEN), jnp.float32)
    out2 = jax.block_until_ready(cdnn_forward(x2, w1, b1, w2, w3, b3))
    ref2 = jax.block_until_ready(cdnn_reference(x2, w1, b1, w2, w3, b3))
    assert out2.shape == (259, 1), out2.shape
    np.testing.assert_allclose(np.asarray(out2), np.asarray(ref2), rtol=2e-2, atol=2e-2)

    print("KERNEL_OK")
</pallas_src>

<mosaic_0001>
module attributes {stable_mosaic.version = 11 : i64} {
  func.func @cdnn_kernel(%arg0: i32, %arg1: memref<640x128xbf16, #tpu.memory_space<vmem>>, %arg2: memref<2048x640xbf16, #tpu.memory_space<vmem>>, %arg3: memref<16x128xf32, #tpu.memory_space<vmem>>, %arg4: memref<8xf32, #tpu.memory_space<smem>>, %arg5: memref<1x1x128xf32, #tpu.memory_space<vmem>>) attributes {dimension_semantics = [#tpu.dimension_semantics<parallel>], iteration_bounds = array<i64: 1>, scalar_prefetch = 0 : i64, scratch_operands = 0 : i64, tpu.core_type = #tpu.core_type<tc>, window_params = [{transform_indices = @transform_0, window_bounds = array<i64: 640, 128>}, {pipeline_mode = #tpu.pipeline_mode<synchronous>, transform_indices = @transform_1, window_bounds = array<i64: 2048, 640>}, {pipeline_mode = #tpu.pipeline_mode<synchronous>, transform_indices = @transform_2, window_bounds = array<i64: 16, 128>}, {transform_indices = @transform_3, window_bounds = array<i64: 8>}, {transform_indices = @transform_4, window_bounds = array<i64: 1, 1, 128>}]} {
    %c0 = arith.constant 0 : index
    %c0_0 = arith.constant 0 : index
    %0 = vector.load %arg2[%c0, %c0_0] : memref<2048x640xbf16, #tpu.memory_space<vmem>>, vector<2048x640xbf16>
    %c0_1 = arith.constant 0 : index
    %c0_2 = arith.constant 0 : index
    %1 = vector.load %arg1[%c0_1, %c0_2] : memref<640x128xbf16, #tpu.memory_space<vmem>>, vector<640x128xbf16>
    %cst = arith.constant dense<0.000000e+00> : vector<2048x128xf32>
    %2 = tpu.matmul %0, %1, %cst {dimension_numbers = #tpu.dot_dimension_numbers<[1], [0], [0], [1], [0, 0, 1, 1], [], []>} : vector<2048x640xbf16>, vector<640x128xbf16>, vector<2048x128xf32> -> vector<2048x128xf32>
    %cst_3 = arith.constant 0.000000e+00 : f32
    %3 = vector.broadcast %cst_3 : f32 to vector<16x128xf32>
    %4 = vector.extract_strided_slice %2 {offsets = [0, 0], sizes = [320, 128], strides = [1, 1]} : vector<2048x128xf32> to vector<320x128xf32>
    %5 = vector.shape_cast %4 : vector<320x128xf32> to vector<20x16x128xf32>
    %cst_4 = arith.constant dense<0xFF800000> : vector<16x128xf32>
    %6 = vector.multi_reduction <maximumf>, %5, %cst_4 [0] : vector<20x16x128xf32> to vector<16x128xf32>
    %cst_5 = arith.constant 0.000000e+00 : f32
    %7 = vector.broadcast %cst_5 : f32 to vector<16x128xf32>
    %8 = arith.maximumf %6, %7 : vector<16x128xf32>
    %c1 = arith.constant 1 : index
    %9 = memref.load %arg4[%c1] : memref<8xf32, #tpu.memory_space<smem>>
    %10 = vector.broadcast %9 : f32 to vector<16x128xf32>
    %11 = arith.mulf %10, %8 : vector<16x128xf32>
    %12 = arith.addf %3, %11 : vector<16x128xf32>
    %13 = vector.extract_strided_slice %2 {offsets = [320, 0], sizes = [336, 128], strides = [1, 1]} : vector<2048x128xf32> to vector<336x128xf32>
    %14 = vector.shape_cast %13 : vector<336x128xf32> to vector<21x16x128xf32>
    %cst_6 = arith.constant dense<0xFF800000> : vector<16x128xf32>
    %15 = vector.multi_reduction <maximumf>, %14, %cst_6 [0] : vector<21x16x128xf32> to vector<16x128xf32>
    %cst_7 = arith.constant 0.000000e+00 : f32
    %16 = vector.broadcast %cst_7 : f32 to vector<16x128xf32>
    %17 = arith.maximumf %15, %16 : vector<16x128xf32>
    %c2 = arith.constant 2 : index
    %18 = memref.load %arg4[%c2] : memref<8xf32, #tpu.memory_space<smem>>
    %19 = vector.broadcast %18 : f32 to vector<16x128xf32>
    %20 = arith.mulf %19, %17 : vector<16x128xf32>
    %21 = arith.addf %12, %20 : vector<16x128xf32>
    %22 = vector.extract_strided_slice %2 {offsets = [656, 0], sizes = [336, 128], strides = [1, 1]} : vector<2048x128xf32> to vector<336x128xf32>
    %23 = vector.shape_cast %22 : vector<336x128xf32> to vector<21x16x128xf32>
    %cst_8 = arith.constant dense<0xFF800000> : vector<16x128xf32>
    %24 = vector.multi_reduction <maximumf>, %23, %cst_8 [0] : vector<21x16x128xf32> to vector<16x128xf32>
    %cst_9 = arith.constant 0.000000e+00 : f32
    %25 = vector.broadcast %cst_9 : f32 to vector<16x128xf32>
    %26 = arith.maximumf %24, %25 : vector<16x128xf32>
    %c3 = arith.constant 3 : index
    %27 = memref.load %arg4[%c3] : memref<8xf32, #tpu.memory_space<smem>>
    %28 = vector.broadcast %27 : f32 to vector<16x128xf32>
    %29 = arith.mulf %28, %26 : vector<16x128xf32>
    %30 = arith.addf %21, %29 : vector<16x128xf32>
    %31 = vector.extract_strided_slice %2 {offsets = [992, 0], sizes = [336, 128], strides = [1, 1]} : vector<2048x128xf32> to vector<336x128xf32>
    %32 = vector.shape_cast %31 : vector<336x128xf32> to vector<21x16x128xf32>
    %cst_10 = arith.constant dense<0xFF800000> : vector<16x128xf32>
    %33 = vector.multi_reduction <maximumf>, %32, %cst_10 [0] : vector<21x16x128xf32> to vector<16x128xf32>
    %cst_11 = arith.constant 0.000000e+00 : f32
    %34 = vector.broadcast %cst_11 : f32 to vector<16x128xf32>
    %35 = arith.maximumf %33, %34 : vector<16x128xf32>
    %c4 = arith.constant 4 : index
    %36 = memref.load %arg4[%c4] : memref<8xf32, #tpu.memory_space<smem>>
    %37 = vector.broadcast %36 : f32 to vector<16x128xf32>
    %38 = arith.mulf %37, %35 : vector<16x128xf32>
    %39 = arith.addf %30, %38 : vector<16x128xf32>
    %40 = vector.extract_strided_slice %2 {offsets = [1328, 0], sizes = [336, 128], strides = [1, 1]} : vector<2048x128xf32> to vector<336x128xf32>
    %41 = vector.shape_cast %40 : vector<336x128xf32> to vector<21x16x128xf32>
    %cst_12 = arith.constant dense<0xFF800000> : vector<16x128xf32>
    %42 = vector.multi_reduction <maximumf>, %41, %cst_12 [0] : vector<21x16x128xf32> to vector<16x128xf32>
    %cst_13 = arith.constant 0.000000e+00 : f32
    %43 = vector.broadcast %cst_13 : f32 to vector<16x128xf32>
    %44 = arith.maximumf %42, %43 : vector<16x128xf32>
    %c5 = arith.constant 5 : index
    %45 = memref.load %arg4[%c5] : memref<8xf32, #tpu.memory_space<smem>>
    %46 = vector.broadcast %45 : f32 to vector<16x128xf32>
    %47 = arith.mulf %46, %44 : vector<16x128xf32>
    %48 = arith.addf %39, %47 : vector<16x128xf32>
    %49 = vector.extract_strided_slice %2 {offsets = [1664, 0], sizes = [320, 128], strides = [1, 1]} : vector<2048x128xf32> to vector<320x128xf32>
    %50 = vector.shape_cast %49 : vector<320x128xf32> to vector<20x16x128xf32>
    %cst_14 = arith.constant dense<0xFF800000> : vector<16x128xf32>
    %51 = vector.multi_reduction <maximumf>, %50, %cst_14 [0] : vector<20x16x128xf32> to vector<16x128xf32>
    %cst_15 = arith.constant 0.000000e+00 : f32
    %52 = vector.broadcast %cst_15 : f32 to vector<16x128xf32>
    %53 = arith.maximumf %51, %52 : vector<16x128xf32>
    %c6 = arith.constant 6 : index
    %54 = memref.load %arg4[%c6] : memref<8xf32, #tpu.memory_space<smem>>
    %55 = vector.broadcast %54 : f32 to vector<16x128xf32>
    %56 = arith.mulf %55, %53 : vector<16x128xf32>
    %57 = arith.addf %48, %56 : vector<16x128xf32>
    %cst_16 = arith.constant 0.000000e+00 : f32
    %58 = vector.broadcast %cst_16 : f32 to vector<16x128xf32>
    %59 = arith.maximumf %57, %58 : vector<16x128xf32>
    %c0_17 = arith.constant 0 : index
    %c0_18 = arith.constant 0 : index
    %60 = vector.load %arg3[%c0_17, %c0_18] : memref<16x128xf32, #tpu.memory_space<vmem>>, vector<16x128xf32>
    %61 = arith.mulf %59, %60 : vector<16x128xf32>
    %cst_19 = arith.constant dense<0.000000e+00> : vector<128xf32>
    %62 = vector.multi_reduction <add>, %61, %cst_19 [0] : vector<16x128xf32> to vector<128xf32>
    %63 = vector.shape_cast %62 : vector<128xf32> to vector<1x128xf32>
    %c0_20 = arith.constant 0 : index
    %64 = memref.load %arg4[%c0_20] : memref<8xf32, #tpu.memory_space<smem>>
    %65 = vector.broadcast %64 : f32 to vector<1x128xf32>
    %66 = arith.addf %63, %65 : vector<1x128xf32>
    %67 = arith.negf %66 : vector<1x128xf32>
    %68 = math.exp %67 : vector<1x128xf32>
    %cst_21 = arith.constant 1.000000e+00 : f32
    %69 = vector.broadcast %cst_21 : f32 to vector<1x128xf32>
    %70 = arith.addf %69, %68 : vector<1x128xf32>
    %71 = arith.divf %69, %70 : vector<1x128xf32>
    %c0_22 = arith.constant 0 : index
    %c0_23 = arith.constant 0 : index
    %c0_24 = arith.constant 0 : index
    %72 = vector.load %arg5[%c0_22, %c0_23, %c0_24] : memref<1x1x128xf32, #tpu.memory_space<vmem>>, vector<1x1x128xf32>
    %73 = vector.shape_cast %72 : vector<1x1x128xf32> to vector<1x128xf32>
    %74 = vector.shape_cast %71 : vector<1x128xf32> to vector<1x1x128xf32>
    tpu.vector_store %arg5[%c0_22, %c0_23, %c0_24], %74 {strides = array<i32>} : memref<1x1x128xf32, #tpu.memory_space<vmem>>, vector<1x1x128xf32>,
    return
  }
  func.func @transform_0(%arg0: i32) -> (i32, i32) {
    %c0_i32 = arith.constant 0 : i32
    %c0_i32_0 = arith.constant 0 : i32
    return %c0_i32, %arg0 : i32, i32
  }
  func.func @transform_1(%arg0: i32) -> (i32, i32) {
    %c0_i32 = arith.constant 0 : i32
    %c0_i32_0 = arith.constant 0 : i32
    %c0_i32_1 = arith.constant 0 : i32
    return %c0_i32, %c0_i32_0 : i32, i32
  }
  func.func @transform_2(%arg0: i32) -> (i32, i32) {
    %c0_i32 = arith.constant 0 : i32
    %c0_i32_0 = arith.constant 0 : i32
    %c0_i32_1 = arith.constant 0 : i32
    return %c0_i32, %c0_i32_0 : i32, i32
  }
  func.func @transform_3(%arg0: i32) -> i32 {
    %c0_i32 = arith.constant 0 : i32
    %c0_i32_0 = arith.constant 0 : i32
    return %c0_i32 : i32
  }
  func.func @transform_4(%arg0: i32) -> (i32, i32, i32) {
    %c0_i32 = arith.constant 0 : i32
    %c0_i32_0 = arith.constant 0 : i32
    %c0_i32_1 = arith.constant 0 : i32
    return %arg0, %c0_i32, %c0_i32_0 : i32, i32, i32
  }
}

</mosaic_0001>

<llo_original>
// kernel: tile.12
$region0: #{tile.12}
  #allocation0 [shape = 's32[1]{0}', space=sflag, size = 0x4, scoped, tag = 'scoped memory for tile.12']
  %s0 = inlined_call_operand.vmem [shape: f32[16], index: 0, kind: input, shape index: {}]
  %s1 = inlined_call_operand.vmem [shape: bf16[124,16], index: 1, kind: output, shape index: {}]
  // Predicated region
  $region2: #{tile.12} parent=0 // pred_check
    _
  $region3: #{tile.12} parent=0 // pred_check_branch
    %3 = sbr.rel (0) target = $region5
  $region4: #{tile.12} parent=0 // pred_region
    _
  $region5: #{tile.12} parent=0 // pred_fallthru
    _
  %v4 = vld [vmem:[%s0] ss:$0 sm:$0xff]
  %v5 = vpack.c.bf16 0.0, %v4
  %6 = vst [vmem:[%s1] sm:$0xf] %v5
  %s7 = scalar_lea.vmem %s1, 4
  %v8 = vpack.c.bf16 0.0, %v4
  %9 = vst [vmem:[%s7] sm:$0xf] %v8
  %s10 = scalar_lea.vmem %s1, 8
  %v11 = vpack.c.bf16 0.0, %v4
  %12 = vst [vmem:[%s10] sm:$0xf] %v11
  %s13 = scalar_lea.vmem %s1, 12
  %v14 = vpack.c.bf16 0.0, %v4
  %15 = vst [vmem:[%s13] sm:$0xf] %v14
  %s16 = scalar_lea.vmem %s1, 16
  %v17 = vpack.c.bf16 0.0, %v4
  %18 = vst [vmem:[%s16] sm:$0xf] %v17
  %s19 = scalar_lea.vmem %s1, 20
  %v20 = vpack.c.bf16 0.0, %v4
  %21 = vst [vmem:[%s19] sm:$0xf] %v20
  %s22 = scalar_lea.vmem %s1, 24
  %v23 = vpack.c.bf16 0.0, %v4
  %24 = vst [vmem:[%s22] sm:$0xf] %v23
  %s25 = scalar_lea.vmem %s1, 28
  %v26 = vpack.c.bf16 0.0, %v4
  %27 = vst [vmem:[%s25] sm:$0xf] %v26
  %s28 = scalar_lea.vmem %s1, 32
  %v29 = vpack.c.bf16 0.0, %v4
  %30 = vst [vmem:[%s28] sm:$0xf] %v29
  %s31 = scalar_lea.vmem %s1, 36
  %v32 = vpack.c.bf16 0.0, %v4
  %33 = vst [vmem:[%s31] sm:$0xf] %v32
  %s34 = scalar_lea.vmem %s1, 40
  %v35 = vpack.c.bf16 0.0, %v4
  %36 = vst [vmem:[%s34] sm:$0xf] %v35
  %s37 = scalar_lea.vmem %s1, 44
  %v38 = vpack.c.bf16 0.0, %v4
  %39 = vst [vmem:[%s37] sm:$0xf] %v38
  %s40 = scalar_lea.vmem %s1, 48
  %v41 = vpack.c.bf16 0.0, %v4
  %42 = vst [vmem:[%s40] sm:$0xf] %v41
  %s43 = scalar_lea.vmem %s1, 52
  %v44 = vpack.c.bf16 0.0, %v4
  %45 = vst [vmem:[%s43] sm:$0xf] %v44
  %s46 = scalar_lea.vmem %s1, 56
  %v47 = vpack.c.bf16 0.0, %v4
  %48 = vst [vmem:[%s46] sm:$0xf] %v47
  %s49 = scalar_lea.vmem %s1, 60
  %v50 = vpack.c.bf16 0.0, %v4
  %51 = vst [vmem:[%s49] sm:$0xf] %v50

// kernel: cdnn_forward.1
$region0: #{cdnn_forward.1}
  #allocation0 [shape = 'u32[]', space=smem, size = 0x4, offset = 0x4, fixed_abs, tag = 'smem constant byte address 0x4 - core index']
  #allocation1 [shape = 'u32[144,128]{1,0:T(1,128)}', space=vmem, size = 0x12000, scoped, tag = 'internal scratch']
  %s0 = inlined_call_operand.vmem [shape: bf16[640,128], index: 0, kind: input, shape index: {}]
  %s1 = inlined_call_operand.vmem [shape: bf16[2048,640], index: 1, kind: input, shape index: {}]
  %s2 = inlined_call_operand.vmem [shape: f32[16,128], index: 2, kind: input, shape index: {}]
  %s3 = inlined_call_operand.vmem [shape: f32[8], index: 3, kind: input, shape index: {}]
  %s4 = inlined_call_operand.vmem [shape: f32[1,1,128], index: 4, kind: output, shape index: {}]
  %s5 = sld [smem:[#allocation0]]
  $region30: #{cdnn_forward.1} parent=0
    _
  %s7 = ssub.s32 1, %s5
  %s8 = scalar_select 0, %s7, %s5
  $region1: #{cdnn_forward.1} parent=0
    #allocation2 [shape = 'u8[512]{0}', space=smem, size = 0x200, scoped, tag = 'input window, operand 3, single buffered']
    #allocation3 [shape = 's32[1]{0}', space=sflag, size = 0x4, scoped, tag = 'scoped memory for cdnn_forward.1']
    %9 = vsyncpa [#allocation3], 0
    // Predicated region
    $region2: #{cdnn_forward.1} parent=1 // pred_check
      _
    $region3: #{cdnn_forward.1} parent=1 // pred_check_branch
      %11 = sbr.rel (0) target = $region5
    $region4: #{cdnn_forward.1} parent=1 // pred_region
      _
    $region5: #{cdnn_forward.1} parent=1 // pred_fallthru
      _
    // Predicated region
    $region6: #{cdnn_forward.1} parent=1 // pred_check
      _
    $region7: #{cdnn_forward.1} parent=1 // pred_check_branch
      %13 = sbr.rel (0) target = $region9
    $region8: #{cdnn_forward.1} parent=1 // pred_region
      _
    $region9: #{cdnn_forward.1} parent=1 // pred_fallthru
      _
    // Predicated region
    $region10: #{cdnn_forward.1} parent=1 // pred_check
      _
    $region11: #{cdnn_forward.1} parent=1 // pred_check_branch
      %15 = sbr.rel (0) target = $region13
    $region12: #{cdnn_forward.1} parent=1 // pred_region
      _
    $region13: #{cdnn_forward.1} parent=1 // pred_fallthru
      _
    // Predicated region
    $region14: #{cdnn_forward.1} parent=1 // pred_check
      _
    $region15: #{cdnn_forward.1} parent=1 // pred_check_branch
      %17 = sbr.rel (0) target = $region17
    $region16: #{cdnn_forward.1} parent=1 // pred_region
      %s19 = ssub.s32 16, 16
      %20 = vsyncadd [#allocation3], %s19
      %s22 = sshll.u32 %s3, 4
      %s23 = int_to_ptr.vmem [resolvable:$true] %s22
      %25 = dma.vmem_to_smem %s23, 16, [#allocation2], [#allocation3]
    $region17: #{cdnn_forward.1} parent=1 // pred_fallthru
      _
    // Predicated region
    $region18: #{cdnn_forward.1} parent=1 // pred_check
      _
    $region19: #{cdnn_forward.1} parent=1 // pred_check_branch
      %27 = sbr.rel (0) target = $region21
    $region20: #{cdnn_forward.1} parent=1 // pred_region
      %28 = dma.done [#allocation3], 16
    $region21: #{cdnn_forward.1} parent=1 // pred_fallthru
      _
    %29 = sfence
    %v31 = vld [vmem:[%s1] sm:$0xff]
    %v32 = vld [vmem:[%s1 + $0x8] sm:$0xff]
    %v33 = vld [vmem:[%s1 + $0x10] sm:$0xf]
    %v34 = vld [vmem:[%s1 + $0x14] sm:$0xff]
    %v35 = vld [vmem:[%s1 + $0x1c] sm:$0xff]
    %v36 = vld [vmem:[%s1 + $0x24] sm:$0xf]
    %v37 = vld [vmem:[%s1 + $0x28] sm:$0xff]
    %v38 = vld [vmem:[%s1 + $0x30] sm:$0xff]
    %v39 = vld [vmem:[%s1 + $0x38] sm:$0xf]
    %v40 = vld [vmem:[%s1 + $0x3c] sm:$0xff]
    %v41 = vld [vmem:[%s1 + $0x44] sm:$0xff]
    %v42 = vld [vmem:[%s1 + $0x4c] sm:$0xf]
    %v43 = vld [vmem:[%s1 + $0x50] sm:$0xff]
    %v44 = vld [vmem:[%s1 + $0x58] sm:$0xff]
    %v45 = vld [vmem:[%s1 + $0x60] sm:$0xf]
    %v46 = vld [vmem:[%s1 + $0x64] sm:$0xff]
    %v47 = vld [vmem:[%s1 + $0x6c] sm:$0xff]
    %v48 = vld [vmem:[%s1 + $0x74] sm:$0xf]
    %v49 = vld [vmem:[%s1 + $0x78] sm:$0xff]
    %v50 = vld [vmem:[%s1 + $0x80] sm:$0xff]
    %v51 = vld [vmem:[%s1 + $0x88] sm:$0xf]
    %v52 = vld [vmem:[%s1 + $0x8c] sm:$0xff]
    %v53 = vld [vmem:[%s1 + $0x94] sm:$0xff]
    %v54 = vld [vmem:[%s1 + $0x9c] sm:$0xf]
    %v55 = vld [vmem:[%s1 + $0xa0] sm:$0xff]
    %v56 = vld [vmem:[%s1 + $0xa8] sm:$0xff]
    %v57 = vld [vmem:[%s1 + $0xb0] sm:$0xf]
    %v58 = vld [vmem:[%s1 + $0xb4] sm:$0xff]
    %v59 = vld [vmem:[%s1 + $0xbc] sm:$0xff]
    %v60 = vld [vmem:[%s1 + $0xc4] sm:$0xf]
    %v61 = vld [vmem:[%s1 + $0xc8] sm:$0xff]
    %v62 = vld [vmem:[%s1 + $0xd0] sm:$0xff]
    %v63 = vld [vmem:[%s1 + $0xd8] sm:$0xf]
    %v64 = vld [vmem:[%s1 + $0xdc] sm:$0xff]
    %v65 = vld [vmem:[%s1 + $0xe4] sm:$0xff]
    %v66 = vld [vmem:[%s1 + $0xec] sm:$0xf]
    %v67 = vld [vmem:[%s1 + $0xf0] sm:$0xff]
    %v68 = vld [vmem:[%s1 + $0xf8] sm:$0xff]
    %v69 = vld [vmem:[%s1 + $0x100] sm:$0xf]
    %v70 = vld [vmem:[%s1 + $0x104] sm:$0xff]
    %v71 = vld [vmem:[%s1 + $0x10c] sm:$0xff]
    %v72 = vld [vmem:[%s1 + $0x114] sm:$0xf]
    %v73 = vld [vmem:[%s1 + $0x118] sm:$0xff]
    %v74 = vld [vmem:[%s1 + $0x120] sm:$0xff]
    %v75 = vld [vmem:[%s1 + $0x128] sm:$0xf]
    %v76 = vld [vmem:[%s1 + $0x12c] sm:$0xff]
    %v77 = vld [vmem:[%s1 + $0x134] sm:$0xff]
    %v78 = vld [vmem:[%s1 + $0x13c] sm:$0xf]
    %v79 = vld [vmem:[%s1 + $0x140] sm:$0xff]
    %v80 = vld [vmem:[%s1 + $0x148] sm:$0xff]
    %v81 = vld [vmem:[%s1 + $0x150] sm:$0xf]
    %v82 = vld [vmem:[%s1 + $0x154] sm:$0xff]
    %v83 = vld [vmem:[%s1 + $0x15c] sm:$0xff]
    %v84 = vld [vmem:[%s1 + $0x164] sm:$0xf]
    %v85 = vld [vmem:[%s1 + $0x168] sm:$0xff]
    %v86 = vld [vmem:[%s1 + $0x170] sm:$0xff]
    %v87 = vld [vmem:[%s1 + $0x178] sm:$0xf]
    %v88 = vld [vmem:[%s1 + $0x17c] sm:$0xff]
    %v89 = vld [vmem:[%s1 + $0x184] sm:$0xff]
    %v90 = vld [vmem:[%s1 + $0x18c] sm:$0xf]
    %v91 = vld [vmem:[%s1 + $0x190] sm:$0xff]
    %v92 = vld [vmem:[%s1 + $0x198] sm:$0xff]
    %v93 = vld [vmem:[%s1 + $0x1a0] sm:$0xf]
    %v94 = vld [vmem:[%s1 + $0x1a4] sm:$0xff]
    %v95 = vld [vmem:[%s1 + $0x1ac] sm:$0xff]
    %v96 = vld [vmem:[%s1 + $0x1b4] sm:$0xf]
    %v97 = vld [vmem:[%s1 + $0x1b8] sm:$0xff]
    %v98 = vld [vmem:[%s1 + $0x1c0] sm:$0xff]
    %v99 = vld [vmem:[%s1 + $0x1c8] sm:$0xf]
    %v100 = vld [vmem:[%s1 + $0x1cc] sm:$0xff]
    %v101 = vld [vmem:[%s1 + $0x1d4] sm:$0xff]
    %v102 = vld [vmem:[%s1 + $0x1dc] sm:$0xf]
    %v103 = vld [vmem:[%s1 + $0x1e0] sm:$0xff]
    %v104 = vld [vmem:[%s1 + $0x1e8] sm:$0xff]
    %v105 = vld [vmem:[%s1 + $0x1f0] sm:$0xf]
    %v106 = vld [vmem:[%s1 + $0x1f4] sm:$0xff]
    %v107 = vld [vmem:[%s1 + $0x1fc] sm:$0xff]
    %v108 = vld [vmem:[%s1 + $0x204] sm:$0xf]
    %v109 = vld [vmem:[%s1 + $0x208] sm:$0xff]
    %v110 = vld [vmem:[%s1 + $0x210] sm:$0xff]
    %v111 = vld [vmem:[%s1 + $0x218] sm:$0xf]
    %v112 = vld [vmem:[%s1 + $0x21c] sm:$0xff]
    %v113 = vld [vmem:[%s1 + $0x224] sm:$0xff]
    %v114 = vld [vmem:[%s1 + $0x22c] sm:$0xf]
    %v115 = vld [vmem:[%s1 + $0x230] sm:$0xff]
    %v116 = vld [vmem:[%s1 + $0x238] sm:$0xff]
    %v117 = vld [vmem:[%s1 + $0x240] sm:$0xf]
    %v118 = vld [vmem:[%s1 + $0x244] sm:$0xff]
    %v119 = vld [vmem:[%s1 + $0x24c] sm:$0xff]
    %v120 = vld [vmem:[%s1 + $0x254] sm:$0xf]
    %v121 = vld [vmem:[%s1 + $0x258] sm:$0xff]
    %v122 = vld [vmem:[%s1 + $0x260] sm:$0xff]
    %v123 = vld [vmem:[%s1 + $0x268] sm:$0xf]
    %v124 = vld [vmem:[%s1 + $0x26c] sm:$0xff]
    %v125 = vld [vmem:[%s1 + $0x274] sm:$0xff]
    %v126 = vld [vmem:[%s1 + $0x27c] sm:$0xf]
    %v127 = vld [vmem:[%s1 + $0x280] sm:$0xff]
    %v128 = vld [vmem:[%s1 + $0x288] sm:$0xff]
    %v129 = vld [vmem:[%s1 + $0x290] sm:$0xf]
    %v130 = vld [vmem:[%s1 + $0x294] sm:$0xff]
    %v131 = vld [vmem:[%s1 + $0x29c] sm:$0xff]
    %v132 = vld [vmem:[%s1 + $0x2a4] sm:$0xf]
    %v133 = vld [vmem:[%s1 + $0x2a8] sm:$0xff]
    %v134 = vld [vmem:[%s1 + $0x2b0] sm:$0xff]
    %v135 = vld [vmem:[%s1 + $0x2b8] sm:$0xf]
    %v136 = vld [vmem:[%s1 + $0x2bc] sm:$0xff]
    %v137 = vld [vmem:[%s1 + $0x2c4] sm:$0xff]
    %v138 = vld [vmem:[%s1 + $0x2cc] sm:$0xf]
    %v139 = vld [vmem:[%s1 + $0x2d0] sm:$0xff]
    %v140 = vld [vmem:[%s1 + $0x2d8] sm:$0xff]
    %v141 = vld [vmem:[%s1 + $0x2e0] sm:$0xf]
    %v142 = vld [vmem:[%s1 + $0x2e4] sm:$0xff]
    %v143 = vld [vmem:[%s1 + $0x2ec] sm:$0xff]
    %v144 = vld [vmem:[%s1 + $0x2f4] sm:$0xf]
    %v145 = vld [vmem:[%s1 + $0x2f8] sm:$0xff]
    %v146 = vld [vmem:[%s1 + $0x300] sm:$0xff]
    %v147 = vld [vmem:[%s1 + $0x308] sm:$0xf]
    %v148 = vld [vmem:[%s1 + $0x30c] sm:$0xff]
    %v149 = vld [vmem:[%s1 + $0x314] sm:$0xff]
    %v150 = vld [vmem:[%s1 + $0x31c] sm:$0xf]
    %v151 = vld [vmem:[%s1 + $0x320] sm:$0xff]
    %v152 = vld [vmem:[%s1 + $0x328] sm:$0xff]
    %v153 = vld [vmem:[%s1 + $0x330] sm:$0xf]
    %v154 = vld [vmem:[%s1 + $0x334] sm:$0xff]
    %v155 = vld [vmem:[%s1 + $0x33c] sm:$0xff]
    %v156 = vld [vmem:[%s1 + $0x344] sm:$0xf]
    %v157 = vld [vmem:[%s1 + $0x348] sm:$0xff]
    %v158 = vld [vmem:[%s1 + $0x350] sm:$0xff]
    %v159 = vld [vmem:[%s1 + $0x358] sm:$0xf]
    %v160 = vld [vmem:[%s1 + $0x35c] sm:$0xff]
    %v161 = vld [vmem:[%s1 + $0x364] sm:$0xff]
    %v162 = vld [vmem:[%s1 + $0x36c] sm:$0xf]
    %v163 = vld [vmem:[%s1 + $0x370] sm:$0xff]
    %v164 = vld [vmem:[%s1 + $0x378] sm:$0xff]
    %v165 = vld [vmem:[%s1 + $0x380] sm:$0xf]
    %v166 = vld [vmem:[%s1 + $0x384] sm:$0xff]
    %v167 = vld [vmem:[%s1 + $0x38c] sm:$0xff]
    %v168 = vld [vmem:[%s1 + $0x394] sm:$0xf]
    %v169 = vld [vmem:[%s1 + $0x398] sm:$0xff]
    %v170 = vld [vmem:[%s1 + $0x3a0] sm:$0xff]
    %v171 = vld [vmem:[%s1 + $0x3a8] sm:$0xf]
    %v172 = vld [vmem:[%s1 + $0x3ac] sm:$0xff]
    %v173 = vld [vmem:[%s1 + $0x3b4] sm:$0xff]
    %v174 = vld [vmem:[%s1 + $0x3bc] sm:$0xf]
    %v175 = vld [vmem:[%s1 + $0x3c0] sm:$0xff]
    %v176 = vld [vmem:[%s1 + $0x3c8] sm:$0xff]
    %v177 = vld [vmem:[%s1 + $0x3d0] sm:$0xf]
    %v178 = vld [vmem:[%s1 + $0x3d4] sm:$0xff]
    %v179 = vld [vmem:[%s1 + $0x3dc] sm:$0xff]
    %v180 = vld [vmem:[%s1 + $0x3e4] sm:$0xf]
    %v181 = vld [vmem:[%s1 + $0x3e8] sm:$0xff]
    %v182 = vld [vmem:[%s1 + $0x3f0] sm:$0xff]
    %v183 = vld [vmem:[%s1 + $0x3f8] sm:$0xf]
    %v184 = vld [vmem:[%s1 + $0x3fc] sm:$0xff]
    %v185 = vld [vmem:[%s1 + $0x404] sm:$0xff]
    %v186 = vld [vmem:[%s1 + $0x40c] sm:$0xf]
    %v187 = vld [vmem:[%s1 + $0x410] sm:$0xff]
    %v188 = vld [vmem:[%s1 + $0x418] sm:$0xff]
    %v189 = vld [vmem:[%s1 + $0x420] sm:$0xf]
    %v190 = vld [vmem:[%s1 + $0x424] sm:$0xff]
    %v191 = vld [vmem:[%s1 + $0x42c] sm:$0xff]
    %v192 = vld [vmem:[%s1 + $0x434] sm:$0xf]
    %v193 = vld [vmem:[%s1 + $0x438] sm:$0xff]
    %v194 = vld [vmem:[%s1 + $0x440] sm:$0xff]
    %v195 = vld [vmem:[%s1 + $0x448] sm:$0xf]
    %v196 = vld [vmem:[%s1 + $0x44c] sm:$0xff]
    %v197 = vld [vmem:[%s1 + $0x454] sm:$0xff]
    %v198 = vld [vmem:[%s1 + $0x45c] sm:$0xf]
    %v199 = vld [vmem:[%s1 + $0x460] sm:$0xff]
    %v200 = vld [vmem:[%s1 + $0x468] sm:$0xff]
    %v201 = vld [vmem:[%s1 + $0x470] sm:$0xf]
    %v202 = vld [vmem:[%s1 + $0x474] sm:$0xff]
    %v203 = vld [vmem:[%s1 + $0x47c] sm:$0xff]
    %v204 = vld [vmem:[%s1 + $0x484] sm:$0xf]
    %v205 = vld [vmem:[%s1 + $0x488] sm:$0xff]
    %v206 = vld [vmem:[%s1 + $0x490] sm:$0xff]
    %v207 = vld [vmem:[%s1 + $0x498] sm:$0xf]
    %v208 = vld [vmem:[%s1 + $0x49c] sm:$0xff]
    %v209 = vld [vmem:[%s1 + $0x4a4] sm:$0xff]
    %v210 = vld [vmem:[%s1 + $0x4ac] sm:$0xf]
    %v211 = vld [vmem:[%s1 + $0x4b0] sm:$0xff]
    %v212 = vld [vmem:[%s1 + $0x4b8] sm:$0xff]
    %v213 = vld [vmem:[%s1 + $0x4c0] sm:$0xf]
    %v214 = vld [vmem:[%s1 + $0x4c4] sm:$0xff]
    %v215 = vld [vmem:[%s1 + $0x4cc] sm:$0xff]
    %v216 = vld [vmem:[%s1 + $0x4d4] sm:$0xf]
    %v217 = vld [vmem:[%s1 + $0x4d8] sm:$0xff]
    %v218 = vld [vmem:[%s1 + $0x4e0] sm:$0xff]
    %v219 = vld [vmem:[%s1 + $0x4e8] sm:$0xf]
    %v220 = vld [vmem:[%s1 + $0x4ec] sm:$0xff]
    %v221 = vld [vmem:[%s1 + $0x4f4] sm:$0xff]
    %v222 = vld [vmem:[%s1 + $0x4fc] sm:$0xf]
    %v223 = vld [vmem:[%s1 + $0x500] sm:$0xff]
    %v224 = vld [vmem:[%s1 + $0x508] sm:$0xff]
    %v225 = vld [vmem:[%s1 + $0x510] sm:$0xf]
    %v226 = vld [vmem:[%s1 + $0x514] sm:$0xff]
    %v227 = vld [vmem:[%s1 + $0x51c] sm:$0xff]
    %v228 = vld [vmem:[%s1 + $0x524] sm:$0xf]
    %v229 = vld [vmem:[%s1 + $0x528] sm:$0xff]
    %v230 = vld [vmem:[%s1 + $0x530] sm:$0xff]
    %v231 = vld [vmem:[%s1 + $0x538] sm:$0xf]
    %v232 = vld [vmem:[%s1 + $0x53c] sm:$0xff]
    %v233 = vld [vmem:[%s1 + $0x544] sm:$0xff]
    %v234 = vld [vmem:[%s1 + $0x54c] sm:$0xf]
    %v235 = vld [vmem:[%s1 + $0x550] sm:$0xff]
    %v236 = vld [vmem:[%s1 + $0x558] sm:$0xff]
    %v237 = vld [vmem:[%s1 + $0x560] sm:$0xf]
    %v238 = vld [vmem:[%s1 + $0x564] sm:$0xff]
    %v239 = vld [vmem:[%s1 + $0x56c] sm:$0xff]
    %v240 = vld [vmem:[%s1 + $0x574] sm:$0xf]
    %v241 = vld [vmem:[%s1 + $0x578] sm:$0xff]
    %v242 = vld [vmem:[%s1 + $0x580] sm:$0xff]
    %v243 = vld [vmem:[%s1 + $0x588] sm:$0xf]
    %v244 = vld [vmem:[%s1 + $0x58c] sm:$0xff]
    %v245 = vld [vmem:[%s1 + $0x594] sm:$0xff]
    %v246 = vld [vmem:[%s1 + $0x59c] sm:$0xf]
    %v247 = vld [vmem:[%s1 + $0x5a0] sm:$0xff]
    %v248 = vld [vmem:[%s1 + $0x5a8] sm:$0xff]
    %v249 = vld [vmem:[%s1 + $0x5b0] sm:$0xf]
    %v250 = vld [vmem:[%s1 + $0x5b4] sm:$0xff]
    %v251 = vld [vmem:[%s1 + $0x5bc] sm:$0xff]
    %v252 = vld [vmem:[%s1 + $0x5c4] sm:$0xf]
    %v253 = vld [vmem:[%s1 + $0x5c8] sm:$0xff]
    %v254 = vld [vmem:[%s1 + $0x5d0] sm:$0xff]
    %v255 = vld [vmem:[%s1 + $0x5d8] sm:$0xf]
    %v256 = vld [vmem:[%s1 + $0x5dc] sm:$0xff]
    %v257 = vld [vmem:[%s1 + $0x5e4] sm:$0xff]
    %v258 = vld [vmem:[%s1 + $0x5ec] sm:$0xf]
    %v259 = vld [vmem:[%s1 + $0x5f0] sm:$0xff]
    %v260 = vld [vmem:[%s1 + $0x5f8] sm:$0xff]
    %v261 = vld [vmem:[%s1 + $0x600] sm:$0xf]
    %v262 = vld [vmem:[%s1 + $0x604] sm:$0xff]
    %v263 = vld [vmem:[%s1 + $0x60c] sm:$0xff]
    %v264 = vld [vmem:[%s1 + $0x614] sm:$0xf]
    %v265 = vld [vmem:[%s1 + $0x618] sm:$0xff]
    %v266 = vld [vmem:[%s1 + $0x620] sm:$0xff]
    %v267 = vld [vmem:[%s1 + $0x628] sm:$0xf]
    %v268 = vld [vmem:[%s1 + $0x62c] sm:$0xff]
    %v269 = vld [vmem:[%s1 + $0x634] sm:$0xff]
    %v270 = vld [vmem:[%s1 + $0x63c] sm:$0xf]
    %v271 = vld [vmem:[%s1 + $0x640] sm:$0xff]
    %v272 = vld [vmem:[%s1 + $0x648] sm:$0xff]
    %v273 = vld [vmem:[%s1 + $0x650] sm:$0xf]
    %v274 = vld [vmem:[%s1 + $0x654] sm:$0xff]
    %v275 = vld [vmem:[%s1 + $0x65c] sm:$0xff]
    %v276 = vld [vmem:[%s1 + $0x664] sm:$0xf]
    %v277 = vld [vmem:[%s1 + $0x668] sm:$0xff]
    %v278 = vld [vmem:[%s1 + $0x670] sm:$0xff]
    %v279 = vld [vmem:[%s1 + $0x678] sm:$0xf]
    %v280 = vld [vmem:[%s1 + $0x67c] sm:$0xff]
    %v281 = vld [vmem:[%s1 + $0x684] sm:$0xff]
    %v282 = vld [vmem:[%s1 + $0x68c] sm:$0xf]
    %v283 = vld [vmem:[%s1 + $0x690] sm:$0xff]
    %v284 = vld [vmem:[%s1 + $0x698] sm:$0xff]
    %v285 = vld [vmem:[%s1 + $0x6a0] sm:$0xf]
    %v286 = vld [vmem:[%s1 + $0x6a4] sm:$0xff]
    %v287 = vld [vmem:[%s1 + $0x6ac] sm:$0xff]
    %v288 = vld [vmem:[%s1 + $0x6b4] sm:$0xf]
    %v289 = vld [vmem:[%s1 + $0x6b8] sm:$0xff]
    %v290 = vld [vmem:[%s1 + $0x6c0] sm:$0xff]
    %v291 = vld [vmem:[%s1 + $0x6c8] sm:$0xf]
    %v292 = vld [vmem:[%s1 + $0x6cc] sm:$0xff]
    %v293 = vld [vmem:[%s1 + $0x6d4] sm:$0xff]
    %v294 = vld [vmem:[%s1 + $0x6dc] sm:$0xf]
    %v295 = vld [vmem:[%s1 + $0x6e0] sm:$0xff]
    %v296 = vld [vmem:[%s1 + $0x6e8] sm:$0xff]
    %v297 = vld [vmem:[%s1 + $0x6f0] sm:$0xf]
    %v298 = vld [vmem:[%s1 + $0x6f4] sm:$0xff]
    %v299 = vld [vmem:[%s1 + $0x6fc] sm:$0xff]
    %v300 = vld [vmem:[%s1 + $0x704] sm:$0xf]
    %v301 = vld [vmem:[%s1 + $0x708] sm:$0xff]
    %v302 = vld [vmem:[%s1 + $0x710] sm:$0xff]
    %v303 = vld [vmem:[%s1 + $0x718] sm:$0xf]
    %v304 = vld [vmem:[%s1 + $0x71c] sm:$0xff]
    %v305 = vld [vmem:[%s1 + $0x724] sm:$0xff]
    %v306 = vld [vmem:[%s1 + $0x72c] sm:$0xf]
    %v307 = vld [vmem:[%s1 + $0x730] sm:$0xff]
    %v308 = vld [vmem:[%s1 + $0x738] sm:$0xff]
    %v309 = vld [vmem:[%s1 + $0x740] sm:$0xf]
    %v310 = vld [vmem:[%s1 + $0x744] sm:$0xff]
    %v311 = vld [vmem:[%s1 + $0x74c] sm:$0xff]
    %v312 = vld [vmem:[%s1 + $0x754] sm:$0xf]
    %v313 = vld [vmem:[%s1 + $0x758] sm:$0xff]
    %v314 = vld [vmem:[%s1 + $0x760] sm:$0xff]
    %v315 = vld [vmem:[%s1 + $0x768] sm:$0xf]
    %v316 = vld [vmem:[%s1 + $0x76c] sm:$0xff]
    %v317 = vld [vmem:[%s1 + $0x774] sm:$0xff]
    %v318 = vld [vmem:[%s1 + $0x77c] sm:$0xf]
    %v319 = vld [vmem:[%s1 + $0x780] sm:$0xff]
    %v320 = vld [vmem:[%s1 + $0x788] sm:$0xff]
    %v321 = vld [vmem:[%s1 + $0x790] sm:$0xf]
    %v322 = vld [vmem:[%s1 + $0x794] sm:$0xff]
    %v323 = vld [vmem:[%s1 + $0x79c] sm:$0xff]
    %v324 = vld [vmem:[%s1 + $0x7a4] sm:$0xf]
    %v325 = vld [vmem:[%s1 + $0x7a8] sm:$0xff]
    %v326 = vld [vmem:[%s1 + $0x7b0] sm:$0xff]
    %v327 = vld [vmem:[%s1 + $0x7b8] sm:$0xf]
    %v328 = vld [vmem:[%s1 + $0x7bc] sm:$0xff]
    %v329 = vld [vmem:[%s1 + $0x7c4] sm:$0xff]
    %v330 = vld [vmem:[%s1 + $0x7cc] sm:$0xf]
    %v331 = vld [vmem:[%s1 + $0x7d0] sm:$0xff]
    %v332 = vld [vmem:[%s1 + $0x7d8] sm:$0xff]
    %v333 = vld [vmem:[%s1 + $0x7e0] sm:$0xf]
    %v334 = vld [vmem:[%s1 + $0x7e4] sm:$0xff]
    %v335 = vld [vmem:[%s1 + $0x7ec] sm:$0xff]
    %v336 = vld [vmem:[%s1 + $0x7f4] sm:$0xf]
    %v337 = vld [vmem:[%s1 + $0x7f8] sm:$0xff]
    %v338 = vld [vmem:[%s1 + $0x800] sm:$0xff]
    %v339 = vld [vmem:[%s1 + $0x808] sm:$0xf]
    %v340 = vld [vmem:[%s1 + $0x80c] sm:$0xff]
    %v341 = vld [vmem:[%s1 + $0x814] sm:$0xff]
    %v342 = vld [vmem:[%s1 + $0x81c] sm:$0xf]
    %v343 = vld [vmem:[%s1 + $0x820] sm:$0xff]
    %v344 = vld [vmem:[%s1 + $0x828] sm:$0xff]
    %v345 = vld [vmem:[%s1 + $0x830] sm:$0xf]
    %v346 = vld [vmem:[%s1 + $0x834] sm:$0xff]
    %v347 = vld [vmem:[%s1 + $0x83c] sm:$0xff]
    %v348 = vld [vmem:[%s1 + $0x844] sm:$0xf]
    %v349 = vld [vmem:[%s1 + $0x848] sm:$0xff]
    %v350 = vld [vmem:[%s1 + $0x850] sm:$0xff]
    %v351 = vld [vmem:[%s1 + $0x858] sm:$0xf]
    %v352 = vld [vmem:[%s1 + $0x85c] sm:$0xff]
    %v353 = vld [vmem:[%s1 + $0x864] sm:$0xff]
    %v354 = vld [vmem:[%s1 + $0x86c] sm:$0xf]
    %v355 = vld [vmem:[%s1 + $0x870] sm:$0xff]
    %v356 = vld [vmem:[%s1 + $0x878] sm:$0xff]
    %v357 = vld [vmem:[%s1 + $0x880] sm:$0xf]
    %v358 = vld [vmem:[%s1 + $0x884] sm:$0xff]
    %v359 = vld [vmem:[%s1 + $0x88c] sm:$0xff]
    %v360 = vld [vmem:[%s1 + $0x894] sm:$0xf]
    %v361 = vld [vmem:[%s1 + $0x898] sm:$0xff]
    %v362 = vld [vmem:[%s1 + $0x8a0] sm:$0xff]
    %v363 = vld [vmem:[%s1 + $0x8a8] sm:$0xf]
    %v364 = vld [vmem:[%s1 + $0x8ac] sm:$0xff]
    %v365 = vld [vmem:[%s1 + $0x8b4] sm:$0xff]
    %v366 = vld [vmem:[%s1 + $0x8bc] sm:$0xf]
    %v367 = vld [vmem:[%s1 + $0x8c0] sm:$0xff]
    %v368 = vld [vmem:[%s1 + $0x8c8] sm:$0xff]
    %v369 = vld [vmem:[%s1 + $0x8d0] sm:$0xf]
    %v370 = vld [vmem:[%s1 + $0x8d4] sm:$0xff]
    %v371 = vld [vmem:[%s1 + $0x8dc] sm:$0xff]
    %v372 = vld [vmem:[%s1 + $0x8e4] sm:$0xf]
    %v373 = vld [vmem:[%s1 + $0x8e8] sm:$0xff]
    %v374 = vld [vmem:[%s1 + $0x8f0] sm:$0xff]
    %v375 = vld [vmem:[%s1 + $0x8f8] sm:$0xf]
    %v376 = vld [vmem:[%s1 + $0x8fc] sm:$0xff]
    %v377 = vld [vmem:[%s1 + $0x904] sm:$0xff]
    %v378 = vld [vmem:[%s1 + $0x90c] sm:$0xf]
    %v379 = vld [vmem:[%s1 + $0x910] sm:$0xff]
    %v380 = vld [vmem:[%s1 + $0x918] sm:$0xff]
    %v381 = vld [vmem:[%s1 + $0x920] sm:$0xf]
    %v382 = vld [vmem:[%s1 + $0x924] sm:$0xff]
    %v383 = vld [vmem:[%s1 + $0x92c] sm:$0xff]
    %v384 = vld [vmem:[%s1 + $0x934] sm:$0xf]
    %v385 = vld [vmem:[%s1 + $0x938] sm:$0xff]
    %v386 = vld [vmem:[%s1 + $0x940] sm:$0xff]
    %v387 = vld [vmem:[%s1 + $0x948] sm:$0xf]
    %v388 = vld [vmem:[%s1 + $0x94c] sm:$0xff]
    %v389 = vld [vmem:[%s1 + $0x954] sm:$0xff]
    %v390 = vld [vmem:[%s1 + $0x95c] sm:$0xf]
    %v391 = vld [vmem:[%s1 + $0x960] sm:$0xff]
    %v392 = vld [vmem:[%s1 + $0x968] sm:$0xff]
    %v393 = vld [vmem:[%s1 + $0x970] sm:$0xf]
    %v394 = vld [vmem:[%s1 + $0x974] sm:$0xff]
    %v395 = vld [vmem:[%s1 + $0x97c] sm:$0xff]
    %v396 = vld [vmem:[%s1 + $0x984] sm:$0xf]
    %v397 = vld [vmem:[%s1 + $0x988] sm:$0xff]
    %v398 = vld [vmem:[%s1 + $0x990] sm:$0xff]
    %v399 = vld [vmem:[%s1 + $0x998] sm:$0xf]
    %v400 = vld [vmem:[%s1 + $0x99c] sm:$0xff]
    %v401 = vld [vmem:[%s1 + $0x9a4] sm:$0xff]
    %v402 = vld [vmem:[%s1 + $0x9ac] sm:$0xf]
    %v403 = vld [vmem:[%s1 + $0x9b0] sm:$0xff]
    %v404 = vld [vmem:[%s1 + $0x9b8] sm:$0xff]
    %v405 = vld [vmem:[%s1 + $0x9c0] sm:$0xf]
    %v406 = vld [vmem:[%s1 + $0x9c4] sm:$0xff]
    %v407 = vld [vmem:[%s1 + $0x9cc] sm:$0xff]
    %v408 = vld [vmem:[%s1 + $0x9d4] sm:$0xf]
    %v409 = vld [vmem:[%s1 + $0x9d8] sm:$0xff]
    %v410 = vld [vmem:[%s1 + $0x9e0] sm:$0xff]
    %v411 = vld [vmem:[%s1 + $0x9e8] sm:$0xf]
    %v412 = vld [vmem:[%s1 + $0x9ec] sm:$0xff]
    %v413 = vld [vmem:[%s1 + $0x9f4] sm:$0xff]
    %v414 = vld [vmem:[%s1 + $0x9fc] sm:$0xf]
    %v415 = vld [vmem:[%s1 + $0xa00] sm:$0xff]
    %v416 = vld [vmem:[%s1 + $0xa08] sm:$0xff]
    %v417 = vld [vmem:[%s1 + $0xa10] sm:$0xf]
    %v418 = vld [vmem:[%s1 + $0xa14] sm:$0xff]
    %v419 = vld [vmem:[%s1 + $0xa1c] sm:$0xff]
    %v420 = vld [vmem:[%s1 + $0xa24] sm:$0xf]
    %v421 = vld [vmem:[%s1 + $0xa28] sm:$0xff]
    %v422 = vld [vmem:[%s1 + $0xa30] sm:$0xff]
    %v423 = vld [vmem:[%s1 + $0xa38] sm:$0xf]
    %v424 = vld [vmem:[%s1 + $0xa3c] sm:$0xff]
    %v425 = vld [vmem:[%s1 + $0xa44] sm:$0xff]
    %v426 = vld [vmem:[%s1 + $0xa4c] sm:$0xf]
    %v427 = vld [vmem:[%s1 + $0xa50] sm:$0xff]
    %v428 = vld [vmem:[%s1 + $0xa58] sm:$0xff]
    %v429 = vld [vmem:[%s1 + $0xa60] sm:$0xf]
    %v430 = vld [vmem:[%s1 + $0xa64] sm:$0xff]
    %v431 = vld [vmem:[%s1 + $0xa6c] sm:$0xff]
    %v432 = vld [vmem:[%s1 + $0xa74] sm:$0xf]
    %v433 = vld [vmem:[%s1 + $0xa78] sm:$0xff]
    %v434 = vld [vmem:[%s1 + $0xa80] sm:$0xff]
    %v435 = vld [vmem:[%s1 + $0xa88] sm:$0xf]
    %v436 = vld [vmem:[%s1 + $0xa8c] sm:$0xff]
    %v437 = vld [vmem:[%s1 + $0xa94] sm:$0xff]
    %v438 = vld [vmem:[%s1 + $0xa9c] sm:$0xf]
    %v439 = vld [vmem:[%s1 + $0xaa0] sm:$0xff]
    %v440 = vld [vmem:[%s1 + $0xaa8] sm:$0xff]
    %v441 = vld [vmem:[%s1 + $0xab0] sm:$0xf]
    %v442 = vld [vmem:[%s1 + $0xab4] sm:$0xff]
    %v443 = vld [vmem:[%s1 + $0xabc] sm:$0xff]
    %v444 = vld [vmem:[%s1 + $0xac4] sm:$0xf]
    %v445 = vld [vmem:[%s1 + $0xac8] sm:$0xff]
    %v446 = vld [vmem:[%s1 + $0xad0] sm:$0xff]
    %v447 = vld [vmem:[%s1 + $0xad8] sm:$0xf]
    %v448 = vld [vmem:[%s1 + $0xadc] sm:$0xff]
    %v449 = vld [vmem:[%s1 + $0xae4] sm:$0xff]
    %v450 = vld [vmem:[%s1 + $0xaec] sm:$0xf]
    %v451 = vld [vmem:[%s1 + $0xaf0] sm:$0xff]
    %v452 = vld [vmem:[%s1 + $0xaf8] sm:$0xff]
    %v453 = vld [vmem:[%s1 + $0xb00] sm:$0xf]
    %v454 = vld [vmem:[%s1 + $0xb04] sm:$0xff]
    %v455 = vld [vmem:[%s1 + $0xb0c] sm:$0xff]
    %v456 = vld [vmem:[%s1 + $0xb14] sm:$0xf]
    %v457 = vld [vmem:[%s1 + $0xb18] sm:$0xff]
    %v458 = vld [vmem:[%s1 + $0xb20] sm:$0xff]
    %v459 = vld [vmem:[%s1 + $0xb28] sm:$0xf]
    %v460 = vld [vmem:[%s1 + $0xb2c] sm:$0xff]
    %v461 = vld [vmem:[%s1 + $0xb34] sm:$0xff]
    %v462 = vld [vmem:[%s1 + $0xb3c] sm:$0xf]
    %v463 = vld [vmem:[%s1 + $0xb40] sm:$0xff]
    %v464 = vld [vmem:[%s1 + $0xb48] sm:$0xff]
    %v465 = vld [vmem:[%s1 + $0xb50] sm:$0xf]
    %v466 = vld [vmem:[%s1 + $0xb54] sm:$0xff]
    %v467 = vld [vmem:[%s1 + $0xb5c] sm:$0xff]
    %v468 = vld [vmem:[%s1 + $0xb64] sm:$0xf]
    %v469 = vld [vmem:[%s1 + $0xb68] sm:$0xff]
    %v470 = vld [vmem:[%s1 + $0xb70] sm:$0xff]
    %v471 = vld [vmem:[%s1 + $0xb78] sm:$0xf]
    %v472 = vld [vmem:[%s1 + $0xb7c] sm:$0xff]
    %v473 = vld [vmem:[%s1 + $0xb84] sm:$0xff]
    %v474 = vld [vmem:[%s1 + $0xb8c] sm:$0xf]
    %v475 = vld [vmem:[%s1 + $0xb90] sm:$0xff]
    %v476 = vld [vmem:[%s1 + $0xb98] sm:$0xff]
    %v477 = vld [vmem:[%s1 + $0xba0] sm:$0xf]
    %v478 = vld [vmem:[%s1 + $0xba4] sm:$0xff]
    %v479 = vld [vmem:[%s1 + $0xbac] sm:$0xff]
    %v480 = vld [vmem:[%s1 + $0xbb4] sm:$0xf]
    %v481 = vld [vmem:[%s1 + $0xbb8] sm:$0xff]
    %v482 = vld [vmem:[%s1 + $0xbc0] sm:$0xff]
    %v483 = vld [vmem:[%s1 + $0xbc8] sm:$0xf]
    %v484 = vld [vmem:[%s1 + $0xbcc] sm:$0xff]
    %v485 = vld [vmem:[%s1 + $0xbd4] sm:$0xff]
    %v486 = vld [vmem:[%s1 + $0xbdc] sm:$0xf]
    %v487 = vld [vmem:[%s1 + $0xbe0] sm:$0xff]
    %v488 = vld [vmem:[%s1 + $0xbe8] sm:$0xff]
    %v489 = vld [vmem:[%s1 + $0xbf0] sm:$0xf]
    %v490 = vld [vmem:[%s1 + $0xbf4] sm:$0xff]
    %v491 = vld [vmem:[%s1 + $0xbfc] sm:$0xff]
    %v492 = vld [vmem:[%s1 + $0xc04] sm:$0xf]
    %v493 = vld [vmem:[%s1 + $0xc08] sm:$0xff]
    %v494 = vld [vmem:[%s1 + $0xc10] sm:$0xff]
    %v495 = vld [vmem:[%s1 + $0xc18] sm:$0xf]
    %v496 = vld [vmem:[%s1 + $0xc1c] sm:$0xff]
    %v497 = vld [vmem:[%s1 + $0xc24] sm:$0xff]
    %v498 = vld [vmem:[%s1 + $0xc2c] sm:$0xf]
    %v499 = vld [vmem:[%s1 + $0xc30] sm:$0xff]
    %v500 = vld [vmem:[%s1 + $0xc38] sm:$0xff]
    %v501 = vld [vmem:[%s1 + $0xc40] sm:$0xf]
    %v502 = vld [vmem:[%s1 + $0xc44] sm:$0xff]
    %v503 = vld [vmem:[%s1 + $0xc4c] sm:$0xff]
    %v504 = vld [vmem:[%s1 + $0xc54] sm:$0xf]
    %v505 = vld [vmem:[%s1 + $0xc58] sm:$0xff]
    %v506 = vld [vmem:[%s1 + $0xc60] sm:$0xff]
    %v507 = vld [vmem:[%s1 + $0xc68] sm:$0xf]
    %v508 = vld [vmem:[%s1 + $0xc6c] sm:$0xff]
    %v509 = vld [vmem:[%s1 + $0xc74] sm:$0xff]
    %v510 = vld [vmem:[%s1 + $0xc7c] sm:$0xf]
    %v511 = vld [vmem:[%s1 + $0xc80] sm:$0xff]
    %v512 = vld [vmem:[%s1 + $0xc88] sm:$0xff]
    %v513 = vld [vmem:[%s1 + $0xc90] sm:$0xf]
    %v514 = vld [vmem:[%s1 + $0xc94] sm:$0xff]
    %v515 = vld [vmem:[%s1 + $0xc9c] sm:$0xff]
    %v516 = vld [vmem:[%s1 + $0xca4] sm:$0xf]
    %v517 = vld [vmem:[%s1 + $0xca8] sm:$0xff]
    %v518 = vld [vmem:[%s1 + $0xcb0] sm:$0xff]
    %v519 = vld [vmem:[%s1 + $0xcb8] sm:$0xf]
    %v520 = vld [vmem:[%s1 + $0xcbc] sm:$0xff]
    %v521 = vld [vmem:[%s1 + $0xcc4] sm:$0xff]
    %v522 = vld [vmem:[%s1 + $0xccc] sm:$0xf]
    %v523 = vld [vmem:[%s1 + $0xcd0] sm:$0xff]
    %v524 = vld [vmem:[%s1 + $0xcd8] sm:$0xff]
    %v525 = vld [vmem:[%s1 + $0xce0] sm:$0xf]
    %v526 = vld [vmem:[%s1 + $0xce4] sm:$0xff]
    %v527 = vld [vmem:[%s1 + $0xcec] sm:$0xff]
    %v528 = vld [vmem:[%s1 + $0xcf4] sm:$0xf]
    %v529 = vld [vmem:[%s1 + $0xcf8] sm:$0xff]
    %v530 = vld [vmem:[%s1 + $0xd00] sm:$0xff]
    %v531 = vld [vmem:[%s1 + $0xd08] sm:$0xf]
    %v532 = vld [vmem:[%s1 + $0xd0c] sm:$0xff]
    %v533 = vld [vmem:[%s1 + $0xd14] sm:$0xff]
    %v534 = vld [vmem:[%s1 + $0xd1c] sm:$0xf]
    %v535 = vld [vmem:[%s1 + $0xd20] sm:$0xff]
    %v536 = vld [vmem:[%s1 + $0xd28] sm:$0xff]
    %v537 = vld [vmem:[%s1 + $0xd30] sm:$0xf]
    %v538 = vld [vmem:[%s1 + $0xd34] sm:$0xff]
    %v539 = vld [vmem:[%s1 + $0xd3c] sm:$0xff]
    %v540 = vld [vmem:[%s1 + $0xd44] sm:$0xf]
    %v541 = vld [vmem:[%s1 + $0xd48] sm:$0xff]
    %v542 = vld [vmem:[%s1 + $0xd50] sm:$0xff]
    %v543 = vld [vmem:[%s1 + $0xd58] sm:$0xf]
    %v544 = vld [vmem:[%s1 + $0xd5c] sm:$0xff]
    %v545 = vld [vmem:[%s1 + $0xd64] sm:$0xff]
    %v546 = vld [vmem:[%s1 + $0xd6c] sm:$0xf]
    %v547 = vld [vmem:[%s1 + $0xd70] sm:$0xff]
    %v548 = vld [vmem:[%s1 + $0xd78] sm:$0xff]
    %v549 = vld [vmem:[%s1 + $0xd80] sm:$0xf]
    %v550 = vld [vmem:[%s1 + $0xd84] sm:$0xff]
    %v551 = vld [vmem:[%s1 + $0xd8c] sm:$0xff]
    %v552 = vld [vmem:[%s1 + $0xd94] sm:$0xf]
    %v553 = vld [vmem:[%s1 + $0xd98] sm:$0xff]
    %v554 = vld [vmem:[%s1 + $0xda0] sm:$0xff]
    %v555 = vld [vmem:[%s1 + $0xda8] sm:$0xf]
    %v556 = vld [vmem:[%s1 + $0xdac] sm:$0xff]
    %v557 = vld [vmem:[%s1 + $0xdb4] sm:$0xff]
    %v558 = vld [vmem:[%s1 + $0xdbc] sm:$0xf]
    %v559 = vld [vmem:[%s1 + $0xdc0] sm:$0xff]
    %v560 = vld [vmem:[%s1 + $0xdc8] sm:$0xff]
    %v561 = vld [vmem:[%s1 + $0xdd0] sm:$0xf]
    %v562 = vld [vmem:[%s1 + $0xdd4] sm:$0xff]
    %v563 = vld [vmem:[%s1 + $0xddc] sm:$0xff]
    %v564 = vld [vmem:[%s1 + $0xde4] sm:$0xf]
    %v565 = vld [vmem:[%s1 + $0xde8] sm:$0xff]
    %v566 = vld [vmem:[%s1 + $0xdf0] sm:$0xff]
    %v567 = vld [vmem:[%s1 + $0xdf8] sm:$0xf]
    %v568 = vld [vmem:[%s1 + $0xdfc] sm:$0xff]
    %v569 = vld [vmem:[%s1 + $0xe04] sm:$0xff]
    %v570 = vld [vmem:[%s1 + $0xe0c] sm:$0xf]
    %v571 = vld [vmem:[%s1 + $0xe10] sm:$0xff]
    %v572 = vld [vmem:[%s1 + $0xe18] sm:$0xff]
    %v573 = vld [vmem:[%s1 + $0xe20] sm:$0xf]
    %v574 = vld [vmem:[%s1 + $0xe24] sm:$0xff]
    %v575 = vld [vmem:[%s1 + $0xe2c] sm:$0xff]
    %v576 = vld [vmem:[%s1 + $0xe34] sm:$0xf]
    %v577 = vld [vmem:[%s1 + $0xe38] sm:$0xff]
    %v578 = vld [vmem:[%s1 + $0xe40] sm:$0xff]
    %v579 = vld [vmem:[%s1 + $0xe48] sm:$0xf]
    %v580 = vld [vmem:[%s1 + $0xe4c] sm:$0xff]
    %v581 = vld [vmem:[%s1 + $0xe54] sm:$0xff]
    %v582 = vld [vmem:[%s1 + $0xe5c] sm:$0xf]
    %v583 = vld [vmem:[%s1 + $0xe60] sm:$0xff]
    %v584 = vld [vmem:[%s1 + $0xe68] sm:$0xff]
    %v585 = vld [vmem:[%s1 + $0xe70] sm:$0xf]
    %v586 = vld [vmem:[%s1 + $0xe74] sm:$0xff]
    %v587 = vld [vmem:[%s1 + $0xe7c] sm:$0xff]
    %v588 = vld [vmem:[%s1 + $0xe84] sm:$0xf]
    %v589 = vld [vmem:[%s1 + $0xe88] sm:$0xff]
    %v590 = vld [vmem:[%s1 + $0xe90] sm:$0xff]
    %v591 = vld [vmem:[%s1 + $0xe98] sm:$0xf]
    %v592 = vld [vmem:[%s1 + $0xe9c] sm:$0xff]
    %v593 = vld [vmem:[%s1 + $0xea4] sm:$0xff]
    %v594 = vld [vmem:[%s1 + $0xeac] sm:$0xf]
    %v595 = vld [vmem:[%s1 + $0xeb0] sm:$0xff]
    %v596 = vld [vmem:[%s1 + $0xeb8] sm:$0xff]
    %v597 = vld [vmem:[%s1 + $0xec0] sm:$0xf]
    %v598 = vld [vmem:[%s1 + $0xec4] sm:$0xff]
    %v599 = vld [vmem:[%s1 + $0xecc] sm:$0xff]
    %v600 = vld [vmem:[%s1 + $0xed4] sm:$0xf]
    %v601 = vld [vmem:[%s1 + $0xed8] sm:$0xff]
    %v602 = vld [vmem:[%s1 + $0xee0] sm:$0xff]
    %v603 = vld [vmem:[%s1 + $0xee8] sm:$0xf]
    %v604 = vld [vmem:[%s1 + $0xeec] sm:$0xff]
    %v605 = vld [vmem:[%s1 + $0xef4] sm:$0xff]
    %v606 = vld [vmem:[%s1 + $0xefc] sm:$0xf]
    %v607 = vld [vmem:[%s1 + $0xf00] sm:$0xff]
    %v608 = vld [vmem:[%s1 + $0xf08] sm:$0xff]
    %v609 = vld [vmem:[%s1 + $0xf10] sm:$0xf]
    %v610 = vld [vmem:[%s1 + $0xf14] sm:$0xff]
    %v611 = vld [vmem:[%s1 + $0xf1c] sm:$0xff]
    %v612 = vld [vmem:[%s1 + $0xf24] sm:$0xf]
    %v613 = vld [vmem:[%s1 + $0xf28] sm:$0xff]
    %v614 = vld [vmem:[%s1 + $0xf30] sm:$0xff]
    %v615 = vld [vmem:[%s1 + $0xf38] sm:$0xf]
    %v616 = vld [vmem:[%s1 + $0xf3c] sm:$0xff]
    %v617 = vld [vmem:[%s1 + $0xf44] sm:$0xff]
    %v618 = vld [vmem:[%s1 + $0xf4c] sm:$0xf]
    %v619 = vld [vmem:[%s1 + $0xf50] sm:$0xff]
    %v620 = vld [vmem:[%s1 + $0xf58] sm:$0xff]
    %v621 = vld [vmem:[%s1 + $0xf60] sm:$0xf]
    %v622 = vld [vmem:[%s1 + $0xf64] sm:$0xff]
    %v623 = vld [vmem:[%s1 + $0xf6c] sm:$0xff]
    %v624 = vld [vmem:[%s1 + $0xf74] sm:$0xf]
    %v625 = vld [vmem:[%s1 + $0xf78] sm:$0xff]
    %v626 = vld [vmem:[%s1 + $0xf80] sm:$0xff]
    %v627 = vld [vmem:[%s1 + $0xf88] sm:$0xf]
    %v628 = vld [vmem:[%s1 + $0xf8c] sm:$0xff]
    %v629 = vld [vmem:[%s1 + $0xf94] sm:$0xff]
    %v630 = vld [vmem:[%s1 + $0xf9c] sm:$0xf]
    %v631 = vld [vmem:[%s1 + $0xfa0] sm:$0xff]
    %v632 = vld [vmem:[%s1 + $0xfa8] sm:$0xff]
    %v633 = vld [vmem:[%s1 + $0xfb0] sm:$0xf]
    %v634 = vld [vmem:[%s1 + $0xfb4] sm:$0xff]
    %v635 = vld [vmem:[%s1 + $0xfbc] sm:$0xff]
    %v636 = vld [vmem:[%s1 + $0xfc4] sm:$0xf]
    %v637 = vld [vmem:[%s1 + $0xfc8] sm:$0xff]
    %v638 = vld [vmem:[%s1 + $0xfd0] sm:$0xff]
    %v639 = vld [vmem:[%s1 + $0xfd8] sm:$0xf]
    %v640 = vld [vmem:[%s1 + $0xfdc] sm:$0xff]
    %v641 = vld [vmem:[%s1 + $0xfe4] sm:$0xff]
    %v642 = vld [vmem:[%s1 + $0xfec] sm:$0xf]
    %v643 = vld [vmem:[%s1 + $0xff0] sm:$0xff]
    %v644 = vld [vmem:[%s1 + $0xff8] sm:$0xff]
    %v645 = vld [vmem:[%s1 + $0x1000] sm:$0xf]
    %v646 = vld [vmem:[%s1 + $0x1004] sm:$0xff]
    %v647 = vld [vmem:[%s1 + $0x100c] sm:$0xff]
    %v648 = vld [vmem:[%s1 + $0x1014] sm:$0xf]
    %v649 = vld [vmem:[%s1 + $0x1018] sm:$0xff]
    %v650 = vld [vmem:[%s1 + $0x1020] sm:$0xff]
    %v651 = vld [vmem:[%s1 + $0x1028] sm:$0xf]
    %v652 = vld [vmem:[%s1 + $0x102c] sm:$0xff]
    %v653 = vld [vmem:[%s1 + $0x1034] sm:$0xff]
    %v654 = vld [vmem:[%s1 + $0x103c] sm:$0xf]
    %v655 = vld [vmem:[%s1 + $0x1040] sm:$0xff]
    %v656 = vld [vmem:[%s1 + $0x1048] sm:$0xff]
    %v657 = vld [vmem:[%s1 + $0x1050] sm:$0xf]
    %v658 = vld [vmem:[%s1 + $0x1054] sm:$0xff]
    %v659 = vld [vmem:[%s1 + $0x105c] sm:$0xff]
    %v660 = vld [vmem:[%s1 + $0x1064] sm:$0xf]
    %v661 = vld [vmem:[%s1 + $0x1068] sm:$0xff]
    %v662 = vld [vmem:[%s1 + $0x1070] sm:$0xff]
    %v663 = vld [vmem:[%s1 + $0x1078] sm:$0xf]
    %v664 = vld [vmem:[%s1 + $0x107c] sm:$0xff]
    %v665 = vld [vmem:[%s1 + $0x1084] sm:$0xff]
    %v666 = vld [vmem:[%s1 + $0x108c] sm:$0xf]
    %v667 = vld [vmem:[%s1 + $0x1090] sm:$0xff]
    %v668 = vld [vmem:[%s1 + $0x1098] sm:$0xff]
    %v669 = vld [vmem:[%s1 + $0x10a0] sm:$0xf]
    %v670 = vld [vmem:[%s1 + $0x10a4] sm:$0xff]
    %v671 = vld [vmem:[%s1 + $0x10ac] sm:$0xff]
    %v672 = vld [vmem:[%s1 + $0x10b4] sm:$0xf]
    %v673 = vld [vmem:[%s1 + $0x10b8] sm:$0xff]
    %v674 = vld [vmem:[%s1 + $0x10c0] sm:$0xff]
    %v675 = vld [vmem:[%s1 + $0x10c8] sm:$0xf]
    %v676 = vld [vmem:[%s1 + $0x10cc] sm:$0xff]
    %v677 = vld [vmem:[%s1 + $0x10d4] sm:$0xff]
    %v678 = vld [vmem:[%s1 + $0x10dc] sm:$0xf]
    %v679 = vld [vmem:[%s1 + $0x10e0] sm:$0xff]
    %v680 = vld [vmem:[%s1 + $0x10e8] sm:$0xff]
    %v681 = vld [vmem:[%s1 + $0x10f0] sm:$0xf]
    %v682 = vld [vmem:[%s1 + $0x10f4] sm:$0xff]
    %v683 = vld [vmem:[%s1 + $0x10fc] sm:$0xff]
    %v684 = vld [vmem:[%s1 + $0x1104] sm:$0xf]
    %v685 = vld [vmem:[%s1 + $0x1108] sm:$0xff]
    %v686 = vld [vmem:[%s1 + $0x1110] sm:$0xff]
    %v687 = vld [vmem:[%s1 + $0x1118] sm:$0xf]
    %v688 = vld [vmem:[%s1 + $0x111c] sm:$0xff]
    %v689 = vld [vmem:[%s1 + $0x1124] sm:$0xff]
    %v690 = vld [vmem:[%s1 + $0x112c] sm:$0xf]
    %v691 = vld [vmem:[%s1 + $0x1130] sm:$0xff]
    %v692 = vld [vmem:[%s1 + $0x1138] sm:$0xff]
    %v693 = vld [vmem:[%s1 + $0x1140] sm:$0xf]
    %v694 = vld [vmem:[%s1 + $0x1144] sm:$0xff]
    %v695 = vld [vmem:[%s1 + $0x114c] sm:$0xff]
    %v696 = vld [vmem:[%s1 + $0x1154] sm:$0xf]
    %v697 = vld [vmem:[%s1 + $0x1158] sm:$0xff]
    %v698 = vld [vmem:[%s1 + $0x1160] sm:$0xff]
    %v699 = vld [vmem:[%s1 + $0x1168] sm:$0xf]
    %v700 = vld [vmem:[%s1 + $0x116c] sm:$0xff]
    %v701 = vld [vmem:[%s1 + $0x1174] sm:$0xff]
    %v702 = vld [vmem:[%s1 + $0x117c] sm:$0xf]
    %v703 = vld [vmem:[%s1 + $0x1180] sm:$0xff]
    %v704 = vld [vmem:[%s1 + $0x1188] sm:$0xff]
    %v705 = vld [vmem:[%s1 + $0x1190] sm:$0xf]
    %v706 = vld [vmem:[%s1 + $0x1194] sm:$0xff]
    %v707 = vld [vmem:[%s1 + $0x119c] sm:$0xff]
    %v708 = vld [vmem:[%s1 + $0x11a4] sm:$0xf]
    %v709 = vld [vmem:[%s1 + $0x11a8] sm:$0xff]
    %v710 = vld [vmem:[%s1 + $0x11b0] sm:$0xff]
    %v711 = vld [vmem:[%s1 + $0x11b8] sm:$0xf]
    %v712 = vld [vmem:[%s1 + $0x11bc] sm:$0xff]
    %v713 = vld [vmem:[%s1 + $0x11c4] sm:$0xff]
    %v714 = vld [vmem:[%s1 + $0x11cc] sm:$0xf]
    %v715 = vld [vmem:[%s1 + $0x11d0] sm:$0xff]
    %v716 = vld [vmem:[%s1 + $0x11d8] sm:$0xff]
    %v717 = vld [vmem:[%s1 + $0x11e0] sm:$0xf]
    %v718 = vld [vmem:[%s1 + $0x11e4] sm:$0xff]
    %v719 = vld [vmem:[%s1 + $0x11ec] sm:$0xff]
    %v720 = vld [vmem:[%s1 + $0x11f4] sm:$0xf]
    %v721 = vld [vmem:[%s1 + $0x11f8] sm:$0xff]
    %v722 = vld [vmem:[%s1 + $0x1200] sm:$0xff]
    %v723 = vld [vmem:[%s1 + $0x1208] sm:$0xf]
    %v724 = vld [vmem:[%s1 + $0x120c] sm:$0xff]
    %v725 = vld [vmem:[%s1 + $0x1214] sm:$0xff]
    %v726 = vld [vmem:[%s1 + $0x121c] sm:$0xf]
    %v727 = vld [vmem:[%s1 + $0x1220] sm:$0xff]
    %v728 = vld [vmem:[%s1 + $0x1228] sm:$0xff]
    %v729 = vld [vmem:[%s1 + $0x1230] sm:$0xf]
    %v730 = vld [vmem:[%s1 + $0x1234] sm:$0xff]
    %v731 = vld [vmem:[%s1 + $0x123c] sm:$0xff]
    %v732 = vld [vmem:[%s1 + $0x1244] sm:$0xf]
    %v733 = vld [vmem:[%s1 + $0x1248] sm:$0xff]
    %v734 = vld [vmem:[%s1 + $0x1250] sm:$0xff]
    %v735 = vld [vmem:[%s1 + $0x1258] sm:$0xf]
    %v736 = vld [vmem:[%s1 + $0x125c] sm:$0xff]
    %v737 = vld [vmem:[%s1 + $0x1264] sm:$0xff]
    %v738 = vld [vmem:[%s1 + $0x126c] sm:$0xf]
    %v739 = vld [vmem:[%s1 + $0x1270] sm:$0xff]
    %v740 = vld [vmem:[%s1 + $0x1278] sm:$0xff]
    %v741 = vld [vmem:[%s1 + $0x1280] sm:$0xf]
    %v742 = vld [vmem:[%s1 + $0x1284] sm:$0xff]
    %v743 = vld [vmem:[%s1 + $0x128c] sm:$0xff]
    %v744 = vld [vmem:[%s1 + $0x1294] sm:$0xf]
    %v745 = vld [vmem:[%s1 + $0x1298] sm:$0xff]
    %v746 = vld [vmem:[%s1 + $0x12a0] sm:$0xff]
    %v747 = vld [vmem:[%s1 + $0x12a8] sm:$0xf]
    %v748 = vld [vmem:[%s1 + $0x12ac] sm:$0xff]
    %v749 = vld [vmem:[%s1 + $0x12b4] sm:$0xff]
    %v750 = vld [vmem:[%s1 + $0x12bc] sm:$0xf]
    %v751 = vld [vmem:[%s1 + $0x12c0] sm:$0xff]
    %v752 = vld [vmem:[%s1 + $0x12c8] sm:$0xff]
    %v753 = vld [vmem:[%s1 + $0x12d0] sm:$0xf]
    %v754 = vld [vmem:[%s1 + $0x12d4] sm:$0xff]
    %v755 = vld [vmem:[%s1 + $0x12dc] sm:$0xff]
    %v756 = vld [vmem:[%s1 + $0x12e4] sm:$0xf]
    %v757 = vld [vmem:[%s1 + $0x12e8] sm:$0xff]
    %v758 = vld [vmem:[%s1 + $0x12f0] sm:$0xff]
    %v759 = vld [vmem:[%s1 + $0x12f8] sm:$0xf]
    %v760 = vld [vmem:[%s1 + $0x12fc] sm:$0xff]
    %v761 = vld [vmem:[%s1 + $0x1304] sm:$0xff]
    %v762 = vld [vmem:[%s1 + $0x130c] sm:$0xf]
    %v763 = vld [vmem:[%s1 + $0x1310] sm:$0xff]
    %v764 = vld [vmem:[%s1 + $0x1318] sm:$0xff]
    %v765 = vld [vmem:[%s1 + $0x1320] sm:$0xf]
    %v766 = vld [vmem:[%s1 + $0x1324] sm:$0xff]
    %v767 = vld [vmem:[%s1 + $0x132c] sm:$0xff]
    %v768 = vld [vmem:[%s1 + $0x1334] sm:$0xf]
    %v769 = vld [vmem:[%s1 + $0x1338] sm:$0xff]
    %v770 = vld [vmem:[%s1 + $0x1340] sm:$0xff]
    %v771 = vld [vmem:[%s1 + $0x1348] sm:$0xf]
    %v772 = vld [vmem:[%s1 + $0x134c] sm:$0xff]
    %v773 = vld [vmem:[%s1 + $0x1354] sm:$0xff]
    %v774 = vld [vmem:[%s1 + $0x135c] sm:$0xf]
    %v775 = vld [vmem:[%s1 + $0x1360] sm:$0xff]
    %v776 = vld [vmem:[%s1 + $0x1368] sm:$0xff]
    %v777 = vld [vmem:[%s1 + $0x1370] sm:$0xf]
    %v778 = vld [vmem:[%s1 + $0x1374] sm:$0xff]
    %v779 = vld [vmem:[%s1 + $0x137c] sm:$0xff]
    %v780 = vld [vmem:[%s1 + $0x1384] sm:$0xf]
    %v781 = vld [vmem:[%s1 + $0x1388] sm:$0xff]
    %v782 = vld [vmem:[%s1 + $0x1390] sm:$0xff]
    %v783 = vld [vmem:[%s1 + $0x1398] sm:$0xf]
    %v784 = vld [vmem:[%s1 + $0x139c] sm:$0xff]
    %v785 = vld [vmem:[%s1 + $0x13a4] sm:$0xff]
    %v786 = vld [vmem:[%s1 + $0x13ac] sm:$0xf]
    %v787 = vld [vmem:[%s1 + $0x13b0] sm:$0xff]
    %v788 = vld [vmem:[%s1 + $0x13b8] sm:$0xff]
    %v789 = vld [vmem:[%s1 + $0x13c0] sm:$0xf]
    %v790 = vld [vmem:[%s1 + $0x13c4] sm:$0xff]
    %v791 = vld [vmem:[%s1 + $0x13cc] sm:$0xff]
    %v792 = vld [vmem:[%s1 + $0x13d4] sm:$0xf]
    %v793 = vld [vmem:[%s1 + $0x13d8] sm:$0xff]
    %v794 = vld [vmem:[%s1 + $0x13e0] sm:$0xff]
    %v795 = vld [vmem:[%s1 + $0x13e8] sm:$0xf]
    %v796 = vld [vmem:[%s1 + $0x13ec] sm:$0xff]
    %v797 = vld [vmem:[%s1 + $0x13f4] sm:$0xff]
    %v798 = vld [vmem:[%s1 + $0x13fc] sm:$0xf]
    %v799 = vld [vmem:[%s0] sm:$0xf]
    %v800 = vld [vmem:[%s0 + $0x4] sm:$0xf]
    %v801 = vld [vmem:[%s0 + $0x8] sm:$0xf]
    %v802 = vld [vmem:[%s0 + $0xc] sm:$0xf]
    %v803 = vld [vmem:[%s0 + $0x10] sm:$0xf]
    %v804 = vld [vmem:[%s0 + $0x14] sm:$0xf]
    %v805 = vld [vmem:[%s0 + $0x18] sm:$0xf]
    %v806 = vld [vmem:[%s0 + $0x1c] sm:$0xf]
    %v807 = vld [vmem:[%s0 + $0x20] sm:$0xf]
    %v808 = vld [vmem:[%s0 + $0x24] sm:$0xf]
    %v809 = vld [vmem:[%s0 + $0x28] sm:$0xf]
    %v810 = vld [vmem:[%s0 + $0x2c] sm:$0xf]
    %v811 = vld [vmem:[%s0 + $0x30] sm:$0xf]
    %v812 = vld [vmem:[%s0 + $0x34] sm:$0xf]
    %v813 = vld [vmem:[%s0 + $0x38] sm:$0xf]
    %v814 = vld [vmem:[%s0 + $0x3c] sm:$0xf]
    %v815 = vld [vmem:[%s0 + $0x40] sm:$0xf]
    %v816 = vld [vmem:[%s0 + $0x44] sm:$0xf]
    %v817 = vld [vmem:[%s0 + $0x48] sm:$0xf]
    %v818 = vld [vmem:[%s0 + $0x4c] sm:$0xf]
    %v819 = vld [vmem:[%s0 + $0x50] sm:$0xf]
    %v820 = vld [vmem:[%s0 + $0x54] sm:$0xf]
    %v821 = vld [vmem:[%s0 + $0x58] sm:$0xf]
    %v822 = vld [vmem:[%s0 + $0x5c] sm:$0xf]
    %v823 = vld [vmem:[%s0 + $0x60] sm:$0xf]
    %v824 = vld [vmem:[%s0 + $0x64] sm:$0xf]
    %v825 = vld [vmem:[%s0 + $0x68] sm:$0xf]
    %v826 = vld [vmem:[%s0 + $0x6c] sm:$0xf]
    %v827 = vld [vmem:[%s0 + $0x70] sm:$0xf]
    %v828 = vld [vmem:[%s0 + $0x74] sm:$0xf]
    %v829 = vld [vmem:[%s0 + $0x78] sm:$0xf]
    %v830 = vld [vmem:[%s0 + $0x7c] sm:$0xf]
    %v831 = vld [vmem:[%s0 + $0x80] sm:$0xf]
    %v832 = vld [vmem:[%s0 + $0x84] sm:$0xf]
    %v833 = vld [vmem:[%s0 + $0x88] sm:$0xf]
    %v834 = vld [vmem:[%s0 + $0x8c] sm:$0xf]
    %v835 = vld [vmem:[%s0 + $0x90] sm:$0xf]
    %v836 = vld [vmem:[%s0 + $0x94] sm:$0xf]
    %v837 = vld [vmem:[%s0 + $0x98] sm:$0xf]
    %v838 = vld [vmem:[%s0 + $0x9c] sm:$0xf]
    %v839 = vld [vmem:[%s0 + $0xa0] sm:$0xf]
    %v840 = vld [vmem:[%s0 + $0xa4] sm:$0xf]
    %v841 = vld [vmem:[%s0 + $0xa8] sm:$0xf]
    %v842 = vld [vmem:[%s0 + $0xac] sm:$0xf]
    %v843 = vld [vmem:[%s0 + $0xb0] sm:$0xf]
    %v844 = vld [vmem:[%s0 + $0xb4] sm:$0xf]
    %v845 = vld [vmem:[%s0 + $0xb8] sm:$0xf]
    %v846 = vld [vmem:[%s0 + $0xbc] sm:$0xf]
    %v847 = vld [vmem:[%s0 + $0xc0] sm:$0xf]
    %v848 = vld [vmem:[%s0 + $0xc4] sm:$0xf]
    %v849 = vld [vmem:[%s0 + $0xc8] sm:$0xf]
    %v850 = vld [vmem:[%s0 + $0xcc] sm:$0xf]
    %v851 = vld [vmem:[%s0 + $0xd0] sm:$0xf]
    %v852 = vld [vmem:[%s0 + $0xd4] sm:$0xf]
    %v853 = vld [vmem:[%s0 + $0xd8] sm:$0xf]
    %v854 = vld [vmem:[%s0 + $0xdc] sm:$0xf]
    %v855 = vld [vmem:[%s0 + $0xe0] sm:$0xf]
    %v856 = vld [vmem:[%s0 + $0xe4] sm:$0xf]
    %v857 = vld [vmem:[%s0 + $0xe8] sm:$0xf]
    %v858 = vld [vmem:[%s0 + $0xec] sm:$0xf]
    %v859 = vld [vmem:[%s0 + $0xf0] sm:$0xf]
    %v860 = vld [vmem:[%s0 + $0xf4] sm:$0xf]
    %v861 = vld [vmem:[%s0 + $0xf8] sm:$0xf]
    %v862 = vld [vmem:[%s0 + $0xfc] sm:$0xf]
    %v863 = vld [vmem:[%s0 + $0x100] sm:$0xf]
    %v864 = vld [vmem:[%s0 + $0x104] sm:$0xf]
    %v865 = vld [vmem:[%s0 + $0x108] sm:$0xf]
    %v866 = vld [vmem:[%s0 + $0x10c] sm:$0xf]
    %v867 = vld [vmem:[%s0 + $0x110] sm:$0xf]
    %v868 = vld [vmem:[%s0 + $0x114] sm:$0xf]
    %v869 = vld [vmem:[%s0 + $0x118] sm:$0xf]
    %v870 = vld [vmem:[%s0 + $0x11c] sm:$0xf]
    %v871 = vld [vmem:[%s0 + $0x120] sm:$0xf]
    %v872 = vld [vmem:[%s0 + $0x124] sm:$0xf]
    %v873 = vld [vmem:[%s0 + $0x128] sm:$0xf]
    %v874 = vld [vmem:[%s0 + $0x12c] sm:$0xf]
    %v875 = vld [vmem:[%s0 + $0x130] sm:$0xf]
    %v876 = vld [vmem:[%s0 + $0x134] sm:$0xf]
    %v877 = vld [vmem:[%s0 + $0x138] sm:$0xf]
    %v878 = vld [vmem:[%s0 + $0x13c] sm:$0xf]
    %v1647 = vunpack.c.l.b16 %v31
    %v1648 = vunpack.c.h.b16 %v31
    %v1649 = vunpack.c.l.b16 %v32
    %v1650 = vunpack.c.h.b16 %v32
    %v1651 = vunpack.c.l.b16 %v33
    %v1652 = vunpack.c.l.b16 %v34
    %v1653 = vunpack.c.h.b16 %v34
    %v1654 = vunpack.c.l.b16 %v35
    %v1655 = vunpack.c.h.b16 %v35
    %v1656 = vunpack.c.l.b16 %v36
    %v1657 = vunpack.c.l.b16 %v37
    %v1658 = vunpack.c.h.b16 %v37
    %v1659 = vunpack.c.l.b16 %v38
    %v1660 = vunpack.c.h.b16 %v38
    %v1661 = vunpack.c.l.b16 %v39
    %v1662 = vunpack.c.l.b16 %v40
    %v1663 = vunpack.c.h.b16 %v40
    %v1664 = vunpack.c.l.b16 %v41
    %v1665 = vunpack.c.h.b16 %v41
    %v1666 = vunpack.c.l.b16 %v42
    %v1667 = vunpack.c.l.b16 %v43
    %v1668 = vunpack.c.h.b16 %v43
    %v1669 = vunpack.c.l.b16 %v44
    %v1670 = vunpack.c.h.b16 %v44
    %v1671 = vunpack.c.l.b16 %v45
    %v1672 = vunpack.c.l.b16 %v46
    %v1673 = vunpack.c.h.b16 %v46
    %v1674 = vunpack.c.l.b16 %v47
    %v1675 = vunpack.c.h.b16 %v47
    %v1676 = vunpack.c.l.b16 %v48
    %v1677 = vunpack.c.l.b16 %v49
    %v1678 = vunpack.c.h.b16 %v49
    %v1679 = vunpack.c.l.b16 %v50
    %v1680 = vunpack.c.h.b16 %v50
    %v1681 = vunpack.c.l.b16 %v51
    %v1682 = vunpack.c.l.b16 %v52
    %v1683 = vunpack.c.h.b16 %v52
    %v1684 = vunpack.c.l.b16 %v53
    %v1685 = vunpack.c.h.b16 %v53
    %v1686 = vunpack.c.l.b16 %v54
    %v1687 = vunpack.c.l.b16 %v55
    %v1688 = vunpack.c.h.b16 %v55
    %v1689 = vunpack.c.l.b16 %v56
    %v1690 = vunpack.c.h.b16 %v56
    %v1691 = vunpack.c.l.b16 %v57
    %v1692 = vunpack.c.l.b16 %v58
    %v1693 = vunpack.c.h.b16 %v58
    %v1694 = vunpack.c.l.b16 %v59
    %v1695 = vunpack.c.h.b16 %v59
    %v1696 = vunpack.c.l.b16 %v60
    %v1697 = vunpack.c.l.b16 %v61
    %v1698 = vunpack.c.h.b16 %v61
    %v1699 = vunpack.c.l.b16 %v62
    %v1700 = vunpack.c.h.b16 %v62
    %v1701 = vunpack.c.l.b16 %v63
    %v1702 = vunpack.c.l.b16 %v64
    %v1703 = vunpack.c.h.b16 %v64
    %v1704 = vunpack.c.l.b16 %v65
    %v1705 = vunpack.c.h.b16 %v65
    %v1706 = vunpack.c.l.b16 %v66
    %v1707 = vunpack.c.l.b16 %v67
    %v1708 = vunpack.c.h.b16 %v67
    %v1709 = vunpack.c.l.b16 %v68
    %v1710 = vunpack.c.h.b16 %v68
    %v1711 = vunpack.c.l.b16 %v69
    %v1712 = vunpack.c.l.b16 %v70
    %v1713 = vunpack.c.h.b16 %v70
    %v1714 = vunpack.c.l.b16 %v71
    %v1715 = vunpack.c.h.b16 %v71
    %v1716 = vunpack.c.l.b16 %v72
    %v1717 = vunpack.c.l.b16 %v73
    %v1718 = vunpack.c.h.b16 %v73
    %v1719 = vunpack.c.l.b16 %v74
    %v1720 = vunpack.c.h.b16 %v74
    %v1721 = vunpack.c.l.b16 %v75
    %v1722 = vunpack.c.l.b16 %v76
    %v1723 = vunpack.c.h.b16 %v76
    %v1724 = vunpack.c.l.b16 %v77
    %v1725 = vunpack.c.h.b16 %v77
    %v1726 = vunpack.c.l.b16 %v78
    %v1727 = vunpack.c.l.b16 %v79
    %v1728 = vunpack.c.h.b16 %v79
    %v1729 = vunpack.c.l.b16 %v80
    %v1730 = vunpack.c.h.b16 %v80
    %v1731 = vunpack.c.l.b16 %v81
    %v1732 = vunpack.c.l.b16 %v82
    %v1733 = vunpack.c.h.b16 %v82
    %v1734 = vunpack.c.l.b16 %v83
    %v1735 = vunpack.c.h.b16 %v83
    %v1736 = vunpack.c.l.b16 %v84
    %v1737 = vunpack.c.l.b16 %v85
    %v1738 = vunpack.c.h.b16 %v85
    %v1739 = vunpack.c.l.b16 %v86
    %v1740 = vunpack.c.h.b16 %v86
    %v1741 = vunpack.c.l.b16 %v87
    %v1742 = vunpack.c.l.b16 %v88
    %v1743 = vunpack.c.h.b16 %v88
    %v1744 = vunpack.c.l.b16 %v89
    %v1745 = vunpack.c.h.b16 %v89
    %v1746 = vunpack.c.l.b16 %v90
    %v1747 = vunpack.c.l.b16 %v91
    %v1748 = vunpack.c.h.b16 %v91
    %v1749 = vunpack.c.l.b16 %v92
    %v1750 = vunpack.c.h.b16 %v92
    %v1751 = vunpack.c.l.b16 %v93
    %v1752 = vunpack.c.l.b16 %v94
    %v1753 = vunpack.c.h.b16 %v94
    %v1754 = vunpack.c.l.b16 %v95
    %v1755 = vunpack.c.h.b16 %v95
    %v1756 = vunpack.c.l.b16 %v96
    %v1757 = vunpack.c.l.b16 %v97
    %v1758 = vunpack.c.h.b16 %v97
    %v1759 = vunpack.c.l.b16 %v98
    %v1760 = vunpack.c.h.b16 %v98
    %v1761 = vunpack.c.l.b16 %v99
    %v1762 = vunpack.c.l.b16 %v100
    %v1763 = vunpack.c.h.b16 %v100
    %v1764 = vunpack.c.l.b16 %v101
    %v1765 = vunpack.c.h.b16 %v101
    %v1766 = vunpack.c.l.b16 %v102
    %v1767 = vunpack.c.l.b16 %v103
    %v1768 = vunpack.c.h.b16 %v103
    %v1769 = vunpack.c.l.b16 %v104
    %v1770 = vunpack.c.h.b16 %v104
    %v1771 = vunpack.c.l.b16 %v105
    %v1772 = vunpack.c.l.b16 %v106
    %v1773 = vunpack.c.h.b16 %v106
    %v1774 = vunpack.c.l.b16 %v107
    %v1775 = vunpack.c.h.b16 %v107
    %v1776 = vunpack.c.l.b16 %v108
    %v1777 = vunpack.c.l.b16 %v109
    %v1778 = vunpack.c.h.b16 %v109
    %v1779 = vunpack.c.l.b16 %v110
    %v1780 = vunpack.c.h.b16 %v110
    %v1781 = vunpack.c.l.b16 %v111
    %v1782 = vunpack.c.l.b16 %v112
    %v1783 = vunpack.c.h.b16 %v112
    %v1784 = vunpack.c.l.b16 %v113
    %v1785 = vunpack.c.h.b16 %v113
    %v1786 = vunpack.c.l.b16 %v114
    %v1787 = vunpack.c.l.b16 %v115
    %v1788 = vunpack.c.h.b16 %v115
    %v1789 = vunpack.c.l.b16 %v116
    %v1790 = vunpack.c.h.b16 %v116
    %v1791 = vunpack.c.l.b16 %v117
    %v1792 = vunpack.c.l.b16 %v118
    %v1793 = vunpack.c.h.b16 %v118
    %v1794 = vunpack.c.l.b16 %v119
    %v1795 = vunpack.c.h.b16 %v119
    %v1796 = vunpack.c.l.b16 %v120
    %v1797 = vunpack.c.l.b16 %v121
    %v1798 = vunpack.c.h.b16 %v121
    %v1799 = vunpack.c.l.b16 %v122
    %v1800 = vunpack.c.h.b16 %v122
    %v1801 = vunpack.c.l.b16 %v123
    %v1802 = vunpack.c.l.b16 %v124
    %v1803 = vunpack.c.h.b16 %v124
    %v1804 = vunpack.c.l.b16 %v125
    %v1805 = vunpack.c.h.b16 %v125
    %v1806 = vunpack.c.l.b16 %v126
    %v1807 = vunpack.c.l.b16 %v127
    %v1808 = vunpack.c.h.b16 %v127
    %v1809 = vunpack.c.l.b16 %v128
    %v1810 = vunpack.c.h.b16 %v128
    %v1811 = vunpack.c.l.b16 %v129
    %v1812 = vunpack.c.l.b16 %v130
    %v1813 = vunpack.c.h.b16 %v130
    %v1814 = vunpack.c.l.b16 %v131
    %v1815 = vunpack.c.h.b16 %v131
    %v1816 = vunpack.c.l.b16 %v132
    %v1817 = vunpack.c.l.b16 %v133
    %v1818 = vunpack.c.h.b16 %v133
    %v1819 = vunpack.c.l.b16 %v134
    %v1820 = vunpack.c.h.b16 %v134
    %v1821 = vunpack.c.l.b16 %v135
    %v1822 = vunpack.c.l.b16 %v136
    %v1823 = vunpack.c.h.b16 %v136
    %v1824 = vunpack.c.l.b16 %v137
    %v1825 = vunpack.c.h.b16 %v137
    %v1826 = vunpack.c.l.b16 %v138
    %v1827 = vunpack.c.l.b16 %v139
    %v1828 = vunpack.c.h.b16 %v139
    %v1829 = vunpack.c.l.b16 %v140
    %v1830 = vunpack.c.h.b16 %v140
    %v1831 = vunpack.c.l.b16 %v141
    %v1832 = vunpack.c.l.b16 %v142
    %v1833 = vunpack.c.h.b16 %v142
    %v1834 = vunpack.c.l.b16 %v143
    %v1835 = vunpack.c.h.b16 %v143
    %v1836 = vunpack.c.l.b16 %v144
    %v1837 = vunpack.c.l.b16 %v145
    %v1838 = vunpack.c.h.b16 %v145
    %v1839 = vunpack.c.l.b16 %v146
    %v1840 = vunpack.c.h.b16 %v146
    %v1841 = vunpack.c.l.b16 %v147
    %v1842 = vunpack.c.l.b16 %v148
    %v1843 = vunpack.c.h.b16 %v148
    %v1844 = vunpack.c.l.b16 %v149
    %v1845 = vunpack.c.h.b16 %v149
    %v1846 = vunpack.c.l.b16 %v150
    %v1847 = vunpack.c.l.b16 %v151
    %v1848 = vunpack.c.h.b16 %v151
    %v1849 = vunpack.c.l.b16 %v152
    %v1850 = vunpack.c.h.b16 %v152
    %v1851 = vunpack.c.l.b16 %v153
    %v1852 = vunpack.c.l.b16 %v154
    %v1853 = vunpack.c.h.b16 %v154
    %v1854 = vunpack.c.l.b16 %v155
    %v1855 = vunpack.c.h.b16 %v155
    %v1856 = vunpack.c.l.b16 %v156
    %v1857 = vunpack.c.l.b16 %v157
    %v1858 = vunpack.c.h.b16 %v157
    %v1859 = vunpack.c.l.b16 %v158
    %v1860 = vunpack.c.h.b16 %v158
    %v1861 = vunpack.c.l.b16 %v159
    %v1862 = vunpack.c.l.b16 %v160
    %v1863 = vunpack.c.h.b16 %v160
    %v1864 = vunpack.c.l.b16 %v161
    %v1865 = vunpack.c.h.b16 %v161
    %v1866 = vunpack.c.l.b16 %v162
    %v1867 = vunpack.c.l.b16 %v163
    %v1868 = vunpack.c.h.b16 %v163
    %v1869 = vunpack.c.l.b16 %v164
    %v1870 = vunpack.c.h.b16 %v164
    %v1871 = vunpack.c.l.b16 %v165
    %v1872 = vunpack.c.l.b16 %v166
    %v1873 = vunpack.c.h.b16 %v166
    %v1874 = vunpack.c.l.b16 %v167
    %v1875 = vunpack.c.h.b16 %v167
    %v1876 = vunpack.c.l.b16 %v168
    %v1877 = vunpack.c.l.b16 %v169
    %v1878 = vunpack.c.h.b16 %v169
    %v1879 = vunpack.c.l.b16 %v170
    %v1880 = vunpack.c.h.b16 %v170
    %v1881 = vunpack.c.l.b16 %v171
    %v1882 = vunpack.c.l.b16 %v172
    %v1883 = vunpack.c.h.b16 %v172
    %v1884 = vunpack.c.l.b16 %v173
    %v1885 = vunpack.c.h.b16 %v173
    %v1886 = vunpack.c.l.b16 %v174
    %v1887 = vunpack.c.l.b16 %v175
    %v1888 = vunpack.c.h.b16 %v175
    %v1889 = vunpack.c.l.b16 %v176
    %v1890 = vunpack.c.h.b16 %v176
    %v1891 = vunpack.c.l.b16 %v177
    %v1892 = vunpack.c.l.b16 %v178
    %v1893 = vunpack.c.h.b16 %v178
    %v1894 = vunpack.c.l.b16 %v179
    %v1895 = vunpack.c.h.b16 %v179
    %v1896 = vunpack.c.l.b16 %v180
    %v1897 = vunpack.c.l.b16 %v181
    %v1898 = vunpack.c.h.b16 %v181
    %v1899 = vunpack.c.l.b16 %v182
    %v1900 = vunpack.c.h.b16 %v182
    %v1901 = vunpack.c.l.b16 %v183
    %v1902 = vunpack.c.l.b16 %v184
    %v1903 = vunpack.c.h.b16 %v184
    %v1904 = vunpack.c.l.b16 %v185
    %v1905 = vunpack.c.h.b16 %v185
    %v1906 = vunpack.c.l.b16 %v186
    %v1907 = vunpack.c.l.b16 %v187
    %v1908 = vunpack.c.h.b16 %v187
    %v1909 = vunpack.c.l.b16 %v188
    %v1910 = vunpack.c.h.b16 %v188
    %v1911 = vunpack.c.l.b16 %v189
    %v1912 = vunpack.c.l.b16 %v190
    %v1913 = vunpack.c.h.b16 %v190
    %v1914 = vunpack.c.l.b16 %v191
    %v1915 = vunpack.c.h.b16 %v191
    %v1916 = vunpack.c.l.b16 %v192
    %v1917 = vunpack.c.l.b16 %v193
    %v1918 = vunpack.c.h.b16 %v193
    %v1919 = vunpack.c.l.b16 %v194
    %v1920 = vunpack.c.h.b16 %v194
    %v1921 = vunpack.c.l.b16 %v195
    %v1922 = vunpack.c.l.b16 %v196
    %v1923 = vunpack.c.h.b16 %v196
    %v1924 = vunpack.c.l.b16 %v197
    %v1925 = vunpack.c.h.b16 %v197
    %v1926 = vunpack.c.l.b16 %v198
    %v1927 = vunpack.c.l.b16 %v199
    %v1928 = vunpack.c.h.b16 %v199
    %v1929 = vunpack.c.l.b16 %v200
    %v1930 = vunpack.c.h.b16 %v200
    %v1931 = vunpack.c.l.b16 %v201
    %v1932 = vunpack.c.l.b16 %v202
    %v1933 = vunpack.c.h.b16 %v202
    %v1934 = vunpack.c.l.b16 %v203
    %v1935 = vunpack.c.h.b16 %v203
    %v1936 = vunpack.c.l.b16 %v204
    %v1937 = vunpack.c.l.b16 %v205
    %v1938 = vunpack.c.h.b16 %v205
    %v1939 = vunpack.c.l.b16 %v206
    %v1940 = vunpack.c.h.b16 %v206
    %v1941 = vunpack.c.l.b16 %v207
    %v1942 = vunpack.c.l.b16 %v208
    %v1943 = vunpack.c.h.b16 %v208
    %v1944 = vunpack.c.l.b16 %v209
    %v1945 = vunpack.c.h.b16 %v209
    %v1946 = vunpack.c.l.b16 %v210
    %v1947 = vunpack.c.l.b16 %v211
    %v1948 = vunpack.c.h.b16 %v211
    %v1949 = vunpack.c.l.b16 %v212
    %v1950 = vunpack.c.h.b16 %v212
    %v1951 = vunpack.c.l.b16 %v213
    %v1952 = vunpack.c.l.b16 %v214
    %v1953 = vunpack.c.h.b16 %v214
    %v1954 = vunpack.c.l.b16 %v215
    %v1955 = vunpack.c.h.b16 %v215
    %v1956 = vunpack.c.l.b16 %v216
    %v1957 = vunpack.c.l.b16 %v217
    %v1958 = vunpack.c.h.b16 %v217
    %v1959 = vunpack.c.l.b16 %v218
    %v1960 = vunpack.c.h.b16 %v218
    %v1961 = vunpack.c.l.b16 %v219
    %v1962 = vunpack.c.l.b16 %v220
    %v1963 = vunpack.c.h.b16 %v220
    %v1964 = vunpack.c.l.b16 %v221
    %v1965 = vunpack.c.h.b16 %v221
    %v1966 = vunpack.c.l.b16 %v222
    %v1967 = vunpack.c.l.b16 %v223
    %v1968 = vunpack.c.h.b16 %v223
    %v1969 = vunpack.c.l.b16 %v224
    %v1970 = vunpack.c.h.b16 %v224
    %v1971 = vunpack.c.l.b16 %v225
    %v1972 = vunpack.c.l.b16 %v226
    %v1973 = vunpack.c.h.b16 %v226
    %v1974 = vunpack.c.l.b16 %v227
    %v1975 = vunpack.c.h.b16 %v227
    %v1976 = vunpack.c.l.b16 %v228
    %v1977 = vunpack.c.l.b16 %v229
    %v1978 = vunpack.c.h.b16 %v229
    %v1979 = vunpack.c.l.b16 %v230
    %v1980 = vunpack.c.h.b16 %v230
    %v1981 = vunpack.c.l.b16 %v231
    %v1982 = vunpack.c.l.b16 %v232
    %v1983 = vunpack.c.h.b16 %v232
    %v1984 = vunpack.c.l.b16 %v233
    %v1985 = vunpack.c.h.b16 %v233
    %v1986 = vunpack.c.l.b16 %v234
    %v1987 = vunpack.c.l.b16 %v235
    %v1988 = vunpack.c.h.b16 %v235
    %v1989 = vunpack.c.l.b16 %v236
    %v1990 = vunpack.c.h.b16 %v236
    %v1991 = vunpack.c.l.b16 %v237
    %v1992 = vunpack.c.l.b16 %v238
    %v1993 = vunpack.c.h.b16 %v238
    %v1994 = vunpack.c.l.b16 %v239
    %v1995 = vunpack.c.h.b16 %v239
    %v1996 = vunpack.c.l.b16 %v240
    %v1997 = vunpack.c.l.b16 %v241
    %v1998 = vunpack.c.h.b16 %v241
    %v1999 = vunpack.c.l.b16 %v242
    %v2000 = vunpack.c.h.b16 %v242
    %v2001 = vunpack.c.l.b16 %v243
    %v2002 = vunpack.c.l.b16 %v244
    %v2003 = vunpack.c.h.b16 %v244
    %v2004 = vunpack.c.l.b16 %v245
    %v2005 = vunpack.c.h.b16 %v245
    %v2006 = vunpack.c.l.b16 %v246
    %v2007 = vunpack.c.l.b16 %v247
    %v2008 = vunpack.c.h.b16 %v247
    %v2009 = vunpack.c.l.b16 %v248
    %v2010 = vunpack.c.h.b16 %v248
    %v2011 = vunpack.c.l.b16 %v249
    %v2012 = vunpack.c.l.b16 %v250
    %v2013 = vunpack.c.h.b16 %v250
    %v2014 = vunpack.c.l.b16 %v251
    %v2015 = vunpack.c.h.b16 %v251
    %v2016 = vunpack.c.l.b16 %v252
    %v2017 = vunpack.c.l.b16 %v253
    %v2018 = vunpack.c.h.b16 %v253
    %v2019 = vunpack.c.l.b16 %v254
    %v2020 = vunpack.c.h.b16 %v254
    %v2021 = vunpack.c.l.b16 %v255
    %v2022 = vunpack.c.l.b16 %v256
    %v2023 = vunpack.c.h.b16 %v256
    %v2024 = vunpack.c.l.b16 %v257
    %v2025 = vunpack.c.h.b16 %v257
    %v2026 = vunpack.c.l.b16 %v258
    %v2027 = vunpack.c.l.b16 %v259
    %v2028 = vunpack.c.h.b16 %v259
    %v2029 = vunpack.c.l.b16 %v260
    %v2030 = vunpack.c.h.b16 %v260
    %v2031 = vunpack.c.l.b16 %v261
    %v2032 = vunpack.c.l.b16 %v262
    %v2033 = vunpack.c.h.b16 %v262
    %v2034 = vunpack.c.l.b16 %v263
    %v2035 = vunpack.c.h.b16 %v263
    %v2036 = vunpack.c.l.b16 %v264
    %v2037 = vunpack.c.l.b16 %v265
    %v2038 = vunpack.c.h.b16 %v265
    %v2039 = vunpack.c.l.b16 %v266
    %v2040 = vunpack.c.h.b16 %v266
    %v2041 = vunpack.c.l.b16 %v267
    %v2042 = vunpack.c.l.b16 %v268
    %v2043 = vunpack.c.h.b16 %v268
    %v2044 = vunpack.c.l.b16 %v269
    %v2045 = vunpack.c.h.b16 %v269
    %v2046 = vunpack.c.l.b16 %v270
    %v2047 = vunpack.c.l.b16 %v271
    %v2048 = vunpack.c.h.b16 %v271
    %v2049 = vunpack.c.l.b16 %v272
    %v2050 = vunpack.c.h.b16 %v272
    %v2051 = vunpack.c.l.b16 %v273
    %v2052 = vunpack.c.l.b16 %v274
    %v2053 = vunpack.c.h.b16 %v274
    %v2054 = vunpack.c.l.b16 %v275
    %v2055 = vunpack.c.h.b16 %v275
    %v2056 = vunpack.c.l.b16 %v276
    %v2057 = vunpack.c.l.b16 %v277
    %v2058 = vunpack.c.h.b16 %v277
    %v2059 = vunpack.c.l.b16 %v278
    %v2060 = vunpack.c.h.b16 %v278
    %v2061 = vunpack.c.l.b16 %v279
    %v2062 = vunpack.c.l.b16 %v280
    %v2063 = vunpack.c.h.b16 %v280
    %v2064 = vunpack.c.l.b16 %v281
    %v2065 = vunpack.c.h.b16 %v281
    %v2066 = vunpack.c.l.b16 %v282
    %v2067 = vunpack.c.l.b16 %v283
    %v2068 = vunpack.c.h.b16 %v283
    %v2069 = vunpack.c.l.b16 %v284
    %v2070 = vunpack.c.h.b16 %v284
    %v2071 = vunpack.c.l.b16 %v285
    %v2072 = vunpack.c.l.b16 %v286
    %v2073 = vunpack.c.h.b16 %v286
    %v2074 = vunpack.c.l.b16 %v287
    %v2075 = vunpack.c.h.b16 %v287
    %v2076 = vunpack.c.l.b16 %v288
    %v2077 = vunpack.c.l.b16 %v289
    %v2078 = vunpack.c.h.b16 %v289
    %v2079 = vunpack.c.l.b16 %v290
    %v2080 = vunpack.c.h.b16 %v290
    %v2081 = vunpack.c.l.b16 %v291
    %v2082 = vunpack.c.l.b16 %v292
    %v2083 = vunpack.c.h.b16 %v292
    %v2084 = vunpack.c.l.b16 %v293
    %v2085 = vunpack.c.h.b16 %v293
    %v2086 = vunpack.c.l.b16 %v294
    %v2087 = vunpack.c.l.b16 %v295
    %v2088 = vunpack.c.h.b16 %v295
    %v2089 = vunpack.c.l.b16 %v296
    %v2090 = vunpack.c.h.b16 %v296
    %v2091 = vunpack.c.l.b16 %v297
    %v2092 = vunpack.c.l.b16 %v298
    %v2093 = vunpack.c.h.b16 %v298
    %v2094 = vunpack.c.l.b16 %v299
    %v2095 = vunpack.c.h.b16 %v299
    %v2096 = vunpack.c.l.b16 %v300
    %v2097 = vunpack.c.l.b16 %v301
    %v2098 = vunpack.c.h.b16 %v301
    %v2099 = vunpack.c.l.b16 %v302
    %v2100 = vunpack.c.h.b16 %v302
    %v2101 = vunpack.c.l.b16 %v303
    %v2102 = vunpack.c.l.b16 %v304
    %v2103 = vunpack.c.h.b16 %v304
    %v2104 = vunpack.c.l.b16 %v305
    %v2105 = vunpack.c.h.b16 %v305
    %v2106 = vunpack.c.l.b16 %v306
    %v2107 = vunpack.c.l.b16 %v307
    %v2108 = vunpack.c.h.b16 %v307
    %v2109 = vunpack.c.l.b16 %v308
    %v2110 = vunpack.c.h.b16 %v308
    %v2111 = vunpack.c.l.b16 %v309
    %v2112 = vunpack.c.l.b16 %v310
    %v2113 = vunpack.c.h.b16 %v310
    %v2114 = vunpack.c.l.b16 %v311
    %v2115 = vunpack.c.h.b16 %v311
    %v2116 = vunpack.c.l.b16 %v312
    %v2117 = vunpack.c.l.b16 %v313
    %v2118 = vunpack.c.h.b16 %v313
    %v2119 = vunpack.c.l.b16 %v314
    %v2120 = vunpack.c.h.b16 %v314
    %v2121 = vunpack.c.l.b16 %v315
    %v2122 = vunpack.c.l.b16 %v316
    %v2123 = vunpack.c.h.b16 %v316
    %v2124 = vunpack.c.l.b16 %v317
    %v2125 = vunpack.c.h.b16 %v317
    %v2126 = vunpack.c.l.b16 %v318
    %v2127 = vunpack.c.l.b16 %v319
    %v2128 = vunpack.c.h.b16 %v319
    %v2129 = vunpack.c.l.b16 %v320
    %v2130 = vunpack.c.h.b16 %v320
    %v2131 = vunpack.c.l.b16 %v321
    %v2132 = vunpack.c.l.b16 %v322
    %v2133 = vunpack.c.h.b16 %v322
    %v2134 = vunpack.c.l.b16 %v323
    %v2135 = vunpack.c.h.b16 %v323
    %v2136 = vunpack.c.l.b16 %v324
    %v2137 = vunpack.c.l.b16 %v325
    %v2138 = vunpack.c.h.b16 %v325
    %v2139 = vunpack.c.l.b16 %v326
    %v2140 = vunpack.c.h.b16 %v326
    %v2141 = vunpack.c.l.b16 %v327
    %v2142 = vunpack.c.l.b16 %v328
    %v2143 = vunpack.c.h.b16 %v328
    %v2144 = vunpack.c.l.b16 %v329
    %v2145 = vunpack.c.h.b16 %v329
    %v2146 = vunpack.c.l.b16 %v330
    %v2147 = vunpack.c.l.b16 %v331
    %v2148 = vunpack.c.h.b16 %v331
    %v2149 = vunpack.c.l.b16 %v332
    %v2150 = vunpack.c.h.b16 %v332
    %v2151 = vunpack.c.l.b16 %v333
    %v2152 = vunpack.c.l.b16 %v334
    %v2153 = vunpack.c.h.b16 %v334
    %v2154 = vunpack.c.l.b16 %v335
    %v2155 = vunpack.c.h.b16 %v335
    %v2156 = vunpack.c.l.b16 %v336
    %v2157 = vunpack.c.l.b16 %v337
    %v2158 = vunpack.c.h.b16 %v337
    %v2159 = vunpack.c.l.b16 %v338
    %v2160 = vunpack.c.h.b16 %v338
    %v2161 = vunpack.c.l.b16 %v339
    %v2162 = vunpack.c.l.b16 %v340
    %v2163 = vunpack.c.h.b16 %v340
    %v2164 = vunpack.c.l.b16 %v341
    %v2165 = vunpack.c.h.b16 %v341
    %v2166 = vunpack.c.l.b16 %v342
    %v2167 = vunpack.c.l.b16 %v343
    %v2168 = vunpack.c.h.b16 %v343
    %v2169 = vunpack.c.l.b16 %v344
    %v2170 = vunpack.c.h.b16 %v344
    %v2171 = vunpack.c.l.b16 %v345
    %v2172 = vunpack.c.l.b16 %v346
    %v2173 = vunpack.c.h.b16 %v346
    %v2174 = vunpack.c.l.b16 %v347
    %v2175 = vunpack.c.h.b16 %v347
    %v2176 = vunpack.c.l.b16 %v348
    %v2177 = vunpack.c.l.b16 %v349
    %v2178 = vunpack.c.h.b16 %v349
    %v2179 = vunpack.c.l.b16 %v350
    %v2180 = vunpack.c.h.b16 %v350
    %v2181 = vunpack.c.l.b16 %v351
    %v2182 = vunpack.c.l.b16 %v352
    %v2183 = vunpack.c.h.b16 %v352
    %v2184 = vunpack.c.l.b16 %v353
    %v2185 = vunpack.c.h.b16 %v353
    %v2186 = vunpack.c.l.b16 %v354
    %v2187 = vunpack.c.l.b16 %v355
    %v2188 = vunpack.c.h.b16 %v355
    %v2189 = vunpack.c.l.b16 %v356
    %v2190 = vunpack.c.h.b16 %v356
    %v2191 = vunpack.c.l.b16 %v357
    %v2192 = vunpack.c.l.b16 %v358
    %v2193 = vunpack.c.h.b16 %v358
    %v2194 = vunpack.c.l.b16 %v359
    %v2195 = vunpack.c.h.b16 %v359
    %v2196 = vunpack.c.l.b16 %v360
    %v2197 = vunpack.c.l.b16 %v361
    %v2198 = vunpack.c.h.b16 %v361
    %v2199 = vunpack.c.l.b16 %v362
    %v2200 = vunpack.c.h.b16 %v362
    %v2201 = vunpack.c.l.b16 %v363
    %v2202 = vunpack.c.l.b16 %v364
    %v2203 = vunpack.c.h.b16 %v364
    %v2204 = vunpack.c.l.b16 %v365
    %v2205 = vunpack.c.h.b16 %v365
    %v2206 = vunpack.c.l.b16 %v366
    %v2207 = vunpack.c.l.b16 %v367
    %v2208 = vunpack.c.h.b16 %v367
    %v2209 = vunpack.c.l.b16 %v368
    %v2210 = vunpack.c.h.b16 %v368
    %v2211 = vunpack.c.l.b16 %v369
    %v2212 = vunpack.c.l.b16 %v370
    %v2213 = vunpack.c.h.b16 %v370
    %v2214 = vunpack.c.l.b16 %v371
    %v2215 = vunpack.c.h.b16 %v371
    %v2216 = vunpack.c.l.b16 %v372
    %v2217 = vunpack.c.l.b16 %v373
    %v2218 = vunpack.c.h.b16 %v373
    %v2219 = vunpack.c.l.b16 %v374
    %v2220 = vunpack.c.h.b16 %v374
    %v2221 = vunpack.c.l.b16 %v375
    %v2222 = vunpack.c.l.b16 %v376
    %v2223 = vunpack.c.h.b16 %v376
    %v2224 = vunpack.c.l.b16 %v377
    %v2225 = vunpack.c.h.b16 %v377
    %v2226 = vunpack.c.l.b16 %v378
    %v2227 = vunpack.c.l.b16 %v379
    %v2228 = vunpack.c.h.b16 %v379
    %v2229 = vunpack.c.l.b16 %v380
    %v2230 = vunpack.c.h.b16 %v380
    %v2231 = vunpack.c.l.b16 %v381
    %v2232 = vunpack.c.l.b16 %v382
    %v2233 = vunpack.c.h.b16 %v382
    %v2234 = vunpack.c.l.b16 %v383
    %v2235 = vunpack.c.h.b16 %v383
    %v2236 = vunpack.c.l.b16 %v384
    %v2237 = vunpack.c.l.b16 %v385
    %v2238 = vunpack.c.h.b16 %v385
    %v2239 = vunpack.c.l.b16 %v386
    %v2240 = vunpack.c.h.b16 %v386
    %v2241 = vunpack.c.l.b16 %v387
    %v2242 = vunpack.c.l.b16 %v388
    %v2243 = vunpack.c.h.b16 %v388
    %v2244 = vunpack.c.l.b16 %v389
    %v2245 = vunpack.c.h.b16 %v389
    %v2246 = vunpack.c.l.b16 %v390
    %v2247 = vunpack.c.l.b16 %v391
    %v2248 = vunpack.c.h.b16 %v391
    %v2249 = vunpack.c.l.b16 %v392
    %v2250 = vunpack.c.h.b16 %v392
    %v2251 = vunpack.c.l.b16 %v393
    %v2252 = vunpack.c.l.b16 %v394
    %v2253 = vunpack.c.h.b16 %v394
    %v2254 = vunpack.c.l.b16 %v395
    %v2255 = vunpack.c.h.b16 %v395
    %v2256 = vunpack.c.l.b16 %v396
    %v2257 = vunpack.c.l.b16 %v397
    %v2258 = vunpack.c.h.b16 %v397
    %v2259 = vunpack.c.l.b16 %v398
    %v2260 = vunpack.c.h.b16 %v398
    %v2261 = vunpack.c.l.b16 %v399
    %v2262 = vunpack.c.l.b16 %v400
    %v2263 = vunpack.c.h.b16 %v400
    %v2264 = vunpack.c.l.b16 %v401
    %v2265 = vunpack.c.h.b16 %v401
    %v2266 = vunpack.c.l.b16 %v402
    %v2267 = vunpack.c.l.b16 %v403
    %v2268 = vunpack.c.h.b16 %v403
    %v2269 = vunpack.c.l.b16 %v404
    %v2270 = vunpack.c.h.b16 %v404
    %v2271 = vunpack.c.l.b16 %v405
    %v2272 = vunpack.c.l.b16 %v406
    %v2273 = vunpack.c.h.b16 %v406
    %v2274 = vunpack.c.l.b16 %v407
    %v2275 = vunpack.c.h.b16 %v407
    %v2276 = vunpack.c.l.b16 %v408
    %v2277 = vunpack.c.l.b16 %v409
    %v2278 = vunpack.c.h.b16 %v409
    %v2279 = vunpack.c.l.b16 %v410
    %v2280 = vunpack.c.h.b16 %v410
    %v2281 = vunpack.c.l.b16 %v411
    %v2282 = vunpack.c.l.b16 %v412
    %v2283 = vunpack.c.h.b16 %v412
    %v2284 = vunpack.c.l.b16 %v413
    %v2285 = vunpack.c.h.b16 %v413
    %v2286 = vunpack.c.l.b16 %v414
    %v2287 = vunpack.c.l.b16 %v415
    %v2288 = vunpack.c.h.b16 %v415
    %v2289 = vunpack.c.l.b16 %v416
    %v2290 = vunpack.c.h.b16 %v416
    %v2291 = vunpack.c.l.b16 %v417
    %v2292 = vunpack.c.l.b16 %v418
    %v2293 = vunpack.c.h.b16 %v418
    %v2294 = vunpack.c.l.b16 %v419
    %v2295 = vunpack.c.h.b16 %v419
    %v2296 = vunpack.c.l.b16 %v420
    %v2297 = vunpack.c.l.b16 %v421
    %v2298 = vunpack.c.h.b16 %v421
    %v2299 = vunpack.c.l.b16 %v422
    %v2300 = vunpack.c.h.b16 %v422
    %v2301 = vunpack.c.l.b16 %v423
    %v2302 = vunpack.c.l.b16 %v424
    %v2303 = vunpack.c.h.b16 %v424
    %v2304 = vunpack.c.l.b16 %v425
    %v2305 = vunpack.c.h.b16 %v425
    %v2306 = vunpack.c.l.b16 %v426
    %v2307 = vunpack.c.l.b16 %v427
    %v2308 = vunpack.c.h.b16 %v427
    %v2309 = vunpack.c.l.b16 %v428
    %v2310 = vunpack.c.h.b16 %v428
    %v2311 = vunpack.c.l.b16 %v429
    %v2312 = vunpack.c.l.b16 %v430
    %v2313 = vunpack.c.h.b16 %v430
    %v2314 = vunpack.c.l.b16 %v431
    %v2315 = vunpack.c.h.b16 %v431
    %v2316 = vunpack.c.l.b16 %v432
    %v2317 = vunpack.c.l.b16 %v433
    %v2318 = vunpack.c.h.b16 %v433
    %v2319 = vunpack.c.l.b16 %v434
    %v2320 = vunpack.c.h.b16 %v434
    %v2321 = vunpack.c.l.b16 %v435
    %v2322 = vunpack.c.l.b16 %v436
    %v2323 = vunpack.c.h.b16 %v436
    %v2324 = vunpack.c.l.b16 %v437
    %v2325 = vunpack.c.h.b16 %v437
    %v2326 = vunpack.c.l.b16 %v438
    %v2327 = vunpack.c.l.b16 %v439
    %v2328 = vunpack.c.h.b16 %v439
    %v2329 = vunpack.c.l.b16 %v440
    %v2330 = vunpack.c.h.b16 %v440
    %v2331 = vunpack.c.l.b16 %v441
    %v2332 = vunpack.c.l.b16 %v442
    %v2333 = vunpack.c.h.b16 %v442
    %v2334 = vunpack.c.l.b16 %v443
    %v2335 = vunpack.c.h.b16 %v443
    %v2336 = vunpack.c.l.b16 %v444
    %v2337 = vunpack.c.l.b16 %v445
    %v2338 = vunpack.c.h.b16 %v445
    %v2339 = vunpack.c.l.b16 %v446
    %v2340 = vunpack.c.h.b16 %v446
    %v2341 = vunpack.c.l.b16 %v447
    %v2342 = vunpack.c.l.b16 %v448
    %v2343 = vunpack.c.h.b16 %v448
    %v2344 = vunpack.c.l.b16 %v449
    %v2345 = vunpack.c.h.b16 %v449
    %v2346 = vunpack.c.l.b16 %v450
    %v2347 = vunpack.c.l.b16 %v451
    %v2348 = vunpack.c.h.b16 %v451
    %v2349 = vunpack.c.l.b16 %v452
    %v2350 = vunpack.c.h.b16 %v452
    %v2351 = vunpack.c.l.b16 %v453
    %v2352 = vunpack.c.l.b16 %v454
    %v2353 = vunpack.c.h.b16 %v454
    %v2354 = vunpack.c.l.b16 %v455
    %v2355 = vunpack.c.h.b16 %v455
    %v2356 = vunpack.c.l.b16 %v456
    %v2357 = vunpack.c.l.b16 %v457
    %v2358 = vunpack.c.h.b16 %v457
    %v2359 = vunpack.c.l.b16 %v458
    %v2360 = vunpack.c.h.b16 %v458
    %v2361 = vunpack.c.l.b16 %v459
    %v2362 = vunpack.c.l.b16 %v460
    %v2363 = vunpack.c.h.b16 %v460
    %v2364 = vunpack.c.l.b16 %v461
    %v2365 = vunpack.c.h.b16 %v461
    %v2366 = vunpack.c.l.b16 %v462
    %v2367 = vunpack.c.l.b16 %v463
    %v2368 = vunpack.c.h.b16 %v463
    %v2369 = vunpack.c.l.b16 %v464
    %v2370 = vunpack.c.h.b16 %v464
    %v2371 = vunpack.c.l.b16 %v465
    %v2372 = vunpack.c.l.b16 %v466
    %v2373 = vunpack.c.h.b16 %v466
    %v2374 = vunpack.c.l.b16 %v467
    %v2375 = vunpack.c.h.b16 %v467
    %v2376 = vunpack.c.l.b16 %v468
    %v2377 = vunpack.c.l.b16 %v469
    %v2378 = vunpack.c.h.b16 %v469
    %v2379 = vunpack.c.l.b16 %v470
    %v2380 = vunpack.c.h.b16 %v470
    %v2381 = vunpack.c.l.b16 %v471
    %v2382 = vunpack.c.l.b16 %v472
    %v2383 = vunpack.c.h.b16 %v472
    %v2384 = vunpack.c.l.b16 %v473
    %v2385 = vunpack.c.h.b16 %v473
    %v2386 = vunpack.c.l.b16 %v474
    %v2387 = vunpack.c.l.b16 %v475
    %v2388 = vunpack.c.h.b16 %v475
    %v2389 = vunpack.c.l.b16 %v476
    %v2390 = vunpack.c.h.b16 %v476
    %v2391 = vunpack.c.l.b16 %v477
    %v2392 = vunpack.c.l.b16 %v478
    %v2393 = vunpack.c.h.b16 %v478
    %v2394 = vunpack.c.l.b16 %v479
    %v2395 = vunpack.c.h.b16 %v479
    %v2396 = vunpack.c.l.b16 %v480
    %v2397 = vunpack.c.l.b16 %v481
    %v2398 = vunpack.c.h.b16 %v481
    %v2399 = vunpack.c.l.b16 %v482
    %v2400 = vunpack.c.h.b16 %v482
    %v2401 = vunpack.c.l.b16 %v483
    %v2402 = vunpack.c.l.b16 %v484
    %v2403 = vunpack.c.h.b16 %v484
    %v2404 = vunpack.c.l.b16 %v485
    %v2405 = vunpack.c.h.b16 %v485
    %v2406 = vunpack.c.l.b16 %v486
    %v2407 = vunpack.c.l.b16 %v487
    %v2408 = vunpack.c.h.b16 %v487
    %v2409 = vunpack.c.l.b16 %v488
    %v2410 = vunpack.c.h.b16 %v488
    %v2411 = vunpack.c.l.b16 %v489
    %v2412 = vunpack.c.l.b16 %v490
    %v2413 = vunpack.c.h.b16 %v490
    %v2414 = vunpack.c.l.b16 %v491
    %v2415 = vunpack.c.h.b16 %v491
    %v2416 = vunpack.c.l.b16 %v492
    %v2417 = vunpack.c.l.b16 %v493
    %v2418 = vunpack.c.h.b16 %v493
    %v2419 = vunpack.c.l.b16 %v494
    %v2420 = vunpack.c.h.b16 %v494
    %v2421 = vunpack.c.l.b16 %v495
    %v2422 = vunpack.c.l.b16 %v496
    %v2423 = vunpack.c.h.b16 %v496
    %v2424 = vunpack.c.l.b16 %v497
    %v2425 = vunpack.c.h.b16 %v497
    %v2426 = vunpack.c.l.b16 %v498
    %v2427 = vunpack.c.l.b16 %v499
    %v2428 = vunpack.c.h.b16 %v499
    %v2429 = vunpack.c.l.b16 %v500
    %v2430 = vunpack.c.h.b16 %v500
    %v2431 = vunpack.c.l.b16 %v501
    %v2432 = vunpack.c.l.b16 %v502
    %v2433 = vunpack.c.h.b16 %v502
    %v2434 = vunpack.c.l.b16 %v503
    %v2435 = vunpack.c.h.b16 %v503
    %v2436 = vunpack.c.l.b16 %v504
    %v2437 = vunpack.c.l.b16 %v505
    %v2438 = vunpack.c.h.b16 %v505
    %v2439 = vunpack.c.l.b16 %v506
    %v2440 = vunpack.c.h.b16 %v506
    %v2441 = vunpack.c.l.b16 %v507
    %v2442 = vunpack.c.l.b16 %v508
    %v2443 = vunpack.c.h.b16 %v508
    %v2444 = vunpack.c.l.b16 %v509
    %v2445 = vunpack.c.h.b16 %v509
    %v2446 = vunpack.c.l.b16 %v510
    %v2447 = vunpack.c.l.b16 %v511
    %v2448 = vunpack.c.h.b16 %v511
    %v2449 = vunpack.c.l.b16 %v512
    %v2450 = vunpack.c.h.b16 %v512
    %v2451 = vunpack.c.l.b16 %v513
    %v2452 = vunpack.c.l.b16 %v514
    %v2453 = vunpack.c.h.b16 %v514
    %v2454 = vunpack.c.l.b16 %v515
    %v2455 = vunpack.c.h.b16 %v515
    %v2456 = vunpack.c.l.b16 %v516
    %v2457 = vunpack.c.l.b16 %v517
    %v2458 = vunpack.c.h.b16 %v517
    %v2459 = vunpack.c.l.b16 %v518
    %v2460 = vunpack.c.h.b16 %v518
    %v2461 = vunpack.c.l.b16 %v519
    %v2462 = vunpack.c.l.b16 %v520
    %v2463 = vunpack.c.h.b16 %v520
    %v2464 = vunpack.c.l.b16 %v521
    %v2465 = vunpack.c.h.b16 %v521
    %v2466 = vunpack.c.l.b16 %v522
    %v2467 = vunpack.c.l.b16 %v523
    %v2468 = vunpack.c.h.b16 %v523
    %v2469 = vunpack.c.l.b16 %v524
    %v2470 = vunpack.c.h.b16 %v524
    %v2471 = vunpack.c.l.b16 %v525
    %v2472 = vunpack.c.l.b16 %v526
    %v2473 = vunpack.c.h.b16 %v526
    %v2474 = vunpack.c.l.b16 %v527
    %v2475 = vunpack.c.h.b16 %v527
    %v2476 = vunpack.c.l.b16 %v528
    %v2477 = vunpack.c.l.b16 %v529
    %v2478 = vunpack.c.h.b16 %v529
    %v2479 = vunpack.c.l.b16 %v530
    %v2480 = vunpack.c.h.b16 %v530
    %v2481 = vunpack.c.l.b16 %v531
    %v2482 = vunpack.c.l.b16 %v532
    %v2483 = vunpack.c.h.b16 %v532
    %v2484 = vunpack.c.l.b16 %v533
    %v2485 = vunpack.c.h.b16 %v533
    %v2486 = vunpack.c.l.b16 %v534
    %v2487 = vunpack.c.l.b16 %v535
    %v2488 = vunpack.c.h.b16 %v535
    %v2489 = vunpack.c.l.b16 %v536
    %v2490 = vunpack.c.h.b16 %v536
    %v2491 = vunpack.c.l.b16 %v537
    %v2492 = vunpack.c.l.b16 %v538
    %v2493 = vunpack.c.h.b16 %v538
    %v2494 = vunpack.c.l.b16 %v539
    %v2495 = vunpack.c.h.b16 %v539
    %v2496 = vunpack.c.l.b16 %v540
    %v2497 = vunpack.c.l.b16 %v541
    %v2498 = vunpack.c.h.b16 %v541
    %v2499 = vunpack.c.l.b16 %v542
    %v2500 = vunpack.c.h.b16 %v542
    %v2501 = vunpack.c.l.b16 %v543
    %v2502 = vunpack.c.l.b16 %v544
    %v2503 = vunpack.c.h.b16 %v544
    %v2504 = vunpack.c.l.b16 %v545
    %v2505 = vunpack.c.h.b16 %v545
    %v2506 = vunpack.c.l.b16 %v546
    %v2507 = vunpack.c.l.b16 %v547
    %v2508 = vunpack.c.h.b16 %v547
    %v2509 = vunpack.c.l.b16 %v548
    %v2510 = vunpack.c.h.b16 %v548
    %v2511 = vunpack.c.l.b16 %v549
    %v2512 = vunpack.c.l.b16 %v550
    %v2513 = vunpack.c.h.b16 %v550
    %v2514 = vunpack.c.l.b16 %v551
    %v2515 = vunpack.c.h.b16 %v551
    %v2516 = vunpack.c.l.b16 %v552
    %v2517 = vunpack.c.l.b16 %v553
    %v2518 = vunpack.c.h.b16 %v553
    %v2519 = vunpack.c.l.b16 %v554
    %v2520 = vunpack.c.h.b16 %v554
    %v2521 = vunpack.c.l.b16 %v555
    %v2522 = vunpack.c.l.b16 %v556
    %v2523 = vunpack.c.h.b16 %v556
    %v2524 = vunpack.c.l.b16 %v557
    %v2525 = vunpack.c.h.b16 %v557
    %v2526 = vunpack.c.l.b16 %v558
    %v2527 = vunpack.c.l.b16 %v559
    %v2528 = vunpack.c.h.b16 %v559
    %v2529 = vunpack.c.l.b16 %v560
    %v2530 = vunpack.c.h.b16 %v560
    %v2531 = vunpack.c.l.b16 %v561
    %v2532 = vunpack.c.l.b16 %v562
    %v2533 = vunpack.c.h.b16 %v562
    %v2534 = vunpack.c.l.b16 %v563
    %v2535 = vunpack.c.h.b16 %v563
    %v2536 = vunpack.c.l.b16 %v564
    %v2537 = vunpack.c.l.b16 %v565
    %v2538 = vunpack.c.h.b16 %v565
    %v2539 = vunpack.c.l.b16 %v566
    %v2540 = vunpack.c.h.b16 %v566
    %v2541 = vunpack.c.l.b16 %v567
    %v2542 = vunpack.c.l.b16 %v568
    %v2543 = vunpack.c.h.b16 %v568
    %v2544 = vunpack.c.l.b16 %v569
    %v2545 = vunpack.c.h.b16 %v569
    %v2546 = vunpack.c.l.b16 %v570
    %v2547 = vunpack.c.l.b16 %v571
    %v2548 = vunpack.c.h.b16 %v571
    %v2549 = vunpack.c.l.b16 %v572
    %v2550 = vunpack.c.h.b16 %v572
    %v2551 = vunpack.c.l.b16 %v573
    %v2552 = vunpack.c.l.b16 %v574
    %v2553 = vunpack.c.h.b16 %v574
    %v2554 = vunpack.c.l.b16 %v575
    %v2555 = vunpack.c.h.b16 %v575
    %v2556 = vunpack.c.l.b16 %v576
    %v2557 = vunpack.c.l.b16 %v577
    %v2558 = vunpack.c.h.b16 %v577
    %v2559 = vunpack.c.l.b16 %v578
    %v2560 = vunpack.c.h.b16 %v578
    %v2561 = vunpack.c.l.b16 %v579
    %v2562 = vunpack.c.l.b16 %v580
    %v2563 = vunpack.c.h.b16 %v580
    %v2564 = vunpack.c.l.b16 %v581
    %v2565 = vunpack.c.h.b16 %v581
    %v2566 = vunpack.c.l.b16 %v582
    %v2567 = vunpack.c.l.b16 %v583
    %v2568 = vunpack.c.h.b16 %v583
    %v2569 = vunpack.c.l.b16 %v584
    %v2570 = vunpack.c.h.b16 %v584
    %v2571 = vunpack.c.l.b16 %v585
    %v2572 = vunpack.c.l.b16 %v586
    %v2573 = vunpack.c.h.b16 %v586
    %v2574 = vunpack.c.l.b16 %v587
    %v2575 = vunpack.c.h.b16 %v587
    %v2576 = vunpack.c.l.b16 %v588
    %v2577 = vunpack.c.l.b16 %v589
    %v2578 = vunpack.c.h.b16 %v589
    %v2579 = vunpack.c.l.b16 %v590
    %v2580 = vunpack.c.h.b16 %v590
    %v2581 = vunpack.c.l.b16 %v591
    %v2582 = vunpack.c.l.b16 %v592
    %v2583 = vunpack.c.h.b16 %v592
    %v2584 = vunpack.c.l.b16 %v593
    %v2585 = vunpack.c.h.b16 %v593
    %v2586 = vunpack.c.l.b16 %v594
    %v2587 = vunpack.c.l.b16 %v595
    %v2588 = vunpack.c.h.b16 %v595
    %v2589 = vunpack.c.l.b16 %v596
    %v2590 = vunpack.c.h.b16 %v596
    %v2591 = vunpack.c.l.b16 %v597
    %v2592 = vunpack.c.l.b16 %v598
    %v2593 = vunpack.c.h.b16 %v598
    %v2594 = vunpack.c.l.b16 %v599
    %v2595 = vunpack.c.h.b16 %v599
    %v2596 = vunpack.c.l.b16 %v600
    %v2597 = vunpack.c.l.b16 %v601
    %v2598 = vunpack.c.h.b16 %v601
    %v2599 = vunpack.c.l.b16 %v602
    %v2600 = vunpack.c.h.b16 %v602
    %v2601 = vunpack.c.l.b16 %v603
    %v2602 = vunpack.c.l.b16 %v604
    %v2603 = vunpack.c.h.b16 %v604
    %v2604 = vunpack.c.l.b16 %v605
    %v2605 = vunpack.c.h.b16 %v605
    %v2606 = vunpack.c.l.b16 %v606
    %v2607 = vunpack.c.l.b16 %v607
    %v2608 = vunpack.c.h.b16 %v607
    %v2609 = vunpack.c.l.b16 %v608
    %v2610 = vunpack.c.h.b16 %v608
    %v2611 = vunpack.c.l.b16 %v609
    %v2612 = vunpack.c.l.b16 %v610
    %v2613 = vunpack.c.h.b16 %v610
    %v2614 = vunpack.c.l.b16 %v611
    %v2615 = vunpack.c.h.b16 %v611
    %v2616 = vunpack.c.l.b16 %v612
    %v2617 = vunpack.c.l.b16 %v613
    %v2618 = vunpack.c.h.b16 %v613
    %v2619 = vunpack.c.l.b16 %v614
    %v2620 = vunpack.c.h.b16 %v614
    %v2621 = vunpack.c.l.b16 %v615
    %v2622 = vunpack.c.l.b16 %v616
    %v2623 = vunpack.c.h.b16 %v616
    %v2624 = vunpack.c.l.b16 %v617
    %v2625 = vunpack.c.h.b16 %v617
    %v2626 = vunpack.c.l.b16 %v618
    %v2627 = vunpack.c.l.b16 %v619
    %v2628 = vunpack.c.h.b16 %v619
    %v2629 = vunpack.c.l.b16 %v620
    %v2630 = vunpack.c.h.b16 %v620
    %v2631 = vunpack.c.l.b16 %v621
    %v2632 = vunpack.c.l.b16 %v622
    %v2633 = vunpack.c.h.b16 %v622
    %v2634 = vunpack.c.l.b16 %v623
    %v2635 = vunpack.c.h.b16 %v623
    %v2636 = vunpack.c.l.b16 %v624
    %v2637 = vunpack.c.l.b16 %v625
    %v2638 = vunpack.c.h.b16 %v625
    %v2639 = vunpack.c.l.b16 %v626
    %v2640 = vunpack.c.h.b16 %v626
    %v2641 = vunpack.c.l.b16 %v627
    %v2642 = vunpack.c.l.b16 %v628
    %v2643 = vunpack.c.h.b16 %v628
    %v2644 = vunpack.c.l.b16 %v629
    %v2645 = vunpack.c.h.b16 %v629
    %v2646 = vunpack.c.l.b16 %v630
    %v2647 = vunpack.c.l.b16 %v631
    %v2648 = vunpack.c.h.b16 %v631
    %v2649 = vunpack.c.l.b16 %v632
    %v2650 = vunpack.c.h.b16 %v632
    %v2651 = vunpack.c.l.b16 %v633
    %v2652 = vunpack.c.l.b16 %v634
    %v2653 = vunpack.c.h.b16 %v634
    %v2654 = vunpack.c.l.b16 %v635
    %v2655 = vunpack.c.h.b16 %v635
    %v2656 = vunpack.c.l.b16 %v636
    %v2657 = vunpack.c.l.b16 %v637
    %v2658 = vunpack.c.h.b16 %v637
    %v2659 = vunpack.c.l.b16 %v638
    %v2660 = vunpack.c.h.b16 %v638
    %v2661 = vunpack.c.l.b16 %v639
    %v2662 = vunpack.c.l.b16 %v640
    %v2663 = vunpack.c.h.b16 %v640
    %v2664 = vunpack.c.l.b16 %v641
    %v2665 = vunpack.c.h.b16 %v641
    %v2666 = vunpack.c.l.b16 %v642
    %v2667 = vunpack.c.l.b16 %v643
    %v2668 = vunpack.c.h.b16 %v643
    %v2669 = vunpack.c.l.b16 %v644
    %v2670 = vunpack.c.h.b16 %v644
    %v2671 = vunpack.c.l.b16 %v645
    %v2672 = vunpack.c.l.b16 %v646
    %v2673 = vunpack.c.h.b16 %v646
    %v2674 = vunpack.c.l.b16 %v647
    %v2675 = vunpack.c.h.b16 %v647
    %v2676 = vunpack.c.l.b16 %v648
    %v2677 = vunpack.c.l.b16 %v649
    %v2678 = vunpack.c.h.b16 %v649
    %v2679 = vunpack.c.l.b16 %v650
    %v2680 = vunpack.c.h.b16 %v650
    %v2681 = vunpack.c.l.b16 %v651
    %v2682 = vunpack.c.l.b16 %v652
    %v2683 = vunpack.c.h.b16 %v652
    %v2684 = vunpack.c.l.b16 %v653
    %v2685 = vunpack.c.h.b16 %v653
    %v2686 = vunpack.c.l.b16 %v654
    %v2687 = vunpack.c.l.b16 %v655
    %v2688 = vunpack.c.h.b16 %v655
    %v2689 = vunpack.c.l.b16 %v656
    %v2690 = vunpack.c.h.b16 %v656
    %v2691 = vunpack.c.l.b16 %v657
    %v2692 = vunpack.c.l.b16 %v658
    %v2693 = vunpack.c.h.b16 %v658
    %v2694 = vunpack.c.l.b16 %v659
    %v2695 = vunpack.c.h.b16 %v659
    %v2696 = vunpack.c.l.b16 %v660
    %v2697 = vunpack.c.l.b16 %v661
    %v2698 = vunpack.c.h.b16 %v661
    %v2699 = vunpack.c.l.b16 %v662
    %v2700 = vunpack.c.h.b16 %v662
    %v2701 = vunpack.c.l.b16 %v663
    %v2702 = vunpack.c.l.b16 %v664
    %v2703 = vunpack.c.h.b16 %v664
    %v2704 = vunpack.c.l.b16 %v665
    %v2705 = vunpack.c.h.b16 %v665
    %v2706 = vunpack.c.l.b16 %v666
    %v2707 = vunpack.c.l.b16 %v667
    %v2708 = vunpack.c.h.b16 %v667
    %v2709 = vunpack.c.l.b16 %v668
    %v2710 = vunpack.c.h.b16 %v668
    %v2711 = vunpack.c.l.b16 %v669
    %v2712 = vunpack.c.l.b16 %v670
    %v2713 = vunpack.c.h.b16 %v670
    %v2714 = vunpack.c.l.b16 %v671
    %v2715 = vunpack.c.h.b16 %v671
    %v2716 = vunpack.c.l.b16 %v672
    %v2717 = vunpack.c.l.b16 %v673
    %v2718 = vunpack.c.h.b16 %v673
    %v2719 = vunpack.c.l.b16 %v674
    %v2720 = vunpack.c.h.b16 %v674
    %v2721 = vunpack.c.l.b16 %v675
    %v2722 = vunpack.c.l.b16 %v676
    %v2723 = vunpack.c.h.b16 %v676
    %v2724 = vunpack.c.l.b16 %v677
    %v2725 = vunpack.c.h.b16 %v677
    %v2726 = vunpack.c.l.b16 %v678
    %v2727 = vunpack.c.l.b16 %v679
    %v2728 = vunpack.c.h.b16 %v679
    %v2729 = vunpack.c.l.b16 %v680
    %v2730 = vunpack.c.h.b16 %v680
    %v2731 = vunpack.c.l.b16 %v681
    %v2732 = vunpack.c.l.b16 %v682
    %v2733 = vunpack.c.h.b16 %v682
    %v2734 = vunpack.c.l.b16 %v683
    %v2735 = vunpack.c.h.b16 %v683
    %v2736 = vunpack.c.l.b16 %v684
    %v2737 = vunpack.c.l.b16 %v685
    %v2738 = vunpack.c.h.b16 %v685
    %v2739 = vunpack.c.l.b16 %v686
    %v2740 = vunpack.c.h.b16 %v686
    %v2741 = vunpack.c.l.b16 %v687
    %v2742 = vunpack.c.l.b16 %v688
    %v2743 = vunpack.c.h.b16 %v688
    %v2744 = vunpack.c.l.b16 %v689
    %v2745 = vunpack.c.h.b16 %v689
    %v2746 = vunpack.c.l.b16 %v690
    %v2747 = vunpack.c.l.b16 %v691
    %v2748 = vunpack.c.h.b16 %v691
    %v2749 = vunpack.c.l.b16 %v692
    %v2750 = vunpack.c.h.b16 %v692
    %v2751 = vunpack.c.l.b16 %v693
    %v2752 = vunpack.c.l.b16 %v694
    %v2753 = vunpack.c.h.b16 %v694
    %v2754 = vunpack.c.l.b16 %v695
    %v2755 = vunpack.c.h.b16 %v695
    %v2756 = vunpack.c.l.b16 %v696
    %v2757 = vunpack.c.l.b16 %v697
    %v2758 = vunpack.c.h.b16 %v697
    %v2759 = vunpack.c.l.b16 %v698
    %v2760 = vunpack.c.h.b16 %v698
    %v2761 = vunpack.c.l.b16 %v699
    %v2762 = vunpack.c.l.b16 %v700
    %v2763 = vunpack.c.h.b16 %v700
    %v2764 = vunpack.c.l.b16 %v701
    %v2765 = vunpack.c.h.b16 %v701
    %v2766 = vunpack.c.l.b16 %v702
    %v2767 = vunpack.c.l.b16 %v703
    %v2768 = vunpack.c.h.b16 %v703
    %v2769 = vunpack.c.l.b16 %v704
    %v2770 = vunpack.c.h.b16 %v704
    %v2771 = vunpack.c.l.b16 %v705
    %v2772 = vunpack.c.l.b16 %v706
    %v2773 = vunpack.c.h.b16 %v706
    %v2774 = vunpack.c.l.b16 %v707
    %v2775 = vunpack.c.h.b16 %v707
    %v2776 = vunpack.c.l.b16 %v708
    %v2777 = vunpack.c.l.b16 %v709
    %v2778 = vunpack.c.h.b16 %v709
    %v2779 = vunpack.c.l.b16 %v710
    %v2780 = vunpack.c.h.b16 %v710
    %v2781 = vunpack.c.l.b16 %v711
    %v2782 = vunpack.c.l.b16 %v712
    %v2783 = vunpack.c.h.b16 %v712
    %v2784 = vunpack.c.l.b16 %v713
    %v2785 = vunpack.c.h.b16 %v713
    %v2786 = vunpack.c.l.b16 %v714
    %v2787 = vunpack.c.l.b16 %v715
    %v2788 = vunpack.c.h.b16 %v715
    %v2789 = vunpack.c.l.b16 %v716
    %v2790 = vunpack.c.h.b16 %v716
    %v2791 = vunpack.c.l.b16 %v717
    %v2792 = vunpack.c.l.b16 %v718
    %v2793 = vunpack.c.h.b16 %v718
    %v2794 = vunpack.c.l.b16 %v719
    %v2795 = vunpack.c.h.b16 %v719
    %v2796 = vunpack.c.l.b16 %v720
    %v2797 = vunpack.c.l.b16 %v721
    %v2798 = vunpack.c.h.b16 %v721
    %v2799 = vunpack.c.l.b16 %v722
    %v2800 = vunpack.c.h.b16 %v722
    %v2801 = vunpack.c.l.b16 %v723
    %v2802 = vunpack.c.l.b16 %v724
    %v2803 = vunpack.c.h.b16 %v724
    %v2804 = vunpack.c.l.b16 %v725
    %v2805 = vunpack.c.h.b16 %v725
    %v2806 = vunpack.c.l.b16 %v726
    %v2807 = vunpack.c.l.b16 %v727
    %v2808 = vunpack.c.h.b16 %v727
    %v2809 = vunpack.c.l.b16 %v728
    %v2810 = vunpack.c.h.b16 %v728
    %v2811 = vunpack.c.l.b16 %v729
    %v2812 = vunpack.c.l.b16 %v730
    %v2813 = vunpack.c.h.b16 %v730
    %v2814 = vunpack.c.l.b16 %v731
    %v2815 = vunpack.c.h.b16 %v731
    %v2816 = vunpack.c.l.b16 %v732
    %v2817 = vunpack.c.l.b16 %v733
    %v2818 = vunpack.c.h.b16 %v733
    %v2819 = vunpack.c.l.b16 %v734
    %v2820 = vunpack.c.h.b16 %v734
    %v2821 = vunpack.c.l.b16 %v735
    %v2822 = vunpack.c.l.b16 %v736
    %v2823 = vunpack.c.h.b16 %v736
    %v2824 = vunpack.c.l.b16 %v737
    %v2825 = vunpack.c.h.b16 %v737
    %v2826 = vunpack.c.l.b16 %v738
    %v2827 = vunpack.c.l.b16 %v739
    %v2828 = vunpack.c.h.b16 %v739
    %v2829 = vunpack.c.l.b16 %v740
    %v2830 = vunpack.c.h.b16 %v740
    %v2831 = vunpack.c.l.b16 %v741
    %v2832 = vunpack.c.l.b16 %v742
    %v2833 = vunpack.c.h.b16 %v742
    %v2834 = vunpack.c.l.b16 %v743
    %v2835 = vunpack.c.h.b16 %v743
    %v2836 = vunpack.c.l.b16 %v744
    %v2837 = vunpack.c.l.b16 %v745
    %v2838 = vunpack.c.h.b16 %v745
    %v2839 = vunpack.c.l.b16 %v746
    %v2840 = vunpack.c.h.b16 %v746
    %v2841 = vunpack.c.l.b16 %v747
    %v2842 = vunpack.c.l.b16 %v748
    %v2843 = vunpack.c.h.b16 %v748
    %v2844 = vunpack.c.l.b16 %v749
    %v2845 = vunpack.c.h.b16 %v749
    %v2846 = vunpack.c.l.b16 %v750
    %v2847 = vunpack.c.l.b16 %v751
    %v2848 = vunpack.c.h.b16 %v751
    %v2849 = vunpack.c.l.b16 %v752
    %v2850 = vunpack.c.h.b16 %v752
    %v2851 = vunpack.c.l.b16 %v753
    %v2852 = vunpack.c.l.b16 %v754
    %v2853 = vunpack.c.h.b16 %v754
    %v2854 = vunpack.c.l.b16 %v755
    %v2855 = vunpack.c.h.b16 %v755
    %v2856 = vunpack.c.l.b16 %v756
    %v2857 = vunpack.c.l.b16 %v757
    %v2858 = vunpack.c.h.b16 %v757
    %v2859 = vunpack.c.l.b16 %v758
    %v2860 = vunpack.c.h.b16 %v758
    %v2861 = vunpack.c.l.b16 %v759
    %v2862 = vunpack.c.l.b16 %v760
    %v2863 = vunpack.c.h.b16 %v760
    %v2864 = vunpack.c.l.b16 %v761
    %v2865 = vunpack.c.h.b16 %v761
    %v2866 = vunpack.c.l.b16 %v762
    %v2867 = vunpack.c.l.b16 %v763
    %v2868 = vunpack.c.h.b16 %v763
    %v2869 = vunpack.c.l.b16 %v764
    %v2870 = vunpack.c.h.b16 %v764
    %v2871 = vunpack.c.l.b16 %v765
    %v2872 = vunpack.c.l.b16 %v766
    %v2873 = vunpack.c.h.b16 %v766
    %v2874 = vunpack.c.l.b16 %v767
    %v2875 = vunpack.c.h.b16 %v767
    %v2876 = vunpack.c.l.b16 %v768
    %v2877 = vunpack.c.l.b16 %v769
    %v2878 = vunpack.c.h.b16 %v769
    %v2879 = vunpack.c.l.b16 %v770
    %v2880 = vunpack.c.h.b16 %v770
    %v2881 = vunpack.c.l.b16 %v771
    %v2882 = vunpack.c.l.b16 %v772
    %v2883 = vunpack.c.h.b16 %v772
    %v2884 = vunpack.c.l.b16 %v773
    %v2885 = vunpack.c.h.b16 %v773
    %v2886 = vunpack.c.l.b16 %v774
    %v2887 = vunpack.c.l.b16 %v775
    %v2888 = vunpack.c.h.b16 %v775
    %v2889 = vunpack.c.l.b16 %v776
    %v2890 = vunpack.c.h.b16 %v776
    %v2891 = vunpack.c.l.b16 %v777
    %v2892 = vunpack.c.l.b16 %v778
    %v2893 = vunpack.c.h.b16 %v778
    %v2894 = vunpack.c.l.b16 %v779
    %v2895 = vunpack.c.h.b16 %v779
    %v2896 = vunpack.c.l.b16 %v780
    %v2897 = vunpack.c.l.b16 %v781
    %v2898 = vunpack.c.h.b16 %v781
    %v2899 = vunpack.c.l.b16 %v782
    %v2900 = vunpack.c.h.b16 %v782
    %v2901 = vunpack.c.l.b16 %v783
    %v2902 = vunpack.c.l.b16 %v784
    %v2903 = vunpack.c.h.b16 %v784
    %v2904 = vunpack.c.l.b16 %v785
    %v2905 = vunpack.c.h.b16 %v785
    %v2906 = vunpack.c.l.b16 %v786
    %v2907 = vunpack.c.l.b16 %v787
    %v2908 = vunpack.c.h.b16 %v787
    %v2909 = vunpack.c.l.b16 %v788
    %v2910 = vunpack.c.h.b16 %v788
    %v2911 = vunpack.c.l.b16 %v789
    %v2912 = vunpack.c.l.b16 %v790
    %v2913 = vunpack.c.h.b16 %v790
    %v2914 = vunpack.c.l.b16 %v791
    %v2915 = vunpack.c.h.b16 %v791
    %v2916 = vunpack.c.l.b16 %v792
    %v2917 = vunpack.c.l.b16 %v793
    %v2918 = vunpack.c.h.b16 %v793
    %v2919 = vunpack.c.l.b16 %v794
    %v2920 = vunpack.c.h.b16 %v794
    %v2921 = vunpack.c.l.b16 %v795
    %v2922 = vunpack.c.l.b16 %v796
    %v2923 = vunpack.c.h.b16 %v796
    %v2924 = vunpack.c.l.b16 %v797
    %v2925 = vunpack.c.h.b16 %v797
    %v2926 = vunpack.c.l.b16 %v798
    %v2927 = vpack.c.b16 %v1652, %v1647
    %v2928 = vpack.c.b16 %v1653, %v1648
    %v2929 = vpack.c.b16 %v1654, %v1649
    %v2930 = vpack.c.b16 %v1655, %v1650
    %v2931 = vpack.c.b16 %v1656, %v1651
    %v2932 = vpack.c.b16 %v1662, %v1657
    %v2933 = vpack.c.b16 %v1663, %v1658
    %v2934 = vpack.c.b16 %v1664, %v1659
    %v2935 = vpack.c.b16 %v1665, %v1660
    %v2936 = vpack.c.b16 %v1666, %v1661
    %v2937 = vpack.c.b16 %v1672, %v1667
    %v2938 = vpack.c.b16 %v1673, %v1668
    %v2939 = vpack.c.b16 %v1674, %v1669
    %v2940 = vpack.c.b16 %v1675, %v1670
    %v2941 = vpack.c.b16 %v1676, %v1671
    %v2942 = vpack.c.b16 %v1682, %v1677
    %v2943 = vpack.c.b16 %v1683, %v1678
    %v2944 = vpack.c.b16 %v1684, %v1679
    %v2945 = vpack.c.b16 %v1685, %v1680
    %v2946 = vpack.c.b16 %v1686, %v1681
    %v2947 = vpack.c.b16 %v1692, %v1687
    %v2948 = vpack.c.b16 %v1693, %v1688
    %v2949 = vpack.c.b16 %v1694, %v1689
    %v2950 = vpack.c.b16 %v1695, %v1690
    %v2951 = vpack.c.b16 %v1696, %v1691
    %v2952 = vpack.c.b16 %v1702, %v1697
    %v2953 = vpack.c.b16 %v1703, %v1698
    %v2954 = vpack.c.b16 %v1704, %v1699
    %v2955 = vpack.c.b16 %v1705, %v1700
    %v2956 = vpack.c.b16 %v1706, %v1701
    %v2957 = vpack.c.b16 %v1712, %v1707
    %v2958 = vpack.c.b16 %v1713, %v1708
    %v2959 = vpack.c.b16 %v1714, %v1709
    %v2960 = vpack.c.b16 %v1715, %v1710
    %v2961 = vpack.c.b16 %v1716, %v1711
    %v2962 = vpack.c.b16 %v1722, %v1717
    %v2963 = vpack.c.b16 %v1723, %v1718
    %v2964 = vpack.c.b16 %v1724, %v1719
    %v2965 = vpack.c.b16 %v1725, %v1720
    %v2966 = vpack.c.b16 %v1726, %v1721
    %v2967 = vpack.c.b16 %v1732, %v1727
    %v2968 = vpack.c.b16 %v1733, %v1728
    %v2969 = vpack.c.b16 %v1734, %v1729
    %v2970 = vpack.c.b16 %v1735, %v1730
    %v2971 = vpack.c.b16 %v1736, %v1731
    %v2972 = vpack.c.b16 %v1742, %v1737
    %v2973 = vpack.c.b16 %v1743, %v1738
    %v2974 = vpack.c.b16 %v1744, %v1739
    %v2975 = vpack.c.b16 %v1745, %v1740
    %v2976 = vpack.c.b16 %v1746, %v1741
    %v2977 = vpack.c.b16 %v1752, %v1747
    %v2978 = vpack.c.b16 %v1753, %v1748
    %v2979 = vpack.c.b16 %v1754, %v1749
    %v2980 = vpack.c.b16 %v1755, %v1750
    %v2981 = vpack.c.b16 %v1756, %v1751
    %v2982 = vpack.c.b16 %v1762, %v1757
    %v2983 = vpack.c.b16 %v1763, %v1758
    %v2984 = vpack.c.b16 %v1764, %v1759
    %v2985 = vpack.c.b16 %v1765, %v1760
    %v2986 = vpack.c.b16 %v1766, %v1761
    %v2987 = vpack.c.b16 %v1772, %v1767
    %v2988 = vpack.c.b16 %v1773, %v1768
    %v2989 = vpack.c.b16 %v1774, %v1769
    %v2990 = vpack.c.b16 %v1775, %v1770
    %v2991 = vpack.c.b16 %v1776, %v1771
    %v2992 = vpack.c.b16 %v1782, %v1777
    %v2993 = vpack.c.b16 %v1783, %v1778
    %v2994 = vpack.c.b16 %v1784, %v1779
    %v2995 = vpack.c.b16 %v1785, %v1780
    %v2996 = vpack.c.b16 %v1786, %v1781
    %v2997 = vpack.c.b16 %v1792, %v1787
    %v2998 = vpack.c.b16 %v1793, %v1788
    %v2999 = vpack.c.b16 %v1794, %v1789
    %v3000 = vpack.c.b16 %v1795, %v1790
    %v3001 = vpack.c.b16 %v1796, %v1791
    %v3002 = vpack.c.b16 %v1802, %v1797
    %v3003 = vpack.c.b16 %v1803, %v1798
    %v3004 = vpack.c.b16 %v1804, %v1799
    %v3005 = vpack.c.b16 %v1805, %v1800
    %v3006 = vpack.c.b16 %v1806, %v1801
    %v3007 = vpack.c.b16 %v1812, %v1807
    %v3008 = vpack.c.b16 %v1813, %v1808
    %v3009 = vpack.c.b16 %v1814, %v1809
    %v3010 = vpack.c.b16 %v1815, %v1810
    %v3011 = vpack.c.b16 %v1816, %v1811
    %v3012 = vpack.c.b16 %v1822, %v1817
    %v3013 = vpack.c.b16 %v1823, %v1818
    %v3014 = vpack.c.b16 %v1824, %v1819
    %v3015 = vpack.c.b16 %v1825, %v1820
    %v3016 = vpack.c.b16 %v1826, %v1821
    %v3017 = vpack.c.b16 %v1832, %v1827
    %v3018 = vpack.c.b16 %v1833, %v1828
    %v3019 = vpack.c.b16 %v1834, %v1829
    %v3020 = vpack.c.b16 %v1835, %v1830
    %v3021 = vpack.c.b16 %v1836, %v1831
    %v3022 = vpack.c.b16 %v1842, %v1837
    %v3023 = vpack.c.b16 %v1843, %v1838
    %v3024 = vpack.c.b16 %v1844, %v1839
    %v3025 = vpack.c.b16 %v1845, %v1840
    %v3026 = vpack.c.b16 %v1846, %v1841
    %v3027 = vpack.c.b16 %v1852, %v1847
    %v3028 = vpack.c.b16 %v1853, %v1848
    %v3029 = vpack.c.b16 %v1854, %v1849
    %v3030 = vpack.c.b16 %v1855, %v1850
    %v3031 = vpack.c.b16 %v1856, %v1851
    %v3032 = vpack.c.b16 %v1862, %v1857
    %v3033 = vpack.c.b16 %v1863, %v1858
    %v3034 = vpack.c.b16 %v1864, %v1859
    %v3035 = vpack.c.b16 %v1865, %v1860
    %v3036 = vpack.c.b16 %v1866, %v1861
    %v3037 = vpack.c.b16 %v1872, %v1867
    %v3038 = vpack.c.b16 %v1873, %v1868
    %v3039 = vpack.c.b16 %v1874, %v1869
    %v3040 = vpack.c.b16 %v1875, %v1870
    %v3041 = vpack.c.b16 %v1876, %v1871
    %v3042 = vpack.c.b16 %v1882, %v1877
    %v3043 = vpack.c.b16 %v1883, %v1878
    %v3044 = vpack.c.b16 %v1884, %v1879
    %v3045 = vpack.c.b16 %v1885, %v1880
    %v3046 = vpack.c.b16 %v1886, %v1881
    %v3047 = vpack.c.b16 %v1892, %v1887
    %v3048 = vpack.c.b16 %v1893, %v1888
    %v3049 = vpack.c.b16 %v1894, %v1889
    %v3050 = vpack.c.b16 %v1895, %v1890
    %v3051 = vpack.c.b16 %v1896, %v1891
    %v3052 = vpack.c.b16 %v1902, %v1897
    %v3053 = vpack.c.b16 %v1903, %v1898
    %v3054 = vpack.c.b16 %v1904, %v1899
    %v3055 = vpack.c.b16 %v1905, %v1900
    %v3056 = vpack.c.b16 %v1906, %v1901
    %v3057 = vpack.c.b16 %v1912, %v1907
    %v3058 = vpack.c.b16 %v1913, %v1908
    %v3059 = vpack.c.b16 %v1914, %v1909
    %v3060 = vpack.c.b16 %v1915, %v1910
    %v3061 = vpack.c.b16 %v1916, %v1911
    %v3062 = vpack.c.b16 %v1922, %v1917
    %v3063 = vpack.c.b16 %v1923, %v1918
    %v3064 = vpack.c.b16 %v1924, %v1919
    %v3065 = vpack.c.b16 %v1925, %v1920
    %v3066 = vpack.c.b16 %v1926, %v1921
    %v3067 = vpack.c.b16 %v1932, %v1927
    %v3068 = vpack.c.b16 %v1933, %v1928
    %v3069 = vpack.c.b16 %v1934, %v1929
    %v3070 = vpack.c.b16 %v1935, %v1930
    %v3071 = vpack.c.b16 %v1936, %v1931
    %v3072 = vpack.c.b16 %v1942, %v1937
    %v3073 = vpack.c.b16 %v1943, %v1938
    %v3074 = vpack.c.b16 %v1944, %v1939
    %v3075 = vpack.c.b16 %v1945, %v1940
    %v3076 = vpack.c.b16 %v1946, %v1941
    %v3077 = vpack.c.b16 %v1952, %v1947
    %v3078 = vpack.c.b16 %v1953, %v1948
    %v3079 = vpack.c.b16 %v1954, %v1949
    %v3080 = vpack.c.b16 %v1955, %v1950
    %v3081 = vpack.c.b16 %v1956, %v1951
    %v3082 = vpack.c.b16 %v1962, %v1957
    %v3083 = vpack.c.b16 %v1963, %v1958
    %v3084 = vpack.c.b16 %v1964, %v1959
    %v3085 = vpack.c.b16 %v1965, %v1960
    %v3086 = vpack.c.b16 %v1966, %v1961
    %v3087 = vpack.c.b16 %v1972, %v1967
    %v3088 = vpack.c.b16 %v1973, %v1968
    %v3089 = vpack.c.b16 %v1974, %v1969
    %v3090 = vpack.c.b16 %v1975, %v1970
    %v3091 = vpack.c.b16 %v1976, %v1971
    %v3092 = vpack.c.b16 %v1982, %v1977
    %v3093 = vpack.c.b16 %v1983, %v1978
    %v3094 = vpack.c.b16 %v1984, %v1979
    %v3095 = vpack.c.b16 %v1985, %v1980
    %v3096 = vpack.c.b16 %v1986, %v1981
    %v3097 = vpack.c.b16 %v1992, %v1987
    %v3098 = vpack.c.b16 %v1993, %v1988
    %v3099 = vpack.c.b16 %v1994, %v1989
    %v3100 = vpack.c.b16 %v1995, %v1990
    %v3101 = vpack.c.b16 %v1996, %v1991
    %v3102 = vpack.c.b16 %v2002, %v1997
    %v3103 = vpack.c.b16 %v2003, %v1998
    %v3104 = vpack.c.b16 %v2004, %v1999
    %v3105 = vpack.c.b16 %v2005, %v2000
    %v3106 = vpack.c.b16 %v2006, %v2001
    %v3107 = vpack.c.b16 %v2012, %v2007
    %v3108 = vpack.c.b16 %v2013, %v2008
    %v3109 = vpack.c.b16 %v2014, %v2009
    %v3110 = vpack.c.b16 %v2015, %v2010
    %v3111 = vpack.c.b16 %v2016, %v2011
    %v3112 = vpack.c.b16 %v2022, %v2017
    %v3113 = vpack.c.b16 %v2023, %v2018
    %v3114 = vpack.c.b16 %v2024, %v2019
    %v3115 = vpack.c.b16 %v2025, %v2020
    %v3116 = vpack.c.b16 %v2026, %v2021
    %v3117 = vpack.c.b16 %v2032, %v2027
    %v3118 = vpack.c.b16 %v2033, %v2028
    %v3119 = vpack.c.b16 %v2034, %v2029
    %v3120 = vpack.c.b16 %v2035, %v2030
    %v3121 = vpack.c.b16 %v2036, %v2031
    %v3122 = vpack.c.b16 %v2042, %v2037
    %v3123 = vpack.c.b16 %v2043, %v2038
    %v3124 = vpack.c.b16 %v2044, %v2039
    %v3125 = vpack.c.b16 %v2045, %v2040
    %v3126 = vpack.c.b16 %v2046, %v2041
    %v3127 = vpack.c.b16 %v2052, %v2047
    %v3128 = vpack.c.b16 %v2053, %v2048
    %v3129 = vpack.c.b16 %v2054, %v2049
    %v3130 = vpack.c.b16 %v2055, %v2050
    %v3131 = vpack.c.b16 %v2056, %v2051
    %v3132 = vpack.c.b16 %v2062, %v2057
    %v3133 = vpack.c.b16 %v2063, %v2058
    %v3134 = vpack.c.b16 %v2064, %v2059
    %v3135 = vpack.c.b16 %v2065, %v2060
    %v3136 = vpack.c.b16 %v2066, %v2061
    %v3137 = vpack.c.b16 %v2072, %v2067
    %v3138 = vpack.c.b16 %v2073, %v2068
    %v3139 = vpack.c.b16 %v2074, %v2069
    %v3140 = vpack.c.b16 %v2075, %v2070
    %v3141 = vpack.c.b16 %v2076, %v2071
    %v3142 = vpack.c.b16 %v2082, %v2077
    %v3143 = vpack.c.b16 %v2083, %v2078
    %v3144 = vpack.c.b16 %v2084, %v2079
    %v3145 = vpack.c.b16 %v2085, %v2080
    %v3146 = vpack.c.b16 %v2086, %v2081
    %v3147 = vpack.c.b16 %v2092, %v2087
    %v3148 = vpack.c.b16 %v2093, %v2088
    %v3149 = vpack.c.b16 %v2094, %v2089
    %v3150 = vpack.c.b16 %v2095, %v2090
    %v3151 = vpack.c.b16 %v2096, %v2091
    %v3152 = vpack.c.b16 %v2102, %v2097
    %v3153 = vpack.c.b16 %v2103, %v2098
    %v3154 = vpack.c.b16 %v2104, %v2099
    %v3155 = vpack.c.b16 %v2105, %v2100
    %v3156 = vpack.c.b16 %v2106, %v2101
    %v3157 = vpack.c.b16 %v2112, %v2107
    %v3158 = vpack.c.b16 %v2113, %v2108
    %v3159 = vpack.c.b16 %v2114, %v2109
    %v3160 = vpack.c.b16 %v2115, %v2110
    %v3161 = vpack.c.b16 %v2116, %v2111
    %v3162 = vpack.c.b16 %v2122, %v2117
    %v3163 = vpack.c.b16 %v2123, %v2118
    %v3164 = vpack.c.b16 %v2124, %v2119
    %v3165 = vpack.c.b16 %v2125, %v2120
    %v3166 = vpack.c.b16 %v2126, %v2121
    %v3167 = vpack.c.b16 %v2132, %v2127
    %v3168 = vpack.c.b16 %v2133, %v2128
    %v3169 = vpack.c.b16 %v2134, %v2129
    %v3170 = vpack.c.b16 %v2135, %v2130
    %v3171 = vpack.c.b16 %v2136, %v2131
    %v3172 = vpack.c.b16 %v2142, %v2137
    %v3173 = vpack.c.b16 %v2143, %v2138
    %v3174 = vpack.c.b16 %v2144, %v2139
    %v3175 = vpack.c.b16 %v2145, %v2140
    %v3176 = vpack.c.b16 %v2146, %v2141
    %v3177 = vpack.c.b16 %v2152, %v2147
    %v3178 = vpack.c.b16 %v2153, %v2148
    %v3179 = vpack.c.b16 %v2154, %v2149
    %v3180 = vpack.c.b16 %v2155, %v2150
    %v3181 = vpack.c.b16 %v2156, %v2151
    %v3182 = vpack.c.b16 %v2162, %v2157
    %v3183 = vpack.c.b16 %v2163, %v2158
    %v3184 = vpack.c.b16 %v2164, %v2159
    %v3185 = vpack.c.b16 %v2165, %v2160
    %v3186 = vpack.c.b16 %v2166, %v2161
    %v3187 = vpack.c.b16 %v2172, %v2167
    %v3188 = vpack.c.b16 %v2173, %v2168
    %v3189 = vpack.c.b16 %v2174, %v2169
    %v3190 = vpack.c.b16 %v2175, %v2170
    %v3191 = vpack.c.b16 %v2176, %v2171
    %v3192 = vpack.c.b16 %v2182, %v2177
    %v3193 = vpack.c.b16 %v2183, %v2178
    %v3194 = vpack.c.b16 %v2184, %v2179
    %v3195 = vpack.c.b16 %v2185, %v2180
    %v3196 = vpack.c.b16 %v2186, %v2181
    %v3197 = vpack.c.b16 %v2192, %v2187
    %v3198 = vpack.c.b16 %v2193, %v2188
    %v3199 = vpack.c.b16 %v2194, %v2189
    %v3200 = vpack.c.b16 %v2195, %v2190
    %v3201 = vpack.c.b16 %v2196, %v2191
    %v3202 = vpack.c.b16 %v2202, %v2197
    %v3203 = vpack.c.b16 %v2203, %v2198
    %v3204 = vpack.c.b16 %v2204, %v2199
    %v3205 = vpack.c.b16 %v2205, %v2200
    %v3206 = vpack.c.b16 %v2206, %v2201
    %v3207 = vpack.c.b16 %v2212, %v2207
    %v3208 = vpack.c.b16 %v2213, %v2208
    %v3209 = vpack.c.b16 %v2214, %v2209
    %v3210 = vpack.c.b16 %v2215, %v2210
    %v3211 = vpack.c.b16 %v2216, %v2211
    %v3212 = vpack.c.b16 %v2222, %v2217
    %v3213 = vpack.c.b16 %v2223, %v2218
    %v3214 = vpack.c.b16 %v2224, %v2219
    %v3215 = vpack.c.b16 %v2225, %v2220
    %v3216 = vpack.c.b16 %v2226, %v2221
    %v3217 = vpack.c.b16 %v2232, %v2227
    %v3218 = vpack.c.b16 %v2233, %v2228
    %v3219 = vpack.c.b16 %v2234, %v2229
    %v3220 = vpack.c.b16 %v2235, %v2230
    %v3221 = vpack.c.b16 %v2236, %v2231
    %v3222 = vpack.c.b16 %v2242, %v2237
    %v3223 = vpack.c.b16 %v2243, %v2238
    %v3224 = vpack.c.b16 %v2244, %v2239
    %v3225 = vpack.c.b16 %v2245, %v2240
    %v3226 = vpack.c.b16 %v2246, %v2241
    %v3227 = vpack.c.b16 %v2252, %v2247
    %v3228 = vpack.c.b16 %v2253, %v2248
    %v3229 = vpack.c.b16 %v2254, %v2249
    %v3230 = vpack.c.b16 %v2255, %v2250
    %v3231 = vpack.c.b16 %v2256, %v2251
    %v3232 = vpack.c.b16 %v2262, %v2257
    %v3233 = vpack.c.b16 %v2263, %v2258
    %v3234 = vpack.c.b16 %v2264, %v2259
    %v3235 = vpack.c.b16 %v2265, %v2260
    %v3236 = vpack.c.b16 %v2266, %v2261
    %v3237 = vpack.c.b16 %v2272, %v2267
    %v3238 = vpack.c.b16 %v2273, %v2268
    %v3239 = vpack.c.b16 %v2274, %v2269
    %v3240 = vpack.c.b16 %v2275, %v2270
    %v3241 = vpack.c.b16 %v2276, %v2271
    %v3242 = vpack.c.b16 %v2282, %v2277
    %v3243 = vpack.c.b16 %v2283, %v2278
    %v3244 = vpack.c.b16 %v2284, %v2279
    %v3245 = vpack.c.b16 %v2285, %v2280
    %v3246 = vpack.c.b16 %v2286, %v2281
    %v3247 = vpack.c.b16 %v2292, %v2287
    %v3248 = vpack.c.b16 %v2293, %v2288
    %v3249 = vpack.c.b16 %v2294, %v2289
    %v3250 = vpack.c.b16 %v2295, %v2290
    %v3251 = vpack.c.b16 %v2296, %v2291
    %v3252 = vpack.c.b16 %v2302, %v2297
    %v3253 = vpack.c.b16 %v2303, %v2298
    %v3254 = vpack.c.b16 %v2304, %v2299
    %v3255 = vpack.c.b16 %v2305, %v2300
    %v3256 = vpack.c.b16 %v2306, %v2301
    %v3257 = vpack.c.b16 %v2312, %v2307
    %v3258 = vpack.c.b16 %v2313, %v2308
    %v3259 = vpack.c.b16 %v2314, %v2309
    %v3260 = vpack.c.b16 %v2315, %v2310
    %v3261 = vpack.c.b16 %v2316, %v2311
    %v3262 = vpack.c.b16 %v2322, %v2317
    %v3263 = vpack.c.b16 %v2323, %v2318
    %v3264 = vpack.c.b16 %v2324, %v2319
    %v3265 = vpack.c.b16 %v2325, %v2320
    %v3266 = vpack.c.b16 %v2326, %v2321
    %v3267 = vpack.c.b16 %v2332, %v2327
    %v3268 = vpack.c.b16 %v2333, %v2328
    %v3269 = vpack.c.b16 %v2334, %v2329
    %v3270 = vpack.c.b16 %v2335, %v2330
    %v3271 = vpack.c.b16 %v2336, %v2331
    %v3272 = vpack.c.b16 %v2342, %v2337
    %v3273 = vpack.c.b16 %v2343, %v2338
    %v3274 = vpack.c.b16 %v2344, %v2339
    %v3275 = vpack.c.b16 %v2345, %v2340
    %v3276 = vpack.c.b16 %v2346, %v2341
    %v3277 = vpack.c.b16 %v2352, %v2347
    %v3278 = vpack.c.b16 %v2353, %v2348
    %v3279 = vpack.c.b16 %v2354, %v2349
    %v3280 = vpack.c.b16 %v2355, %v2350
    %v3281 = vpack.c.b16 %v2356, %v2351
    %v3282 = vpack.c.b16 %v2362, %v2357
    %v3283 = vpack.c.b16 %v2363, %v2358
    %v3284 = vpack.c.b16 %v2364, %v2359
    %v3285 = vpack.c.b16 %v2365, %v2360
    %v3286 = vpack.c.b16 %v2366, %v2361
    %v3287 = vpack.c.b16 %v2372, %v2367
    %v3288 = vpack.c.b16 %v2373, %v2368
    %v3289 = vpack.c.b16 %v2374, %v2369
    %v3290 = vpack.c.b16 %v2375, %v2370
    %v3291 = vpack.c.b16 %v2376, %v2371
    %v3292 = vpack.c.b16 %v2382, %v2377
    %v3293 = vpack.c.b16 %v2383, %v2378
    %v3294 = vpack.c.b16 %v2384, %v2379
    %v3295 = vpack.c.b16 %v2385, %v2380
    %v3296 = vpack.c.b16 %v2386, %v2381
    %v3297 = vpack.c.b16 %v2392, %v2387
    %v3298 = vpack.c.b16 %v2393, %v2388
    %v3299 = vpack.c.b16 %v2394, %v2389
    %v3300 = vpack.c.b16 %v2395, %v2390
    %v3301 = vpack.c.b16 %v2396, %v2391
    %v3302 = vpack.c.b16 %v2402, %v2397
    %v3303 = vpack.c.b16 %v2403, %v2398
    %v3304 = vpack.c.b16 %v2404, %v2399
    %v3305 = vpack.c.b16 %v2405, %v2400
    %v3306 = vpack.c.b16 %v2406, %v2401
    %v3307 = vpack.c.b16 %v2412, %v2407
    %v3308 = vpack.c.b16 %v2413, %v2408
    %v3309 = vpack.c.b16 %v2414, %v2409
    %v3310 = vpack.c.b16 %v2415, %v2410
    %v3311 = vpack.c.b16 %v2416, %v2411
    %v3312 = vpack.c.b16 %v2422, %v2417
    %v3313 = vpack.c.b16 %v2423, %v2418
    %v3314 = vpack.c.b16 %v2424, %v2419
    %v3315 = vpack.c.b16 %v2425, %v2420
    %v3316 = vpack.c.b16 %v2426, %v2421
    %v3317 = vpack.c.b16 %v2432, %v2427
    %v3318 = vpack.c.b16 %v2433, %v2428
    %v3319 = vpack.c.b16 %v2434, %v2429
    %v3320 = vpack.c.b16 %v2435, %v2430
    %v3321 = vpack.c.b16 %v2436, %v2431
    %v3322 = vpack.c.b16 %v2442, %v2437
    %v3323 = vpack.c.b16 %v2443, %v2438
    %v3324 = vpack.c.b16 %v2444, %v2439
    %v3325 = vpack.c.b16 %v2445, %v2440
    %v3326 = vpack.c.b16 %v2446, %v2441
    %v3327 = vpack.c.b16 %v2452, %v2447
    %v3328 = vpack.c.b16 %v2453, %v2448
    %v3329 = vpack.c.b16 %v2454, %v2449
    %v3330 = vpack.c.b16 %v2455, %v2450
    %v3331 = vpack.c.b16 %v2456, %v2451
    %v3332 = vpack.c.b16 %v2462, %v2457
    %v3333 = vpack.c.b16 %v2463, %v2458
    %v3334 = vpack.c.b16 %v2464, %v2459
    %v3335 = vpack.c.b16 %v2465, %v2460
    %v3336 = vpack.c.b16 %v2466, %v2461
    %v3337 = vpack.c.b16 %v2472, %v2467
    %v3338 = vpack.c.b16 %v2473, %v2468
    %v3339 = vpack.c.b16 %v2474, %v2469
    %v3340 = vpack.c.b16 %v2475, %v2470
    %v3341 = vpack.c.b16 %v2476, %v2471
    %v3342 = vpack.c.b16 %v2482, %v2477
    %v3343 = vpack.c.b16 %v2483, %v2478
    %v3344 = vpack.c.b16 %v2484, %v2479
    %v3345 = vpack.c.b16 %v2485, %v2480
    %v3346 = vpack.c.b16 %v2486, %v2481
    %v3347 = vpack.c.b16 %v2492, %v2487
    %v3348 = vpack.c.b16 %v2493, %v2488
    %v3349 = vpack.c.b16 %v2494, %v2489
    %v3350 = vpack.c.b16 %v2495, %v2490
    %v3351 = vpack.c.b16 %v2496, %v2491
    %v3352 = vpack.c.b16 %v2502, %v2497
    %v3353 = vpack.c.b16 %v2503, %v2498
    %v3354 = vpack.c.b16 %v2504, %v2499
    %v3355 = vpack.c.b16 %v2505, %v2500
    %v3356 = vpack.c.b16 %v2506, %v2501
    %v3357 = vpack.c.b16 %v2512, %v2507
    %v3358 = vpack.c.b16 %v2513, %v2508
    %v3359 = vpack.c.b16 %v2514, %v2509
    %v3360 = vpack.c.b16 %v2515, %v2510
    %v3361 = vpack.c.b16 %v2516, %v2511
    %v3362 = vpack.c.b16 %v2522, %v2517
    %v3363 = vpack.c.b16 %v2523, %v2518
    %v3364 = vpack.c.b16 %v2524, %v2519
    %v3365 = vpack.c.b16 %v2525, %v2520
    %v3366 = vpack.c.b16 %v2526, %v2521
    %v3367 = vpack.c.b16 %v2532, %v2527
    %v3368 = vpack.c.b16 %v2533, %v2528
    %v3369 = vpack.c.b16 %v2534, %v2529
    %v3370 = vpack.c.b16 %v2535, %v2530
    %v3371 = vpack.c.b16 %v2536, %v2531
    %v3372 = vpack.c.b16 %v2542, %v2537
    %v3373 = vpack.c.b16 %v2543, %v2538
    %v3374 = vpack.c.b16 %v2544, %v2539
    %v3375 = vpack.c.b16 %v2545, %v2540
    %v3376 = vpack.c.b16 %v2546, %v2541
    %v3377 = vpack.c.b16 %v2552, %v2547
    %v3378 = vpack.c.b16 %v2553, %v2548
    %v3379 = vpack.c.b16 %v2554, %v2549
    %v3380 = vpack.c.b16 %v2555, %v2550
    %v3381 = vpack.c.b16 %v2556, %v2551
    %v3382 = vpack.c.b16 %v2562, %v2557
    %v3383 = vpack.c.b16 %v2563, %v2558
    %v3384 = vpack.c.b16 %v2564, %v2559
    %v3385 = vpack.c.b16 %v2565, %v2560
    %v3386 = vpack.c.b16 %v2566, %v2561
    %v3387 = vpack.c.b16 %v2572, %v2567
    %v3388 = vpack.c.b16 %v2573, %v2568
    %v3389 = vpack.c.b16 %v2574, %v2569
    %v3390 = vpack.c.b16 %v2575, %v2570
    %v3391 = vpack.c.b16 %v2576, %v2571
    %v3392 = vpack.c.b16 %v2582, %v2577
    %v3393 = vpack.c.b16 %v2583, %v2578
    %v3394 = vpack.c.b16 %v2584, %v2579
    %v3395 = vpack.c.b16 %v2585, %v2580
    %v3396 = vpack.c.b16 %v2586, %v2581
    %v3397 = vpack.c.b16 %v2592, %v2587
    %v3398 = vpack.c.b16 %v2593, %v2588
    %v3399 = vpack.c.b16 %v2594, %v2589
    %v3400 = vpack.c.b16 %v2595, %v2590
    %v3401 = vpack.c.b16 %v2596, %v2591
    %v3402 = vpack.c.b16 %v2602, %v2597
    %v3403 = vpack.c.b16 %v2603, %v2598
    %v3404 = vpack.c.b16 %v2604, %v2599
    %v3405 = vpack.c.b16 %v2605, %v2600
    %v3406 = vpack.c.b16 %v2606, %v2601
    %v3407 = vpack.c.b16 %v2612, %v2607
    %v3408 = vpack.c.b16 %v2613, %v2608
    %v3409 = vpack.c.b16 %v2614, %v2609
    %v3410 = vpack.c.b16 %v2615, %v2610
    %v3411 = vpack.c.b16 %v2616, %v2611
    %v3412 = vpack.c.b16 %v2622, %v2617
    %v3413 = vpack.c.b16 %v2623, %v2618
    %v3414 = vpack.c.b16 %v2624, %v2619
    %v3415 = vpack.c.b16 %v2625, %v2620
    %v3416 = vpack.c.b16 %v2626, %v2621
    %v3417 = vpack.c.b16 %v2632, %v2627
    %v3418 = vpack.c.b16 %v2633, %v2628
    %v3419 = vpack.c.b16 %v2634, %v2629
    %v3420 = vpack.c.b16 %v2635, %v2630
    %v3421 = vpack.c.b16 %v2636, %v2631
    %v3422 = vpack.c.b16 %v2642, %v2637
    %v3423 = vpack.c.b16 %v2643, %v2638
    %v3424 = vpack.c.b16 %v2644, %v2639
    %v3425 = vpack.c.b16 %v2645, %v2640
    %v3426 = vpack.c.b16 %v2646, %v2641
    %v3427 = vpack.c.b16 %v2652, %v2647
    %v3428 = vpack.c.b16 %v2653, %v2648
    %v3429 = vpack.c.b16 %v2654, %v2649
    %v3430 = vpack.c.b16 %v2655, %v2650
    %v3431 = vpack.c.b16 %v2656, %v2651
    %v3432 = vpack.c.b16 %v2662, %v2657
    %v3433 = vpack.c.b16 %v2663, %v2658
    %v3434 = vpack.c.b16 %v2664, %v2659
    %v3435 = vpack.c.b16 %v2665, %v2660
    %v3436 = vpack.c.b16 %v2666, %v2661
    %v3437 = vpack.c.b16 %v2672, %v2667
    %v3438 = vpack.c.b16 %v2673, %v2668
    %v3439 = vpack.c.b16 %v2674, %v2669
    %v3440 = vpack.c.b16 %v2675, %v2670
    %v3441 = vpack.c.b16 %v2676, %v2671
    %v3442 = vpack.c.b16 %v2682, %v2677
    %v3443 = vpack.c.b16 %v2683, %v2678
    %v3444 = vpack.c.b16 %v2684, %v2679
    %v3445 = vpack.c.b16 %v2685, %v2680
    %v3446 = vpack.c.b16 %v2686, %v2681
    %v3447 = vpack.c.b16 %v2692, %v2687
    %v3448 = vpack.c.b16 %v2693, %v2688
    %v3449 = vpack.c.b16 %v2694, %v2689
    %v3450 = vpack.c.b16 %v2695, %v2690
    %v3451 = vpack.c.b16 %v2696, %v2691
    %v3452 = vpack.c.b16 %v2702, %v2697
    %v3453 = vpack.c.b16 %v2703, %v2698
    %v3454 = vpack.c.b16 %v2704, %v2699
    %v3455 = vpack.c.b16 %v2705, %v2700
    %v3456 = vpack.c.b16 %v2706, %v2701
    %v3457 = vpack.c.b16 %v2712, %v2707
    %v3458 = vpack.c.b16 %v2713, %v2708
    %v3459 = vpack.c.b16 %v2714, %v2709
    %v3460 = vpack.c.b16 %v2715, %v2710
    %v3461 = vpack.c.b16 %v2716, %v2711
    %v3462 = vpack.c.b16 %v2722, %v2717
    %v3463 = vpack.c.b16 %v2723, %v2718
    %v3464 = vpack.c.b16 %v2724, %v2719
    %v3465 = vpack.c.b16 %v2725, %v2720
    %v3466 = vpack.c.b16 %v2726, %v2721
    %v3467 = vpack.c.b16 %v2732, %v2727
    %v3468 = vpack.c.b16 %v2733, %v2728
    %v3469 = vpack.c.b16 %v2734, %v2729
    %v3470 = vpack.c.b16 %v2735, %v2730
    %v3471 = vpack.c.b16 %v2736, %v2731
    %v3472 = vpack.c.b16 %v2742, %v2737
    %v3473 = vpack.c.b16 %v2743, %v2738
    %v3474 = vpack.c.b16 %v2744, %v2739
    %v3475 = vpack.c.b16 %v2745, %v2740
    %v3476 = vpack.c.b16 %v2746, %v2741
    %v3477 = vpack.c.b16 %v2752, %v2747
    %v3478 = vpack.c.b16 %v2753, %v2748
    %v3479 = vpack.c.b16 %v2754, %v2749
    %v3480 = vpack.c.b16 %v2755, %v2750
    %v3481 = vpack.c.b16 %v2756, %v2751
    %v3482 = vpack.c.b16 %v2762, %v2757
    %v3483 = vpack.c.b16 %v2763, %v2758
    %v3484 = vpack.c.b16 %v2764, %v2759
    %v3485 = vpack.c.b16 %v2765, %v2760
    %v3486 = vpack.c.b16 %v2766, %v2761
    %v3487 = vpack.c.b16 %v2772, %v2767
    %v3488 = vpack.c.b16 %v2773, %v2768
    %v3489 = vpack.c.b16 %v2774, %v2769
    %v3490 = vpack.c.b16 %v2775, %v2770
    %v3491 = vpack.c.b16 %v2776, %v2771
    %v3492 = vpack.c.b16 %v2782, %v2777
    %v3493 = vpack.c.b16 %v2783, %v2778
    %v3494 = vpack.c.b16 %v2784, %v2779
    %v3495 = vpack.c.b16 %v2785, %v2780
    %v3496 = vpack.c.b16 %v2786, %v2781
    %v3497 = vpack.c.b16 %v2792, %v2787
    %v3498 = vpack.c.b16 %v2793, %v2788
    %v3499 = vpack.c.b16 %v2794, %v2789
    %v3500 = vpack.c.b16 %v2795, %v2790
    %v3501 = vpack.c.b16 %v2796, %v2791
    %v3502 = vpack.c.b16 %v2802, %v2797
    %v3503 = vpack.c.b16 %v2803, %v2798
    %v3504 = vpack.c.b16 %v2804, %v2799
    %v3505 = vpack.c.b16 %v2805, %v2800
    %v3506 = vpack.c.b16 %v2806, %v2801
    %v3507 = vpack.c.b16 %v2812, %v2807
    %v3508 = vpack.c.b16 %v2813, %v2808
    %v3509 = vpack.c.b16 %v2814, %v2809
    %v3510 = vpack.c.b16 %v2815, %v2810
    %v3511 = vpack.c.b16 %v2816, %v2811
    %v3512 = vpack.c.b16 %v2822, %v2817
    %v3513 = vpack.c.b16 %v2823, %v2818
    %v3514 = vpack.c.b16 %v2824, %v2819
    %v3515 = vpack.c.b16 %v2825, %v2820
    %v3516 = vpack.c.b16 %v2826, %v2821
    %v3517 = vpack.c.b16 %v2832, %v2827
    %v3518 = vpack.c.b16 %v2833, %v2828
    %v3519 = vpack.c.b16 %v2834, %v2829
    %v3520 = vpack.c.b16 %v2835, %v2830
    %v3521 = vpack.c.b16 %v2836, %v2831
    %v3522 = vpack.c.b16 %v2842, %v2837
    %v3523 = vpack.c.b16 %v2843, %v2838
    %v3524 = vpack.c.b16 %v2844, %v2839
    %v3525 = vpack.c.b16 %v2845, %v2840
    %v3526 = vpack.c.b16 %v2846, %v2841
    %v3527 = vpack.c.b16 %v2852, %v2847
    %v3528 = vpack.c.b16 %v2853, %v2848
    %v3529 = vpack.c.b16 %v2854, %v2849
    %v3530 = vpack.c.b16 %v2855, %v2850
    %v3531 = vpack.c.b16 %v2856, %v2851
    %v3532 = vpack.c.b16 %v2862, %v2857
    %v3533 = vpack.c.b16 %v2863, %v2858
    %v3534 = vpack.c.b16 %v2864, %v2859
    %v3535 = vpack.c.b16 %v2865, %v2860
    %v3536 = vpack.c.b16 %v2866, %v2861
    %v3537 = vpack.c.b16 %v2872, %v2867
    %v3538 = vpack.c.b16 %v2873, %v2868
    %v3539 = vpack.c.b16 %v2874, %v2869
    %v3540 = vpack.c.b16 %v2875, %v2870
    %v3541 = vpack.c.b16 %v2876, %v2871
    %v3542 = vpack.c.b16 %v2882, %v2877
    %v3543 = vpack.c.b16 %v2883, %v2878
    %v3544 = vpack.c.b16 %v2884, %v2879
    %v3545 = vpack.c.b16 %v2885, %v2880
    %v3546 = vpack.c.b16 %v2886, %v2881
    %v3547 = vpack.c.b16 %v2892, %v2887
    %v3548 = vpack.c.b16 %v2893, %v2888
    %v3549 = vpack.c.b16 %v2894, %v2889
    %v3550 = vpack.c.b16 %v2895, %v2890
    %v3551 = vpack.c.b16 %v2896, %v2891
    %v3552 = vpack.c.b16 %v2902, %v2897
    %v3553 = vpack.c.b16 %v2903, %v2898
    %v3554 = vpack.c.b16 %v2904, %v2899
    %v3555 = vpack.c.b16 %v2905, %v2900
    %v3556 = vpack.c.b16 %v2906, %v2901
    %v3557 = vpack.c.b16 %v2912, %v2907
    %v3558 = vpack.c.b16 %v2913, %v2908
    %v3559 = vpack.c.b16 %v2914, %v2909
    %v3560 = vpack.c.b16 %v2915, %v2910
    %v3561 = vpack.c.b16 %v2916, %v2911
    %v3562 = vpack.c.b16 %v2922, %v2917
    %v3563 = vpack.c.b16 %v2923, %v2918
    %v3564 = vpack.c.b16 %v2924, %v2919
    %v3565 = vpack.c.b16 %v2925, %v2920
    %v3566 = vpack.c.b16 %v2926, %v2921
    %v4287 = vunpack.c.l.b16 %v799
    %v4288 = vunpack.c.l.b16 %v800
    %v4289 = vunpack.c.l.b16 %v801
    %v4290 = vunpack.c.l.b16 %v802
    %v4291 = vunpack.c.l.b16 %v803
    %v4292 = vunpack.c.l.b16 %v804
    %v4293 = vunpack.c.l.b16 %v805
    %v4294 = vunpack.c.l.b16 %v806
    %v4295 = vunpack.c.l.b16 %v807
    %v4296 = vunpack.c.l.b16 %v808
    %v4297 = vunpack.c.l.b16 %v809
    %v4298 = vunpack.c.l.b16 %v810
    %v4299 = vunpack.c.l.b16 %v811
    %v4300 = vunpack.c.l.b16 %v812
    %v4301 = vunpack.c.l.b16 %v813
    %v4302 = vunpack.c.l.b16 %v814
    %v4303 = vunpack.c.l.b16 %v815
    %v4304 = vunpack.c.l.b16 %v816
    %v4305 = vunpack.c.l.b16 %v817
    %v4306 = vunpack.c.l.b16 %v818
    %v4307 = vunpack.c.l.b16 %v819
    %v4308 = vunpack.c.l.b16 %v820
    %v4309 = vunpack.c.l.b16 %v821
    %v4310 = vunpack.c.l.b16 %v822
    %v4311 = vunpack.c.l.b16 %v823
    %v4312 = vunpack.c.l.b16 %v824
    %v4313 = vunpack.c.l.b16 %v825
    %v4314 = vunpack.c.l.b16 %v826
    %v4315 = vunpack.c.l.b16 %v827
    %v4316 = vunpack.c.l.b16 %v828
    %v4317 = vunpack.c.l.b16 %v829
    %v4318 = vunpack.c.l.b16 %v830
    %v4319 = vunpack.c.l.b16 %v831
    %v4320 = vunpack.c.l.b16 %v832
    %v4321 = vunpack.c.l.b16 %v833
    %v4322 = vunpack.c.l.b16 %v834
    %v4323 = vunpack.c.l.b16 %v835
    %v4324 = vunpack.c.l.b16 %v836
    %v4325 = vunpack.c.l.b16 %v837
    %v4326 = vunpack.c.l.b16 %v838
    %v4327 = vunpack.c.l.b16 %v839
    %v4328 = vunpack.c.l.b16 %v840
    %v4329 = vunpack.c.l.b16 %v841
    %v4330 = vunpack.c.l.b16 %v842
    %v4331 = vunpack.c.l.b16 %v843
    %v4332 = vunpack.c.l.b16 %v844
    %v4333 = vunpack.c.l.b16 %v845
    %v4334 = vunpack.c.l.b16 %v846
    %v4335 = vunpack.c.l.b16 %v847
    %v4336 = vunpack.c.l.b16 %v848
    %v4337 = vunpack.c.l.b16 %v849
    %v4338 = vunpack.c.l.b16 %v850
    %v4339 = vunpack.c.l.b16 %v851
    %v4340 = vunpack.c.l.b16 %v852
    %v4341 = vunpack.c.l.b16 %v853
    %v4342 = vunpack.c.l.b16 %v854
    %v4343 = vunpack.c.l.b16 %v855
    %v4344 = vunpack.c.l.b16 %v856
    %v4345 = vunpack.c.l.b16 %v857
    %v4346 = vunpack.c.l.b16 %v858
    %v4347 = vunpack.c.l.b16 %v859
    %v4348 = vunpack.c.l.b16 %v860
    %v4349 = vunpack.c.l.b16 %v861
    %v4350 = vunpack.c.l.b16 %v862
    %v4351 = vunpack.c.l.b16 %v863
    %v4352 = vunpack.c.l.b16 %v864
    %v4353 = vunpack.c.l.b16 %v865
    %v4354 = vunpack.c.l.b16 %v866
    %v4355 = vunpack.c.l.b16 %v867
    %v4356 = vunpack.c.l.b16 %v868
    %v4357 = vunpack.c.l.b16 %v869
    %v4358 = vunpack.c.l.b16 %v870
    %v4359 = vunpack.c.l.b16 %v871
    %v4360 = vunpack.c.l.b16 %v872
    %v4361 = vunpack.c.l.b16 %v873
    %v4362 = vunpack.c.l.b16 %v874
    %v4363 = vunpack.c.l.b16 %v875
    %v4364 = vunpack.c.l.b16 %v876
    %v4365 = vunpack.c.l.b16 %v877
    %v4366 = vunpack.c.l.b16 %v878
    %v4367 = vpack.c.b16 %v4288, %v4287
    %v4368 = vpack.c.b16 %v4290, %v4289
    %v4369 = vpack.c.b16 %v4292, %v4291
    %v4370 = vpack.c.b16 %v4294, %v4293
    %v4371 = vpack.c.b16 %v4296, %v4295
    %v4372 = vpack.c.b16 %v4298, %v4297
    %v4373 = vpack.c.b16 %v4300, %v4299
    %v4374 = vpack.c.b16 %v4302, %v4301
    %v4375 = vpack.c.b16 %v4304, %v4303
    %v4376 = vpack.c.b16 %v4306, %v4305
    %v4377 = vpack.c.b16 %v4308, %v4307
    %v4378 = vpack.c.b16 %v4310, %v4309
    %v4379 = vpack.c.b16 %v4312, %v4311
    %v4380 = vpack.c.b16 %v4314, %v4313
    %v4381 = vpack.c.b16 %v4316, %v4315
    %v4382 = vpack.c.b16 %v4318, %v4317
    %v4383 = vpack.c.b16 %v4320, %v4319
    %v4384 = vpack.c.b16 %v4322, %v4321
    %v4385 = vpack.c.b16 %v4324, %v4323
    %v4386 = vpack.c.b16 %v4326, %v4325
    %v4387 = vpack.c.b16 %v4328, %v4327
    %v4388 = vpack.c.b16 %v4330, %v4329
    %v4389 = vpack.c.b16 %v4332, %v4331
    %v4390 = vpack.c.b16 %v4334, %v4333
    %v4391 = vpack.c.b16 %v4336, %v4335
    %v4392 = vpack.c.b16 %v4338, %v4337
    %v4393 = vpack.c.b16 %v4340, %v4339
    %v4394 = vpack.c.b16 %v4342, %v4341
    %v4395 = vpack.c.b16 %v4344, %v4343
    %v4396 = vpack.c.b16 %v4346, %v4345
    %v4397 = vpack.c.b16 %v4348, %v4347
    %v4398 = vpack.c.b16 %v4350, %v4349
    %v4399 = vpack.c.b16 %v4352, %v4351
    %v4400 = vpack.c.b16 %v4354, %v4353
    %v4401 = vpack.c.b16 %v4356, %v4355
    %v4402 = vpack.c.b16 %v4358, %v4357
    %v4403 = vpack.c.b16 %v4360, %v4359
    %v4404 = vpack.c.b16 %v4362, %v4361
    %v4405 = vpack.c.b16 %v4364, %v4363
    %v4406 = vpack.c.b16 %v4366, %v4365
    %4447 = vmatprep.subr.bf16.mxu0 0
    %4448 = vmatpush1.bf16.msra.mxu0 %v4374
    %4449 = vmatprep.subr.bf16.mxu0 0
    %4450 = vmatpush1.bf16.msra.mxu0 %v4373
    %4451 = vmatprep.subr.bf16.mxu0 0
    %4452 = vmatpush1.bf16.msra.mxu0 %v4372
    %4453 = vmatprep.subr.bf16.mxu0 0
    %4454 = vmatpush1.bf16.msra.mxu0 %v4371
    %4455 = vmatprep.subr.bf16.mxu0 0
    %4456 = vmatpush1.bf16.msra.mxu0 %v4370
    %4457 = vmatprep.subr.bf16.mxu0 0
    %4458 = vmatpush1.bf16.msra.mxu0 %v4369
    %4459 = vmatprep.subr.bf16.mxu0 0
    %4460 = vmatpush1.bf16.msra.mxu0 %v4368
    %4461 = vmatprep.subr.bf16.mxu0 0
    %4462 = vmatpush1.bf16.msra.mxu0 %v4367
    %4463 = vmatprep.subr.bf16.mxu0 0
    %4464 = vmatpush2.bf16.msra.mxu0 %v4382
    %4465 = vmatprep.subr.bf16.mxu0 0
    %4466 = vmatpush2.bf16.msra.mxu0 %v4381
    %4467 = vmatprep.subr.bf16.mxu0 0
    %4468 = vmatpush2.bf16.msra.mxu0 %v4380
    %4469 = vmatprep.subr.bf16.mxu0 0
    %4470 = vmatpush2.bf16.msra.mxu0 %v4379
    %4471 = vmatprep.subr.bf16.mxu0 0
    %4472 = vmatpush2.bf16.msra.mxu0 %v4378
    %4473 = vmatprep.subr.bf16.mxu0 0
    %4474 = vmatpush2.bf16.msra.mxu0 %v4377
    %4475 = vmatprep.subr.bf16.mxu0 0
    %4476 = vmatpush2.bf16.msra.mxu0 %v4376
    %4477 = vmatprep.subr.bf16.mxu0 0
    %4478 = vmatpush2.bf16.msra.mxu0 %v4375
    %4479 = vmatprep.mubr.bf16.mxu0 %v2928
    %4480 = vmatmul.mubr.bf16.gmra.mxu0 %v2927
    %v4481 = vpop.f32.mrf.mxu0
    %v4482 = vadd.f32 0.0, %v4481
    %v4483 = vpop.f32.mrf.mxu0
    %v4484 = vpop.f32.mrf.mxu0
    %v4485 = vadd.f32 0.0, %v4484
    %v4486 = vpop.f32.mrf.mxu0
    %4487 = vmatprep.mubr.bf16.mxu0 %v2933
    %4488 = vmatmul.mubr.bf16.gmra.mxu0 %v2932
    %v4489 = vpop.f32.mrf.mxu0
    %v4490 = vadd.f32 0.0, %v4489
    %v4491 = vpop.f32.mrf.mxu0
    %v4492 = vpop.f32.mrf.mxu0
    %v4493 = vadd.f32 0.0, %v4492
    %v4494 = vpop.f32.mrf.mxu0
    %4495 = vmatprep.mubr.bf16.mxu0 %v2938
    %4496 = vmatmul.mubr.bf16.gmra.mxu0 %v2937
    %v4497 = vpop.f32.mrf.mxu0
    %v4498 = vadd.f32 0.0, %v4497
    %v4499 = vpop.f32.mrf.mxu0
    %v4500 = vpop.f32.mrf.mxu0
    %v4501 = vadd.f32 0.0, %v4500
    %v4502 = vpop.f32.mrf.mxu0
    %4503 = vmatprep.mubr.bf16.mxu0 %v2943
    %4504 = vmatmul.mubr.bf16.gmra.mxu0 %v2942
    %v4505 = vpop.f32.mrf.mxu0
    %v4506 = vadd.f32 0.0, %v4505
    %v4507 = vpop.f32.mrf.mxu0
    %v4508 = vpop.f32.mrf.mxu0
    %v4509 = vadd.f32 0.0, %v4508
    %v4510 = vpop.f32.mrf.mxu0
    %4511 = vmatprep.mubr.bf16.mxu0 %v2948
    %4512 = vmatmul.mubr.bf16.gmra.mxu0 %v2947
    %v4513 = vpop.f32.mrf.mxu0
    %v4514 = vadd.f32 0.0, %v4513
    %v4515 = vpop.f32.mrf.mxu0
    %v4516 = vpop.f32.mrf.mxu0
    %v4517 = vadd.f32 0.0, %v4516
    %v4518 = vpop.f32.mrf.mxu0
    %4519 = vmatprep.mubr.bf16.mxu0 %v2953
    %4520 = vmatmul.mubr.bf16.gmra.mxu0 %v2952
    %v4521 = vpop.f32.mrf.mxu0
    %v4522 = vadd.f32 0.0, %v4521
    %v4523 = vpop.f32.mrf.mxu0
    %v4524 = vpop.f32.mrf.mxu0
    %v4525 = vadd.f32 0.0, %v4524
    %v4526 = vpop.f32.mrf.mxu0
    %4527 = vmatprep.mubr.bf16.mxu0 %v2958
    %4528 = vmatmul.mubr.bf16.gmra.mxu0 %v2957
    %v4529 = vpop.f32.mrf.mxu0
    %v4530 = vadd.f32 0.0, %v4529
    %v4531 = vpop.f32.mrf.mxu0
    %v4532 = vpop.f32.mrf.mxu0
    %v4533 = vadd.f32 0.0, %v4532
    %v4534 = vpop.f32.mrf.mxu0
    %4535 = vmatprep.mubr.bf16.mxu0 %v2963
    %4536 = vmatmul.mubr.bf16.gmra.mxu0 %v2962
    %v4537 = vpop.f32.mrf.mxu0
    %v4538 = vadd.f32 0.0, %v4537
    %v4539 = vpop.f32.mrf.mxu0
    %v4540 = vpop.f32.mrf.mxu0
    %v4541 = vadd.f32 0.0, %v4540
    %v4542 = vpop.f32.mrf.mxu0
    %4543 = vmatprep.mubr.bf16.mxu0 %v2968
    %4544 = vmatmul.mubr.bf16.gmra.mxu0 %v2967
    %v4545 = vpop.f32.mrf.mxu0
    %v4546 = vadd.f32 0.0, %v4545
    %v4547 = vpop.f32.mrf.mxu0
    %v4548 = vpop.f32.mrf.mxu0
    %v4549 = vadd.f32 0.0, %v4548
    %v4550 = vpop.f32.mrf.mxu0
    %4551 = vmatprep.mubr.bf16.mxu0 %v2973
    %4552 = vmatmul.mubr.bf16.gmra.mxu0 %v2972
    %v4553 = vpop.f32.mrf.mxu0
    %v4554 = vadd.f32 0.0, %v4553
    %v4555 = vpop.f32.mrf.mxu0
    %v4556 = vpop.f32.mrf.mxu0
    %v4557 = vadd.f32 0.0, %v4556
    %v4558 = vpop.f32.mrf.mxu0
    %4559 = vmatprep.mubr.bf16.mxu0 %v2978
    %4560 = vmatmul.mubr.bf16.gmra.mxu0 %v2977
    %v4561 = vpop.f32.mrf.mxu0
    %v4562 = vadd.f32 0.0, %v4561
    %v4563 = vpop.f32.mrf.mxu0
    %v4564 = vpop.f32.mrf.mxu0
    %v4565 = vadd.f32 0.0, %v4564
    %v4566 = vpop.f32.mrf.mxu0
    %4567 = vmatprep.mubr.bf16.mxu0 %v2983
    %4568 = vmatmul.mubr.bf16.gmra.mxu0 %v2982
    %v4569 = vpop.f32.mrf.mxu0
    %v4570 = vadd.f32 0.0, %v4569
    %v4571 = vpop.f32.mrf.mxu0
    %v4572 = vpop.f32.mrf.mxu0
    %v4573 = vadd.f32 0.0, %v4572
    %v4574 = vpop.f32.mrf.mxu0
    %4575 = vmatprep.mubr.bf16.mxu0 %v2988
    %4576 = vmatmul.mubr.bf16.gmra.mxu0 %v2987
    %v4577 = vpop.f32.mrf.mxu0
    %v4578 = vadd.f32 0.0, %v4577
    %v4579 = vpop.f32.mrf.mxu0
    %v4580 = vpop.f32.mrf.mxu0
    %v4581 = vadd.f32 0.0, %v4580
    %v4582 = vpop.f32.mrf.mxu0
    %4583 = vmatprep.mubr.bf16.mxu0 %v2993
    %4584 = vmatmul.mubr.bf16.gmra.mxu0 %v2992
    %v4585 = vpop.f32.mrf.mxu0
    %v4586 = vadd.f32 0.0, %v4585
    %v4587 = vpop.f32.mrf.mxu0
    %v4588 = vpop.f32.mrf.mxu0
    %v4589 = vadd.f32 0.0, %v4588
    %v4590 = vpop.f32.mrf.mxu0
    %4591 = vmatprep.mubr.bf16.mxu0 %v2998
    %4592 = vmatmul.mubr.bf16.gmra.mxu0 %v2997
    %v4593 = vpop.f32.mrf.mxu0
    %v4594 = vadd.f32 0.0, %v4593
    %v4595 = vpop.f32.mrf.mxu0
    %v4596 = vpop.f32.mrf.mxu0
    %v4597 = vadd.f32 0.0, %v4596
    %v4598 = vpop.f32.mrf.mxu0
    %4599 = vmatprep.mubr.bf16.mxu0 %v3003
    %4600 = vmatmul.mubr.bf16.gmra.mxu0 %v3002
    %v4601 = vpop.f32.mrf.mxu0
    %v4602 = vadd.f32 0.0, %v4601
    %v4603 = vpop.f32.mrf.mxu0
    %v4604 = vpop.f32.mrf.mxu0
    %v4605 = vadd.f32 0.0, %v4604
    %v4606 = vpop.f32.mrf.mxu0
    %4607 = vmatprep.mubr.bf16.mxu0 %v3008
    %4608 = vmatmul.mubr.bf16.gmra.mxu0 %v3007
    %v4609 = vpop.f32.mrf.mxu0
    %v4610 = vadd.f32 0.0, %v4609
    %v4611 = vpop.f32.mrf.mxu0
    %v4612 = vpop.f32.mrf.mxu0
    %v4613 = vadd.f32 0.0, %v4612
    %v4614 = vpop.f32.mrf.mxu0
    %4615 = vmatprep.mubr.bf16.mxu0 %v3013
    %4616 = vmatmul.mubr.bf16.gmra.mxu0 %v3012
    %v4617 = vpop.f32.mrf.mxu0
    %v4618 = vadd.f32 0.0, %v4617
    %v4619 = vpop.f32.mrf.mxu0
    %v4620 = vpop.f32.mrf.mxu0
    %v4621 = vadd.f32 0.0, %v4620
    %v4622 = vpop.f32.mrf.mxu0
    %4623 = vmatprep.mubr.bf16.mxu0 %v3018
    %4624 = vmatmul.mubr.bf16.gmra.mxu0 %v3017
    %v4625 = vpop.f32.mrf.mxu0
    %v4626 = vadd.f32 0.0, %v4625
    %v4627 = vpop.f32.mrf.mxu0
    %v4628 = vpop.f32.mrf.mxu0
    %v4629 = vadd.f32 0.0, %v4628
    %v4630 = vpop.f32.mrf.mxu0
    %4631 = vmatprep.mubr.bf16.mxu0 %v3023
    %4632 = vmatmul.mubr.bf16.gmra.mxu0 %v3022
    %v4633 = vpop.f32.mrf.mxu0
    %v4634 = vadd.f32 0.0, %v4633
    %v4635 = vpop.f32.mrf.mxu0
    %v4636 = vpop.f32.mrf.mxu0
    %v4637 = vadd.f32 0.0, %v4636
    %v4638 = vpop.f32.mrf.mxu0
    %4639 = vmatprep.mubr.bf16.mxu0 %v3028
    %4640 = vmatmul.mubr.bf16.gmra.mxu0 %v3027
    %v4641 = vpop.f32.mrf.mxu0
    %v4642 = vadd.f32 0.0, %v4641
    %v4643 = vpop.f32.mrf.mxu0
    %v4644 = vpop.f32.mrf.mxu0
    %v4645 = vadd.f32 0.0, %v4644
    %v4646 = vpop.f32.mrf.mxu0
    %4647 = vmatprep.mubr.bf16.mxu0 %v3033
    %4648 = vmatmul.mubr.bf16.gmra.mxu0 %v3032
    %v4649 = vpop.f32.mrf.mxu0
    %v4650 = vadd.f32 0.0, %v4649
    %v4651 = vpop.f32.mrf.mxu0
    %v4652 = vpop.f32.mrf.mxu0
    %v4653 = vadd.f32 0.0, %v4652
    %v4654 = vpop.f32.mrf.mxu0
    %4655 = vmatprep.mubr.bf16.mxu0 %v3038
    %4656 = vmatmul.mubr.bf16.gmra.mxu0 %v3037
    %v4657 = vpop.f32.mrf.mxu0
    %v4658 = vadd.f32 0.0, %v4657
    %v4659 = vpop.f32.mrf.mxu0
    %v4660 = vpop.f32.mrf.mxu0
    %v4661 = vadd.f32 0.0, %v4660
    %v4662 = vpop.f32.mrf.mxu0
    %4663 = vmatprep.mubr.bf16.mxu0 %v3043
    %4664 = vmatmul.mubr.bf16.gmra.mxu0 %v3042
    %v4665 = vpop.f32.mrf.mxu0
    %v4666 = vadd.f32 0.0, %v4665
    %v4667 = vpop.f32.mrf.mxu0
    %v4668 = vpop.f32.mrf.mxu0
    %v4669 = vadd.f32 0.0, %v4668
    %v4670 = vpop.f32.mrf.mxu0
    %4671 = vmatprep.mubr.bf16.mxu0 %v3048
    %4672 = vmatmul.mubr.bf16.gmra.mxu0 %v3047
    %v4673 = vpop.f32.mrf.mxu0
    %v4674 = vadd.f32 0.0, %v4673
    %v4675 = vpop.f32.mrf.mxu0
    %v4676 = vpop.f32.mrf.mxu0
    %v4677 = vadd.f32 0.0, %v4676
    %v4678 = vpop.f32.mrf.mxu0
    %4679 = vmatprep.mubr.bf16.mxu0 %v3053
    %4680 = vmatmul.mubr.bf16.gmra.mxu0 %v3052
    %v4681 = vpop.f32.mrf.mxu0
    %v4682 = vadd.f32 0.0, %v4681
    %v4683 = vpop.f32.mrf.mxu0
    %v4684 = vpop.f32.mrf.mxu0
    %v4685 = vadd.f32 0.0, %v4684
    %v4686 = vpop.f32.mrf.mxu0
    %4687 = vmatprep.mubr.bf16.mxu0 %v3058
    %4688 = vmatmul.mubr.bf16.gmra.mxu0 %v3057
    %v4689 = vpop.f32.mrf.mxu0
    %v4690 = vadd.f32 0.0, %v4689
    %v4691 = vpop.f32.mrf.mxu0
    %v4692 = vpop.f32.mrf.mxu0
    %v4693 = vadd.f32 0.0, %v4692
    %v4694 = vpop.f32.mrf.mxu0
    %4695 = vmatprep.mubr.bf16.mxu0 %v3063
    %4696 = vmatmul.mubr.bf16.gmra.mxu0 %v3062
    %v4697 = vpop.f32.mrf.mxu0
    %v4698 = vadd.f32 0.0, %v4697
    %v4699 = vpop.f32.mrf.mxu0
    %v4700 = vpop.f32.mrf.mxu0
    %v4701 = vadd.f32 0.0, %v4700
    %v4702 = vpop.f32.mrf.mxu0
    %4703 = vmatprep.mubr.bf16.mxu0 %v3068
    %4704 = vmatmul.mubr.bf16.gmra.mxu0 %v3067
    %v4705 = vpop.f32.mrf.mxu0
    %v4706 = vadd.f32 0.0, %v4705
    %v4707 = vpop.f32.mrf.mxu0
    %v4708 = vpop.f32.mrf.mxu0
    %v4709 = vadd.f32 0.0, %v4708
    %v4710 = vpop.f32.mrf.mxu0
    %4711 = vmatprep.mubr.bf16.mxu0 %v3073
    %4712 = vmatmul.mubr.bf16.gmra.mxu0 %v3072
    %v4713 = vpop.f32.mrf.mxu0
    %v4714 = vadd.f32 0.0, %v4713
    %v4715 = vpop.f32.mrf.mxu0
    %v4716 = vpop.f32.mrf.mxu0
    %v4717 = vadd.f32 0.0, %v4716
    %v4718 = vpop.f32.mrf.mxu0
    %4719 = vmatprep.mubr.bf16.mxu0 %v3078
    %4720 = vmatmul.mubr.bf16.gmra.mxu0 %v3077
    %v4721 = vpop.f32.mrf.mxu0
    %v4722 = vadd.f32 0.0, %v4721
    %v4723 = vpop.f32.mrf.mxu0
    %v4724 = vpop.f32.mrf.mxu0
    %v4725 = vadd.f32 0.0, %v4724
    %v4726 = vpop.f32.mrf.mxu0
    %4727 = vmatprep.mubr.bf16.mxu0 %v3083
    %4728 = vmatmul.mubr.bf16.gmra.mxu0 %v3082
    %v4729 = vpop.f32.mrf.mxu0
    %v4730 = vadd.f32 0.0, %v4729
    %v4731 = vpop.f32.mrf.mxu0
    %v4732 = vpop.f32.mrf.mxu0
    %v4733 = vadd.f32 0.0, %v4732
    %v4734 = vpop.f32.mrf.mxu0
    %4735 = vmatprep.mubr.bf16.mxu0 %v3088
    %4736 = vmatmul.mubr.bf16.gmra.mxu0 %v3087
    %v4737 = vpop.f32.mrf.mxu0
    %v4738 = vadd.f32 0.0, %v4737
    %v4739 = vpop.f32.mrf.mxu0
    %v4740 = vpop.f32.mrf.mxu0
    %v4741 = vadd.f32 0.0, %v4740
    %v4742 = vpop.f32.mrf.mxu0
    %4743 = vmatprep.mubr.bf16.mxu0 %v3093
    %4744 = vmatmul.mubr.bf16.gmra.mxu0 %v3092
    %v4745 = vpop.f32.mrf.mxu0
    %v4746 = vadd.f32 0.0, %v4745
    %v4747 = vpop.f32.mrf.mxu0
    %v4748 = vpop.f32.mrf.mxu0
    %v4749 = vadd.f32 0.0, %v4748
    %v4750 = vpop.f32.mrf.mxu0
    %4751 = vmatprep.mubr.bf16.mxu0 %v3098
    %4752 = vmatmul.mubr.bf16.gmra.mxu0 %v3097
    %v4753 = vpop.f32.mrf.mxu0
    %v4754 = vadd.f32 0.0, %v4753
    %v4755 = vpop.f32.mrf.mxu0
    %v4756 = vpop.f32.mrf.mxu0
    %v4757 = vadd.f32 0.0, %v4756
    %v4758 = vpop.f32.mrf.mxu0
    %4759 = vmatprep.mubr.bf16.mxu0 %v3103
    %4760 = vmatmul.mubr.bf16.gmra.mxu0 %v3102
    %v4761 = vpop.f32.mrf.mxu0
    %v4762 = vadd.f32 0.0, %v4761
    %v4763 = vpop.f32.mrf.mxu0
    %v4764 = vpop.f32.mrf.mxu0
    %v4765 = vadd.f32 0.0, %v4764
    %v4766 = vpop.f32.mrf.mxu0
    %4767 = vmatprep.mubr.bf16.mxu0 %v3108
    %4768 = vmatmul.mubr.bf16.gmra.mxu0 %v3107
    %v4769 = vpop.f32.mrf.mxu0
    %v4770 = vadd.f32 0.0, %v4769
    %v4771 = vpop.f32.mrf.mxu0
    %v4772 = vpop.f32.mrf.mxu0
    %v4773 = vadd.f32 0.0, %v4772
    %v4774 = vpop.f32.mrf.mxu0
    %4775 = vmatprep.mubr.bf16.mxu0 %v3113
    %4776 = vmatmul.mubr.bf16.gmra.mxu0 %v3112
    %v4777 = vpop.f32.mrf.mxu0
    %v4778 = vadd.f32 0.0, %v4777
    %v4779 = vpop.f32.mrf.mxu0
    %v4780 = vpop.f32.mrf.mxu0
    %v4781 = vadd.f32 0.0, %v4780
    %v4782 = vpop.f32.mrf.mxu0
    %4783 = vmatprep.mubr.bf16.mxu0 %v3118
    %4784 = vmatmul.mubr.bf16.gmra.mxu0 %v3117
    %v4785 = vpop.f32.mrf.mxu0
    %v4786 = vadd.f32 0.0, %v4785
    %v4787 = vpop.f32.mrf.mxu0
    %v4788 = vpop.f32.mrf.mxu0
    %v4789 = vadd.f32 0.0, %v4788
    %v4790 = vpop.f32.mrf.mxu0
    %4791 = vmatprep.mubr.bf16.mxu0 %v3123
    %4792 = vmatmul.mubr.bf16.gmra.mxu0 %v3122
    %v4793 = vpop.f32.mrf.mxu0
    %v4794 = vadd.f32 0.0, %v4793
    %v4795 = vpop.f32.mrf.mxu0
    %v4796 = vpop.f32.mrf.mxu0
    %v4797 = vadd.f32 0.0, %v4796
    %v4798 = vpop.f32.mrf.mxu0
    %4799 = vmatprep.mubr.bf16.mxu0 %v3128
    %4800 = vmatmul.mubr.bf16.gmra.mxu0 %v3127
    %v4801 = vpop.f32.mrf.mxu0
    %v4802 = vadd.f32 0.0, %v4801
    %v4803 = vpop.f32.mrf.mxu0
    %v4804 = vpop.f32.mrf.mxu0
    %v4805 = vadd.f32 0.0, %v4804
    %v4806 = vpop.f32.mrf.mxu0
    %4807 = vmatprep.mubr.bf16.mxu0 %v3133
    %4808 = vmatmul.mubr.bf16.gmra.mxu0 %v3132
    %v4809 = vpop.f32.mrf.mxu0
    %v4810 = vadd.f32 0.0, %v4809
    %v4811 = vpop.f32.mrf.mxu0
    %v4812 = vpop.f32.mrf.mxu0
    %v4813 = vadd.f32 0.0, %v4812
    %v4814 = vpop.f32.mrf.mxu0
    %4815 = vmatprep.mubr.bf16.mxu0 %v3138
    %4816 = vmatmul.mubr.bf16.gmra.mxu0 %v3137
    %v4817 = vpop.f32.mrf.mxu0
    %v4818 = vadd.f32 0.0, %v4817
    %v4819 = vpop.f32.mrf.mxu0
    %v4820 = vpop.f32.mrf.mxu0
    %v4821 = vadd.f32 0.0, %v4820
    %v4822 = vpop.f32.mrf.mxu0
    %4823 = vmatprep.mubr.bf16.mxu0 %v3143
    %4824 = vmatmul.mubr.bf16.gmra.mxu0 %v3142
    %v4825 = vpop.f32.mrf.mxu0
    %v4826 = vadd.f32 0.0, %v4825
    %v4827 = vpop.f32.mrf.mxu0
    %v4828 = vpop.f32.mrf.mxu0
    %v4829 = vadd.f32 0.0, %v4828
    %v4830 = vpop.f32.mrf.mxu0
    %4831 = vmatprep.mubr.bf16.mxu0 %v3148
    %4832 = vmatmul.mubr.bf16.gmra.mxu0 %v3147
    %v4833 = vpop.f32.mrf.mxu0
    %v4834 = vadd.f32 0.0, %v4833
    %v4835 = vpop.f32.mrf.mxu0
    %v4836 = vpop.f32.mrf.mxu0
    %v4837 = vadd.f32 0.0, %v4836
    %v4838 = vpop.f32.mrf.mxu0
    %4839 = vmatprep.mubr.bf16.mxu0 %v3153
    %4840 = vmatmul.mubr.bf16.gmra.mxu0 %v3152
    %v4841 = vpop.f32.mrf.mxu0
    %v4842 = vadd.f32 0.0, %v4841
    %v4843 = vpop.f32.mrf.mxu0
    %v4844 = vpop.f32.mrf.mxu0
    %v4845 = vadd.f32 0.0, %v4844
    %v4846 = vpop.f32.mrf.mxu0
    %4847 = vmatprep.mubr.bf16.mxu0 %v3158
    %4848 = vmatmul.mubr.bf16.gmra.mxu0 %v3157
    %v4849 = vpop.f32.mrf.mxu0
    %v4850 = vadd.f32 0.0, %v4849
    %v4851 = vpop.f32.mrf.mxu0
    %v4852 = vpop.f32.mrf.mxu0
    %v4853 = vadd.f32 0.0, %v4852
    %v4854 = vpop.f32.mrf.mxu0
    %4855 = vmatprep.mubr.bf16.mxu0 %v3163
    %4856 = vmatmul.mubr.bf16.gmra.mxu0 %v3162
    %v4857 = vpop.f32.mrf.mxu0
    %v4858 = vadd.f32 0.0, %v4857
    %v4859 = vpop.f32.mrf.mxu0
    %v4860 = vpop.f32.mrf.mxu0
    %v4861 = vadd.f32 0.0, %v4860
    %v4862 = vpop.f32.mrf.mxu0
    %4863 = vmatprep.mubr.bf16.mxu0 %v3168
    %4864 = vmatmul.mubr.bf16.gmra.mxu0 %v3167
    %v4865 = vpop.f32.mrf.mxu0
    %v4866 = vadd.f32 0.0, %v4865
    %v4867 = vpop.f32.mrf.mxu0
    %v4868 = vpop.f32.mrf.mxu0
    %v4869 = vadd.f32 0.0, %v4868
    %v4870 = vpop.f32.mrf.mxu0
    %4871 = vmatprep.mubr.bf16.mxu0 %v3173
    %4872 = vmatmul.mubr.bf16.gmra.mxu0 %v3172
    %v4873 = vpop.f32.mrf.mxu0
    %v4874 = vadd.f32 0.0, %v4873
    %v4875 = vpop.f32.mrf.mxu0
    %v4876 = vpop.f32.mrf.mxu0
    %v4877 = vadd.f32 0.0, %v4876
    %v4878 = vpop.f32.mrf.mxu0
    %4879 = vmatprep.mubr.bf16.mxu0 %v3178
    %4880 = vmatmul.mubr.bf16.gmra.mxu0 %v3177
    %v4881 = vpop.f32.mrf.mxu0
    %v4882 = vadd.f32 0.0, %v4881
    %v4883 = vpop.f32.mrf.mxu0
    %v4884 = vpop.f32.mrf.mxu0
    %v4885 = vadd.f32 0.0, %v4884
    %v4886 = vpop.f32.mrf.mxu0
    %4887 = vmatprep.mubr.bf16.mxu0 %v3183
    %4888 = vmatmul.mubr.bf16.gmra.mxu0 %v3182
    %v4889 = vpop.f32.mrf.mxu0
    %v4890 = vadd.f32 0.0, %v4889
    %v4891 = vpop.f32.mrf.mxu0
    %v4892 = vpop.f32.mrf.mxu0
    %v4893 = vadd.f32 0.0, %v4892
    %v4894 = vpop.f32.mrf.mxu0
    %4895 = vmatprep.mubr.bf16.mxu0 %v3188
    %4896 = vmatmul.mubr.bf16.gmra.mxu0 %v3187
    %v4897 = vpop.f32.mrf.mxu0
    %v4898 = vadd.f32 0.0, %v4897
    %v4899 = vpop.f32.mrf.mxu0
    %v4900 = vpop.f32.mrf.mxu0
    %v4901 = vadd.f32 0.0, %v4900
    %v4902 = vpop.f32.mrf.mxu0
    %4903 = vmatprep.mubr.bf16.mxu0 %v3193
    %4904 = vmatmul.mubr.bf16.gmra.mxu0 %v3192
    %v4905 = vpop.f32.mrf.mxu0
    %v4906 = vadd.f32 0.0, %v4905
    %v4907 = vpop.f32.mrf.mxu0
    %v4908 = vpop.f32.mrf.mxu0
    %v4909 = vadd.f32 0.0, %v4908
    %v4910 = vpop.f32.mrf.mxu0
    %4911 = vmatprep.mubr.bf16.mxu0 %v3198
    %4912 = vmatmul.mubr.bf16.gmra.mxu0 %v3197
    %v4913 = vpop.f32.mrf.mxu0
    %v4914 = vadd.f32 0.0, %v4913
    %v4915 = vpop.f32.mrf.mxu0
    %v4916 = vpop.f32.mrf.mxu0
    %v4917 = vadd.f32 0.0, %v4916
    %v4918 = vpop.f32.mrf.mxu0
    %4919 = vmatprep.mubr.bf16.mxu0 %v3203
    %4920 = vmatmul.mubr.bf16.gmra.mxu0 %v3202
    %v4921 = vpop.f32.mrf.mxu0
    %v4922 = vadd.f32 0.0, %v4921
    %v4923 = vpop.f32.mrf.mxu0
    %v4924 = vpop.f32.mrf.mxu0
    %v4925 = vadd.f32 0.0, %v4924
    %v4926 = vpop.f32.mrf.mxu0
    %4927 = vmatprep.mubr.bf16.mxu0 %v3208
    %4928 = vmatmul.mubr.bf16.gmra.mxu0 %v3207
    %v4929 = vpop.f32.mrf.mxu0
    %v4930 = vadd.f32 0.0, %v4929
    %v4931 = vpop.f32.mrf.mxu0
    %v4932 = vpop.f32.mrf.mxu0
    %v4933 = vadd.f32 0.0, %v4932
    %v4934 = vpop.f32.mrf.mxu0
    %4935 = vmatprep.mubr.bf16.mxu0 %v3213
    %4936 = vmatmul.mubr.bf16.gmra.mxu0 %v3212
    %v4937 = vpop.f32.mrf.mxu0
    %v4938 = vadd.f32 0.0, %v4937
    %v4939 = vpop.f32.mrf.mxu0
    %v4940 = vpop.f32.mrf.mxu0
    %v4941 = vadd.f32 0.0, %v4940
    %v4942 = vpop.f32.mrf.mxu0
    %4943 = vmatprep.mubr.bf16.mxu0 %v3218
    %4944 = vmatmul.mubr.bf16.gmra.mxu0 %v3217
    %v4945 = vpop.f32.mrf.mxu0
    %v4946 = vadd.f32 0.0, %v4945
    %v4947 = vpop.f32.mrf.mxu0
    %v4948 = vpop.f32.mrf.mxu0
    %v4949 = vadd.f32 0.0, %v4948
    %v4950 = vpop.f32.mrf.mxu0
    %4951 = vmatprep.mubr.bf16.mxu0 %v3223
    %4952 = vmatmul.mubr.bf16.gmra.mxu0 %v3222
    %v4953 = vpop.f32.mrf.mxu0
    %v4954 = vadd.f32 0.0, %v4953
    %v4955 = vpop.f32.mrf.mxu0
    %v4956 = vpop.f32.mrf.mxu0
    %v4957 = vadd.f32 0.0, %v4956
    %v4958 = vpop.f32.mrf.mxu0
    %4959 = vmatprep.mubr.bf16.mxu0 %v3228
    %4960 = vmatmul.mubr.bf16.gmra.mxu0 %v3227
    %v4961 = vpop.f32.mrf.mxu0
    %v4962 = vadd.f32 0.0, %v4961
    %v4963 = vpop.f32.mrf.mxu0
    %v4964 = vpop.f32.mrf.mxu0
    %v4965 = vadd.f32 0.0, %v4964
    %v4966 = vpop.f32.mrf.mxu0
    %4967 = vmatprep.mubr.bf16.mxu0 %v3233
    %4968 = vmatmul.mubr.bf16.gmra.mxu0 %v3232
    %v4969 = vpop.f32.mrf.mxu0
    %v4970 = vadd.f32 0.0, %v4969
    %v4971 = vpop.f32.mrf.mxu0
    %v4972 = vpop.f32.mrf.mxu0
    %v4973 = vadd.f32 0.0, %v4972
    %v4974 = vpop.f32.mrf.mxu0
    %4975 = vmatprep.mubr.bf16.mxu0 %v3238
    %4976 = vmatmul.mubr.bf16.gmra.mxu0 %v3237
    %v4977 = vpop.f32.mrf.mxu0
    %v4978 = vadd.f32 0.0, %v4977
    %v4979 = vpop.f32.mrf.mxu0
    %v4980 = vpop.f32.mrf.mxu0
    %v4981 = vadd.f32 0.0, %v4980
    %v4982 = vpop.f32.mrf.mxu0
    %4983 = vmatprep.mubr.bf16.mxu0 %v3243
    %4984 = vmatmul.mubr.bf16.gmra.mxu0 %v3242
    %v4985 = vpop.f32.mrf.mxu0
    %v4986 = vadd.f32 0.0, %v4985
    %v4987 = vpop.f32.mrf.mxu0
    %v4988 = vpop.f32.mrf.mxu0
    %v4989 = vadd.f32 0.0, %v4988
    %v4990 = vpop.f32.mrf.mxu0
    %4991 = vmatprep.mubr.bf16.mxu0 %v3248
    %4992 = vmatmul.mubr.bf16.gmra.mxu0 %v3247
    %v4993 = vpop.f32.mrf.mxu0
    %v4994 = vadd.f32 0.0, %v4993
    %v4995 = vpop.f32.mrf.mxu0
    %v4996 = vpop.f32.mrf.mxu0
    %v4997 = vadd.f32 0.0, %v4996
    %v4998 = vpop.f32.mrf.mxu0
    %4999 = vmatprep.mubr.bf16.mxu0 %v3253
    %5000 = vmatmul.mubr.bf16.gmra.mxu0 %v3252
    %v5001 = vpop.f32.mrf.mxu0
    %v5002 = vadd.f32 0.0, %v5001
    %v5003 = vpop.f32.mrf.mxu0
    %v5004 = vpop.f32.mrf.mxu0
    %v5005 = vadd.f32 0.0, %v5004
    %v5006 = vpop.f32.mrf.mxu0
    %5007 = vmatprep.mubr.bf16.mxu0 %v3258
    %5008 = vmatmul.mubr.bf16.gmra.mxu0 %v3257
    %v5009 = vpop.f32.mrf.mxu0
    %v5010 = vadd.f32 0.0, %v5009
    %v5011 = vpop.f32.mrf.mxu0
    %v5012 = vpop.f32.mrf.mxu0
    %v5013 = vadd.f32 0.0, %v5012
    %v5014 = vpop.f32.mrf.mxu0
    %5015 = vmatprep.mubr.bf16.mxu0 %v3263
    %5016 = vmatmul.mubr.bf16.gmra.mxu0 %v3262
    %v5017 = vpop.f32.mrf.mxu0
    %v5018 = vadd.f32 0.0, %v5017
    %v5019 = vpop.f32.mrf.mxu0
    %v5020 = vpop.f32.mrf.mxu0
    %v5021 = vadd.f32 0.0, %v5020
    %v5022 = vpop.f32.mrf.mxu0
    %5023 = vmatprep.mubr.bf16.mxu0 %v3268
    %5024 = vmatmul.mubr.bf16.gmra.mxu0 %v3267
    %v5025 = vpop.f32.mrf.mxu0
    %v5026 = vadd.f32 0.0, %v5025
    %v5027 = vpop.f32.mrf.mxu0
    %v5028 = vpop.f32.mrf.mxu0
    %v5029 = vadd.f32 0.0, %v5028
    %v5030 = vpop.f32.mrf.mxu0
    %5031 = vmatprep.mubr.bf16.mxu0 %v3273
    %5032 = vmatmul.mubr.bf16.gmra.mxu0 %v3272
    %v5033 = vpop.f32.mrf.mxu0
    %v5034 = vadd.f32 0.0, %v5033
    %v5035 = vpop.f32.mrf.mxu0
    %v5036 = vpop.f32.mrf.mxu0
    %v5037 = vadd.f32 0.0, %v5036
    %v5038 = vpop.f32.mrf.mxu0
    %5039 = vmatprep.mubr.bf16.mxu0 %v3278
    %5040 = vmatmul.mubr.bf16.gmra.mxu0 %v3277
    %v5041 = vpop.f32.mrf.mxu0
    %v5042 = vadd.f32 0.0, %v5041
    %v5043 = vpop.f32.mrf.mxu0
    %v5044 = vpop.f32.mrf.mxu0
    %v5045 = vadd.f32 0.0, %v5044
    %v5046 = vpop.f32.mrf.mxu0
    %5047 = vmatprep.mubr.bf16.mxu0 %v3283
    %5048 = vmatmul.mubr.bf16.gmra.mxu0 %v3282
    %v5049 = vpop.f32.mrf.mxu0
    %v5050 = vadd.f32 0.0, %v5049
    %v5051 = vpop.f32.mrf.mxu0
    %v5052 = vpop.f32.mrf.mxu0
    %v5053 = vadd.f32 0.0, %v5052
    %v5054 = vpop.f32.mrf.mxu0
    %5055 = vmatprep.mubr.bf16.mxu0 %v3288
    %5056 = vmatmul.mubr.bf16.gmra.mxu0 %v3287
    %v5057 = vpop.f32.mrf.mxu0
    %v5058 = vadd.f32 0.0, %v5057
    %v5059 = vpop.f32.mrf.mxu0
    %v5060 = vpop.f32.mrf.mxu0
    %v5061 = vadd.f32 0.0, %v5060
    %v5062 = vpop.f32.mrf.mxu0
    %5063 = vmatprep.mubr.bf16.mxu0 %v3293
    %5064 = vmatmul.mubr.bf16.gmra.mxu0 %v3292
    %v5065 = vpop.f32.mrf.mxu0
    %v5066 = vadd.f32 0.0, %v5065
    %v5067 = vpop.f32.mrf.mxu0
    %v5068 = vpop.f32.mrf.mxu0
    %v5069 = vadd.f32 0.0, %v5068
    %v5070 = vpop.f32.mrf.mxu0
    %5071 = vmatprep.mubr.bf16.mxu0 %v3298
    %5072 = vmatmul.mubr.bf16.gmra.mxu0 %v3297
    %v5073 = vpop.f32.mrf.mxu0
    %v5074 = vadd.f32 0.0, %v5073
    %v5075 = vpop.f32.mrf.mxu0
    %v5076 = vpop.f32.mrf.mxu0
    %v5077 = vadd.f32 0.0, %v5076
    %v5078 = vpop.f32.mrf.mxu0
    %5079 = vmatprep.mubr.bf16.mxu0 %v3303
    %5080 = vmatmul.mubr.bf16.gmra.mxu0 %v3302
    %v5081 = vpop.f32.mrf.mxu0
    %v5082 = vadd.f32 0.0, %v5081
    %v5083 = vpop.f32.mrf.mxu0
    %v5084 = vpop.f32.mrf.mxu0
    %v5085 = vadd.f32 0.0, %v5084
    %v5086 = vpop.f32.mrf.mxu0
    %5087 = vmatprep.mubr.bf16.mxu0 %v3308
    %5088 = vmatmul.mubr.bf16.gmra.mxu0 %v3307
    %v5089 = vpop.f32.mrf.mxu0
    %v5090 = vadd.f32 0.0, %v5089
    %v5091 = vpop.f32.mrf.mxu0
    %v5092 = vpop.f32.mrf.mxu0
    %v5093 = vadd.f32 0.0, %v5092
    %v5094 = vpop.f32.mrf.mxu0
    %5095 = vmatprep.mubr.bf16.mxu0 %v3313
    %5096 = vmatmul.mubr.bf16.gmra.mxu0 %v3312
    %v5097 = vpop.f32.mrf.mxu0
    %v5098 = vadd.f32 0.0, %v5097
    %v5099 = vpop.f32.mrf.mxu0
    %v5100 = vpop.f32.mrf.mxu0
    %v5101 = vadd.f32 0.0, %v5100
    %v5102 = vpop.f32.mrf.mxu0
    %5103 = vmatprep.mubr.bf16.mxu0 %v3318
    %5104 = vmatmul.mubr.bf16.gmra.mxu0 %v3317
    %v5105 = vpop.f32.mrf.mxu0
    %v5106 = vadd.f32 0.0, %v5105
    %v5107 = vpop.f32.mrf.mxu0
    %v5108 = vpop.f32.mrf.mxu0
    %v5109 = vadd.f32 0.0, %v5108
    %v5110 = vpop.f32.mrf.mxu0
    %5111 = vmatprep.mubr.bf16.mxu0 %v3323
    %5112 = vmatmul.mubr.bf16.gmra.mxu0 %v3322
    %v5113 = vpop.f32.mrf.mxu0
    %v5114 = vadd.f32 0.0, %v5113
    %v5115 = vpop.f32.mrf.mxu0
    %v5116 = vpop.f32.mrf.mxu0
    %v5117 = vadd.f32 0.0, %v5116
    %v5118 = vpop.f32.mrf.mxu0
    %5119 = vmatprep.mubr.bf16.mxu0 %v3328
    %5120 = vmatmul.mubr.bf16.gmra.mxu0 %v3327
    %v5121 = vpop.f32.mrf.mxu0
    %v5122 = vadd.f32 0.0, %v5121
    %v5123 = vpop.f32.mrf.mxu0
    %v5124 = vpop.f32.mrf.mxu0
    %v5125 = vadd.f32 0.0, %v5124
    %v5126 = vpop.f32.mrf.mxu0
    %5127 = vmatprep.mubr.bf16.mxu0 %v3333
    %5128 = vmatmul.mubr.bf16.gmra.mxu0 %v3332
    %v5129 = vpop.f32.mrf.mxu0
    %v5130 = vadd.f32 0.0, %v5129
    %v5131 = vpop.f32.mrf.mxu0
    %v5132 = vpop.f32.mrf.mxu0
    %v5133 = vadd.f32 0.0, %v5132
    %v5134 = vpop.f32.mrf.mxu0
    %5135 = vmatprep.mubr.bf16.mxu0 %v3338
    %5136 = vmatmul.mubr.bf16.gmra.mxu0 %v3337
    %v5137 = vpop.f32.mrf.mxu0
    %v5138 = vadd.f32 0.0, %v5137
    %v5139 = vpop.f32.mrf.mxu0
    %v5140 = vpop.f32.mrf.mxu0
    %v5141 = vadd.f32 0.0, %v5140
    %v5142 = vpop.f32.mrf.mxu0
    %5143 = vmatprep.mubr.bf16.mxu0 %v3343
    %5144 = vmatmul.mubr.bf16.gmra.mxu0 %v3342
    %v5145 = vpop.f32.mrf.mxu0
    %v5146 = vadd.f32 0.0, %v5145
    %v5147 = vpop.f32.mrf.mxu0
    %v5148 = vpop.f32.mrf.mxu0
    %v5149 = vadd.f32 0.0, %v5148
    %v5150 = vpop.f32.mrf.mxu0
    %5151 = vmatprep.mubr.bf16.mxu0 %v3348
    %5152 = vmatmul.mubr.bf16.gmra.mxu0 %v3347
    %v5153 = vpop.f32.mrf.mxu0
    %v5154 = vadd.f32 0.0, %v5153
    %v5155 = vpop.f32.mrf.mxu0
    %v5156 = vpop.f32.mrf.mxu0
    %v5157 = vadd.f32 0.0, %v5156
    %v5158 = vpop.f32.mrf.mxu0
    %5159 = vmatprep.mubr.bf16.mxu0 %v3353
    %5160 = vmatmul.mubr.bf16.gmra.mxu0 %v3352
    %v5161 = vpop.f32.mrf.mxu0
    %v5162 = vadd.f32 0.0, %v5161
    %v5163 = vpop.f32.mrf.mxu0
    %v5164 = vpop.f32.mrf.mxu0
    %v5165 = vadd.f32 0.0, %v5164
    %v5166 = vpop.f32.mrf.mxu0
    %5167 = vmatprep.mubr.bf16.mxu0 %v3358
    %5168 = vmatmul.mubr.bf16.gmra.mxu0 %v3357
    %v5169 = vpop.f32.mrf.mxu0
    %v5170 = vadd.f32 0.0, %v5169
    %v5171 = vpop.f32.mrf.mxu0
    %v5172 = vpop.f32.mrf.mxu0
    %v5173 = vadd.f32 0.0, %v5172
    %v5174 = vpop.f32.mrf.mxu0
    %5175 = vmatprep.mubr.bf16.mxu0 %v3363
    %5176 = vmatmul.mubr.bf16.gmra.mxu0 %v3362
    %v5177 = vpop.f32.mrf.mxu0
    %v5178 = vadd.f32 0.0, %v5177
    %v5179 = vpop.f32.mrf.mxu0
    %v5180 = vpop.f32.mrf.mxu0
    %v5181 = vadd.f32 0.0, %v5180
    %v5182 = vpop.f32.mrf.mxu0
    %5183 = vmatprep.mubr.bf16.mxu0 %v3368
    %5184 = vmatmul.mubr.bf16.gmra.mxu0 %v3367
    %v5185 = vpop.f32.mrf.mxu0
    %v5186 = vadd.f32 0.0, %v5185
    %v5187 = vpop.f32.mrf.mxu0
    %v5188 = vpop.f32.mrf.mxu0
    %v5189 = vadd.f32 0.0, %v5188
    %v5190 = vpop.f32.mrf.mxu0
    %5191 = vmatprep.mubr.bf16.mxu0 %v3373
    %5192 = vmatmul.mubr.bf16.gmra.mxu0 %v3372
    %v5193 = vpop.f32.mrf.mxu0
    %v5194 = vadd.f32 0.0, %v5193
    %v5195 = vpop.f32.mrf.mxu0
    %v5196 = vpop.f32.mrf.mxu0
    %v5197 = vadd.f32 0.0, %v5196
    %v5198 = vpop.f32.mrf.mxu0
    %5199 = vmatprep.mubr.bf16.mxu0 %v3378
    %5200 = vmatmul.mubr.bf16.gmra.mxu0 %v3377
    %v5201 = vpop.f32.mrf.mxu0
    %v5202 = vadd.f32 0.0, %v5201
    %v5203 = vpop.f32.mrf.mxu0
    %v5204 = vpop.f32.mrf.mxu0
    %v5205 = vadd.f32 0.0, %v5204
    %v5206 = vpop.f32.mrf.mxu0
    %5207 = vmatprep.mubr.bf16.mxu0 %v3383
    %5208 = vmatmul.mubr.bf16.gmra.mxu0 %v3382
    %v5209 = vpop.f32.mrf.mxu0
    %v5210 = vadd.f32 0.0, %v5209
    %v5211 = vpop.f32.mrf.mxu0
    %v5212 = vpop.f32.mrf.mxu0
    %v5213 = vadd.f32 0.0, %v5212
    %v5214 = vpop.f32.mrf.mxu0
    %5215 = vmatprep.mubr.bf16.mxu0 %v3388
    %5216 = vmatmul.mubr.bf16.gmra.mxu0 %v3387
    %v5217 = vpop.f32.mrf.mxu0
    %v5218 = vadd.f32 0.0, %v5217
    %v5219 = vpop.f32.mrf.mxu0
    %v5220 = vpop.f32.mrf.mxu0
    %v5221 = vadd.f32 0.0, %v5220
    %v5222 = vpop.f32.mrf.mxu0
    %5223 = vmatprep.mubr.bf16.mxu0 %v3393
    %5224 = vmatmul.mubr.bf16.gmra.mxu0 %v3392
    %v5225 = vpop.f32.mrf.mxu0
    %v5226 = vadd.f32 0.0, %v5225
    %v5227 = vpop.f32.mrf.mxu0
    %v5228 = vpop.f32.mrf.mxu0
    %v5229 = vadd.f32 0.0, %v5228
    %v5230 = vpop.f32.mrf.mxu0
    %5231 = vmatprep.mubr.bf16.mxu0 %v3398
    %5232 = vmatmul.mubr.bf16.gmra.mxu0 %v3397
    %v5233 = vpop.f32.mrf.mxu0
    %v5234 = vadd.f32 0.0, %v5233
    %v5235 = vpop.f32.mrf.mxu0
    %v5236 = vpop.f32.mrf.mxu0
    %v5237 = vadd.f32 0.0, %v5236
    %v5238 = vpop.f32.mrf.mxu0
    %5239 = vmatprep.mubr.bf16.mxu0 %v3403
    %5240 = vmatmul.mubr.bf16.gmra.mxu0 %v3402
    %v5241 = vpop.f32.mrf.mxu0
    %v5242 = vadd.f32 0.0, %v5241
    %v5243 = vpop.f32.mrf.mxu0
    %v5244 = vpop.f32.mrf.mxu0
    %v5245 = vadd.f32 0.0, %v5244
    %v5246 = vpop.f32.mrf.mxu0
    %5247 = vmatprep.mubr.bf16.mxu0 %v3408
    %5248 = vmatmul.mubr.bf16.gmra.mxu0 %v3407
    %v5249 = vpop.f32.mrf.mxu0
    %v5250 = vadd.f32 0.0, %v5249
    %v5251 = vpop.f32.mrf.mxu0
    %v5252 = vpop.f32.mrf.mxu0
    %v5253 = vadd.f32 0.0, %v5252
    %v5254 = vpop.f32.mrf.mxu0
    %5255 = vmatprep.mubr.bf16.mxu0 %v3413
    %5256 = vmatmul.mubr.bf16.gmra.mxu0 %v3412
    %v5257 = vpop.f32.mrf.mxu0
    %v5258 = vadd.f32 0.0, %v5257
    %v5259 = vpop.f32.mrf.mxu0
    %v5260 = vpop.f32.mrf.mxu0
    %v5261 = vadd.f32 0.0, %v5260
    %v5262 = vpop.f32.mrf.mxu0
    %5263 = vmatprep.mubr.bf16.mxu0 %v3418
    %5264 = vmatmul.mubr.bf16.gmra.mxu0 %v3417
    %v5265 = vpop.f32.mrf.mxu0
    %v5266 = vadd.f32 0.0, %v5265
    %v5267 = vpop.f32.mrf.mxu0
    %v5268 = vpop.f32.mrf.mxu0
    %v5269 = vadd.f32 0.0, %v5268
    %v5270 = vpop.f32.mrf.mxu0
    %5271 = vmatprep.mubr.bf16.mxu0 %v3423
    %5272 = vmatmul.mubr.bf16.gmra.mxu0 %v3422
    %v5273 = vpop.f32.mrf.mxu0
    %v5274 = vadd.f32 0.0, %v5273
    %v5275 = vpop.f32.mrf.mxu0
    %v5276 = vpop.f32.mrf.mxu0
    %v5277 = vadd.f32 0.0, %v5276
    %v5278 = vpop.f32.mrf.mxu0
    %5279 = vmatprep.mubr.bf16.mxu0 %v3428
    %5280 = vmatmul.mubr.bf16.gmra.mxu0 %v3427
    %v5281 = vpop.f32.mrf.mxu0
    %v5282 = vadd.f32 0.0, %v5281
    %v5283 = vpop.f32.mrf.mxu0
    %v5284 = vpop.f32.mrf.mxu0
    %v5285 = vadd.f32 0.0, %v5284
    %v5286 = vpop.f32.mrf.mxu0
    %5287 = vmatprep.mubr.bf16.mxu0 %v3433
    %5288 = vmatmul.mubr.bf16.gmra.mxu0 %v3432
    %v5289 = vpop.f32.mrf.mxu0
    %v5290 = vadd.f32 0.0, %v5289
    %v5291 = vpop.f32.mrf.mxu0
    %v5292 = vpop.f32.mrf.mxu0
    %v5293 = vadd.f32 0.0, %v5292
    %v5294 = vpop.f32.mrf.mxu0
    %5295 = vmatprep.mubr.bf16.mxu0 %v3438
    %5296 = vmatmul.mubr.bf16.gmra.mxu0 %v3437
    %v5297 = vpop.f32.mrf.mxu0
    %v5298 = vadd.f32 0.0, %v5297
    %v5299 = vpop.f32.mrf.mxu0
    %v5300 = vpop.f32.mrf.mxu0
    %v5301 = vadd.f32 0.0, %v5300
    %v5302 = vpop.f32.mrf.mxu0
    %5303 = vmatprep.mubr.bf16.mxu0 %v3443
    %5304 = vmatmul.mubr.bf16.gmra.mxu0 %v3442
    %v5305 = vpop.f32.mrf.mxu0
    %v5306 = vadd.f32 0.0, %v5305
    %v5307 = vpop.f32.mrf.mxu0
    %v5308 = vpop.f32.mrf.mxu0
    %v5309 = vadd.f32 0.0, %v5308
    %v5310 = vpop.f32.mrf.mxu0
    %5311 = vmatprep.mubr.bf16.mxu0 %v3448
    %5312 = vmatmul.mubr.bf16.gmra.mxu0 %v3447
    %v5313 = vpop.f32.mrf.mxu0
    %v5314 = vadd.f32 0.0, %v5313
    %v5315 = vpop.f32.mrf.mxu0
    %v5316 = vpop.f32.mrf.mxu0
    %v5317 = vadd.f32 0.0, %v5316
    %v5318 = vpop.f32.mrf.mxu0
    %5319 = vmatprep.mubr.bf16.mxu0 %v3453
    %5320 = vmatmul.mubr.bf16.gmra.mxu0 %v3452
    %v5321 = vpop.f32.mrf.mxu0
    %v5322 = vadd.f32 0.0, %v5321
    %v5323 = vpop.f32.mrf.mxu0
    %v5324 = vpop.f32.mrf.mxu0
    %v5325 = vadd.f32 0.0, %v5324
    %v5326 = vpop.f32.mrf.mxu0
    %5327 = vmatprep.mubr.bf16.mxu0 %v3458
    %5328 = vmatmul.mubr.bf16.gmra.mxu0 %v3457
    %v5329 = vpop.f32.mrf.mxu0
    %v5330 = vadd.f32 0.0, %v5329
    %v5331 = vpop.f32.mrf.mxu0
    %v5332 = vpop.f32.mrf.mxu0
    %v5333 = vadd.f32 0.0, %v5332
    %v5334 = vpop.f32.mrf.mxu0
    %5335 = vmatprep.mubr.bf16.mxu0 %v3463
    %5336 = vmatmul.mubr.bf16.gmra.mxu0 %v3462
    %v5337 = vpop.f32.mrf.mxu0
    %v5338 = vadd.f32 0.0, %v5337
    %v5339 = vpop.f32.mrf.mxu0
    %v5340 = vpop.f32.mrf.mxu0
    %v5341 = vadd.f32 0.0, %v5340
    %v5342 = vpop.f32.mrf.mxu0
    %5343 = vmatprep.mubr.bf16.mxu0 %v3468
    %5344 = vmatmul.mubr.bf16.gmra.mxu0 %v3467
    %v5345 = vpop.f32.mrf.mxu0
    %v5346 = vadd.f32 0.0, %v5345
    %v5347 = vpop.f32.mrf.mxu0
    %v5348 = vpop.f32.mrf.mxu0
    %v5349 = vadd.f32 0.0, %v5348
    %v5350 = vpop.f32.mrf.mxu0
    %5351 = vmatprep.mubr.bf16.mxu0 %v3473
    %5352 = vmatmul.mubr.bf16.gmra.mxu0 %v3472
    %v5353 = vpop.f32.mrf.mxu0
    %v5354 = vadd.f32 0.0, %v5353
    %v5355 = vpop.f32.mrf.mxu0
    %v5356 = vpop.f32.mrf.mxu0
    %v5357 = vadd.f32 0.0, %v5356
    %v5358 = vpop.f32.mrf.mxu0
    %5359 = vmatprep.mubr.bf16.mxu0 %v3478
    %5360 = vmatmul.mubr.bf16.gmra.mxu0 %v3477
    %v5361 = vpop.f32.mrf.mxu0
    %v5362 = vadd.f32 0.0, %v5361
    %v5363 = vpop.f32.mrf.mxu0
    %v5364 = vpop.f32.mrf.mxu0
    %v5365 = vadd.f32 0.0, %v5364
    %v5366 = vpop.f32.mrf.mxu0
    %5367 = vmatprep.mubr.bf16.mxu0 %v3483
    %5368 = vmatmul.mubr.bf16.gmra.mxu0 %v3482
    %v5369 = vpop.f32.mrf.mxu0
    %v5370 = vadd.f32 0.0, %v5369
    %v5371 = vpop.f32.mrf.mxu0
    %v5372 = vpop.f32.mrf.mxu0
    %v5373 = vadd.f32 0.0, %v5372
    %v5374 = vpop.f32.mrf.mxu0
    %5375 = vmatprep.mubr.bf16.mxu0 %v3488
    %5376 = vmatmul.mubr.bf16.gmra.mxu0 %v3487
    %v5377 = vpop.f32.mrf.mxu0
    %v5378 = vadd.f32 0.0, %v5377
    %v5379 = vpop.f32.mrf.mxu0
    %v5380 = vpop.f32.mrf.mxu0
    %v5381 = vadd.f32 0.0, %v5380
    %v5382 = vpop.f32.mrf.mxu0
    %5383 = vmatprep.mubr.bf16.mxu0 %v3493
    %5384 = vmatmul.mubr.bf16.gmra.mxu0 %v3492
    %v5385 = vpop.f32.mrf.mxu0
    %v5386 = vadd.f32 0.0, %v5385
    %v5387 = vpop.f32.mrf.mxu0
    %v5388 = vpop.f32.mrf.mxu0
    %v5389 = vadd.f32 0.0, %v5388
    %v5390 = vpop.f32.mrf.mxu0
    %5391 = vmatprep.mubr.bf16.mxu0 %v3498
    %5392 = vmatmul.mubr.bf16.gmra.mxu0 %v3497
    %v5393 = vpop.f32.mrf.mxu0
    %v5394 = vadd.f32 0.0, %v5393
    %v5395 = vpop.f32.mrf.mxu0
    %v5396 = vpop.f32.mrf.mxu0
    %v5397 = vadd.f32 0.0, %v5396
    %v5398 = vpop.f32.mrf.mxu0
    %5399 = vmatprep.mubr.bf16.mxu0 %v3503
    %5400 = vmatmul.mubr.bf16.gmra.mxu0 %v3502
    %v5401 = vpop.f32.mrf.mxu0
    %v5402 = vadd.f32 0.0, %v5401
    %v5403 = vpop.f32.mrf.mxu0
    %v5404 = vpop.f32.mrf.mxu0
    %v5405 = vadd.f32 0.0, %v5404
    %v5406 = vpop.f32.mrf.mxu0
    %5407 = vmatprep.mubr.bf16.mxu0 %v3508
    %5408 = vmatmul.mubr.bf16.gmra.mxu0 %v3507
    %v5409 = vpop.f32.mrf.mxu0
    %v5410 = vadd.f32 0.0, %v5409
    %v5411 = vpop.f32.mrf.mxu0
    %v5412 = vpop.f32.mrf.mxu0
    %v5413 = vadd.f32 0.0, %v5412
    %v5414 = vpop.f32.mrf.mxu0
    %5415 = vmatprep.mubr.bf16.mxu0 %v3513
    %5416 = vmatmul.mubr.bf16.gmra.mxu0 %v3512
    %v5417 = vpop.f32.mrf.mxu0
    %v5418 = vadd.f32 0.0, %v5417
    %v5419 = vpop.f32.mrf.mxu0
    %v5420 = vpop.f32.mrf.mxu0
    %v5421 = vadd.f32 0.0, %v5420
    %v5422 = vpop.f32.mrf.mxu0
    %5423 = vmatprep.mubr.bf16.mxu0 %v3518
    %5424 = vmatmul.mubr.bf16.gmra.mxu0 %v3517
    %v5425 = vpop.f32.mrf.mxu0
    %v5426 = vadd.f32 0.0, %v5425
    %v5427 = vpop.f32.mrf.mxu0
    %v5428 = vpop.f32.mrf.mxu0
    %v5429 = vadd.f32 0.0, %v5428
    %v5430 = vpop.f32.mrf.mxu0
    %5431 = vmatprep.mubr.bf16.mxu0 %v3523
    %5432 = vmatmul.mubr.bf16.gmra.mxu0 %v3522
    %v5433 = vpop.f32.mrf.mxu0
    %v5434 = vadd.f32 0.0, %v5433
    %v5435 = vpop.f32.mrf.mxu0
    %v5436 = vpop.f32.mrf.mxu0
    %v5437 = vadd.f32 0.0, %v5436
    %v5438 = vpop.f32.mrf.mxu0
    %5439 = vmatprep.mubr.bf16.mxu0 %v3528
    %5440 = vmatmul.mubr.bf16.gmra.mxu0 %v3527
    %v5441 = vpop.f32.mrf.mxu0
    %v5442 = vadd.f32 0.0, %v5441
    %v5443 = vpop.f32.mrf.mxu0
    %v5444 = vpop.f32.mrf.mxu0
    %v5445 = vadd.f32 0.0, %v5444
    %v5446 = vpop.f32.mrf.mxu0
    %5447 = vmatprep.mubr.bf16.mxu0 %v3533
    %5448 = vmatmul.mubr.bf16.gmra.mxu0 %v3532
    %v5449 = vpop.f32.mrf.mxu0
    %v5450 = vadd.f32 0.0, %v5449
    %v5451 = vpop.f32.mrf.mxu0
    %v5452 = vpop.f32.mrf.mxu0
    %v5453 = vadd.f32 0.0, %v5452
    %v5454 = vpop.f32.mrf.mxu0
    %5455 = vmatprep.mubr.bf16.mxu0 %v3538
    %5456 = vmatmul.mubr.bf16.gmra.mxu0 %v3537
    %v5457 = vpop.f32.mrf.mxu0
    %v5458 = vadd.f32 0.0, %v5457
    %v5459 = vpop.f32.mrf.mxu0
    %v5460 = vpop.f32.mrf.mxu0
    %v5461 = vadd.f32 0.0, %v5460
    %v5462 = vpop.f32.mrf.mxu0
    %5463 = vmatprep.mubr.bf16.mxu0 %v3543
    %5464 = vmatmul.mubr.bf16.gmra.mxu0 %v3542
    %v5465 = vpop.f32.mrf.mxu0
    %v5466 = vadd.f32 0.0, %v5465
    %v5467 = vpop.f32.mrf.mxu0
    %v5468 = vpop.f32.mrf.mxu0
    %v5469 = vadd.f32 0.0, %v5468
    %v5470 = vpop.f32.mrf.mxu0
    %5471 = vmatprep.mubr.bf16.mxu0 %v3548
    %5472 = vmatmul.mubr.bf16.gmra.mxu0 %v3547
    %v5473 = vpop.f32.mrf.mxu0
    %v5474 = vpop.f32.mrf.mxu0
    %v5475 = vpop.f32.mrf.mxu0
    %v5476 = vpop.f32.mrf.mxu0
    %5477 = vmatprep.mubr.bf16.mxu0 %v3553
    %5478 = vmatmul.mubr.bf16.gmra.mxu0 %v3552
    %v5479 = vpop.f32.mrf.mxu0
    %v5480 = vpop.f32.mrf.mxu0
    %v5481 = vpop.f32.mrf.mxu0
    %v5482 = vpop.f32.mrf.mxu0
    %5483 = vmatprep.mubr.bf16.mxu0 %v3558
    %5484 = vmatmul.mubr.bf16.gmra.mxu0 %v3557
    %v5485 = vpop.f32.mrf.mxu0
    %v5486 = vpop.f32.mrf.mxu0
    %v5487 = vpop.f32.mrf.mxu0
    %v5488 = vpop.f32.mrf.mxu0
    %5489 = vmatprep.mubr.bf16.mxu0 %v3563
    %5490 = vmatmul.mubr.bf16.gmra.mxu0 %v3562
    %v5491 = vpop.f32.mrf.mxu0
    %v5492 = vpop.f32.mrf.mxu0
    %v5493 = vpop.f32.mrf.mxu0
    %v5494 = vpop.f32.mrf.mxu0
    %5495 = vdwg.mxu0
    %5496 = vmatprep.subr.bf16.mxu0 0
    %5497 = vmatpush1.bf16.msra.mxu0 %v4390
    %5498 = vmatprep.subr.bf16.mxu0 0
    %5499 = vmatpush1.bf16.msra.mxu0 %v4389
    %5500 = vmatprep.subr.bf16.mxu0 0
    %5501 = vmatpush1.bf16.msra.mxu0 %v4388
    %5502 = vmatprep.subr.bf16.mxu0 0
    %5503 = vmatpush1.bf16.msra.mxu0 %v4387
    %5504 = vmatprep.subr.bf16.mxu0 0
    %5505 = vmatpush1.bf16.msra.mxu0 %v4386
    %5506 = vmatprep.subr.bf16.mxu0 0
    %5507 = vmatpush1.bf16.msra.mxu0 %v4385
    %5508 = vmatprep.subr.bf16.mxu0 0
    %5509 = vmatpush1.bf16.msra.mxu0 %v4384
    %5510 = vmatprep.subr.bf16.mxu0 0
    %5511 = vmatpush1.bf16.msra.mxu0 %v4383
    %5512 = vmatprep.subr.bf16.mxu0 0
    %5513 = vmatpush2.bf16.msra.mxu0 %v4398
    %5514 = vmatprep.subr.bf16.mxu0 0
    %5515 = vmatpush2.bf16.msra.mxu0 %v4397
    %5516 = vmatprep.subr.bf16.mxu0 0
    %5517 = vmatpush2.bf16.msra.mxu0 %v4396
    %5518 = vmatprep.subr.bf16.mxu0 0
    %5519 = vmatpush2.bf16.msra.mxu0 %v4395
    %5520 = vmatprep.subr.bf16.mxu0 0
    %5521 = vmatpush2.bf16.msra.mxu0 %v4394
    %5522 = vmatprep.subr.bf16.mxu0 0
    %5523 = vmatpush2.bf16.msra.mxu0 %v4393
    %5524 = vmatprep.subr.bf16.mxu0 0
    %5525 = vmatpush2.bf16.msra.mxu0 %v4392
    %5526 = vmatprep.subr.bf16.mxu0 0
    %5527 = vmatpush2.bf16.msra.mxu0 %v4391
    %5528 = vmatprep.mubr.bf16.mxu0 %v2930
    %5529 = vmatmul.mubr.bf16.gmra.mxu0 %v2929
    %v5530 = vpop.f32.mrf.mxu0
    %v5531 = vadd.f32 %v4482, %v5530
    %v5532 = vpop.f32.mrf.mxu0
    %v5533 = vpop.f32.mrf.mxu0
    %v5534 = vadd.f32 %v4485, %v5533
    %v5535 = vpop.f32.mrf.mxu0
    %5536 = vmatprep.mubr.bf16.mxu0 %v2935
    %5537 = vmatmul.mubr.bf16.gmra.mxu0 %v2934
    %v5538 = vpop.f32.mrf.mxu0
    %v5539 = vadd.f32 %v4490, %v5538
    %v5540 = vpop.f32.mrf.mxu0
    %v5541 = vpop.f32.mrf.mxu0
    %v5542 = vadd.f32 %v4493, %v5541
    %v5543 = vpop.f32.mrf.mxu0
    %5544 = vmatprep.mubr.bf16.mxu0 %v2940
    %5545 = vmatmul.mubr.bf16.gmra.mxu0 %v2939
    %v5546 = vpop.f32.mrf.mxu0
    %v5547 = vadd.f32 %v4498, %v5546
    %v5548 = vpop.f32.mrf.mxu0
    %v5549 = vpop.f32.mrf.mxu0
    %v5550 = vadd.f32 %v4501, %v5549
    %v5551 = vpop.f32.mrf.mxu0
    %5552 = vmatprep.mubr.bf16.mxu0 %v2945
    %5553 = vmatmul.mubr.bf16.gmra.mxu0 %v2944
    %v5554 = vpop.f32.mrf.mxu0
    %v5555 = vadd.f32 %v4506, %v5554
    %v5556 = vpop.f32.mrf.mxu0
    %v5557 = vpop.f32.mrf.mxu0
    %v5558 = vadd.f32 %v4509, %v5557
    %v5559 = vpop.f32.mrf.mxu0
    %5560 = vmatprep.mubr.bf16.mxu0 %v2950
    %5561 = vmatmul.mubr.bf16.gmra.mxu0 %v2949
    %v5562 = vpop.f32.mrf.mxu0
    %v5563 = vadd.f32 %v4514, %v5562
    %v5564 = vpop.f32.mrf.mxu0
    %v5565 = vpop.f32.mrf.mxu0
    %v5566 = vadd.f32 %v4517, %v5565
    %v5567 = vpop.f32.mrf.mxu0
    %5568 = vmatprep.mubr.bf16.mxu0 %v2955
    %5569 = vmatmul.mubr.bf16.gmra.mxu0 %v2954
    %v5570 = vpop.f32.mrf.mxu0
    %v5571 = vadd.f32 %v4522, %v5570
    %v5572 = vpop.f32.mrf.mxu0
    %v5573 = vpop.f32.mrf.mxu0
    %v5574 = vadd.f32 %v4525, %v5573
    %v5575 = vpop.f32.mrf.mxu0
    %5576 = vmatprep.mubr.bf16.mxu0 %v2960
    %5577 = vmatmul.mubr.bf16.gmra.mxu0 %v2959
    %v5578 = vpop.f32.mrf.mxu0
    %v5579 = vadd.f32 %v4530, %v5578
    %v5580 = vpop.f32.mrf.mxu0
    %v5581 = vpop.f32.mrf.mxu0
    %v5582 = vadd.f32 %v4533, %v5581
    %v5583 = vpop.f32.mrf.mxu0
    %5584 = vmatprep.mubr.bf16.mxu0 %v2965
    %5585 = vmatmul.mubr.bf16.gmra.mxu0 %v2964
    %v5586 = vpop.f32.mrf.mxu0
    %v5587 = vadd.f32 %v4538, %v5586
    %v5588 = vpop.f32.mrf.mxu0
    %v5589 = vpop.f32.mrf.mxu0
    %v5590 = vadd.f32 %v4541, %v5589
    %v5591 = vpop.f32.mrf.mxu0
    %5592 = vmatprep.mubr.bf16.mxu0 %v2970
    %5593 = vmatmul.mubr.bf16.gmra.mxu0 %v2969
    %v5594 = vpop.f32.mrf.mxu0
    %v5595 = vadd.f32 %v4546, %v5594
    %v5596 = vpop.f32.mrf.mxu0
    %v5597 = vpop.f32.mrf.mxu0
    %v5598 = vadd.f32 %v4549, %v5597
    %v5599 = vpop.f32.mrf.mxu0
    %5600 = vmatprep.mubr.bf16.mxu0 %v2975
    %5601 = vmatmul.mubr.bf16.gmra.mxu0 %v2974
    %v5602 = vpop.f32.mrf.mxu0
    %v5603 = vadd.f32 %v4554, %v5602
    %v5604 = vpop.f32.mrf.mxu0
    %v5605 = vpop.f32.mrf.mxu0
    %v5606 = vadd.f32 %v4557, %v5605
    %v5607 = vpop.f32.mrf.mxu0
    %5608 = vmatprep.mubr.bf16.mxu0 %v2980
    %5609 = vmatmul.mubr.bf16.gmra.mxu0 %v2979
    %v5610 = vpop.f32.mrf.mxu0
    %v5611 = vadd.f32 %v4562, %v5610
    %v5612 = vpop.f32.mrf.mxu0
    %v5613 = vpop.f32.mrf.mxu0
    %v5614 = vadd.f32 %v4565, %v5613
    %v5615 = vpop.f32.mrf.mxu0
    %5616 = vmatprep.mubr.bf16.mxu0 %v2985
    %5617 = vmatmul.mubr.bf16.gmra.mxu0 %v2984
    %v5618 = vpop.f32.mrf.mxu0
    %v5619 = vadd.f32 %v4570, %v5618
    %v5620 = vpop.f32.mrf.mxu0
    %v5621 = vpop.f32.mrf.mxu0
    %v5622 = vadd.f32 %v4573, %v5621
    %v5623 = vpop.f32.mrf.mxu0
    %5624 = vmatprep.mubr.bf16.mxu0 %v2990
    %5625 = vmatmul.mubr.bf16.gmra.mxu0 %v2989
    %v5626 = vpop.f32.mrf.mxu0
    %v5627 = vadd.f32 %v4578, %v5626
    %v5628 = vpop.f32.mrf.mxu0
    %v5629 = vpop.f32.mrf.mxu0
    %v5630 = vadd.f32 %v4581, %v5629
    %v5631 = vpop.f32.mrf.mxu0
    %5632 = vmatprep.mubr.bf16.mxu0 %v2995
    %5633 = vmatmul.mubr.bf16.gmra.mxu0 %v2994
    %v5634 = vpop.f32.mrf.mxu0
    %v5635 = vadd.f32 %v4586, %v5634
    %v5636 = vpop.f32.mrf.mxu0
    %v5637 = vpop.f32.mrf.mxu0
    %v5638 = vadd.f32 %v4589, %v5637
    %v5639 = vpop.f32.mrf.mxu0
    %5640 = vmatprep.mubr.bf16.mxu0 %v3000
    %5641 = vmatmul.mubr.bf16.gmra.mxu0 %v2999
    %v5642 = vpop.f32.mrf.mxu0
    %v5643 = vadd.f32 %v4594, %v5642
    %v5644 = vpop.f32.mrf.mxu0
    %v5645 = vpop.f32.mrf.mxu0
    %v5646 = vadd.f32 %v4597, %v5645
    %v5647 = vpop.f32.mrf.mxu0
    %5648 = vmatprep.mubr.bf16.mxu0 %v3005
    %5649 = vmatmul.mubr.bf16.gmra.mxu0 %v3004
    %v5650 = vpop.f32.mrf.mxu0
    %v5651 = vadd.f32 %v4602, %v5650
    %v5652 = vpop.f32.mrf.mxu0
    %v5653 = vpop.f32.mrf.mxu0
    %v5654 = vadd.f32 %v4605, %v5653
    %v5655 = vpop.f32.mrf.mxu0
    %5656 = vmatprep.mubr.bf16.mxu0 %v3010
    %5657 = vmatmul.mubr.bf16.gmra.mxu0 %v3009
    %v5658 = vpop.f32.mrf.mxu0
    %v5659 = vadd.f32 %v4610, %v5658
    %v5660 = vpop.f32.mrf.mxu0
    %v5661 = vpop.f32.mrf.mxu0
    %v5662 = vadd.f32 %v4613, %v5661
    %v5663 = vpop.f32.mrf.mxu0
    %5664 = vmatprep.mubr.bf16.mxu0 %v3015
    %5665 = vmatmul.mubr.bf16.gmra.mxu0 %v3014
    %v5666 = vpop.f32.mrf.mxu0
    %v5667 = vadd.f32 %v4618, %v5666
    %v5668 = vpop.f32.mrf.mxu0
    %v5669 = vpop.f32.mrf.mxu0
    %v5670 = vadd.f32 %v4621, %v5669
    %v5671 = vpop.f32.mrf.mxu0
    %5672 = vmatprep.mubr.bf16.mxu0 %v3020
    %5673 = vmatmul.mubr.bf16.gmra.mxu0 %v3019
    %v5674 = vpop.f32.mrf.mxu0
    %v5675 = vadd.f32 %v4626, %v5674
    %v5676 = vpop.f32.mrf.mxu0
    %v5677 = vpop.f32.mrf.mxu0
    %v5678 = vadd.f32 %v4629, %v5677
    %v5679 = vpop.f32.mrf.mxu0
    %5680 = vmatprep.mubr.bf16.mxu0 %v3025
    %5681 = vmatmul.mubr.bf16.gmra.mxu0 %v3024
    %v5682 = vpop.f32.mrf.mxu0
    %v5683 = vadd.f32 %v4634, %v5682
    %v5684 = vpop.f32.mrf.mxu0
    %v5685 = vpop.f32.mrf.mxu0
    %v5686 = vadd.f32 %v4637, %v5685
    %v5687 = vpop.f32.mrf.mxu0
    %5688 = vmatprep.mubr.bf16.mxu0 %v3030
    %5689 = vmatmul.mubr.bf16.gmra.mxu0 %v3029
    %v5690 = vpop.f32.mrf.mxu0
    %v5691 = vadd.f32 %v4642, %v5690
    %v5692 = vpop.f32.mrf.mxu0
    %v5693 = vpop.f32.mrf.mxu0
    %v5694 = vadd.f32 %v4645, %v5693
    %v5695 = vpop.f32.mrf.mxu0
    %5696 = vmatprep.mubr.bf16.mxu0 %v3035
    %5697 = vmatmul.mubr.bf16.gmra.mxu0 %v3034
    %v5698 = vpop.f32.mrf.mxu0
    %v5699 = vadd.f32 %v4650, %v5698
    %v5700 = vpop.f32.mrf.mxu0
    %v5701 = vpop.f32.mrf.mxu0
    %v5702 = vadd.f32 %v4653, %v5701
    %v5703 = vpop.f32.mrf.mxu0
    %5704 = vmatprep.mubr.bf16.mxu0 %v3040
    %5705 = vmatmul.mubr.bf16.gmra.mxu0 %v3039
    %v5706 = vpop.f32.mrf.mxu0
    %v5707 = vadd.f32 %v4658, %v5706
    %v5708 = vpop.f32.mrf.mxu0
    %v5709 = vpop.f32.mrf.mxu0
    %v5710 = vadd.f32 %v4661, %v5709
    %v5711 = vpop.f32.mrf.mxu0
    %5712 = vmatprep.mubr.bf16.mxu0 %v3045
    %5713 = vmatmul.mubr.bf16.gmra.mxu0 %v3044
    %v5714 = vpop.f32.mrf.mxu0
    %v5715 = vadd.f32 %v4666, %v5714
    %v5716 = vpop.f32.mrf.mxu0
    %v5717 = vpop.f32.mrf.mxu0
    %v5718 = vadd.f32 %v4669, %v5717
    %v5719 = vpop.f32.mrf.mxu0
    %5720 = vmatprep.mubr.bf16.mxu0 %v3050
    %5721 = vmatmul.mubr.bf16.gmra.mxu0 %v3049
    %v5722 = vpop.f32.mrf.mxu0
    %v5723 = vadd.f32 %v4674, %v5722
    %v5724 = vpop.f32.mrf.mxu0
    %v5725 = vpop.f32.mrf.mxu0
    %v5726 = vadd.f32 %v4677, %v5725
    %v5727 = vpop.f32.mrf.mxu0
    %5728 = vmatprep.mubr.bf16.mxu0 %v3055
    %5729 = vmatmul.mubr.bf16.gmra.mxu0 %v3054
    %v5730 = vpop.f32.mrf.mxu0
    %v5731 = vadd.f32 %v4682, %v5730
    %v5732 = vpop.f32.mrf.mxu0
    %v5733 = vpop.f32.mrf.mxu0
    %v5734 = vadd.f32 %v4685, %v5733
    %v5735 = vpop.f32.mrf.mxu0
    %5736 = vmatprep.mubr.bf16.mxu0 %v3060
    %5737 = vmatmul.mubr.bf16.gmra.mxu0 %v3059
    %v5738 = vpop.f32.mrf.mxu0
    %v5739 = vadd.f32 %v4690, %v5738
    %v5740 = vpop.f32.mrf.mxu0
    %v5741 = vpop.f32.mrf.mxu0
    %v5742 = vadd.f32 %v4693, %v5741
    %v5743 = vpop.f32.mrf.mxu0
    %5744 = vmatprep.mubr.bf16.mxu0 %v3065
    %5745 = vmatmul.mubr.bf16.gmra.mxu0 %v3064
    %v5746 = vpop.f32.mrf.mxu0
    %v5747 = vadd.f32 %v4698, %v5746
    %v5748 = vpop.f32.mrf.mxu0
    %v5749 = vpop.f32.mrf.mxu0
    %v5750 = vadd.f32 %v4701, %v5749
    %v5751 = vpop.f32.mrf.mxu0
    %5752 = vmatprep.mubr.bf16.mxu0 %v3070
    %5753 = vmatmul.mubr.bf16.gmra.mxu0 %v3069
    %v5754 = vpop.f32.mrf.mxu0
    %v5755 = vadd.f32 %v4706, %v5754
    %v5756 = vpop.f32.mrf.mxu0
    %v5757 = vpop.f32.mrf.mxu0
    %v5758 = vadd.f32 %v4709, %v5757
    %v5759 = vpop.f32.mrf.mxu0
    %5760 = vmatprep.mubr.bf16.mxu0 %v3075
    %5761 = vmatmul.mubr.bf16.gmra.mxu0 %v3074
    %v5762 = vpop.f32.mrf.mxu0
    %v5763 = vadd.f32 %v4714, %v5762
    %v5764 = vpop.f32.mrf.mxu0
    %v5765 = vpop.f32.mrf.mxu0
    %v5766 = vadd.f32 %v4717, %v5765
    %v5767 = vpop.f32.mrf.mxu0
    %5768 = vmatprep.mubr.bf16.mxu0 %v3080
    %5769 = vmatmul.mubr.bf16.gmra.mxu0 %v3079
    %v5770 = vpop.f32.mrf.mxu0
    %v5771 = vadd.f32 %v4722, %v5770
    %v5772 = vpop.f32.mrf.mxu0
    %v5773 = vpop.f32.mrf.mxu0
    %v5774 = vadd.f32 %v4725, %v5773
    %v5775 = vpop.f32.mrf.mxu0
    %5776 = vmatprep.mubr.bf16.mxu0 %v3085
    %5777 = vmatmul.mubr.bf16.gmra.mxu0 %v3084
    %v5778 = vpop.f32.mrf.mxu0
    %v5779 = vadd.f32 %v4730, %v5778
    %v5780 = vpop.f32.mrf.mxu0
    %v5781 = vpop.f32.mrf.mxu0
    %v5782 = vadd.f32 %v4733, %v5781
    %v5783 = vpop.f32.mrf.mxu0
    %5784 = vmatprep.mubr.bf16.mxu0 %v3090
    %5785 = vmatmul.mubr.bf16.gmra.mxu0 %v3089
    %v5786 = vpop.f32.mrf.mxu0
    %v5787 = vadd.f32 %v4738, %v5786
    %v5788 = vpop.f32.mrf.mxu0
    %v5789 = vpop.f32.mrf.mxu0
    %v5790 = vadd.f32 %v4741, %v5789
    %v5791 = vpop.f32.mrf.mxu0
    %5792 = vmatprep.mubr.bf16.mxu0 %v3095
    %5793 = vmatmul.mubr.bf16.gmra.mxu0 %v3094
    %v5794 = vpop.f32.mrf.mxu0
    %v5795 = vadd.f32 %v4746, %v5794
    %v5796 = vpop.f32.mrf.mxu0
    %v5797 = vpop.f32.mrf.mxu0
    %v5798 = vadd.f32 %v4749, %v5797
    %v5799 = vpop.f32.mrf.mxu0
    %5800 = vmatprep.mubr.bf16.mxu0 %v3100
    %5801 = vmatmul.mubr.bf16.gmra.mxu0 %v3099
    %v5802 = vpop.f32.mrf.mxu0
    %v5803 = vadd.f32 %v4754, %v5802
    %v5804 = vpop.f32.mrf.mxu0
    %v5805 = vpop.f32.mrf.mxu0
    %v5806 = vadd.f32 %v4757, %v5805
    %v5807 = vpop.f32.mrf.mxu0
    %5808 = vmatprep.mubr.bf16.mxu0 %v3105
    %5809 = vmatmul.mubr.bf16.gmra.mxu0 %v3104
    %v5810 = vpop.f32.mrf.mxu0
    %v5811 = vadd.f32 %v4762, %v5810
    %v5812 = vpop.f32.mrf.mxu0
    %v5813 = vpop.f32.mrf.mxu0
    %v5814 = vadd.f32 %v4765, %v5813
    %v5815 = vpop.f32.mrf.mxu0
    %5816 = vmatprep.mubr.bf16.mxu0 %v3110
    %5817 = vmatmul.mubr.bf16.gmra.mxu0 %v3109
    %v5818 = vpop.f32.mrf.mxu0
    %v5819 = vadd.f32 %v4770, %v5818
    %v5820 = vpop.f32.mrf.mxu0
    %v5821 = vpop.f32.mrf.mxu0
    %v5822 = vadd.f32 %v4773, %v5821
    %v5823 = vpop.f32.mrf.mxu0
    %5824 = vmatprep.mubr.bf16.mxu0 %v3115
    %5825 = vmatmul.mubr.bf16.gmra.mxu0 %v3114
    %v5826 = vpop.f32.mrf.mxu0
    %v5827 = vadd.f32 %v4778, %v5826
    %v5828 = vpop.f32.mrf.mxu0
    %v5829 = vpop.f32.mrf.mxu0
    %v5830 = vadd.f32 %v4781, %v5829
    %v5831 = vpop.f32.mrf.mxu0
    %5832 = vmatprep.mubr.bf16.mxu0 %v3120
    %5833 = vmatmul.mubr.bf16.gmra.mxu0 %v3119
    %v5834 = vpop.f32.mrf.mxu0
    %v5835 = vadd.f32 %v4786, %v5834
    %v5836 = vpop.f32.mrf.mxu0
    %v5837 = vpop.f32.mrf.mxu0
    %v5838 = vadd.f32 %v4789, %v5837
    %v5839 = vpop.f32.mrf.mxu0
    %5840 = vmatprep.mubr.bf16.mxu0 %v3125
    %5841 = vmatmul.mubr.bf16.gmra.mxu0 %v3124
    %v5842 = vpop.f32.mrf.mxu0
    %v5843 = vadd.f32 %v4794, %v5842
    %v5844 = vpop.f32.mrf.mxu0
    %v5845 = vpop.f32.mrf.mxu0
    %v5846 = vadd.f32 %v4797, %v5845
    %v5847 = vpop.f32.mrf.mxu0
    %5848 = vmatprep.mubr.bf16.mxu0 %v3130
    %5849 = vmatmul.mubr.bf16.gmra.mxu0 %v3129
    %v5850 = vpop.f32.mrf.mxu0
    %v5851 = vadd.f32 %v4802, %v5850
    %v5852 = vpop.f32.mrf.mxu0
    %v5853 = vpop.f32.mrf.mxu0
    %v5854 = vadd.f32 %v4805, %v5853
    %v5855 = vpop.f32.mrf.mxu0
    %5856 = vmatprep.mubr.bf16.mxu0 %v3135
    %5857 = vmatmul.mubr.bf16.gmra.mxu0 %v3134
    %v5858 = vpop.f32.mrf.mxu0
    %v5859 = vadd.f32 %v4810, %v5858
    %v5860 = vpop.f32.mrf.mxu0
    %v5861 = vpop.f32.mrf.mxu0
    %v5862 = vadd.f32 %v4813, %v5861
    %v5863 = vpop.f32.mrf.mxu0
    %5864 = vmatprep.mubr.bf16.mxu0 %v3140
    %5865 = vmatmul.mubr.bf16.gmra.mxu0 %v3139
    %v5866 = vpop.f32.mrf.mxu0
    %v5867 = vadd.f32 %v4818, %v5866
    %v5868 = vpop.f32.mrf.mxu0
    %v5869 = vpop.f32.mrf.mxu0
    %v5870 = vadd.f32 %v4821, %v5869
    %v5871 = vpop.f32.mrf.mxu0
    %5872 = vmatprep.mubr.bf16.mxu0 %v3145
    %5873 = vmatmul.mubr.bf16.gmra.mxu0 %v3144
    %v5874 = vpop.f32.mrf.mxu0
    %v5875 = vadd.f32 %v4826, %v5874
    %v5876 = vpop.f32.mrf.mxu0
    %v5877 = vpop.f32.mrf.mxu0
    %v5878 = vadd.f32 %v4829, %v5877
    %v5879 = vpop.f32.mrf.mxu0
    %5880 = vmatprep.mubr.bf16.mxu0 %v3150
    %5881 = vmatmul.mubr.bf16.gmra.mxu0 %v3149
    %v5882 = vpop.f32.mrf.mxu0
    %v5883 = vadd.f32 %v4834, %v5882
    %v5884 = vpop.f32.mrf.mxu0
    %v5885 = vpop.f32.mrf.mxu0
    %v5886 = vadd.f32 %v4837, %v5885
    %v5887 = vpop.f32.mrf.mxu0
    %5888 = vmatprep.mubr.bf16.mxu0 %v3155
    %5889 = vmatmul.mubr.bf16.gmra.mxu0 %v3154
    %v5890 = vpop.f32.mrf.mxu0
    %v5891 = vadd.f32 %v4842, %v5890
    %v5892 = vpop.f32.mrf.mxu0
    %v5893 = vpop.f32.mrf.mxu0
    %v5894 = vadd.f32 %v4845, %v5893
    %v5895 = vpop.f32.mrf.mxu0
    %5896 = vmatprep.mubr.bf16.mxu0 %v3160
    %5897 = vmatmul.mubr.bf16.gmra.mxu0 %v3159
    %v5898 = vpop.f32.mrf.mxu0
    %v5899 = vadd.f32 %v4850, %v5898
    %v5900 = vpop.f32.mrf.mxu0
    %v5901 = vpop.f32.mrf.mxu0
    %v5902 = vadd.f32 %v4853, %v5901
    %v5903 = vpop.f32.mrf.mxu0
    %5904 = vmatprep.mubr.bf16.mxu0 %v3165
    %5905 = vmatmul.mubr.bf16.gmra.mxu0 %v3164
    %v5906 = vpop.f32.mrf.mxu0
    %v5907 = vadd.f32 %v4858, %v5906
    %v5908 = vpop.f32.mrf.mxu0
    %v5909 = vpop.f32.mrf.mxu0
    %v5910 = vadd.f32 %v4861, %v5909
    %v5911 = vpop.f32.mrf.mxu0
    %5912 = vmatprep.mubr.bf16.mxu0 %v3170
    %5913 = vmatmul.mubr.bf16.gmra.mxu0 %v3169
    %v5914 = vpop.f32.mrf.mxu0
    %v5915 = vadd.f32 %v4866, %v5914
    %v5916 = vpop.f32.mrf.mxu0
    %v5917 = vpop.f32.mrf.mxu0
    %v5918 = vadd.f32 %v4869, %v5917
    %v5919 = vpop.f32.mrf.mxu0
    %5920 = vmatprep.mubr.bf16.mxu0 %v3175
    %5921 = vmatmul.mubr.bf16.gmra.mxu0 %v3174
    %v5922 = vpop.f32.mrf.mxu0
    %v5923 = vadd.f32 %v4874, %v5922
    %v5924 = vpop.f32.mrf.mxu0
    %v5925 = vpop.f32.mrf.mxu0
    %v5926 = vadd.f32 %v4877, %v5925
    %v5927 = vpop.f32.mrf.mxu0
    %5928 = vmatprep.mubr.bf16.mxu0 %v3180
    %5929 = vmatmul.mubr.bf16.gmra.mxu0 %v3179
    %v5930 = vpop.f32.mrf.mxu0
    %v5931 = vadd.f32 %v4882, %v5930
    %v5932 = vpop.f32.mrf.mxu0
    %v5933 = vpop.f32.mrf.mxu0
    %v5934 = vadd.f32 %v4885, %v5933
    %v5935 = vpop.f32.mrf.mxu0
    %5936 = vmatprep.mubr.bf16.mxu0 %v3185
    %5937 = vmatmul.mubr.bf16.gmra.mxu0 %v3184
    %v5938 = vpop.f32.mrf.mxu0
    %v5939 = vadd.f32 %v4890, %v5938
    %v5940 = vpop.f32.mrf.mxu0
    %v5941 = vpop.f32.mrf.mxu0
    %v5942 = vadd.f32 %v4893, %v5941
    %v5943 = vpop.f32.mrf.mxu0
    %5944 = vmatprep.mubr.bf16.mxu0 %v3190
    %5945 = vmatmul.mubr.bf16.gmra.mxu0 %v3189
    %v5946 = vpop.f32.mrf.mxu0
    %v5947 = vadd.f32 %v4898, %v5946
    %v5948 = vpop.f32.mrf.mxu0
    %v5949 = vpop.f32.mrf.mxu0
    %v5950 = vadd.f32 %v4901, %v5949
    %v5951 = vpop.f32.mrf.mxu0
    %5952 = vmatprep.mubr.bf16.mxu0 %v3195
    %5953 = vmatmul.mubr.bf16.gmra.mxu0 %v3194
    %v5954 = vpop.f32.mrf.mxu0
    %v5955 = vadd.f32 %v4906, %v5954
    %v5956 = vpop.f32.mrf.mxu0
    %v5957 = vpop.f32.mrf.mxu0
    %v5958 = vadd.f32 %v4909, %v5957
    %v5959 = vpop.f32.mrf.mxu0
    %5960 = vmatprep.mubr.bf16.mxu0 %v3200
    %5961 = vmatmul.mubr.bf16.gmra.mxu0 %v3199
    %v5962 = vpop.f32.mrf.mxu0
    %v5963 = vadd.f32 %v4914, %v5962
    %v5964 = vpop.f32.mrf.mxu0
    %v5965 = vpop.f32.mrf.mxu0
    %v5966 = vadd.f32 %v4917, %v5965
    %v5967 = vpop.f32.mrf.mxu0
    %5968 = vmatprep.mubr.bf16.mxu0 %v3205
    %5969 = vmatmul.mubr.bf16.gmra.mxu0 %v3204
    %v5970 = vpop.f32.mrf.mxu0
    %v5971 = vadd.f32 %v4922, %v5970
    %v5972 = vpop.f32.mrf.mxu0
    %v5973 = vpop.f32.mrf.mxu0
    %v5974 = vadd.f32 %v4925, %v5973
    %v5975 = vpop.f32.mrf.mxu0
    %5976 = vmatprep.mubr.bf16.mxu0 %v3210
    %5977 = vmatmul.mubr.bf16.gmra.mxu0 %v3209
    %v5978 = vpop.f32.mrf.mxu0
    %v5979 = vadd.f32 %v4930, %v5978
    %v5980 = vpop.f32.mrf.mxu0
    %v5981 = vpop.f32.mrf.mxu0
    %v5982 = vadd.f32 %v4933, %v5981
    %v5983 = vpop.f32.mrf.mxu0
    %5984 = vmatprep.mubr.bf16.mxu0 %v3215
    %5985 = vmatmul.mubr.bf16.gmra.mxu0 %v3214
    %v5986 = vpop.f32.mrf.mxu0
    %v5987 = vadd.f32 %v4938, %v5986
    %v5988 = vpop.f32.mrf.mxu0
    %v5989 = vpop.f32.mrf.mxu0
    %v5990 = vadd.f32 %v4941, %v5989
    %v5991 = vpop.f32.mrf.mxu0
    %5992 = vmatprep.mubr.bf16.mxu0 %v3220
    %5993 = vmatmul.mubr.bf16.gmra.mxu0 %v3219
    %v5994 = vpop.f32.mrf.mxu0
    %v5995 = vadd.f32 %v4946, %v5994
    %v5996 = vpop.f32.mrf.mxu0
    %v5997 = vpop.f32.mrf.mxu0
    %v5998 = vadd.f32 %v4949, %v5997
    %v5999 = vpop.f32.mrf.mxu0
    %6000 = vmatprep.mubr.bf16.mxu0 %v3225
    %6001 = vmatmul.mubr.bf16.gmra.mxu0 %v3224
    %v6002 = vpop.f32.mrf.mxu0
    %v6003 = vadd.f32 %v4954, %v6002
    %v6004 = vpop.f32.mrf.mxu0
    %v6005 = vpop.f32.mrf.mxu0
    %v6006 = vadd.f32 %v4957, %v6005
    %v6007 = vpop.f32.mrf.mxu0
    %6008 = vmatprep.mubr.bf16.mxu0 %v3230
    %6009 = vmatmul.mubr.bf16.gmra.mxu0 %v3229
    %v6010 = vpop.f32.mrf.mxu0
    %v6011 = vadd.f32 %v4962, %v6010
    %v6012 = vpop.f32.mrf.mxu0
    %v6013 = vpop.f32.mrf.mxu0
    %v6014 = vadd.f32 %v4965, %v6013
    %v6015 = vpop.f32.mrf.mxu0
    %6016 = vmatprep.mubr.bf16.mxu0 %v3235
    %6017 = vmatmul.mubr.bf16.gmra.mxu0 %v3234
    %v6018 = vpop.f32.mrf.mxu0
    %v6019 = vadd.f32 %v4970, %v6018
    %v6020 = vpop.f32.mrf.mxu0
    %v6021 = vpop.f32.mrf.mxu0
    %v6022 = vadd.f32 %v4973, %v6021
    %v6023 = vpop.f32.mrf.mxu0
    %6024 = vmatprep.mubr.bf16.mxu0 %v3240
    %6025 = vmatmul.mubr.bf16.gmra.mxu0 %v3239
    %v6026 = vpop.f32.mrf.mxu0
    %v6027 = vadd.f32 %v4978, %v6026
    %v6028 = vpop.f32.mrf.mxu0
    %v6029 = vpop.f32.mrf.mxu0
    %v6030 = vadd.f32 %v4981, %v6029
    %v6031 = vpop.f32.mrf.mxu0
    %6032 = vmatprep.mubr.bf16.mxu0 %v3245
    %6033 = vmatmul.mubr.bf16.gmra.mxu0 %v3244
    %v6034 = vpop.f32.mrf.mxu0
    %v6035 = vadd.f32 %v4986, %v6034
    %v6036 = vpop.f32.mrf.mxu0
    %v6037 = vpop.f32.mrf.mxu0
    %v6038 = vadd.f32 %v4989, %v6037
    %v6039 = vpop.f32.mrf.mxu0
    %6040 = vmatprep.mubr.bf16.mxu0 %v3250
    %6041 = vmatmul.mubr.bf16.gmra.mxu0 %v3249
    %v6042 = vpop.f32.mrf.mxu0
    %v6043 = vadd.f32 %v4994, %v6042
    %v6044 = vpop.f32.mrf.mxu0
    %v6045 = vpop.f32.mrf.mxu0
    %v6046 = vadd.f32 %v4997, %v6045
    %v6047 = vpop.f32.mrf.mxu0
    %6048 = vmatprep.mubr.bf16.mxu0 %v3255
    %6049 = vmatmul.mubr.bf16.gmra.mxu0 %v3254
    %v6050 = vpop.f32.mrf.mxu0
    %v6051 = vadd.f32 %v5002, %v6050
    %v6052 = vpop.f32.mrf.mxu0
    %v6053 = vpop.f32.mrf.mxu0
    %v6054 = vadd.f32 %v5005, %v6053
    %v6055 = vpop.f32.mrf.mxu0
    %6056 = vmatprep.mubr.bf16.mxu0 %v3260
    %6057 = vmatmul.mubr.bf16.gmra.mxu0 %v3259
    %v6058 = vpop.f32.mrf.mxu0
    %v6059 = vadd.f32 %v5010, %v6058
    %v6060 = vpop.f32.mrf.mxu0
    %v6061 = vpop.f32.mrf.mxu0
    %v6062 = vadd.f32 %v5013, %v6061
    %v6063 = vpop.f32.mrf.mxu0
    %6064 = vmatprep.mubr.bf16.mxu0 %v3265
    %6065 = vmatmul.mubr.bf16.gmra.mxu0 %v3264
    %v6066 = vpop.f32.mrf.mxu0
    %v6067 = vadd.f32 %v5018, %v6066
    %v6068 = vpop.f32.mrf.mxu0
    %v6069 = vpop.f32.mrf.mxu0
    %v6070 = vadd.f32 %v5021, %v6069
    %v6071 = vpop.f32.mrf.mxu0
    %6072 = vmatprep.mubr.bf16.mxu0 %v3270
    %6073 = vmatmul.mubr.bf16.gmra.mxu0 %v3269
    %v6074 = vpop.f32.mrf.mxu0
    %v6075 = vadd.f32 %v5026, %v6074
    %v6076 = vpop.f32.mrf.mxu0
    %v6077 = vpop.f32.mrf.mxu0
    %v6078 = vadd.f32 %v5029, %v6077
    %v6079 = vpop.f32.mrf.mxu0
    %6080 = vmatprep.mubr.bf16.mxu0 %v3275
    %6081 = vmatmul.mubr.bf16.gmra.mxu0 %v3274
    %v6082 = vpop.f32.mrf.mxu0
    %v6083 = vadd.f32 %v5034, %v6082
    %v6084 = vpop.f32.mrf.mxu0
    %v6085 = vpop.f32.mrf.mxu0
    %v6086 = vadd.f32 %v5037, %v6085
    %v6087 = vpop.f32.mrf.mxu0
    %6088 = vmatprep.mubr.bf16.mxu0 %v3280
    %6089 = vmatmul.mubr.bf16.gmra.mxu0 %v3279
    %v6090 = vpop.f32.mrf.mxu0
    %v6091 = vadd.f32 %v5042, %v6090
    %v6092 = vpop.f32.mrf.mxu0
    %v6093 = vpop.f32.mrf.mxu0
    %v6094 = vadd.f32 %v5045, %v6093
    %v6095 = vpop.f32.mrf.mxu0
    %6096 = vmatprep.mubr.bf16.mxu0 %v3285
    %6097 = vmatmul.mubr.bf16.gmra.mxu0 %v3284
    %v6098 = vpop.f32.mrf.mxu0
    %v6099 = vadd.f32 %v5050, %v6098
    %v6100 = vpop.f32.mrf.mxu0
    %v6101 = vpop.f32.mrf.mxu0
    %v6102 = vadd.f32 %v5053, %v6101
    %v6103 = vpop.f32.mrf.mxu0
    %6104 = vmatprep.mubr.bf16.mxu0 %v3290
    %6105 = vmatmul.mubr.bf16.gmra.mxu0 %v3289
    %v6106 = vpop.f32.mrf.mxu0
    %v6107 = vadd.f32 %v5058, %v6106
    %v6108 = vpop.f32.mrf.mxu0
    %v6109 = vpop.f32.mrf.mxu0
    %v6110 = vadd.f32 %v5061, %v6109
    %v6111 = vpop.f32.mrf.mxu0
    %6112 = vmatprep.mubr.bf16.mxu0 %v3295
    %6113 = vmatmul.mubr.bf16.gmra.mxu0 %v3294
    %v6114 = vpop.f32.mrf.mxu0
    %v6115 = vadd.f32 %v5066, %v6114
    %v6116 = vpop.f32.mrf.mxu0
    %v6117 = vpop.f32.mrf.mxu0
    %v6118 = vadd.f32 %v5069, %v6117
    %v6119 = vpop.f32.mrf.mxu0
    %6120 = vmatprep.mubr.bf16.mxu0 %v3300
    %6121 = vmatmul.mubr.bf16.gmra.mxu0 %v3299
    %v6122 = vpop.f32.mrf.mxu0
    %v6123 = vadd.f32 %v5074, %v6122
    %v6124 = vpop.f32.mrf.mxu0
    %v6125 = vpop.f32.mrf.mxu0
    %v6126 = vadd.f32 %v5077, %v6125
    %v6127 = vpop.f32.mrf.mxu0
    %6128 = vmatprep.mubr.bf16.mxu0 %v3305
    %6129 = vmatmul.mubr.bf16.gmra.mxu0 %v3304
    %v6130 = vpop.f32.mrf.mxu0
    %v6131 = vadd.f32 %v5082, %v6130
    %v6132 = vpop.f32.mrf.mxu0
    %v6133 = vpop.f32.mrf.mxu0
    %v6134 = vadd.f32 %v5085, %v6133
    %v6135 = vpop.f32.mrf.mxu0
    %6136 = vmatprep.mubr.bf16.mxu0 %v3310
    %6137 = vmatmul.mubr.bf16.gmra.mxu0 %v3309
    %v6138 = vpop.f32.mrf.mxu0
    %v6139 = vadd.f32 %v5090, %v6138
    %v6140 = vpop.f32.mrf.mxu0
    %v6141 = vpop.f32.mrf.mxu0
    %v6142 = vadd.f32 %v5093, %v6141
    %v6143 = vpop.f32.mrf.mxu0
    %6144 = vmatprep.mubr.bf16.mxu0 %v3315
    %6145 = vmatmul.mubr.bf16.gmra.mxu0 %v3314
    %v6146 = vpop.f32.mrf.mxu0
    %v6147 = vadd.f32 %v5098, %v6146
    %v6148 = vpop.f32.mrf.mxu0
    %v6149 = vpop.f32.mrf.mxu0
    %v6150 = vadd.f32 %v5101, %v6149
    %v6151 = vpop.f32.mrf.mxu0
    %6152 = vmatprep.mubr.bf16.mxu0 %v3320
    %6153 = vmatmul.mubr.bf16.gmra.mxu0 %v3319
    %v6154 = vpop.f32.mrf.mxu0
    %v6155 = vadd.f32 %v5106, %v6154
    %v6156 = vpop.f32.mrf.mxu0
    %v6157 = vpop.f32.mrf.mxu0
    %v6158 = vadd.f32 %v5109, %v6157
    %v6159 = vpop.f32.mrf.mxu0
    %6160 = vmatprep.mubr.bf16.mxu0 %v3325
    %6161 = vmatmul.mubr.bf16.gmra.mxu0 %v3324
    %v6162 = vpop.f32.mrf.mxu0
    %v6163 = vadd.f32 %v5114, %v6162
    %v6164 = vpop.f32.mrf.mxu0
    %v6165 = vpop.f32.mrf.mxu0
    %v6166 = vadd.f32 %v5117, %v6165
    %v6167 = vpop.f32.mrf.mxu0
    %6168 = vmatprep.mubr.bf16.mxu0 %v3330
    %6169 = vmatmul.mubr.bf16.gmra.mxu0 %v3329
    %v6170 = vpop.f32.mrf.mxu0
    %v6171 = vadd.f32 %v5122, %v6170
    %v6172 = vpop.f32.mrf.mxu0
    %v6173 = vpop.f32.mrf.mxu0
    %v6174 = vadd.f32 %v5125, %v6173
    %v6175 = vpop.f32.mrf.mxu0
    %6176 = vmatprep.mubr.bf16.mxu0 %v3335
    %6177 = vmatmul.mubr.bf16.gmra.mxu0 %v3334
    %v6178 = vpop.f32.mrf.mxu0
    %v6179 = vadd.f32 %v5130, %v6178
    %v6180 = vpop.f32.mrf.mxu0
    %v6181 = vpop.f32.mrf.mxu0
    %v6182 = vadd.f32 %v5133, %v6181
    %v6183 = vpop.f32.mrf.mxu0
    %6184 = vmatprep.mubr.bf16.mxu0 %v3340
    %6185 = vmatmul.mubr.bf16.gmra.mxu0 %v3339
    %v6186 = vpop.f32.mrf.mxu0
    %v6187 = vadd.f32 %v5138, %v6186
    %v6188 = vpop.f32.mrf.mxu0
    %v6189 = vpop.f32.mrf.mxu0
    %v6190 = vadd.f32 %v5141, %v6189
    %v6191 = vpop.f32.mrf.mxu0
    %6192 = vmatprep.mubr.bf16.mxu0 %v3345
    %6193 = vmatmul.mubr.bf16.gmra.mxu0 %v3344
    %v6194 = vpop.f32.mrf.mxu0
    %v6195 = vadd.f32 %v5146, %v6194
    %v6196 = vpop.f32.mrf.mxu0
    %v6197 = vpop.f32.mrf.mxu0
    %v6198 = vadd.f32 %v5149, %v6197
    %v6199 = vpop.f32.mrf.mxu0
    %6200 = vmatprep.mubr.bf16.mxu0 %v3350
    %6201 = vmatmul.mubr.bf16.gmra.mxu0 %v3349
    %v6202 = vpop.f32.mrf.mxu0
    %v6203 = vadd.f32 %v5154, %v6202
    %v6204 = vpop.f32.mrf.mxu0
    %v6205 = vpop.f32.mrf.mxu0
    %v6206 = vadd.f32 %v5157, %v6205
    %v6207 = vpop.f32.mrf.mxu0
    %6208 = vmatprep.mubr.bf16.mxu0 %v3355
    %6209 = vmatmul.mubr.bf16.gmra.mxu0 %v3354
    %v6210 = vpop.f32.mrf.mxu0
    %v6211 = vadd.f32 %v5162, %v6210
    %v6212 = vpop.f32.mrf.mxu0
    %v6213 = vpop.f32.mrf.mxu0
    %v6214 = vadd.f32 %v5165, %v6213
    %v6215 = vpop.f32.mrf.mxu0
    %6216 = vmatprep.mubr.bf16.mxu0 %v3360
    %6217 = vmatmul.mubr.bf16.gmra.mxu0 %v3359
    %v6218 = vpop.f32.mrf.mxu0
    %v6219 = vadd.f32 %v5170, %v6218
    %v6220 = vpop.f32.mrf.mxu0
    %v6221 = vpop.f32.mrf.mxu0
    %v6222 = vadd.f32 %v5173, %v6221
    %v6223 = vpop.f32.mrf.mxu0
    %6224 = vmatprep.mubr.bf16.mxu0 %v3365
    %6225 = vmatmul.mubr.bf16.gmra.mxu0 %v3364
    %v6226 = vpop.f32.mrf.mxu0
    %v6227 = vadd.f32 %v5178, %v6226
    %v6228 = vpop.f32.mrf.mxu0
    %v6229 = vpop.f32.mrf.mxu0
    %v6230 = vadd.f32 %v5181, %v6229
    %v6231 = vpop.f32.mrf.mxu0
    %6232 = vmatprep.mubr.bf16.mxu0 %v3370
    %6233 = vmatmul.mubr.bf16.gmra.mxu0 %v3369
    %v6234 = vpop.f32.mrf.mxu0
    %v6235 = vadd.f32 %v5186, %v6234
    %v6236 = vpop.f32.mrf.mxu0
    %v6237 = vpop.f32.mrf.mxu0
    %v6238 = vadd.f32 %v5189, %v6237
    %v6239 = vpop.f32.mrf.mxu0
    %6240 = vmatprep.mubr.bf16.mxu0 %v3375
    %6241 = vmatmul.mubr.bf16.gmra.mxu0 %v3374
    %v6242 = vpop.f32.mrf.mxu0
    %v6243 = vadd.f32 %v5194, %v6242
    %v6244 = vpop.f32.mrf.mxu0
    %v6245 = vpop.f32.mrf.mxu0
    %v6246 = vadd.f32 %v5197, %v6245
    %v6247 = vpop.f32.mrf.mxu0
    %6248 = vmatprep.mubr.bf16.mxu0 %v3380
    %6249 = vmatmul.mubr.bf16.gmra.mxu0 %v3379
    %v6250 = vpop.f32.mrf.mxu0
    %v6251 = vadd.f32 %v5202, %v6250
    %v6252 = vpop.f32.mrf.mxu0
    %v6253 = vpop.f32.mrf.mxu0
    %v6254 = vadd.f32 %v5205, %v6253
    %v6255 = vpop.f32.mrf.mxu0
    %6256 = vmatprep.mubr.bf16.mxu0 %v3385
    %6257 = vmatmul.mubr.bf16.gmra.mxu0 %v3384
    %v6258 = vpop.f32.mrf.mxu0
    %v6259 = vadd.f32 %v5210, %v6258
    %v6260 = vpop.f32.mrf.mxu0
    %v6261 = vpop.f32.mrf.mxu0
    %v6262 = vadd.f32 %v5213, %v6261
    %v6263 = vpop.f32.mrf.mxu0
    %6264 = vmatprep.mubr.bf16.mxu0 %v3390
    %6265 = vmatmul.mubr.bf16.gmra.mxu0 %v3389
    %v6266 = vpop.f32.mrf.mxu0
    %v6267 = vadd.f32 %v5218, %v6266
    %v6268 = vpop.f32.mrf.mxu0
    %v6269 = vpop.f32.mrf.mxu0
    %v6270 = vadd.f32 %v5221, %v6269
    %v6271 = vpop.f32.mrf.mxu0
    %6272 = vmatprep.mubr.bf16.mxu0 %v3395
    %6273 = vmatmul.mubr.bf16.gmra.mxu0 %v3394
    %v6274 = vpop.f32.mrf.mxu0
    %v6275 = vadd.f32 %v5226, %v6274
    %v6276 = vpop.f32.mrf.mxu0
    %v6277 = vpop.f32.mrf.mxu0
    %v6278 = vadd.f32 %v5229, %v6277
    %v6279 = vpop.f32.mrf.mxu0
    %6280 = vmatprep.mubr.bf16.mxu0 %v3400
    %6281 = vmatmul.mubr.bf16.gmra.mxu0 %v3399
    %v6282 = vpop.f32.mrf.mxu0
    %v6283 = vadd.f32 %v5234, %v6282
    %v6284 = vpop.f32.mrf.mxu0
    %v6285 = vpop.f32.mrf.mxu0
    %v6286 = vadd.f32 %v5237, %v6285
    %v6287 = vpop.f32.mrf.mxu0
    %6288 = vmatprep.mubr.bf16.mxu0 %v3405
    %6289 = vmatmul.mubr.bf16.gmra.mxu0 %v3404
    %v6290 = vpop.f32.mrf.mxu0
    %v6291 = vadd.f32 %v5242, %v6290
    %v6292 = vpop.f32.mrf.mxu0
    %v6293 = vpop.f32.mrf.mxu0
    %v6294 = vadd.f32 %v5245, %v6293
    %v6295 = vpop.f32.mrf.mxu0
    %6296 = vmatprep.mubr.bf16.mxu0 %v3410
    %6297 = vmatmul.mubr.bf16.gmra.mxu0 %v3409
    %v6298 = vpop.f32.mrf.mxu0
    %v6299 = vadd.f32 %v5250, %v6298
    %v6300 = vpop.f32.mrf.mxu0
    %v6301 = vpop.f32.mrf.mxu0
    %v6302 = vadd.f32 %v5253, %v6301
    %v6303 = vpop.f32.mrf.mxu0
    %6304 = vmatprep.mubr.bf16.mxu0 %v3415
    %6305 = vmatmul.mubr.bf16.gmra.mxu0 %v3414
    %v6306 = vpop.f32.mrf.mxu0
    %v6307 = vadd.f32 %v5258, %v6306
    %v6308 = vpop.f32.mrf.mxu0
    %v6309 = vpop.f32.mrf.mxu0
    %v6310 = vadd.f32 %v5261, %v6309
    %v6311 = vpop.f32.mrf.mxu0
    %6312 = vmatprep.mubr.bf16.mxu0 %v3420
    %6313 = vmatmul.mubr.bf16.gmra.mxu0 %v3419
    %v6314 = vpop.f32.mrf.mxu0
    %v6315 = vadd.f32 %v5266, %v6314
    %v6316 = vpop.f32.mrf.mxu0
    %v6317 = vpop.f32.mrf.mxu0
    %v6318 = vadd.f32 %v5269, %v6317
    %v6319 = vpop.f32.mrf.mxu0
    %6320 = vmatprep.mubr.bf16.mxu0 %v3425
    %6321 = vmatmul.mubr.bf16.gmra.mxu0 %v3424
    %v6322 = vpop.f32.mrf.mxu0
    %v6323 = vadd.f32 %v5274, %v6322
    %v6324 = vpop.f32.mrf.mxu0
    %v6325 = vpop.f32.mrf.mxu0
    %v6326 = vadd.f32 %v5277, %v6325
    %v6327 = vpop.f32.mrf.mxu0
    %6328 = vmatprep.mubr.bf16.mxu0 %v3430
    %6329 = vmatmul.mubr.bf16.gmra.mxu0 %v3429
    %v6330 = vpop.f32.mrf.mxu0
    %v6331 = vadd.f32 %v5282, %v6330
    %v6332 = vpop.f32.mrf.mxu0
    %v6333 = vpop.f32.mrf.mxu0
    %v6334 = vadd.f32 %v5285, %v6333
    %v6335 = vpop.f32.mrf.mxu0
    %6336 = vmatprep.mubr.bf16.mxu0 %v3435
    %6337 = vmatmul.mubr.bf16.gmra.mxu0 %v3434
    %v6338 = vpop.f32.mrf.mxu0
    %v6339 = vadd.f32 %v5290, %v6338
    %v6340 = vpop.f32.mrf.mxu0
    %v6341 = vpop.f32.mrf.mxu0
    %v6342 = vadd.f32 %v5293, %v6341
    %v6343 = vpop.f32.mrf.mxu0
    %6344 = vmatprep.mubr.bf16.mxu0 %v3440
    %6345 = vmatmul.mubr.bf16.gmra.mxu0 %v3439
    %v6346 = vpop.f32.mrf.mxu0
    %v6347 = vadd.f32 %v5298, %v6346
    %v6348 = vpop.f32.mrf.mxu0
    %v6349 = vpop.f32.mrf.mxu0
    %v6350 = vadd.f32 %v5301, %v6349
    %v6351 = vpop.f32.mrf.mxu0
    %6352 = vmatprep.mubr.bf16.mxu0 %v3445
    %6353 = vmatmul.mubr.bf16.gmra.mxu0 %v3444
    %v6354 = vpop.f32.mrf.mxu0
    %v6355 = vadd.f32 %v5306, %v6354
    %v6356 = vpop.f32.mrf.mxu0
    %v6357 = vpop.f32.mrf.mxu0
    %v6358 = vadd.f32 %v5309, %v6357
    %v6359 = vpop.f32.mrf.mxu0
    %6360 = vmatprep.mubr.bf16.mxu0 %v3450
    %6361 = vmatmul.mubr.bf16.gmra.mxu0 %v3449
    %v6362 = vpop.f32.mrf.mxu0
    %v6363 = vadd.f32 %v5314, %v6362
    %v6364 = vpop.f32.mrf.mxu0
    %v6365 = vpop.f32.mrf.mxu0
    %v6366 = vadd.f32 %v5317, %v6365
    %v6367 = vpop.f32.mrf.mxu0
    %6368 = vmatprep.mubr.bf16.mxu0 %v3455
    %6369 = vmatmul.mubr.bf16.gmra.mxu0 %v3454
    %v6370 = vpop.f32.mrf.mxu0
    %v6371 = vadd.f32 %v5322, %v6370
    %v6372 = vpop.f32.mrf.mxu0
    %v6373 = vpop.f32.mrf.mxu0
    %v6374 = vadd.f32 %v5325, %v6373
    %v6375 = vpop.f32.mrf.mxu0
    %6376 = vmatprep.mubr.bf16.mxu0 %v3460
    %6377 = vmatmul.mubr.bf16.gmra.mxu0 %v3459
    %v6378 = vpop.f32.mrf.mxu0
    %v6379 = vadd.f32 %v5330, %v6378
    %v6380 = vpop.f32.mrf.mxu0
    %v6381 = vpop.f32.mrf.mxu0
    %v6382 = vadd.f32 %v5333, %v6381
    %v6383 = vpop.f32.mrf.mxu0
    %6384 = vmatprep.mubr.bf16.mxu0 %v3465
    %6385 = vmatmul.mubr.bf16.gmra.mxu0 %v3464
    %v6386 = vpop.f32.mrf.mxu0
    %v6387 = vadd.f32 %v5338, %v6386
    %v6388 = vpop.f32.mrf.mxu0
    %v6389 = vpop.f32.mrf.mxu0
    %v6390 = vadd.f32 %v5341, %v6389
    %v6391 = vpop.f32.mrf.mxu0
    %6392 = vmatprep.mubr.bf16.mxu0 %v3470
    %6393 = vmatmul.mubr.bf16.gmra.mxu0 %v3469
    %v6394 = vpop.f32.mrf.mxu0
    %v6395 = vadd.f32 %v5346, %v6394
    %v6396 = vpop.f32.mrf.mxu0
    %v6397 = vpop.f32.mrf.mxu0
    %v6398 = vadd.f32 %v5349, %v6397
    %v6399 = vpop.f32.mrf.mxu0
    %6400 = vmatprep.mubr.bf16.mxu0 %v3475
    %6401 = vmatmul.mubr.bf16.gmra.mxu0 %v3474
    %v6402 = vpop.f32.mrf.mxu0
    %v6403 = vadd.f32 %v5354, %v6402
    %v6404 = vpop.f32.mrf.mxu0
    %v6405 = vpop.f32.mrf.mxu0
    %v6406 = vadd.f32 %v5357, %v6405
    %v6407 = vpop.f32.mrf.mxu0
    %6408 = vmatprep.mubr.bf16.mxu0 %v3480
    %6409 = vmatmul.mubr.bf16.gmra.mxu0 %v3479
    %v6410 = vpop.f32.mrf.mxu0
    %v6411 = vadd.f32 %v5362, %v6410
    %v6412 = vpop.f32.mrf.mxu0
    %v6413 = vpop.f32.mrf.mxu0
    %v6414 = vadd.f32 %v5365, %v6413
    %v6415 = vpop.f32.mrf.mxu0
    %6416 = vmatprep.mubr.bf16.mxu0 %v3485
    %6417 = vmatmul.mubr.bf16.gmra.mxu0 %v3484
    %v6418 = vpop.f32.mrf.mxu0
    %v6419 = vadd.f32 %v5370, %v6418
    %v6420 = vpop.f32.mrf.mxu0
    %v6421 = vpop.f32.mrf.mxu0
    %v6422 = vadd.f32 %v5373, %v6421
    %v6423 = vpop.f32.mrf.mxu0
    %6424 = vmatprep.mubr.bf16.mxu0 %v3490
    %6425 = vmatmul.mubr.bf16.gmra.mxu0 %v3489
    %v6426 = vpop.f32.mrf.mxu0
    %v6427 = vadd.f32 %v5378, %v6426
    %v6428 = vpop.f32.mrf.mxu0
    %v6429 = vpop.f32.mrf.mxu0
    %v6430 = vadd.f32 %v5381, %v6429
    %v6431 = vpop.f32.mrf.mxu0
    %6432 = vmatprep.mubr.bf16.mxu0 %v3495
    %6433 = vmatmul.mubr.bf16.gmra.mxu0 %v3494
    %v6434 = vpop.f32.mrf.mxu0
    %v6435 = vadd.f32 %v5386, %v6434
    %v6436 = vpop.f32.mrf.mxu0
    %v6437 = vpop.f32.mrf.mxu0
    %v6438 = vadd.f32 %v5389, %v6437
    %v6439 = vpop.f32.mrf.mxu0
    %6440 = vmatprep.mubr.bf16.mxu0 %v3500
    %6441 = vmatmul.mubr.bf16.gmra.mxu0 %v3499
    %v6442 = vpop.f32.mrf.mxu0
    %v6443 = vadd.f32 %v5394, %v6442
    %v6444 = vpop.f32.mrf.mxu0
    %v6445 = vpop.f32.mrf.mxu0
    %v6446 = vadd.f32 %v5397, %v6445
    %v6447 = vpop.f32.mrf.mxu0
    %6448 = vmatprep.mubr.bf16.mxu0 %v3505
    %6449 = vmatmul.mubr.bf16.gmra.mxu0 %v3504
    %v6450 = vpop.f32.mrf.mxu0
    %v6451 = vadd.f32 %v5402, %v6450
    %v6452 = vpop.f32.mrf.mxu0
    %v6453 = vpop.f32.mrf.mxu0
    %v6454 = vadd.f32 %v5405, %v6453
    %v6455 = vpop.f32.mrf.mxu0
    %6456 = vmatprep.mubr.bf16.mxu0 %v3510
    %6457 = vmatmul.mubr.bf16.gmra.mxu0 %v3509
    %v6458 = vpop.f32.mrf.mxu0
    %v6459 = vadd.f32 %v5410, %v6458
    %v6460 = vpop.f32.mrf.mxu0
    %v6461 = vpop.f32.mrf.mxu0
    %v6462 = vadd.f32 %v5413, %v6461
    %v6463 = vpop.f32.mrf.mxu0
    %6464 = vmatprep.mubr.bf16.mxu0 %v3515
    %6465 = vmatmul.mubr.bf16.gmra.mxu0 %v3514
    %v6466 = vpop.f32.mrf.mxu0
    %v6467 = vadd.f32 %v5418, %v6466
    %v6468 = vpop.f32.mrf.mxu0
    %v6469 = vpop.f32.mrf.mxu0
    %v6470 = vadd.f32 %v5421, %v6469
    %v6471 = vpop.f32.mrf.mxu0
    %6472 = vmatprep.mubr.bf16.mxu0 %v3520
    %6473 = vmatmul.mubr.bf16.gmra.mxu0 %v3519
    %v6474 = vpop.f32.mrf.mxu0
    %v6475 = vadd.f32 %v5426, %v6474
    %v6476 = vpop.f32.mrf.mxu0
    %v6477 = vpop.f32.mrf.mxu0
    %v6478 = vadd.f32 %v5429, %v6477
    %v6479 = vpop.f32.mrf.mxu0
    %6480 = vmatprep.mubr.bf16.mxu0 %v3525
    %6481 = vmatmul.mubr.bf16.gmra.mxu0 %v3524
    %v6482 = vpop.f32.mrf.mxu0
    %v6483 = vadd.f32 %v5434, %v6482
    %v6484 = vpop.f32.mrf.mxu0
    %v6485 = vpop.f32.mrf.mxu0
    %v6486 = vadd.f32 %v5437, %v6485
    %v6487 = vpop.f32.mrf.mxu0
    %6488 = vmatprep.mubr.bf16.mxu0 %v3530
    %6489 = vmatmul.mubr.bf16.gmra.mxu0 %v3529
    %v6490 = vpop.f32.mrf.mxu0
    %v6491 = vadd.f32 %v5442, %v6490
    %v6492 = vpop.f32.mrf.mxu0
    %v6493 = vpop.f32.mrf.mxu0
    %v6494 = vadd.f32 %v5445, %v6493
    %v6495 = vpop.f32.mrf.mxu0
    %6496 = vmatprep.mubr.bf16.mxu0 %v3535
    %6497 = vmatmul.mubr.bf16.gmra.mxu0 %v3534
    %v6498 = vpop.f32.mrf.mxu0
    %v6499 = vadd.f32 %v5450, %v6498
    %v6500 = vpop.f32.mrf.mxu0
    %v6501 = vpop.f32.mrf.mxu0
    %v6502 = vadd.f32 %v5453, %v6501
    %v6503 = vpop.f32.mrf.mxu0
    %6504 = vmatprep.mubr.bf16.mxu0 %v3540
    %6505 = vmatmul.mubr.bf16.gmra.mxu0 %v3539
    %v6506 = vpop.f32.mrf.mxu0
    %v6507 = vadd.f32 %v5458, %v6506
    %v6508 = vpop.f32.mrf.mxu0
    %v6509 = vpop.f32.mrf.mxu0
    %v6510 = vadd.f32 %v5461, %v6509
    %v6511 = vpop.f32.mrf.mxu0
    %6512 = vmatprep.mubr.bf16.mxu0 %v3545
    %6513 = vmatmul.mubr.bf16.gmra.mxu0 %v3544
    %v6514 = vpop.f32.mrf.mxu0
    %v6515 = vadd.f32 %v5466, %v6514
    %v6516 = vpop.f32.mrf.mxu0
    %v6517 = vpop.f32.mrf.mxu0
    %v6518 = vadd.f32 %v5469, %v6517
    %v6519 = vpop.f32.mrf.mxu0
    %6520 = vmatprep.mubr.bf16.mxu0 %v3550
    %6521 = vmatmul.mubr.bf16.gmra.mxu0 %v3549
    %v6522 = vpop.f32.mrf.mxu0
    %v6523 = vpop.f32.mrf.mxu0
    %v6524 = vpop.f32.mrf.mxu0
    %v6525 = vpop.f32.mrf.mxu0
    %6526 = vmatprep.mubr.bf16.mxu0 %v3555
    %6527 = vmatmul.mubr.bf16.gmra.mxu0 %v3554
    %v6528 = vpop.f32.mrf.mxu0
    %v6529 = vpop.f32.mrf.mxu0
    %v6530 = vpop.f32.mrf.mxu0
    %v6531 = vpop.f32.mrf.mxu0
    %6532 = vmatprep.mubr.bf16.mxu0 %v3560
    %6533 = vmatmul.mubr.bf16.gmra.mxu0 %v3559
    %v6534 = vpop.f32.mrf.mxu0
    %v6535 = vpop.f32.mrf.mxu0
    %v6536 = vpop.f32.mrf.mxu0
    %v6537 = vpop.f32.mrf.mxu0
    %6538 = vmatprep.mubr.bf16.mxu0 %v3565
    %6539 = vmatmul.mubr.bf16.gmra.mxu0 %v3564
    %v6540 = vpop.f32.mrf.mxu0
    %v6541 = vpop.f32.mrf.mxu0
    %v6542 = vpop.f32.mrf.mxu0
    %v6543 = vpop.f32.mrf.mxu0
    %6544 = vdwg.mxu0
    %6545 = vmatprep.subr.bf16.mxu0 0
    %6546 = vmatpush1.bf16.msra.mxu0 %v4406
    %6547 = vmatprep.subr.bf16.mxu0 0
    %6548 = vmatpush1.bf16.msra.mxu0 %v4405
    %6549 = vmatprep.subr.bf16.mxu0 0
    %6550 = vmatpush1.bf16.msra.mxu0 %v4404
    %6551 = vmatprep.subr.bf16.mxu0 0
    %6552 = vmatpush1.bf16.msra.mxu0 %v4403
    %6553 = vmatprep.subr.bf16.mxu0 0
    %6554 = vmatpush1.bf16.msra.mxu0 %v4402
    %6555 = vmatprep.subr.bf16.mxu0 0
    %6556 = vmatpush1.bf16.msra.mxu0 %v4401
    %6557 = vmatprep.subr.bf16.mxu0 0
    %6558 = vmatpush1.bf16.msra.mxu0 %v4400
    %6559 = vmatprep.subr.bf16.mxu0 0
    %6560 = vmatpush1.bf16.msra.mxu0 %v4399
    %6561 = vmatprep.subr.bf16.mxu0 0
    %6562 = vmatpush2.bf16.msra.mxu0 0
    %6563 = vmatprep.subr.bf16.mxu0 0
    %6564 = vmatpush2.bf16.msra.mxu0 0
    %6565 = vmatprep.subr.bf16.mxu0 0
    %6566 = vmatpush2.bf16.msra.mxu0 0
    %6567 = vmatprep.subr.bf16.mxu0 0
    %6568 = vmatpush2.bf16.msra.mxu0 0
    %6569 = vmatprep.subr.bf16.mxu0 0
    %6570 = vmatpush2.bf16.msra.mxu0 0
    %6571 = vmatprep.subr.bf16.mxu0 0
    %6572 = vmatpush2.bf16.msra.mxu0 0
    %6573 = vmatprep.subr.bf16.mxu0 0
    %6574 = vmatpush2.bf16.msra.mxu0 0
    %6575 = vmatprep.subr.bf16.mxu0 0
    %6576 = vmatpush2.bf16.msra.mxu0 0
    %6577 = vmatprep.mubr.bf16.mxu0 0
    %6578 = vmatmul.mubr.bf16.gmra.mxu0 %v2931
    %v6579 = vpop.f32.mrf.mxu0
    %v6580 = vadd.f32 %v5531, %v6579
    %v6581 = vpop.f32.mrf.mxu0
    %v6582 = vpop.f32.mrf.mxu0
    %v6583 = vadd.f32 %v5534, %v6582
    %v6584 = vpop.f32.mrf.mxu0
    %6585 = vmatprep.mubr.bf16.mxu0 0
    %6586 = vmatmul.mubr.bf16.gmra.mxu0 %v2936
    %v6587 = vpop.f32.mrf.mxu0
    %v6588 = vadd.f32 %v5539, %v6587
    %v6589 = vpop.f32.mrf.mxu0
    %v6590 = vpop.f32.mrf.mxu0
    %v6591 = vadd.f32 %v5542, %v6590
    %v6592 = vpop.f32.mrf.mxu0
    %6593 = vmatprep.mubr.bf16.mxu0 0
    %6594 = vmatmul.mubr.bf16.gmra.mxu0 %v2941
    %v6595 = vpop.f32.mrf.mxu0
    %v6596 = vadd.f32 %v5547, %v6595
    %v6597 = vpop.f32.mrf.mxu0
    %v6598 = vpop.f32.mrf.mxu0
    %v6599 = vadd.f32 %v5550, %v6598
    %v6600 = vpop.f32.mrf.mxu0
    %6601 = vmatprep.mubr.bf16.mxu0 0
    %6602 = vmatmul.mubr.bf16.gmra.mxu0 %v2946
    %v6603 = vpop.f32.mrf.mxu0
    %v6604 = vadd.f32 %v5555, %v6603
    %v6605 = vpop.f32.mrf.mxu0
    %v6606 = vpop.f32.mrf.mxu0
    %v6607 = vadd.f32 %v5558, %v6606
    %v6608 = vpop.f32.mrf.mxu0
    %6609 = vmatprep.mubr.bf16.mxu0 0
    %6610 = vmatmul.mubr.bf16.gmra.mxu0 %v2951
    %v6611 = vpop.f32.mrf.mxu0
    %v6612 = vadd.f32 %v5563, %v6611
    %v6613 = vpop.f32.mrf.mxu0
    %v6614 = vpop.f32.mrf.mxu0
    %v6615 = vadd.f32 %v5566, %v6614
    %v6616 = vpop.f32.mrf.mxu0
    %6617 = vmatprep.mubr.bf16.mxu0 0
    %6618 = vmatmul.mubr.bf16.gmra.mxu0 %v2956
    %v6619 = vpop.f32.mrf.mxu0
    %v6620 = vadd.f32 %v5571, %v6619
    %v6621 = vpop.f32.mrf.mxu0
    %v6622 = vpop.f32.mrf.mxu0
    %v6623 = vadd.f32 %v5574, %v6622
    %v6624 = vpop.f32.mrf.mxu0
    %6625 = vmatprep.mubr.bf16.mxu0 0
    %6626 = vmatmul.mubr.bf16.gmra.mxu0 %v2961
    %v6627 = vpop.f32.mrf.mxu0
    %v6628 = vadd.f32 %v5579, %v6627
    %v6629 = vpop.f32.mrf.mxu0
    %v6630 = vpop.f32.mrf.mxu0
    %v6631 = vadd.f32 %v5582, %v6630
    %v6632 = vpop.f32.mrf.mxu0
    %6633 = vmatprep.mubr.bf16.mxu0 0
    %6634 = vmatmul.mubr.bf16.gmra.mxu0 %v2966
    %v6635 = vpop.f32.mrf.mxu0
    %v6636 = vadd.f32 %v5587, %v6635
    %v6637 = vpop.f32.mrf.mxu0
    %v6638 = vpop.f32.mrf.mxu0
    %v6639 = vadd.f32 %v5590, %v6638
    %v6640 = vpop.f32.mrf.mxu0
    %6641 = vmatprep.mubr.bf16.mxu0 0
    %6642 = vmatmul.mubr.bf16.gmra.mxu0 %v2971
    %v6643 = vpop.f32.mrf.mxu0
    %v6644 = vadd.f32 %v5595, %v6643
    %v6645 = vpop.f32.mrf.mxu0
    %v6646 = vpop.f32.mrf.mxu0
    %v6647 = vadd.f32 %v5598, %v6646
    %v6648 = vpop.f32.mrf.mxu0
    %6649 = vmatprep.mubr.bf16.mxu0 0
    %6650 = vmatmul.mubr.bf16.gmra.mxu0 %v2976
    %v6651 = vpop.f32.mrf.mxu0
    %v6652 = vadd.f32 %v5603, %v6651
    %v6653 = vpop.f32.mrf.mxu0
    %v6654 = vpop.f32.mrf.mxu0
    %v6655 = vadd.f32 %v5606, %v6654
    %v6656 = vpop.f32.mrf.mxu0
    %6657 = vmatprep.mubr.bf16.mxu0 0
    %6658 = vmatmul.mubr.bf16.gmra.mxu0 %v2981
    %v6659 = vpop.f32.mrf.mxu0
    %v6660 = vadd.f32 %v5611, %v6659
    %v6661 = vpop.f32.mrf.mxu0
    %v6662 = vpop.f32.mrf.mxu0
    %v6663 = vadd.f32 %v5614, %v6662
    %v6664 = vpop.f32.mrf.mxu0
    %6665 = vmatprep.mubr.bf16.mxu0 0
    %6666 = vmatmul.mubr.bf16.gmra.mxu0 %v2986
    %v6667 = vpop.f32.mrf.mxu0
    %v6668 = vadd.f32 %v5619, %v6667
    %v6669 = vpop.f32.mrf.mxu0
    %v6670 = vpop.f32.mrf.mxu0
    %v6671 = vadd.f32 %v5622, %v6670
    %v6672 = vpop.f32.mrf.mxu0
    %6673 = vmatprep.mubr.bf16.mxu0 0
    %6674 = vmatmul.mubr.bf16.gmra.mxu0 %v2991
    %v6675 = vpop.f32.mrf.mxu0
    %v6676 = vadd.f32 %v5627, %v6675
    %v6677 = vpop.f32.mrf.mxu0
    %v6678 = vpop.f32.mrf.mxu0
    %v6679 = vadd.f32 %v5630, %v6678
    %v6680 = vpop.f32.mrf.mxu0
    %6681 = vmatprep.mubr.bf16.mxu0 0
    %6682 = vmatmul.mubr.bf16.gmra.mxu0 %v2996
    %v6683 = vpop.f32.mrf.mxu0
    %v6684 = vadd.f32 %v5635, %v6683
    %v6685 = vpop.f32.mrf.mxu0
    %v6686 = vpop.f32.mrf.mxu0
    %v6687 = vadd.f32 %v5638, %v6686
    %v6688 = vpop.f32.mrf.mxu0
    %6689 = vmatprep.mubr.bf16.mxu0 0
    %6690 = vmatmul.mubr.bf16.gmra.mxu0 %v3001
    %v6691 = vpop.f32.mrf.mxu0
    %v6692 = vadd.f32 %v5643, %v6691
    %v6693 = vpop.f32.mrf.mxu0
    %v6694 = vpop.f32.mrf.mxu0
    %v6695 = vadd.f32 %v5646, %v6694
    %v6696 = vpop.f32.mrf.mxu0
    %6697 = vmatprep.mubr.bf16.mxu0 0
    %6698 = vmatmul.mubr.bf16.gmra.mxu0 %v3006
    %v6699 = vpop.f32.mrf.mxu0
    %v6700 = vadd.f32 %v5651, %v6699
    %v6701 = vpop.f32.mrf.mxu0
    %v6702 = vpop.f32.mrf.mxu0
    %v6703 = vadd.f32 %v5654, %v6702
    %v6704 = vpop.f32.mrf.mxu0
    %6705 = vmatprep.mubr.bf16.mxu0 0
    %6706 = vmatmul.mubr.bf16.gmra.mxu0 %v3011
    %v6707 = vpop.f32.mrf.mxu0
    %v6708 = vadd.f32 %v5659, %v6707
    %v6709 = vpop.f32.mrf.mxu0
    %v6710 = vpop.f32.mrf.mxu0
    %v6711 = vadd.f32 %v5662, %v6710
    %v6712 = vpop.f32.mrf.mxu0
    %6713 = vmatprep.mubr.bf16.mxu0 0
    %6714 = vmatmul.mubr.bf16.gmra.mxu0 %v3016
    %v6715 = vpop.f32.mrf.mxu0
    %v6716 = vadd.f32 %v5667, %v6715
    %v6717 = vpop.f32.mrf.mxu0
    %v6718 = vpop.f32.mrf.mxu0
    %v6719 = vadd.f32 %v5670, %v6718
    %v6720 = vpop.f32.mrf.mxu0
    %6721 = vmatprep.mubr.bf16.mxu0 0
    %6722 = vmatmul.mubr.bf16.gmra.mxu0 %v3021
    %v6723 = vpop.f32.mrf.mxu0
    %v6724 = vadd.f32 %v5675, %v6723
    %v6725 = vpop.f32.mrf.mxu0
    %v6726 = vpop.f32.mrf.mxu0
    %v6727 = vadd.f32 %v5678, %v6726
    %v6728 = vpop.f32.mrf.mxu0
    %6729 = vmatprep.mubr.bf16.mxu0 0
    %6730 = vmatmul.mubr.bf16.gmra.mxu0 %v3026
    %v6731 = vpop.f32.mrf.mxu0
    %v6732 = vadd.f32 %v5683, %v6731
    %v6733 = vpop.f32.mrf.mxu0
    %v6734 = vpop.f32.mrf.mxu0
    %v6735 = vadd.f32 %v5686, %v6734
    %v6736 = vpop.f32.mrf.mxu0
    %6737 = vmatprep.mubr.bf16.mxu0 0
    %6738 = vmatmul.mubr.bf16.gmra.mxu0 %v3031
    %v6739 = vpop.f32.mrf.mxu0
    %v6740 = vadd.f32 %v5691, %v6739
    %v6741 = vpop.f32.mrf.mxu0
    %v6742 = vpop.f32.mrf.mxu0
    %v6743 = vadd.f32 %v5694, %v6742
    %v6744 = vpop.f32.mrf.mxu0
    %6745 = vmatprep.mubr.bf16.mxu0 0
    %6746 = vmatmul.mubr.bf16.gmra.mxu0 %v3036
    %v6747 = vpop.f32.mrf.mxu0
    %v6748 = vadd.f32 %v5699, %v6747
    %v6749 = vpop.f32.mrf.mxu0
    %v6750 = vpop.f32.mrf.mxu0
    %v6751 = vadd.f32 %v5702, %v6750
    %v6752 = vpop.f32.mrf.mxu0
    %6753 = vmatprep.mubr.bf16.mxu0 0
    %6754 = vmatmul.mubr.bf16.gmra.mxu0 %v3041
    %v6755 = vpop.f32.mrf.mxu0
    %v6756 = vadd.f32 %v5707, %v6755
    %v6757 = vpop.f32.mrf.mxu0
    %v6758 = vpop.f32.mrf.mxu0
    %v6759 = vadd.f32 %v5710, %v6758
    %v6760 = vpop.f32.mrf.mxu0
    %6761 = vmatprep.mubr.bf16.mxu0 0
    %6762 = vmatmul.mubr.bf16.gmra.mxu0 %v3046
    %v6763 = vpop.f32.mrf.mxu0
    %v6764 = vadd.f32 %v5715, %v6763
    %v6765 = vpop.f32.mrf.mxu0
    %v6766 = vpop.f32.mrf.mxu0
    %v6767 = vadd.f32 %v5718, %v6766
    %v6768 = vpop.f32.mrf.mxu0
    %6769 = vmatprep.mubr.bf16.mxu0 0
    %6770 = vmatmul.mubr.bf16.gmra.mxu0 %v3051
    %v6771 = vpop.f32.mrf.mxu0
    %v6772 = vadd.f32 %v5723, %v6771
    %v6773 = vpop.f32.mrf.mxu0
    %v6774 = vpop.f32.mrf.mxu0
    %v6775 = vadd.f32 %v5726, %v6774
    %v6776 = vpop.f32.mrf.mxu0
    %6777 = vmatprep.mubr.bf16.mxu0 0
    %6778 = vmatmul.mubr.bf16.gmra.mxu0 %v3056
    %v6779 = vpop.f32.mrf.mxu0
    %v6780 = vadd.f32 %v5731, %v6779
    %v6781 = vpop.f32.mrf.mxu0
    %v6782 = vpop.f32.mrf.mxu0
    %v6783 = vadd.f32 %v5734, %v6782
    %v6784 = vpop.f32.mrf.mxu0
    %6785 = vmatprep.mubr.bf16.mxu0 0
    %6786 = vmatmul.mubr.bf16.gmra.mxu0 %v3061
    %v6787 = vpop.f32.mrf.mxu0
    %v6788 = vadd.f32 %v5739, %v6787
    %v6789 = vpop.f32.mrf.mxu0
    %v6790 = vpop.f32.mrf.mxu0
    %v6791 = vadd.f32 %v5742, %v6790
    %v6792 = vpop.f32.mrf.mxu0
    %6793 = vmatprep.mubr.bf16.mxu0 0
    %6794 = vmatmul.mubr.bf16.gmra.mxu0 %v3066
    %v6795 = vpop.f32.mrf.mxu0
    %v6796 = vadd.f32 %v5747, %v6795
    %v6797 = vpop.f32.mrf.mxu0
    %v6798 = vpop.f32.mrf.mxu0
    %v6799 = vadd.f32 %v5750, %v6798
    %v6800 = vpop.f32.mrf.mxu0
    %6801 = vmatprep.mubr.bf16.mxu0 0
    %6802 = vmatmul.mubr.bf16.gmra.mxu0 %v3071
    %v6803 = vpop.f32.mrf.mxu0
    %v6804 = vadd.f32 %v5755, %v6803
    %v6805 = vpop.f32.mrf.mxu0
    %v6806 = vpop.f32.mrf.mxu0
    %v6807 = vadd.f32 %v5758, %v6806
    %v6808 = vpop.f32.mrf.mxu0
    %6809 = vmatprep.mubr.bf16.mxu0 0
    %6810 = vmatmul.mubr.bf16.gmra.mxu0 %v3076
    %v6811 = vpop.f32.mrf.mxu0
    %v6812 = vadd.f32 %v5763, %v6811
    %v6813 = vpop.f32.mrf.mxu0
    %v6814 = vpop.f32.mrf.mxu0
    %v6815 = vadd.f32 %v5766, %v6814
    %v6816 = vpop.f32.mrf.mxu0
    %6817 = vmatprep.mubr.bf16.mxu0 0
    %6818 = vmatmul.mubr.bf16.gmra.mxu0 %v3081
    %v6819 = vpop.f32.mrf.mxu0
    %v6820 = vadd.f32 %v5771, %v6819
    %v6821 = vpop.f32.mrf.mxu0
    %v6822 = vpop.f32.mrf.mxu0
    %v6823 = vadd.f32 %v5774, %v6822
    %v6824 = vpop.f32.mrf.mxu0
    %6825 = vmatprep.mubr.bf16.mxu0 0
    %6826 = vmatmul.mubr.bf16.gmra.mxu0 %v3086
    %v6827 = vpop.f32.mrf.mxu0
    %v6828 = vadd.f32 %v5779, %v6827
    %v6829 = vpop.f32.mrf.mxu0
    %v6830 = vpop.f32.mrf.mxu0
    %v6831 = vadd.f32 %v5782, %v6830
    %v6832 = vpop.f32.mrf.mxu0
    %6833 = vmatprep.mubr.bf16.mxu0 0
    %6834 = vmatmul.mubr.bf16.gmra.mxu0 %v3091
    %v6835 = vpop.f32.mrf.mxu0
    %v6836 = vadd.f32 %v5787, %v6835
    %v6837 = vpop.f32.mrf.mxu0
    %v6838 = vpop.f32.mrf.mxu0
    %v6839 = vadd.f32 %v5790, %v6838
    %v6840 = vpop.f32.mrf.mxu0
    %6841 = vmatprep.mubr.bf16.mxu0 0
    %6842 = vmatmul.mubr.bf16.gmra.mxu0 %v3096
    %v6843 = vpop.f32.mrf.mxu0
    %v6844 = vadd.f32 %v5795, %v6843
    %v6845 = vpop.f32.mrf.mxu0
    %v6846 = vpop.f32.mrf.mxu0
    %v6847 = vadd.f32 %v5798, %v6846
    %v6848 = vpop.f32.mrf.mxu0
    %6849 = vmatprep.mubr.bf16.mxu0 0
    %6850 = vmatmul.mubr.bf16.gmra.mxu0 %v3101
    %v6851 = vpop.f32.mrf.mxu0
    %v6852 = vadd.f32 %v5803, %v6851
    %v6853 = vpop.f32.mrf.mxu0
    %v6854 = vpop.f32.mrf.mxu0
    %v6855 = vadd.f32 %v5806, %v6854
    %v6856 = vpop.f32.mrf.mxu0
    %6857 = vmatprep.mubr.bf16.mxu0 0
    %6858 = vmatmul.mubr.bf16.gmra.mxu0 %v3106
    %v6859 = vpop.f32.mrf.mxu0
    %v6860 = vadd.f32 %v5811, %v6859
    %v6861 = vpop.f32.mrf.mxu0
    %v6862 = vpop.f32.mrf.mxu0
    %v6863 = vadd.f32 %v5814, %v6862
    %v6864 = vpop.f32.mrf.mxu0
    %6865 = vmatprep.mubr.bf16.mxu0 0
    %6866 = vmatmul.mubr.bf16.gmra.mxu0 %v3111
    %v6867 = vpop.f32.mrf.mxu0
    %v6868 = vadd.f32 %v5819, %v6867
    %v6869 = vpop.f32.mrf.mxu0
    %v6870 = vpop.f32.mrf.mxu0
    %v6871 = vadd.f32 %v5822, %v6870
    %v6872 = vpop.f32.mrf.mxu0
    %6873 = vmatprep.mubr.bf16.mxu0 0
    %6874 = vmatmul.mubr.bf16.gmra.mxu0 %v3116
    %v6875 = vpop.f32.mrf.mxu0
    %v6876 = vadd.f32 %v5827, %v6875
    %v6877 = vpop.f32.mrf.mxu0
    %v6878 = vpop.f32.mrf.mxu0
    %v6879 = vadd.f32 %v5830, %v6878
    %v6880 = vpop.f32.mrf.mxu0
    %6881 = vmatprep.mubr.bf16.mxu0 0
    %6882 = vmatmul.mubr.bf16.gmra.mxu0 %v3121
    %v6883 = vpop.f32.mrf.mxu0
    %v6884 = vadd.f32 %v5835, %v6883
    %v6885 = vpop.f32.mrf.mxu0
    %v6886 = vpop.f32.mrf.mxu0
    %v6887 = vadd.f32 %v5838, %v6886
    %v6888 = vpop.f32.mrf.mxu0
    %6889 = vmatprep.mubr.bf16.mxu0 0
    %6890 = vmatmul.mubr.bf16.gmra.mxu0 %v3126
    %v6891 = vpop.f32.mrf.mxu0
    %v6892 = vadd.f32 %v5843, %v6891
    %v6893 = vpop.f32.mrf.mxu0
    %v6894 = vpop.f32.mrf.mxu0
    %v6895 = vadd.f32 %v5846, %v6894
    %v6896 = vpop.f32.mrf.mxu0
    %6897 = vmatprep.mubr.bf16.mxu0 0
    %6898 = vmatmul.mubr.bf16.gmra.mxu0 %v3131
    %v6899 = vpop.f32.mrf.mxu0
    %v6900 = vadd.f32 %v5851, %v6899
    %v6901 = vpop.f32.mrf.mxu0
    %v6902 = vpop.f32.mrf.mxu0
    %v6903 = vadd.f32 %v5854, %v6902
    %v6904 = vpop.f32.mrf.mxu0
    %6905 = vmatprep.mubr.bf16.mxu0 0
    %6906 = vmatmul.mubr.bf16.gmra.mxu0 %v3136
    %v6907 = vpop.f32.mrf.mxu0
    %v6908 = vadd.f32 %v5859, %v6907
    %v6909 = vpop.f32.mrf.mxu0
    %v6910 = vpop.f32.mrf.mxu0
    %v6911 = vadd.f32 %v5862, %v6910
    %v6912 = vpop.f32.mrf.mxu0
    %6913 = vmatprep.mubr.bf16.mxu0 0
    %6914 = vmatmul.mubr.bf16.gmra.mxu0 %v3141
    %v6915 = vpop.f32.mrf.mxu0
    %v6916 = vadd.f32 %v5867, %v6915
    %v6917 = vpop.f32.mrf.mxu0
    %v6918 = vpop.f32.mrf.mxu0
    %v6919 = vadd.f32 %v5870, %v6918
    %v6920 = vpop.f32.mrf.mxu0
    %6921 = vmatprep.mubr.bf16.mxu0 0
    %6922 = vmatmul.mubr.bf16.gmra.mxu0 %v3146
    %v6923 = vpop.f32.mrf.mxu0
    %v6924 = vadd.f32 %v5875, %v6923
    %v6925 = vpop.f32.mrf.mxu0
    %v6926 = vpop.f32.mrf.mxu0
    %v6927 = vadd.f32 %v5878, %v6926
    %v6928 = vpop.f32.mrf.mxu0
    %6929 = vmatprep.mubr.bf16.mxu0 0
    %6930 = vmatmul.mubr.bf16.gmra.mxu0 %v3151
    %v6931 = vpop.f32.mrf.mxu0
    %v6932 = vadd.f32 %v5883, %v6931
    %v6933 = vpop.f32.mrf.mxu0
    %v6934 = vpop.f32.mrf.mxu0
    %v6935 = vadd.f32 %v5886, %v6934
    %v6936 = vpop.f32.mrf.mxu0
    %6937 = vmatprep.mubr.bf16.mxu0 0
    %6938 = vmatmul.mubr.bf16.gmra.mxu0 %v3156
    %v6939 = vpop.f32.mrf.mxu0
    %v6940 = vadd.f32 %v5891, %v6939
    %v6941 = vpop.f32.mrf.mxu0
    %v6942 = vpop.f32.mrf.mxu0
    %v6943 = vadd.f32 %v5894, %v6942
    %v6944 = vpop.f32.mrf.mxu0
    %6945 = vmatprep.mubr.bf16.mxu0 0
    %6946 = vmatmul.mubr.bf16.gmra.mxu0 %v3161
    %v6947 = vpop.f32.mrf.mxu0
    %v6948 = vadd.f32 %v5899, %v6947
    %v6949 = vpop.f32.mrf.mxu0
    %v6950 = vpop.f32.mrf.mxu0
    %v6951 = vadd.f32 %v5902, %v6950
    %v6952 = vpop.f32.mrf.mxu0
    %6953 = vmatprep.mubr.bf16.mxu0 0
    %6954 = vmatmul.mubr.bf16.gmra.mxu0 %v3166
    %v6955 = vpop.f32.mrf.mxu0
    %v6956 = vadd.f32 %v5907, %v6955
    %v6957 = vpop.f32.mrf.mxu0
    %v6958 = vpop.f32.mrf.mxu0
    %v6959 = vadd.f32 %v5910, %v6958
    %v6960 = vpop.f32.mrf.mxu0
    %6961 = vmatprep.mubr.bf16.mxu0 0
    %6962 = vmatmul.mubr.bf16.gmra.mxu0 %v3171
    %v6963 = vpop.f32.mrf.mxu0
    %v6964 = vadd.f32 %v5915, %v6963
    %v6965 = vpop.f32.mrf.mxu0
    %v6966 = vpop.f32.mrf.mxu0
    %v6967 = vadd.f32 %v5918, %v6966
    %v6968 = vpop.f32.mrf.mxu0
    %6969 = vmatprep.mubr.bf16.mxu0 0
    %6970 = vmatmul.mubr.bf16.gmra.mxu0 %v3176
    %v6971 = vpop.f32.mrf.mxu0
    %v6972 = vadd.f32 %v5923, %v6971
    %v6973 = vpop.f32.mrf.mxu0
    %v6974 = vpop.f32.mrf.mxu0
    %v6975 = vadd.f32 %v5926, %v6974
    %v6976 = vpop.f32.mrf.mxu0
    %6977 = vmatprep.mubr.bf16.mxu0 0
    %6978 = vmatmul.mubr.bf16.gmra.mxu0 %v3181
    %v6979 = vpop.f32.mrf.mxu0
    %v6980 = vadd.f32 %v5931, %v6979
    %v6981 = vpop.f32.mrf.mxu0
    %v6982 = vpop.f32.mrf.mxu0
    %v6983 = vadd.f32 %v5934, %v6982
    %v6984 = vpop.f32.mrf.mxu0
    %6985 = vmatprep.mubr.bf16.mxu0 0
    %6986 = vmatmul.mubr.bf16.gmra.mxu0 %v3186
    %v6987 = vpop.f32.mrf.mxu0
    %v6988 = vadd.f32 %v5939, %v6987
    %v6989 = vpop.f32.mrf.mxu0
    %v6990 = vpop.f32.mrf.mxu0
    %v6991 = vadd.f32 %v5942, %v6990
    %v6992 = vpop.f32.mrf.mxu0
    %6993 = vmatprep.mubr.bf16.mxu0 0
    %6994 = vmatmul.mubr.bf16.gmra.mxu0 %v3191
    %v6995 = vpop.f32.mrf.mxu0
    %v6996 = vadd.f32 %v5947, %v6995
    %v6997 = vpop.f32.mrf.mxu0
    %v6998 = vpop.f32.mrf.mxu0
    %v6999 = vadd.f32 %v5950, %v6998
    %v7000 = vpop.f32.mrf.mxu0
    %7001 = vmatprep.mubr.bf16.mxu0 0
    %7002 = vmatmul.mubr.bf16.gmra.mxu0 %v3196
    %v7003 = vpop.f32.mrf.mxu0
    %v7004 = vadd.f32 %v5955, %v7003
    %v7005 = vpop.f32.mrf.mxu0
    %v7006 = vpop.f32.mrf.mxu0
    %v7007 = vadd.f32 %v5958, %v7006
    %v7008 = vpop.f32.mrf.mxu0
    %7009 = vmatprep.mubr.bf16.mxu0 0
    %7010 = vmatmul.mubr.bf16.gmra.mxu0 %v3201
    %v7011 = vpop.f32.mrf.mxu0
    %v7012 = vadd.f32 %v5963, %v7011
    %v7013 = vpop.f32.mrf.mxu0
    %v7014 = vpop.f32.mrf.mxu0
    %v7015 = vadd.f32 %v5966, %v7014
    %v7016 = vpop.f32.mrf.mxu0
    %7017 = vmatprep.mubr.bf16.mxu0 0
    %7018 = vmatmul.mubr.bf16.gmra.mxu0 %v3206
    %v7019 = vpop.f32.mrf.mxu0
    %v7020 = vadd.f32 %v5971, %v7019
    %v7021 = vpop.f32.mrf.mxu0
    %v7022 = vpop.f32.mrf.mxu0
    %v7023 = vadd.f32 %v5974, %v7022
    %v7024 = vpop.f32.mrf.mxu0
    %7025 = vmatprep.mubr.bf16.mxu0 0
    %7026 = vmatmul.mubr.bf16.gmra.mxu0 %v3211
    %v7027 = vpop.f32.mrf.mxu0
    %v7028 = vadd.f32 %v5979, %v7027
    %v7029 = vpop.f32.mrf.mxu0
    %v7030 = vpop.f32.mrf.mxu0
    %v7031 = vadd.f32 %v5982, %v7030
    %v7032 = vpop.f32.mrf.mxu0
    %7033 = vmatprep.mubr.bf16.mxu0 0
    %7034 = vmatmul.mubr.bf16.gmra.mxu0 %v3216
    %v7035 = vpop.f32.mrf.mxu0
    %v7036 = vadd.f32 %v5987, %v7035
    %v7037 = vpop.f32.mrf.mxu0
    %v7038 = vpop.f32.mrf.mxu0
    %v7039 = vadd.f32 %v5990, %v7038
    %v7040 = vpop.f32.mrf.mxu0
    %7041 = vmatprep.mubr.bf16.mxu0 0
    %7042 = vmatmul.mubr.bf16.gmra.mxu0 %v3221
    %v7043 = vpop.f32.mrf.mxu0
    %v7044 = vadd.f32 %v5995, %v7043
    %v7045 = vpop.f32.mrf.mxu0
    %v7046 = vpop.f32.mrf.mxu0
    %v7047 = vadd.f32 %v5998, %v7046
    %v7048 = vpop.f32.mrf.mxu0
    %7049 = vmatprep.mubr.bf16.mxu0 0
    %7050 = vmatmul.mubr.bf16.gmra.mxu0 %v3226
    %v7051 = vpop.f32.mrf.mxu0
    %v7052 = vadd.f32 %v6003, %v7051
    %v7053 = vpop.f32.mrf.mxu0
    %v7054 = vpop.f32.mrf.mxu0
    %v7055 = vadd.f32 %v6006, %v7054
    %v7056 = vpop.f32.mrf.mxu0
    %7057 = vmatprep.mubr.bf16.mxu0 0
    %7058 = vmatmul.mubr.bf16.gmra.mxu0 %v3231
    %v7059 = vpop.f32.mrf.mxu0
    %v7060 = vadd.f32 %v6011, %v7059
    %v7061 = vpop.f32.mrf.mxu0
    %v7062 = vpop.f32.mrf.mxu0
    %v7063 = vadd.f32 %v6014, %v7062
    %v7064 = vpop.f32.mrf.mxu0
    %7065 = vmatprep.mubr.bf16.mxu0 0
    %7066 = vmatmul.mubr.bf16.gmra.mxu0 %v3236
    %v7067 = vpop.f32.mrf.mxu0
    %v7068 = vadd.f32 %v6019, %v7067
    %v7069 = vpop.f32.mrf.mxu0
    %v7070 = vpop.f32.mrf.mxu0
    %v7071 = vadd.f32 %v6022, %v7070
    %v7072 = vpop.f32.mrf.mxu0
    %7073 = vmatprep.mubr.bf16.mxu0 0
    %7074 = vmatmul.mubr.bf16.gmra.mxu0 %v3241
    %v7075 = vpop.f32.mrf.mxu0
    %v7076 = vadd.f32 %v6027, %v7075
    %v7077 = vpop.f32.mrf.mxu0
    %v7078 = vpop.f32.mrf.mxu0
    %v7079 = vadd.f32 %v6030, %v7078
    %v7080 = vpop.f32.mrf.mxu0
    %7081 = vmatprep.mubr.bf16.mxu0 0
    %7082 = vmatmul.mubr.bf16.gmra.mxu0 %v3246
    %v7083 = vpop.f32.mrf.mxu0
    %v7084 = vadd.f32 %v6035, %v7083
    %v7085 = vpop.f32.mrf.mxu0
    %v7086 = vpop.f32.mrf.mxu0
    %v7087 = vadd.f32 %v6038, %v7086
    %v7088 = vpop.f32.mrf.mxu0
    %7089 = vmatprep.mubr.bf16.mxu0 0
    %7090 = vmatmul.mubr.bf16.gmra.mxu0 %v3251
    %v7091 = vpop.f32.mrf.mxu0
    %v7092 = vadd.f32 %v6043, %v7091
    %v7093 = vpop.f32.mrf.mxu0
    %v7094 = vpop.f32.mrf.mxu0
    %v7095 = vadd.f32 %v6046, %v7094
    %v7096 = vpop.f32.mrf.mxu0
    %7097 = vmatprep.mubr.bf16.mxu0 0
    %7098 = vmatmul.mubr.bf16.gmra.mxu0 %v3256
    %v7099 = vpop.f32.mrf.mxu0
    %v7100 = vadd.f32 %v6051, %v7099
    %v7101 = vpop.f32.mrf.mxu0
    %v7102 = vpop.f32.mrf.mxu0
    %v7103 = vadd.f32 %v6054, %v7102
    %v7104 = vpop.f32.mrf.mxu0
    %7105 = vmatprep.mubr.bf16.mxu0 0
    %7106 = vmatmul.mubr.bf16.gmra.mxu0 %v3261
    %v7107 = vpop.f32.mrf.mxu0
    %v7108 = vadd.f32 %v6059, %v7107
    %v7109 = vpop.f32.mrf.mxu0
    %v7110 = vpop.f32.mrf.mxu0
    %v7111 = vadd.f32 %v6062, %v7110
    %v7112 = vpop.f32.mrf.mxu0
    %7113 = vmatprep.mubr.bf16.mxu0 0
    %7114 = vmatmul.mubr.bf16.gmra.mxu0 %v3266
    %v7115 = vpop.f32.mrf.mxu0
    %v7116 = vadd.f32 %v6067, %v7115
    %v7117 = vpop.f32.mrf.mxu0
    %v7118 = vpop.f32.mrf.mxu0
    %v7119 = vadd.f32 %v6070, %v7118
    %v7120 = vpop.f32.mrf.mxu0
    %7121 = vmatprep.mubr.bf16.mxu0 0
    %7122 = vmatmul.mubr.bf16.gmra.mxu0 %v3271
    %v7123 = vpop.f32.mrf.mxu0
    %v7124 = vadd.f32 %v6075, %v7123
    %v7125 = vpop.f32.mrf.mxu0
    %v7126 = vpop.f32.mrf.mxu0
    %v7127 = vadd.f32 %v6078, %v7126
    %v7128 = vpop.f32.mrf.mxu0
    %7129 = vmatprep.mubr.bf16.mxu0 0
    %7130 = vmatmul.mubr.bf16.gmra.mxu0 %v3276
    %v7131 = vpop.f32.mrf.mxu0
    %v7132 = vadd.f32 %v6083, %v7131
    %v7133 = vpop.f32.mrf.mxu0
    %v7134 = vpop.f32.mrf.mxu0
    %v7135 = vadd.f32 %v6086, %v7134
    %v7136 = vpop.f32.mrf.mxu0
    %7137 = vmatprep.mubr.bf16.mxu0 0
    %7138 = vmatmul.mubr.bf16.gmra.mxu0 %v3281
    %v7139 = vpop.f32.mrf.mxu0
    %v7140 = vadd.f32 %v6091, %v7139
    %v7141 = vpop.f32.mrf.mxu0
    %v7142 = vpop.f32.mrf.mxu0
    %v7143 = vadd.f32 %v6094, %v7142
    %v7144 = vpop.f32.mrf.mxu0
    %7145 = vmatprep.mubr.bf16.mxu0 0
    %7146 = vmatmul.mubr.bf16.gmra.mxu0 %v3286
    %v7147 = vpop.f32.mrf.mxu0
    %v7148 = vadd.f32 %v6099, %v7147
    %v7149 = vpop.f32.mrf.mxu0
    %v7150 = vpop.f32.mrf.mxu0
    %v7151 = vadd.f32 %v6102, %v7150
    %v7152 = vpop.f32.mrf.mxu0
    %7153 = vmatprep.mubr.bf16.mxu0 0
    %7154 = vmatmul.mubr.bf16.gmra.mxu0 %v3291
    %v7155 = vpop.f32.mrf.mxu0
    %v7156 = vadd.f32 %v6107, %v7155
    %v7157 = vpop.f32.mrf.mxu0
    %v7158 = vpop.f32.mrf.mxu0
    %v7159 = vadd.f32 %v6110, %v7158
    %v7160 = vpop.f32.mrf.mxu0
    %7161 = vmatprep.mubr.bf16.mxu0 0
    %7162 = vmatmul.mubr.bf16.gmra.mxu0 %v3296
    %v7163 = vpop.f32.mrf.mxu0
    %v7164 = vadd.f32 %v6115, %v7163
    %v7165 = vpop.f32.mrf.mxu0
    %v7166 = vpop.f32.mrf.mxu0
    %v7167 = vadd.f32 %v6118, %v7166
    %v7168 = vpop.f32.mrf.mxu0
    %7169 = vmatprep.mubr.bf16.mxu0 0
    %7170 = vmatmul.mubr.bf16.gmra.mxu0 %v3301
    %v7171 = vpop.f32.mrf.mxu0
    %v7172 = vadd.f32 %v6123, %v7171
    %v7173 = vpop.f32.mrf.mxu0
    %v7174 = vpop.f32.mrf.mxu0
    %v7175 = vadd.f32 %v6126, %v7174
    %v7176 = vpop.f32.mrf.mxu0
    %7177 = vmatprep.mubr.bf16.mxu0 0
    %7178 = vmatmul.mubr.bf16.gmra.mxu0 %v3306
    %v7179 = vpop.f32.mrf.mxu0
    %v7180 = vadd.f32 %v6131, %v7179
    %v7181 = vpop.f32.mrf.mxu0
    %v7182 = vpop.f32.mrf.mxu0
    %v7183 = vadd.f32 %v6134, %v7182
    %v7184 = vpop.f32.mrf.mxu0
    %7185 = vmatprep.mubr.bf16.mxu0 0
    %7186 = vmatmul.mubr.bf16.gmra.mxu0 %v3311
    %v7187 = vpop.f32.mrf.mxu0
    %v7188 = vadd.f32 %v6139, %v7187
    %v7189 = vpop.f32.mrf.mxu0
    %v7190 = vpop.f32.mrf.mxu0
    %v7191 = vadd.f32 %v6142, %v7190
    %v7192 = vpop.f32.mrf.mxu0
    %7193 = vmatprep.mubr.bf16.mxu0 0
    %7194 = vmatmul.mubr.bf16.gmra.mxu0 %v3316
    %v7195 = vpop.f32.mrf.mxu0
    %v7196 = vadd.f32 %v6147, %v7195
    %v7197 = vpop.f32.mrf.mxu0
    %v7198 = vpop.f32.mrf.mxu0
    %v7199 = vadd.f32 %v6150, %v7198
    %v7200 = vpop.f32.mrf.mxu0
    %7201 = vmatprep.mubr.bf16.mxu0 0
    %7202 = vmatmul.mubr.bf16.gmra.mxu0 %v3321
    %v7203 = vpop.f32.mrf.mxu0
    %v7204 = vadd.f32 %v6155, %v7203
    %v7205 = vpop.f32.mrf.mxu0
    %v7206 = vpop.f32.mrf.mxu0
    %v7207 = vadd.f32 %v6158, %v7206
    %v7208 = vpop.f32.mrf.mxu0
    %7209 = vmatprep.mubr.bf16.mxu0 0
    %7210 = vmatmul.mubr.bf16.gmra.mxu0 %v3326
    %v7211 = vpop.f32.mrf.mxu0
    %v7212 = vadd.f32 %v6163, %v7211
    %v7213 = vpop.f32.mrf.mxu0
    %v7214 = vpop.f32.mrf.mxu0
    %v7215 = vadd.f32 %v6166, %v7214
    %v7216 = vpop.f32.mrf.mxu0
    %7217 = vmatprep.mubr.bf16.mxu0 0
    %7218 = vmatmul.mubr.bf16.gmra.mxu0 %v3331
    %v7219 = vpop.f32.mrf.mxu0
    %v7220 = vadd.f32 %v6171, %v7219
    %v7221 = vpop.f32.mrf.mxu0
    %v7222 = vpop.f32.mrf.mxu0
    %v7223 = vadd.f32 %v6174, %v7222
    %v7224 = vpop.f32.mrf.mxu0
    %7225 = vmatprep.mubr.bf16.mxu0 0
    %7226 = vmatmul.mubr.bf16.gmra.mxu0 %v3336
    %v7227 = vpop.f32.mrf.mxu0
    %v7228 = vadd.f32 %v6179, %v7227
    %v7229 = vpop.f32.mrf.mxu0
    %v7230 = vpop.f32.mrf.mxu0
    %v7231 = vadd.f32 %v6182, %v7230
    %v7232 = vpop.f32.mrf.mxu0
    %7233 = vmatprep.mubr.bf16.mxu0 0
    %7234 = vmatmul.mubr.bf16.gmra.mxu0 %v3341
    %v7235 = vpop.f32.mrf.mxu0
    %v7236 = vadd.f32 %v6187, %v7235
    %v7237 = vpop.f32.mrf.mxu0
    %v7238 = vpop.f32.mrf.mxu0
    %v7239 = vadd.f32 %v6190, %v7238
    %v7240 = vpop.f32.mrf.mxu0
    %7241 = vmatprep.mubr.bf16.mxu0 0
    %7242 = vmatmul.mubr.bf16.gmra.mxu0 %v3346
    %v7243 = vpop.f32.mrf.mxu0
    %v7244 = vadd.f32 %v6195, %v7243
    %v7245 = vpop.f32.mrf.mxu0
    %v7246 = vpop.f32.mrf.mxu0
    %v7247 = vadd.f32 %v6198, %v7246
    %v7248 = vpop.f32.mrf.mxu0
    %7249 = vmatprep.mubr.bf16.mxu0 0
    %7250 = vmatmul.mubr.bf16.gmra.mxu0 %v3351
    %v7251 = vpop.f32.mrf.mxu0
    %v7252 = vadd.f32 %v6203, %v7251
    %v7253 = vpop.f32.mrf.mxu0
    %v7254 = vpop.f32.mrf.mxu0
    %v7255 = vadd.f32 %v6206, %v7254
    %v7256 = vpop.f32.mrf.mxu0
    %7257 = vmatprep.mubr.bf16.mxu0 0
    %7258 = vmatmul.mubr.bf16.gmra.mxu0 %v3356
    %v7259 = vpop.f32.mrf.mxu0
    %v7260 = vadd.f32 %v6211, %v7259
    %v7261 = vpop.f32.mrf.mxu0
    %v7262 = vpop.f32.mrf.mxu0
    %v7263 = vadd.f32 %v6214, %v7262
    %v7264 = vpop.f32.mrf.mxu0
    %7265 = vmatprep.mubr.bf16.mxu0 0
    %7266 = vmatmul.mubr.bf16.gmra.mxu0 %v3361
    %v7267 = vpop.f32.mrf.mxu0
    %v7268 = vadd.f32 %v6219, %v7267
    %v7269 = vpop.f32.mrf.mxu0
    %v7270 = vpop.f32.mrf.mxu0
    %v7271 = vadd.f32 %v6222, %v7270
    %v7272 = vpop.f32.mrf.mxu0
    %7273 = vmatprep.mubr.bf16.mxu0 0
    %7274 = vmatmul.mubr.bf16.gmra.mxu0 %v3366
    %v7275 = vpop.f32.mrf.mxu0
    %v7276 = vadd.f32 %v6227, %v7275
    %v7277 = vpop.f32.mrf.mxu0
    %v7278 = vpop.f32.mrf.mxu0
    %v7279 = vadd.f32 %v6230, %v7278
    %v7280 = vpop.f32.mrf.mxu0
    %7281 = vmatprep.mubr.bf16.mxu0 0
    %7282 = vmatmul.mubr.bf16.gmra.mxu0 %v3371
    %v7283 = vpop.f32.mrf.mxu0
    %v7284 = vadd.f32 %v6235, %v7283
    %v7285 = vpop.f32.mrf.mxu0
    %v7286 = vpop.f32.mrf.mxu0
    %v7287 = vadd.f32 %v6238, %v7286
    %v7288 = vpop.f32.mrf.mxu0
    %7289 = vmatprep.mubr.bf16.mxu0 0
    %7290 = vmatmul.mubr.bf16.gmra.mxu0 %v3376
    %v7291 = vpop.f32.mrf.mxu0
    %v7292 = vadd.f32 %v6243, %v7291
    %v7293 = vpop.f32.mrf.mxu0
    %v7294 = vpop.f32.mrf.mxu0
    %v7295 = vadd.f32 %v6246, %v7294
    %v7296 = vpop.f32.mrf.mxu0
    %7297 = vmatprep.mubr.bf16.mxu0 0
    %7298 = vmatmul.mubr.bf16.gmra.mxu0 %v3381
    %v7299 = vpop.f32.mrf.mxu0
    %v7300 = vadd.f32 %v6251, %v7299
    %v7301 = vpop.f32.mrf.mxu0
    %v7302 = vpop.f32.mrf.mxu0
    %v7303 = vadd.f32 %v6254, %v7302
    %v7304 = vpop.f32.mrf.mxu0
    %7305 = vmatprep.mubr.bf16.mxu0 0
    %7306 = vmatmul.mubr.bf16.gmra.mxu0 %v3386
    %v7307 = vpop.f32.mrf.mxu0
    %v7308 = vadd.f32 %v6259, %v7307
    %v7309 = vpop.f32.mrf.mxu0
    %v7310 = vpop.f32.mrf.mxu0
    %v7311 = vadd.f32 %v6262, %v7310
    %v7312 = vpop.f32.mrf.mxu0
    %7313 = vmatprep.mubr.bf16.mxu0 0
    %7314 = vmatmul.mubr.bf16.gmra.mxu0 %v3391
    %v7315 = vpop.f32.mrf.mxu0
    %v7316 = vadd.f32 %v6267, %v7315
    %v7317 = vpop.f32.mrf.mxu0
    %v7318 = vpop.f32.mrf.mxu0
    %v7319 = vadd.f32 %v6270, %v7318
    %v7320 = vpop.f32.mrf.mxu0
    %7321 = vmatprep.mubr.bf16.mxu0 0
    %7322 = vmatmul.mubr.bf16.gmra.mxu0 %v3396
    %v7323 = vpop.f32.mrf.mxu0
    %v7324 = vadd.f32 %v6275, %v7323
    %v7325 = vpop.f32.mrf.mxu0
    %v7326 = vpop.f32.mrf.mxu0
    %v7327 = vadd.f32 %v6278, %v7326
    %v7328 = vpop.f32.mrf.mxu0
    %7329 = vmatprep.mubr.bf16.mxu0 0
    %7330 = vmatmul.mubr.bf16.gmra.mxu0 %v3401
    %v7331 = vpop.f32.mrf.mxu0
    %v7332 = vadd.f32 %v6283, %v7331
    %v7333 = vpop.f32.mrf.mxu0
    %v7334 = vpop.f32.mrf.mxu0
    %v7335 = vadd.f32 %v6286, %v7334
    %v7336 = vpop.f32.mrf.mxu0
    %7337 = vmatprep.mubr.bf16.mxu0 0
    %7338 = vmatmul.mubr.bf16.gmra.mxu0 %v3406
    %v7339 = vpop.f32.mrf.mxu0
    %v7340 = vadd.f32 %v6291, %v7339
    %v7341 = vpop.f32.mrf.mxu0
    %v7342 = vpop.f32.mrf.mxu0
    %v7343 = vadd.f32 %v6294, %v7342
    %v7344 = vpop.f32.mrf.mxu0
    %7345 = vmatprep.mubr.bf16.mxu0 0
    %7346 = vmatmul.mubr.bf16.gmra.mxu0 %v3411
    %v7347 = vpop.f32.mrf.mxu0
    %v7348 = vadd.f32 %v6299, %v7347
    %v7349 = vpop.f32.mrf.mxu0
    %v7350 = vpop.f32.mrf.mxu0
    %v7351 = vadd.f32 %v6302, %v7350
    %v7352 = vpop.f32.mrf.mxu0
    %7353 = vmatprep.mubr.bf16.mxu0 0
    %7354 = vmatmul.mubr.bf16.gmra.mxu0 %v3416
    %v7355 = vpop.f32.mrf.mxu0
    %v7356 = vadd.f32 %v6307, %v7355
    %v7357 = vpop.f32.mrf.mxu0
    %v7358 = vpop.f32.mrf.mxu0
    %v7359 = vadd.f32 %v6310, %v7358
    %v7360 = vpop.f32.mrf.mxu0
    %7361 = vmatprep.mubr.bf16.mxu0 0
    %7362 = vmatmul.mubr.bf16.gmra.mxu0 %v3421
    %v7363 = vpop.f32.mrf.mxu0
    %v7364 = vadd.f32 %v6315, %v7363
    %v7365 = vpop.f32.mrf.mxu0
    %v7366 = vpop.f32.mrf.mxu0
    %v7367 = vadd.f32 %v6318, %v7366
    %v7368 = vpop.f32.mrf.mxu0
    %7369 = vmatprep.mubr.bf16.mxu0 0
    %7370 = vmatmul.mubr.bf16.gmra.mxu0 %v3426
    %v7371 = vpop.f32.mrf.mxu0
    %v7372 = vadd.f32 %v6323, %v7371
    %v7373 = vpop.f32.mrf.mxu0
    %v7374 = vpop.f32.mrf.mxu0
    %v7375 = vadd.f32 %v6326, %v7374
    %v7376 = vpop.f32.mrf.mxu0
    %7377 = vmatprep.mubr.bf16.mxu0 0
    %7378 = vmatmul.mubr.bf16.gmra.mxu0 %v3431
    %v7379 = vpop.f32.mrf.mxu0
    %v7380 = vadd.f32 %v6331, %v7379
    %v7381 = vpop.f32.mrf.mxu0
    %v7382 = vpop.f32.mrf.mxu0
    %v7383 = vadd.f32 %v6334, %v7382
    %v7384 = vpop.f32.mrf.mxu0
    %7385 = vmatprep.mubr.bf16.mxu0 0
    %7386 = vmatmul.mubr.bf16.gmra.mxu0 %v3436
    %v7387 = vpop.f32.mrf.mxu0
    %v7388 = vadd.f32 %v6339, %v7387
    %v7389 = vpop.f32.mrf.mxu0
    %v7390 = vpop.f32.mrf.mxu0
    %v7391 = vadd.f32 %v6342, %v7390
    %v7392 = vpop.f32.mrf.mxu0
    %7393 = vmatprep.mubr.bf16.mxu0 0
    %7394 = vmatmul.mubr.bf16.gmra.mxu0 %v3441
    %v7395 = vpop.f32.mrf.mxu0
    %v7396 = vadd.f32 %v6347, %v7395
    %v7397 = vpop.f32.mrf.mxu0
    %v7398 = vpop.f32.mrf.mxu0
    %v7399 = vadd.f32 %v6350, %v7398
    %v7400 = vpop.f32.mrf.mxu0
    %7401 = vmatprep.mubr.bf16.mxu0 0
    %7402 = vmatmul.mubr.bf16.gmra.mxu0 %v3446
    %v7403 = vpop.f32.mrf.mxu0
    %v7404 = vadd.f32 %v6355, %v7403
    %v7405 = vpop.f32.mrf.mxu0
    %v7406 = vpop.f32.mrf.mxu0
    %v7407 = vadd.f32 %v6358, %v7406
    %v7408 = vpop.f32.mrf.mxu0
    %7409 = vmatprep.mubr.bf16.mxu0 0
    %7410 = vmatmul.mubr.bf16.gmra.mxu0 %v3451
    %v7411 = vpop.f32.mrf.mxu0
    %v7412 = vadd.f32 %v6363, %v7411
    %v7413 = vpop.f32.mrf.mxu0
    %v7414 = vpop.f32.mrf.mxu0
    %v7415 = vadd.f32 %v6366, %v7414
    %v7416 = vpop.f32.mrf.mxu0
    %7417 = vmatprep.mubr.bf16.mxu0 0
    %7418 = vmatmul.mubr.bf16.gmra.mxu0 %v3456
    %v7419 = vpop.f32.mrf.mxu0
    %v7420 = vadd.f32 %v6371, %v7419
    %v7421 = vpop.f32.mrf.mxu0
    %v7422 = vpop.f32.mrf.mxu0
    %v7423 = vadd.f32 %v6374, %v7422
    %v7424 = vpop.f32.mrf.mxu0
    %7425 = vmatprep.mubr.bf16.mxu0 0
    %7426 = vmatmul.mubr.bf16.gmra.mxu0 %v3461
    %v7427 = vpop.f32.mrf.mxu0
    %v7428 = vadd.f32 %v6379, %v7427
    %v7429 = vpop.f32.mrf.mxu0
    %v7430 = vpop.f32.mrf.mxu0
    %v7431 = vadd.f32 %v6382, %v7430
    %v7432 = vpop.f32.mrf.mxu0
    %7433 = vmatprep.mubr.bf16.mxu0 0
    %7434 = vmatmul.mubr.bf16.gmra.mxu0 %v3466
    %v7435 = vpop.f32.mrf.mxu0
    %v7436 = vadd.f32 %v6387, %v7435
    %v7437 = vpop.f32.mrf.mxu0
    %v7438 = vpop.f32.mrf.mxu0
    %v7439 = vadd.f32 %v6390, %v7438
    %v7440 = vpop.f32.mrf.mxu0
    %7441 = vmatprep.mubr.bf16.mxu0 0
    %7442 = vmatmul.mubr.bf16.gmra.mxu0 %v3471
    %v7443 = vpop.f32.mrf.mxu0
    %v7444 = vadd.f32 %v6395, %v7443
    %v7445 = vpop.f32.mrf.mxu0
    %v7446 = vpop.f32.mrf.mxu0
    %v7447 = vadd.f32 %v6398, %v7446
    %v7448 = vpop.f32.mrf.mxu0
    %7449 = vmatprep.mubr.bf16.mxu0 0
    %7450 = vmatmul.mubr.bf16.gmra.mxu0 %v3476
    %v7451 = vpop.f32.mrf.mxu0
    %v7452 = vadd.f32 %v6403, %v7451
    %v7453 = vpop.f32.mrf.mxu0
    %v7454 = vpop.f32.mrf.mxu0
    %v7455 = vadd.f32 %v6406, %v7454
    %v7456 = vpop.f32.mrf.mxu0
    %7457 = vmatprep.mubr.bf16.mxu0 0
    %7458 = vmatmul.mubr.bf16.gmra.mxu0 %v3481
    %v7459 = vpop.f32.mrf.mxu0
    %v7460 = vadd.f32 %v6411, %v7459
    %v7461 = vpop.f32.mrf.mxu0
    %v7462 = vpop.f32.mrf.mxu0
    %v7463 = vadd.f32 %v6414, %v7462
    %v7464 = vpop.f32.mrf.mxu0
    %7465 = vmatprep.mubr.bf16.mxu0 0
    %7466 = vmatmul.mubr.bf16.gmra.mxu0 %v3486
    %v7467 = vpop.f32.mrf.mxu0
    %v7468 = vadd.f32 %v6419, %v7467
    %v7469 = vpop.f32.mrf.mxu0
    %v7470 = vpop.f32.mrf.mxu0
    %v7471 = vadd.f32 %v6422, %v7470
    %v7472 = vpop.f32.mrf.mxu0
    %7473 = vmatprep.mubr.bf16.mxu0 0
    %7474 = vmatmul.mubr.bf16.gmra.mxu0 %v3491
    %v7475 = vpop.f32.mrf.mxu0
    %v7476 = vadd.f32 %v6427, %v7475
    %v7477 = vpop.f32.mrf.mxu0
    %v7478 = vpop.f32.mrf.mxu0
    %v7479 = vadd.f32 %v6430, %v7478
    %v7480 = vpop.f32.mrf.mxu0
    %7481 = vmatprep.mubr.bf16.mxu0 0
    %7482 = vmatmul.mubr.bf16.gmra.mxu0 %v3496
    %v7483 = vpop.f32.mrf.mxu0
    %v7484 = vadd.f32 %v6435, %v7483
    %v7485 = vpop.f32.mrf.mxu0
    %v7486 = vpop.f32.mrf.mxu0
    %v7487 = vadd.f32 %v6438, %v7486
    %v7488 = vpop.f32.mrf.mxu0
    %7489 = vmatprep.mubr.bf16.mxu0 0
    %7490 = vmatmul.mubr.bf16.gmra.mxu0 %v3501
    %v7491 = vpop.f32.mrf.mxu0
    %v7492 = vadd.f32 %v6443, %v7491
    %v7493 = vpop.f32.mrf.mxu0
    %v7494 = vpop.f32.mrf.mxu0
    %v7495 = vadd.f32 %v6446, %v7494
    %v7496 = vpop.f32.mrf.mxu0
    %7497 = vmatprep.mubr.bf16.mxu0 0
    %7498 = vmatmul.mubr.bf16.gmra.mxu0 %v3506
    %v7499 = vpop.f32.mrf.mxu0
    %v7500 = vadd.f32 %v6451, %v7499
    %v7501 = vpop.f32.mrf.mxu0
    %v7502 = vpop.f32.mrf.mxu0
    %v7503 = vadd.f32 %v6454, %v7502
    %v7504 = vpop.f32.mrf.mxu0
    %7505 = vmatprep.mubr.bf16.mxu0 0
    %7506 = vmatmul.mubr.bf16.gmra.mxu0 %v3511
    %v7507 = vpop.f32.mrf.mxu0
    %v7508 = vadd.f32 %v6459, %v7507
    %v7509 = vpop.f32.mrf.mxu0
    %v7510 = vpop.f32.mrf.mxu0
    %v7511 = vadd.f32 %v6462, %v7510
    %v7512 = vpop.f32.mrf.mxu0
    %7513 = vmatprep.mubr.bf16.mxu0 0
    %7514 = vmatmul.mubr.bf16.gmra.mxu0 %v3516
    %v7515 = vpop.f32.mrf.mxu0
    %v7516 = vadd.f32 %v6467, %v7515
    %v7517 = vpop.f32.mrf.mxu0
    %v7518 = vpop.f32.mrf.mxu0
    %v7519 = vadd.f32 %v6470, %v7518
    %v7520 = vpop.f32.mrf.mxu0
    %7521 = vmatprep.mubr.bf16.mxu0 0
    %7522 = vmatmul.mubr.bf16.gmra.mxu0 %v3521
    %v7523 = vpop.f32.mrf.mxu0
    %v7524 = vadd.f32 %v6475, %v7523
    %v7525 = vpop.f32.mrf.mxu0
    %v7526 = vpop.f32.mrf.mxu0
    %v7527 = vadd.f32 %v6478, %v7526
    %v7528 = vpop.f32.mrf.mxu0
    %7529 = vmatprep.mubr.bf16.mxu0 0
    %7530 = vmatmul.mubr.bf16.gmra.mxu0 %v3526
    %v7531 = vpop.f32.mrf.mxu0
    %v7532 = vadd.f32 %v6483, %v7531
    %v7533 = vpop.f32.mrf.mxu0
    %v7534 = vpop.f32.mrf.mxu0
    %v7535 = vadd.f32 %v6486, %v7534
    %v7536 = vpop.f32.mrf.mxu0
    %7537 = vmatprep.mubr.bf16.mxu0 0
    %7538 = vmatmul.mubr.bf16.gmra.mxu0 %v3531
    %v7539 = vpop.f32.mrf.mxu0
    %v7540 = vadd.f32 %v6491, %v7539
    %v7541 = vpop.f32.mrf.mxu0
    %v7542 = vpop.f32.mrf.mxu0
    %v7543 = vadd.f32 %v6494, %v7542
    %v7544 = vpop.f32.mrf.mxu0
    %7545 = vmatprep.mubr.bf16.mxu0 0
    %7546 = vmatmul.mubr.bf16.gmra.mxu0 %v3536
    %v7547 = vpop.f32.mrf.mxu0
    %v7548 = vadd.f32 %v6499, %v7547
    %v7549 = vpop.f32.mrf.mxu0
    %v7550 = vpop.f32.mrf.mxu0
    %v7551 = vadd.f32 %v6502, %v7550
    %v7552 = vpop.f32.mrf.mxu0
    %7553 = vmatprep.mubr.bf16.mxu0 0
    %7554 = vmatmul.mubr.bf16.gmra.mxu0 %v3541
    %v7555 = vpop.f32.mrf.mxu0
    %v7556 = vadd.f32 %v6507, %v7555
    %v7557 = vpop.f32.mrf.mxu0
    %v7558 = vpop.f32.mrf.mxu0
    %v7559 = vadd.f32 %v6510, %v7558
    %v7560 = vpop.f32.mrf.mxu0
    %7561 = vmatprep.mubr.bf16.mxu0 0
    %7562 = vmatmul.mubr.bf16.gmra.mxu0 %v3546
    %v7563 = vpop.f32.mrf.mxu0
    %v7564 = vadd.f32 %v6515, %v7563
    %v7565 = vpop.f32.mrf.mxu0
    %v7566 = vpop.f32.mrf.mxu0
    %v7567 = vadd.f32 %v6518, %v7566
    %v7568 = vpop.f32.mrf.mxu0
    %7569 = vmatprep.mubr.bf16.mxu0 0
    %7570 = vmatmul.mubr.bf16.gmra.mxu0 %v3551
    %v7571 = vpop.f32.mrf.mxu0
    %v7572 = vpop.f32.mrf.mxu0
    %v7573 = vpop.f32.mrf.mxu0
    %v7574 = vpop.f32.mrf.mxu0
    %7575 = vmatprep.mubr.bf16.mxu0 0
    %7576 = vmatmul.mubr.bf16.gmra.mxu0 %v3556
    %v7577 = vpop.f32.mrf.mxu0
    %v7578 = vpop.f32.mrf.mxu0
    %v7579 = vpop.f32.mrf.mxu0
    %v7580 = vpop.f32.mrf.mxu0
    %7581 = vmatprep.mubr.bf16.mxu0 0
    %7582 = vmatmul.mubr.bf16.gmra.mxu0 %v3561
    %v7583 = vpop.f32.mrf.mxu0
    %v7584 = vpop.f32.mrf.mxu0
    %v7585 = vpop.f32.mrf.mxu0
    %v7586 = vpop.f32.mrf.mxu0
    %7587 = vmatprep.mubr.bf16.mxu0 0
    %7588 = vmatmul.mubr.bf16.gmra.mxu0 %v3566
    %v7589 = vpop.f32.mrf.mxu0
    %v7590 = vpop.f32.mrf.mxu0
    %v7591 = vpop.f32.mrf.mxu0
    %v7592 = vpop.f32.mrf.mxu0
    %7593 = vdwg.mxu0
    %v7594 = vmax.f32 %v6580, %v6596
    %v7595 = vmax.f32 %v6588, %v6604
    %v7596 = vmax.f32 %v7594, %v6612
    %v7597 = vmax.f32 %v7595, %v6620
    %v7598 = vmax.f32 %v7596, %v6628
    %v7599 = vmax.f32 %v7597, %v6636
    %v7600 = vmax.f32 %v7598, %v6644
    %v7601 = vmax.f32 %v7599, %v6652
    %v7602 = vmax.f32 %v7600, %v6660
    %v7603 = vmax.f32 %v7601, %v6668
    %v7604 = vmax.f32 %v7602, %v6676
    %v7605 = vmax.f32 %v7603, %v6684
    %v7606 = vmax.f32 %v7604, %v6692
    %v7607 = vmax.f32 %v7605, %v6700
    %v7608 = vmax.f32 %v7606, %v6708
    %v7609 = vmax.f32 %v7607, %v6716
    %v7610 = vmax.f32 %v7608, %v6724
    %v7611 = vmax.f32 %v7609, %v6732
    %v7612 = vmax.f32 %v7610, %v7611
    %v7613 = vmax.f32 %v6583, %v6599
    %v7614 = vmax.f32 %v6591, %v6607
    %v7615 = vmax.f32 %v7613, %v6615
    %v7616 = vmax.f32 %v7614, %v6623
    %v7617 = vmax.f32 %v7615, %v6631
    %v7618 = vmax.f32 %v7616, %v6639
    %v7619 = vmax.f32 %v7617, %v6647
    %v7620 = vmax.f32 %v7618, %v6655
    %v7621 = vmax.f32 %v7619, %v6663
    %v7622 = vmax.f32 %v7620, %v6671
    %v7623 = vmax.f32 %v7621, %v6679
    %v7624 = vmax.f32 %v7622, %v6687
    %v7625 = vmax.f32 %v7623, %v6695
    %v7626 = vmax.f32 %v7624, %v6703
    %v7627 = vmax.f32 %v7625, %v6711
    %v7628 = vmax.f32 %v7626, %v6719
    %v7629 = vmax.f32 %v7627, %v6727
    %v7630 = vmax.f32 %v7628, %v6735
    %v7631 = vmax.f32 %v7629, %v7630
    %v7632 = vmax.f32 %v7612, 0.0
    %v7633 = vmax.f32 %v7631, 0.0
    %s7634 = sld [smem:[#allocation2 + $0x1]]
    %v7635 = vstv %s7634
    %v7636 = vmul.f32 %v7635, %v7632
    %v7637 = vmul.f32 %v7635, %v7633
    %v7638 = vadd.f32 %v7636, 0.0
    %v7639 = vadd.f32 %v7637, 0.0
    %v7640 = vmax.f32 %v6740, %v6756
    %v7641 = vmax.f32 %v6748, %v6764
    %v7642 = vmax.f32 %v7640, %v6772
    %v7643 = vmax.f32 %v7641, %v6780
    %v7644 = vmax.f32 %v7642, %v6788
    %v7645 = vmax.f32 %v7643, %v6796
    %v7646 = vmax.f32 %v7644, %v6804
    %v7647 = vmax.f32 %v7645, %v6812
    %v7648 = vmax.f32 %v7646, %v6820
    %v7649 = vmax.f32 %v7647, %v6828
    %v7650 = vmax.f32 %v7648, %v6836
    %v7651 = vmax.f32 %v7649, %v6844
    %v7652 = vmax.f32 %v7650, %v6852
    %v7653 = vmax.f32 %v7651, %v6860
    %v7654 = vmax.f32 %v7652, %v6868
    %v7655 = vmax.f32 %v7653, %v6876
    %v7656 = vmax.f32 %v7654, %v6884
    %v7657 = vmax.f32 %v7655, %v6892
    %v7658 = vmax.f32 %v7656, %v6900
    %v7659 = vmax.f32 %v7658, %v7657
    %v7660 = vmax.f32 %v6743, %v6759
    %v7661 = vmax.f32 %v6751, %v6767
    %v7662 = vmax.f32 %v7660, %v6775
    %v7663 = vmax.f32 %v7661, %v6783
    %v7664 = vmax.f32 %v7662, %v6791
    %v7665 = vmax.f32 %v7663, %v6799
    %v7666 = vmax.f32 %v7664, %v6807
    %v7667 = vmax.f32 %v7665, %v6815
    %v7668 = vmax.f32 %v7666, %v6823
    %v7669 = vmax.f32 %v7667, %v6831
    %v7670 = vmax.f32 %v7668, %v6839
    %v7671 = vmax.f32 %v7669, %v6847
    %v7672 = vmax.f32 %v7670, %v6855
    %v7673 = vmax.f32 %v7671, %v6863
    %v7674 = vmax.f32 %v7672, %v6871
    %v7675 = vmax.f32 %v7673, %v6879
    %v7676 = vmax.f32 %v7674, %v6887
    %v7677 = vmax.f32 %v7675, %v6895
    %v7678 = vmax.f32 %v7676, %v6903
    %v7679 = vmax.f32 %v7678, %v7677
    %v7680 = vmax.f32 %v7659, 0.0
    %v7681 = vmax.f32 %v7679, 0.0
    %s7682 = sld [smem:[#allocation2 + $0x2]]
    %v7683 = vstv %s7682
    %v7684 = vmul.f32 %v7683, %v7680
    %v7685 = vmul.f32 %v7683, %v7681
    %v7686 = vadd.f32 %v7638, %v7684
    %v7687 = vadd.f32 %v7639, %v7685
    %v7688 = vmax.f32 %v6908, %v6924
    %v7689 = vmax.f32 %v6916, %v6932
    %v7690 = vmax.f32 %v7688, %v6940
    %v7691 = vmax.f32 %v7689, %v6948
    %v7692 = vmax.f32 %v7690, %v6956
    %v7693 = vmax.f32 %v7691, %v6964
    %v7694 = vmax.f32 %v7692, %v6972
    %v7695 = vmax.f32 %v7693, %v6980
    %v7696 = vmax.f32 %v7694, %v6988
    %v7697 = vmax.f32 %v7695, %v6996
    %v7698 = vmax.f32 %v7696, %v7004
    %v7699 = vmax.f32 %v7697, %v7012
    %v7700 = vmax.f32 %v7698, %v7020
    %v7701 = vmax.f32 %v7699, %v7028
    %v7702 = vmax.f32 %v7700, %v7036
    %v7703 = vmax.f32 %v7701, %v7044
    %v7704 = vmax.f32 %v7702, %v7052
    %v7705 = vmax.f32 %v7703, %v7060
    %v7706 = vmax.f32 %v7704, %v7068
    %v7707 = vmax.f32 %v7706, %v7705
    %v7708 = vmax.f32 %v6911, %v6927
    %v7709 = vmax.f32 %v6919, %v6935
    %v7710 = vmax.f32 %v7708, %v6943
    %v7711 = vmax.f32 %v7709, %v6951
    %v7712 = vmax.f32 %v7710, %v6959
    %v7713 = vmax.f32 %v7711, %v6967
    %v7714 = vmax.f32 %v7712, %v6975
    %v7715 = vmax.f32 %v7713, %v6983
    %v7716 = vmax.f32 %v7714, %v6991
    %v7717 = vmax.f32 %v7715, %v6999
    %v7718 = vmax.f32 %v7716, %v7007
    %v7719 = vmax.f32 %v7717, %v7015
    %v7720 = vmax.f32 %v7718, %v7023
    %v7721 = vmax.f32 %v7719, %v7031
    %v7722 = vmax.f32 %v7720, %v7039
    %v7723 = vmax.f32 %v7721, %v7047
    %v7724 = vmax.f32 %v7722, %v7055
    %v7725 = vmax.f32 %v7723, %v7063
    %v7726 = vmax.f32 %v7724, %v7071
    %v7727 = vmax.f32 %v7726, %v7725
    %v7728 = vmax.f32 %v7707, 0.0
    %v7729 = vmax.f32 %v7727, 0.0
    %s7730 = sld [smem:[#allocation2 + $0x3]]
    %v7731 = vstv %s7730
    %v7732 = vmul.f32 %v7731, %v7728
    %v7733 = vmul.f32 %v7731, %v7729
    %v7734 = vadd.f32 %v7686, %v7732
    %v7735 = vadd.f32 %v7687, %v7733
    %v7736 = vmax.f32 %v7076, %v7092
    %v7737 = vmax.f32 %v7084, %v7100
    %v7738 = vmax.f32 %v7736, %v7108
    %v7739 = vmax.f32 %v7737, %v7116
    %v7740 = vmax.f32 %v7738, %v7124
    %v7741 = vmax.f32 %v7739, %v7132
    %v7742 = vmax.f32 %v7740, %v7140
    %v7743 = vmax.f32 %v7741, %v7148
    %v7744 = vmax.f32 %v7742, %v7156
    %v7745 = vmax.f32 %v7743, %v7164
    %v7746 = vmax.f32 %v7744, %v7172
    %v7747 = vmax.f32 %v7745, %v7180
    %v7748 = vmax.f32 %v7746, %v7188
    %v7749 = vmax.f32 %v7747, %v7196
    %v7750 = vmax.f32 %v7748, %v7204
    %v7751 = vmax.f32 %v7749, %v7212
    %v7752 = vmax.f32 %v7750, %v7220
    %v7753 = vmax.f32 %v7751, %v7228
    %v7754 = vmax.f32 %v7752, %v7236
    %v7755 = vmax.f32 %v7754, %v7753
    %v7756 = vmax.f32 %v7079, %v7095
    %v7757 = vmax.f32 %v7087, %v7103
    %v7758 = vmax.f32 %v7756, %v7111
    %v7759 = vmax.f32 %v7757, %v7119
    %v7760 = vmax.f32 %v7758, %v7127
    %v7761 = vmax.f32 %v7759, %v7135
    %v7762 = vmax.f32 %v7760, %v7143
    %v7763 = vmax.f32 %v7761, %v7151
    %v7764 = vmax.f32 %v7762, %v7159
    %v7765 = vmax.f32 %v7763, %v7167
    %v7766 = vmax.f32 %v7764, %v7175
    %v7767 = vmax.f32 %v7765, %v7183
    %v7768 = vmax.f32 %v7766, %v7191
    %v7769 = vmax.f32 %v7767, %v7199
    %v7770 = vmax.f32 %v7768, %v7207
    %v7771 = vmax.f32 %v7769, %v7215
    %v7772 = vmax.f32 %v7770, %v7223
    %v7773 = vmax.f32 %v7771, %v7231
    %v7774 = vmax.f32 %v7772, %v7239
    %v7775 = vmax.f32 %v7774, %v7773
    %v7776 = vmax.f32 %v7755, 0.0
    %v7777 = vmax.f32 %v7775, 0.0
    %s7778 = sld [smem:[#allocation2 + $0x4]]
    %v7779 = vstv %s7778
    %v7780 = vmul.f32 %v7779, %v7776
    %v7781 = vmul.f32 %v7779, %v7777
    %v7782 = vadd.f32 %v7734, %v7780
    %v7783 = vadd.f32 %v7735, %v7781
    %v7784 = vmax.f32 %v7244, %v7260
    %v7785 = vmax.f32 %v7252, %v7268
    %v7786 = vmax.f32 %v7784, %v7276
    %v7787 = vmax.f32 %v7785, %v7284
    %v7788 = vmax.f32 %v7786, %v7292
    %v7789 = vmax.f32 %v7787, %v7300
    %v7790 = vmax.f32 %v7788, %v7308
    %v7791 = vmax.f32 %v7789, %v7316
    %v7792 = vmax.f32 %v7790, %v7324
    %v7793 = vmax.f32 %v7791, %v7332
    %v7794 = vmax.f32 %v7792, %v7340
    %v7795 = vmax.f32 %v7793, %v7348
    %v7796 = vmax.f32 %v7794, %v7356
    %v7797 = vmax.f32 %v7795, %v7364
    %v7798 = vmax.f32 %v7796, %v7372
    %v7799 = vmax.f32 %v7797, %v7380
    %v7800 = vmax.f32 %v7798, %v7388
    %v7801 = vmax.f32 %v7799, %v7396
    %v7802 = vmax.f32 %v7800, %v7404
    %v7803 = vmax.f32 %v7802, %v7801
    %v7804 = vmax.f32 %v7247, %v7263
    %v7805 = vmax.f32 %v7255, %v7271
    %v7806 = vmax.f32 %v7804, %v7279
    %v7807 = vmax.f32 %v7805, %v7287
    %v7808 = vmax.f32 %v7806, %v7295
    %v7809 = vmax.f32 %v7807, %v7303
    %v7810 = vmax.f32 %v7808, %v7311
    %v7811 = vmax.f32 %v7809, %v7319
    %v7812 = vmax.f32 %v7810, %v7327
    %v7813 = vmax.f32 %v7811, %v7335
    %v7814 = vmax.f32 %v7812, %v7343
    %v7815 = vmax.f32 %v7813, %v7351
    %v7816 = vmax.f32 %v7814, %v7359
    %v7817 = vmax.f32 %v7815, %v7367
    %v7818 = vmax.f32 %v7816, %v7375
    %v7819 = vmax.f32 %v7817, %v7383
    %v7820 = vmax.f32 %v7818, %v7391
    %v7821 = vmax.f32 %v7819, %v7399
    %v7822 = vmax.f32 %v7820, %v7407
    %v7823 = vmax.f32 %v7822, %v7821
    %v7824 = vmax.f32 %v7803, 0.0
    %v7825 = vmax.f32 %v7823, 0.0
    %s7826 = sld [smem:[#allocation2 + $0x5]]
    %v7827 = vstv %s7826
    %v7828 = vmul.f32 %v7827, %v7824
    %v7829 = vmul.f32 %v7827, %v7825
    %v7830 = vadd.f32 %v7782, %v7828
    %v7831 = vadd.f32 %v7783, %v7829
    %v7832 = vmax.f32 %v7412, %v7428
    %v7833 = vmax.f32 %v7420, %v7436
    %v7834 = vmax.f32 %v7832, %v7444
    %v7835 = vmax.f32 %v7833, %v7452
    %v7836 = vmax.f32 %v7834, %v7460
    %v7837 = vmax.f32 %v7835, %v7468
    %v7838 = vmax.f32 %v7836, %v7476
    %v7839 = vmax.f32 %v7837, %v7484
    %v7840 = vmax.f32 %v7838, %v7492
    %v7841 = vmax.f32 %v7839, %v7500
    %v7842 = vmax.f32 %v7840, %v7508
    %v7843 = vmax.f32 %v7841, %v7516
    %v7844 = vmax.f32 %v7842, %v7524
    %v7845 = vmax.f32 %v7843, %v7532
    %v7846 = vmax.f32 %v7844, %v7540
    %v7847 = vmax.f32 %v7845, %v7548
    %v7848 = vmax.f32 %v7846, %v7556
    %v7849 = vmax.f32 %v7847, %v7564
    %v7850 = vmax.f32 %v7848, %v7849
    %v7851 = vmax.f32 %v7415, %v7431
    %v7852 = vmax.f32 %v7423, %v7439
    %v7853 = vmax.f32 %v7851, %v7447
    %v7854 = vmax.f32 %v7852, %v7455
    %v7855 = vmax.f32 %v7853, %v7463
    %v7856 = vmax.f32 %v7854, %v7471
    %v7857 = vmax.f32 %v7855, %v7479
    %v7858 = vmax.f32 %v7856, %v7487
    %v7859 = vmax.f32 %v7857, %v7495
    %v7860 = vmax.f32 %v7858, %v7503
    %v7861 = vmax.f32 %v7859, %v7511
    %v7862 = vmax.f32 %v7860, %v7519
    %v7863 = vmax.f32 %v7861, %v7527
    %v7864 = vmax.f32 %v7862, %v7535
    %v7865 = vmax.f32 %v7863, %v7543
    %v7866 = vmax.f32 %v7864, %v7551
    %v7867 = vmax.f32 %v7865, %v7559
    %v7868 = vmax.f32 %v7866, %v7567
    %v7869 = vmax.f32 %v7867, %v7868
    %v7870 = vmax.f32 %v7850, 0.0
    %v7871 = vmax.f32 %v7869, 0.0
    %s7872 = sld [smem:[#allocation2 + $0x6]]
    %v7873 = vstv %s7872
    %v7874 = vmul.f32 %v7873, %v7870
    %v7875 = vmul.f32 %v7873, %v7871
    %v7876 = vadd.f32 %v7830, %v7874
    %v7877 = vadd.f32 %v7831, %v7875
    %v7878 = vmax.f32 %v7876, 0.0
    %v7879 = vmax.f32 %v7877, 0.0
    %v7880 = vld [vmem:[%s2] sm:$0xff]
    %v7881 = vld [vmem:[%s2 + $0x8] sm:$0xff]
    %v7882 = vmul.f32 %v7878, %v7880
    %v7883 = vmul.f32 %v7879, %v7881
    %v7884 = vadd.f32 %v7882, %v7883
    %v7885 = vrot.slane %v7884, 4
    %v7886 = vadd.f32 %v7884, %v7885
    %v7887 = vrot.slane %v7886, 2
    %v7888 = vadd.f32 %v7886, %v7887
    %v7889 = vrot.slane %v7888, 1
    %v7890 = vadd.f32 %v7888, %v7889
    %s7891 = sld [smem:[#allocation2]]
    %v7892 = vstv %s7891
    %v7893 = vadd.f32 %v7890, %v7892
    %v7894 = vxor.u32 %v7893, 2147483648
    %v7895 = vmul.f32 %v7894, 1.442695
    %v7896 = vpow.pop %v7895
    %v7897 = vadd.f32 %v7896, 1.0
    %v7898 = vrcp.pop %v7897
    %v7899 = vmul.f32 1.0, %v7898
    %7900 = vst [vmem:[%s4] sm:$0x1] %v7899
    // Predicated region
    $region22: #{cdnn_forward.1} parent=1 // pred_check
      _
    $region23: #{cdnn_forward.1} parent=1 // pred_check_branch
      %7902 = sbr.rel (0) target = $region25
    $region24: #{cdnn_forward.1} parent=1 // pred_region
      _
    $region25: #{cdnn_forward.1} parent=1 // pred_fallthru
      _
    // Predicated region
    $region26: #{cdnn_forward.1} parent=1 // pred_check
      _
    $region27: #{cdnn_forward.1} parent=1 // pred_check_branch
      %7904 = sbr.rel (0) target = $region29
    $region28: #{cdnn_forward.1} parent=1 // pred_region
      _
    $region29: #{cdnn_forward.1} parent=1 // pred_fallthru
      _
    %7905 = vsyncpa [#allocation3], 1

</llo_original>
